<compile_context>
chip_gen: v6e
topology: v6e:2x2x1
jax: 0.10.0
libtpu: 0.0.40
codegen_flags: <defaults>
</compile_context>

<pallas_src>
import functools

import jax
import jax.numpy as jnp
from jax import lax
from jax.experimental import pallas as pl
from jax.experimental.pallas import tpu as pltpu

# ---------------- small LlamaConfig-like settings ----------------
HIDDEN = 256
N_HEADS = 4
N_KV_HEADS = 2
HEAD_DIM = HIDDEN // N_HEADS          # 64
INTERMEDIATE = 512
SEQ = 128                              # tokens per sequence (per grid block)
RMS_EPS = 1e-5
ROPE_THETA = 10000.0
SCALING = HEAD_DIM ** -0.5
Q_SIZE = N_HEADS * HEAD_DIM            # 256
KV_SIZE = N_KV_HEADS * HEAD_DIM        # 128
NEG_INF = -1e30


# ---------------- fused decoder-layer kernel ----------------
def _decoder_layer_kernel(has_residual, *refs):
    if has_residual:
        (x_ref, res_ref, cosq_ref, sinq_ref, cosk_ref, sink_ref,
         ln1_ref, ln2_ref, wqkvr_ref, wo_ref, wgu_ref, wdown_ref,
         out_ref, res_out_ref) = refs
    else:
        (x_ref, cosq_ref, sinq_ref, cosk_ref, sink_ref,
         ln1_ref, ln2_ref, wqkvr_ref, wo_ref, wgu_ref, wdown_ref,
         out_ref, res_out_ref) = refs

    x = x_ref[...]                                        # (T, H) f32
    # vLLM fused-residual RMSNorm: s = x (+ residual); residual = s; h = rms(s)
    res1 = x + res_ref[...] if has_residual else x
    var1 = jnp.mean(res1 * res1, axis=-1, keepdims=True)
    h = res1 * lax.rsqrt(var1 + RMS_EPS) * ln1_ref[...]
    hb = h.astype(jnp.bfloat16)

    # One merged MXU matmul: [Wq | Wk | Wv | Wq_halfswap | Wk_halfswap]  (H, 896)
    proj = jnp.dot(hb, wqkvr_ref[...], preferred_element_type=jnp.float32)
    o0 = Q_SIZE
    o1 = o0 + KV_SIZE
    o2 = o1 + KV_SIZE
    o3 = o2 + Q_SIZE
    qf = proj[:, :o0]            # (T, 256)
    kf = proj[:, o0:o1]          # (T, 128)
    vf = proj[:, o1:o2]          # (T, 128)
    q_sw = proj[:, o2:o3]        # per-head half-swapped q projection
    k_sw = proj[:, o3:]          # per-head half-swapped k projection

    # Full-width NeoX RoPE (no XLU rolls, no sub-128 slices):
    #   rot(x) = x * [cos,cos] + swap(x) * [-sin,sin]  per head (tables pre-tiled).
    q = qf * cosq_ref[...] + q_sw * sinq_ref[...]         # (T, Q_SIZE)
    k = kf * cosk_ref[...] + k_sw * sink_ref[...]         # (T, KV_SIZE)

    t = x.shape[0]
    row = lax.broadcasted_iota(jnp.int32, (t, t), 0)
    col = lax.broadcasted_iota(jnp.int32, (t, t), 1)
    causal = col <= row
    group = N_HEADS // N_KV_HEADS

    # Causal attention per head; o_proj accumulated per head (no concat, no
    # lane-misaligned f32 materialization of the concatenated attention output).
    o = jnp.zeros((t, HIDDEN), jnp.float32)
    for hd in range(N_HEADS):
        kv = hd // group
        qh = q[:, hd * HEAD_DIM:(hd + 1) * HEAD_DIM]      # (T, D)
        kh = k[:, kv * HEAD_DIM:(kv + 1) * HEAD_DIM]
        vh = vf[:, kv * HEAD_DIM:(kv + 1) * HEAD_DIM]
        s = lax.dot_general(qh, kh, (((1,), (1,)), ((), ())),
                            preferred_element_type=jnp.float32) * SCALING
        s = jnp.where(causal, s, NEG_INF)
        m = jnp.max(s, axis=-1, keepdims=True)
        p = jnp.exp(s - m)
        l = jnp.sum(p, axis=-1, keepdims=True)
        p = p * pl.reciprocal(l, approx=True)             # EUP reciprocal
        attn_h = jnp.dot(p, vh, preferred_element_type=jnp.float32)
        o = o + jnp.dot(attn_h.astype(jnp.bfloat16),
                        wo_ref[hd * HEAD_DIM:(hd + 1) * HEAD_DIM, :],
                        preferred_element_type=jnp.float32)

    # post-attention fused add + RMSNorm
    res2 = o + res1
    res_out_ref[...] = res2
    var2 = jnp.mean(res2 * res2, axis=-1, keepdims=True)
    h2 = res2 * lax.rsqrt(var2 + RMS_EPS) * ln2_ref[...]
    h2b = h2.astype(jnp.bfloat16)

    # MLP: one merged gate|up matmul, SiluAndMul in f32, then down_proj.
    gu = jnp.dot(h2b, wgu_ref[...], preferred_element_type=jnp.float32)
    gate = gu[:, :INTERMEDIATE]
    up = gu[:, INTERMEDIATE:]
    act = gate * jax.nn.sigmoid(gate) * up
    out_ref[...] = jnp.dot(act.astype(jnp.bfloat16), wdown_ref[...],
                           preferred_element_type=jnp.float32)


# ---------------- wrappers / one-time prep ----------------
def build_rope_tables(positions):
    """RoPE tables pre-tiled to projection width; built once, shared by all layers."""
    inv_freq = 1.0 / (ROPE_THETA ** (
        jnp.arange(0, HEAD_DIM, 2, dtype=jnp.float32) / HEAD_DIM))
    freqs = positions.astype(jnp.float32)[:, None] * inv_freq[None, :]   # (T, D/2)
    cos = jnp.cos(freqs)
    sin = jnp.sin(freqs)
    cos_h = jnp.concatenate([cos, cos], axis=-1)          # (T, D)
    sin_h = jnp.concatenate([-sin, sin], axis=-1)         # (T, D)
    return (jnp.tile(cos_h, (1, N_HEADS)), jnp.tile(sin_h, (1, N_HEADS)),
            jnp.tile(cos_h, (1, N_KV_HEADS)), jnp.tile(sin_h, (1, N_KV_HEADS)))


def _swap_head_halves(w, n_heads):
    """Column-permute weights so (x @ w_sw) == per-head half-swap of (x @ w)."""
    h_in = w.shape[0]
    w4 = w.reshape(h_in, n_heads, 2, HEAD_DIM // 2)
    return w4[:, :, ::-1, :].reshape(h_in, n_heads * HEAD_DIM)


def prepare_params(params):
    """One-time host prep: transpose to [in,out], merge Q/K/V (+ half-swapped
    RoPE copies) into one weight slab, merge gate|up, cast to bf16."""
    qkv_t = params["qkv_w"].T                             # (H, q+2kv) f32
    wq = qkv_t[:, :Q_SIZE]
    wk = qkv_t[:, Q_SIZE:Q_SIZE + KV_SIZE]
    wv = qkv_t[:, Q_SIZE + KV_SIZE:]
    wqkvr = jnp.concatenate(
        [wq, wk, wv,
         _swap_head_halves(wq, N_HEADS), _swap_head_halves(wk, N_KV_HEADS)],
        axis=1).astype(jnp.bfloat16)                      # (H, 896)
    return {
        "ln1": params["input_ln_w"],
        "ln2": params["post_ln_w"],
        "wqkvr": wqkvr,
        "wo": params["o_w"].T.astype(jnp.bfloat16),       # (Q_SIZE, H)
        "wgu": params["gate_up_w"].T.astype(jnp.bfloat16),  # (H, 2I)
        "wdown": params["down_w"].T.astype(jnp.bfloat16),   # (I, H)
    }


def llama_decoder_layer(hidden_states, residual, rope_tables, p):
    """Fused decoder layer. hidden_states/residual: (B, T, H) f32.
    Grid over the batch axis ("parallel" -> shards across both TCs on v7x);
    weights/tables use constant index_maps so they stay VMEM-resident."""
    b, t, hdim = hidden_states.shape
    has_residual = residual is not None
    cos_q, sin_q, cos_k, sin_k = rope_tables

    seq_spec = pl.BlockSpec((None, t, hdim), lambda i: (i, 0, 0))

    def const_spec(arr):
        return pl.BlockSpec(arr.shape, lambda i, _nd=arr.ndim: (0,) * _nd)

    args = [hidden_states]
    in_specs = [seq_spec]
    if has_residual:
        args.append(residual)
        in_specs.append(seq_spec)
    shared = [cos_q, sin_q, cos_k, sin_k, p["ln1"], p["ln2"],
              p["wqkvr"], p["wo"], p["wgu"], p["wdown"]]
    args += shared
    in_specs += [const_spec(a) for a in shared]

    out_shapes = (jax.ShapeDtypeStruct((b, t, hdim), jnp.float32),
                  jax.ShapeDtypeStruct((b, t, hdim), jnp.float32))
    return pl.pallas_call(
        functools.partial(_decoder_layer_kernel, has_residual),
        out_shape=out_shapes,
        grid=(b,),
        in_specs=in_specs,
        out_specs=(seq_spec, seq_spec),
        compiler_params=pltpu.CompilerParams(
            dimension_semantics=("parallel",)),
    )(*args)


# ---------------- deterministic params ----------------
def init_params(key):
    """Torch-convention weights (merged qkv / gate_up, [out, in])."""
    ks = jax.random.split(key, 6)
    s = 0.05

    def bf16_exact(x):
        # exactly representable in bf16 -> f32 reference and bf16 kernel weights
        # are numerically identical values
        return x.astype(jnp.bfloat16).astype(jnp.float32)

    return {
        "input_ln_w": (1.0 + 0.1 * jax.random.normal(ks[0], (1, HIDDEN))).astype(jnp.float32),
        "post_ln_w": (1.0 + 0.1 * jax.random.normal(ks[1], (1, HIDDEN))).astype(jnp.float32),
        "qkv_w": bf16_exact(s * jax.random.normal(ks[2], (Q_SIZE + 2 * KV_SIZE, HIDDEN))),
        "o_w": bf16_exact(s * jax.random.normal(ks[3], (HIDDEN, Q_SIZE))),
        "gate_up_w": bf16_exact(s * jax.random.normal(ks[4], (2 * INTERMEDIATE, HIDDEN))),
        "down_w": bf16_exact(s * jax.random.normal(ks[5], (HIDDEN, INTERMEDIATE))),
    }


# ---------------- pure-JAX f32 reference (single sequence) ----------------
def reference_layer(positions, hidden_states, residual, params):
    def rms(x, w):
        var = jnp.mean(x * x, axis=-1, keepdims=True)
        return x * lax.rsqrt(var + RMS_EPS) * w

    inv_freq = 1.0 / (ROPE_THETA ** (
        jnp.arange(0, HEAD_DIM, 2, dtype=jnp.float32) / HEAD_DIM))
    freqs = positions.astype(jnp.float32)[:, None] * inv_freq[None, :]
    cos, sin = jnp.cos(freqs), jnp.sin(freqs)

    def rope(x):  # x: (T, nh, D), neox style
        half = HEAD_DIM // 2
        x1, x2 = x[..., :half], x[..., half:]
        c, sn = cos[:, None, :], sin[:, None, :]
        return jnp.concatenate([x1 * c - x2 * sn, x2 * c + x1 * sn], axis=-1)

    if residual is None:
        residual = hidden_states
        h = rms(hidden_states, params["input_ln_w"])
    else:
        residual = hidden_states + residual
        h = rms(residual, params["input_ln_w"])

    qkv = h @ params["qkv_w"].T
    t = hidden_states.shape[0]
    q = rope(qkv[:, :Q_SIZE].reshape(t, N_HEADS, HEAD_DIM))
    k = rope(qkv[:, Q_SIZE:Q_SIZE + KV_SIZE].reshape(t, N_KV_HEADS, HEAD_DIM))
    v = qkv[:, Q_SIZE + KV_SIZE:].reshape(t, N_KV_HEADS, HEAD_DIM)
    group = N_HEADS // N_KV_HEADS
    k = jnp.repeat(k, group, axis=1)
    v = jnp.repeat(v, group, axis=1)
    s = jnp.einsum("qhd,khd->hqk", q, k) * SCALING
    mask = jnp.tril(jnp.ones((t, t), bool))
    s = jnp.where(mask[None], s, NEG_INF)
    p = jax.nn.softmax(s, axis=-1)
    attn = jnp.einsum("hqk,khd->qhd", p, v).reshape(t, Q_SIZE)
    h = attn @ params["o_w"].T

    residual = h + residual
    h = rms(residual, params["post_ln_w"])
    gu = h @ params["gate_up_w"].T
    gate, up = gu[:, :INTERMEDIATE], gu[:, INTERMEDIATE:]
    out = (gate * jax.nn.sigmoid(gate) * up) @ params["down_w"].T
    return out, residual


if __name__ == "__main__":
    key = jax.random.PRNGKey(0)
    kx, kp = jax.random.split(key)
    params = init_params(kp)
    prepared = prepare_params(params)

    batch = 2
    hidden_states = jax.random.normal(kx, (batch, SEQ, HIDDEN), dtype=jnp.float32)
    positions = jnp.arange(SEQ, dtype=jnp.int32)
    rope_tables = build_rope_tables(positions)

    layer = jax.jit(llama_decoder_layer)
    # Layer 0 (residual=None branch) then layer 1 (fused-residual branch), same weights.
    h1, r1 = layer(hidden_states, None, rope_tables, prepared)
    h2, r2 = layer(h1, r1, rope_tables, prepared)
    h1, r1, h2, r2 = jax.block_until_ready((h1, r1, h2, r2))

    ref_h1, ref_r1 = jax.vmap(
        lambda x: reference_layer(positions, x, None, params))(hidden_states)
    ref_h2, ref_r2 = jax.vmap(
        lambda x, r: reference_layer(positions, x, r, params))(ref_h1, ref_r1)

    for got, ref, name in ((h1, ref_h1, "h1"), (r1, ref_r1, "r1"),
                           (h2, ref_h2, "h2"), (r2, ref_r2, "r2")):
        assert got.shape == (batch, SEQ, HIDDEN), (name, got.shape)
        err = float(jnp.max(jnp.abs(got - ref)))
        assert jnp.allclose(got, ref, atol=5e-2, rtol=5e-2), (name, err)
    print("KERNEL_OK")
</pallas_src>

<mosaic_0001>
module attributes {stable_mosaic.version = 11 : i64} {
  func.func @_decoder_layer_kernel(%arg0: i32, %arg1: memref<1x128x256xf32, #tpu.memory_space<vmem>>, %arg2: memref<128x256xf32, #tpu.memory_space<vmem>>, %arg3: memref<128x256xf32, #tpu.memory_space<vmem>>, %arg4: memref<128x128xf32, #tpu.memory_space<vmem>>, %arg5: memref<128x128xf32, #tpu.memory_space<vmem>>, %arg6: memref<1x256xf32, #tpu.memory_space<vmem>>, %arg7: memref<1x256xf32, #tpu.memory_space<vmem>>, %arg8: memref<256x896xbf16, #tpu.memory_space<vmem>>, %arg9: memref<256x256xbf16, #tpu.memory_space<vmem>>, %arg10: memref<256x1024xbf16, #tpu.memory_space<vmem>>, %arg11: memref<512x256xbf16, #tpu.memory_space<vmem>>, %arg12: memref<1x128x256xf32, #tpu.memory_space<vmem>>, %arg13: memref<1x128x256xf32, #tpu.memory_space<vmem>>) attributes {dimension_semantics = [#tpu.dimension_semantics<parallel>], iteration_bounds = array<i64: 2>, scalar_prefetch = 0 : i64, scratch_operands = 0 : i64, tpu.core_type = #tpu.core_type<tc>, window_params = [{transform_indices = @transform_0, window_bounds = array<i64: 1, 128, 256>}, {pipeline_mode = #tpu.pipeline_mode<synchronous>, transform_indices = @transform_1, window_bounds = array<i64: 128, 256>}, {pipeline_mode = #tpu.pipeline_mode<synchronous>, transform_indices = @transform_2, window_bounds = array<i64: 128, 256>}, {pipeline_mode = #tpu.pipeline_mode<synchronous>, transform_indices = @transform_3, window_bounds = array<i64: 128, 128>}, {pipeline_mode = #tpu.pipeline_mode<synchronous>, transform_indices = @transform_4, window_bounds = array<i64: 128, 128>}, {pipeline_mode = #tpu.pipeline_mode<synchronous>, transform_indices = @transform_5, window_bounds = array<i64: 1, 256>}, {pipeline_mode = #tpu.pipeline_mode<synchronous>, transform_indices = @transform_6, window_bounds = array<i64: 1, 256>}, {pipeline_mode = #tpu.pipeline_mode<synchronous>, transform_indices = @transform_7, window_bounds = array<i64: 256, 896>}, {pipeline_mode = #tpu.pipeline_mode<synchronous>, transform_indices = @transform_8, window_bounds = array<i64: 256, 256>}, {pipeline_mode = #tpu.pipeline_mode<synchronous>, transform_indices = @transform_9, window_bounds = array<i64: 256, 1024>}, {pipeline_mode = #tpu.pipeline_mode<synchronous>, transform_indices = @transform_10, window_bounds = array<i64: 512, 256>}, {transform_indices = @transform_11, window_bounds = array<i64: 1, 128, 256>}, {transform_indices = @transform_12, window_bounds = array<i64: 1, 128, 256>}]} {
    %c0 = arith.constant 0 : index
    %c0_0 = arith.constant 0 : index
    %c0_1 = arith.constant 0 : index
    %0 = vector.load %arg1[%c0, %c0_0, %c0_1] : memref<1x128x256xf32, #tpu.memory_space<vmem>>, vector<1x128x256xf32>
    %1 = vector.shape_cast %0 : vector<1x128x256xf32> to vector<128x256xf32>
    %2 = arith.mulf %1, %1 : vector<128x256xf32>
    %cst = arith.constant dense<0.000000e+00> : vector<128xf32>
    %3 = vector.multi_reduction <add>, %2, %cst [1] : vector<128x256xf32> to vector<128xf32>
    %4 = vector.shape_cast %3 : vector<128xf32> to vector<128x1xf32>
    %cst_2 = arith.constant 2.560000e+02 : f32
    %5 = vector.broadcast %cst_2 : f32 to vector<128x1xf32>
    %6 = arith.divf %4, %5 : vector<128x1xf32>
    %cst_3 = arith.constant 9.99999974E-6 : f32
    %7 = vector.broadcast %cst_3 : f32 to vector<128x1xf32>
    %8 = arith.addf %6, %7 : vector<128x1xf32>
    %9 = math.rsqrt %8 : vector<128x1xf32>
    %10 = vector.broadcast %9 : vector<128x1xf32> to vector<128x256xf32>
    %11 = arith.mulf %1, %10 : vector<128x256xf32>
    %c0_4 = arith.constant 0 : index
    %c0_5 = arith.constant 0 : index
    %12 = vector.load %arg6[%c0_4, %c0_5] : memref<1x256xf32, #tpu.memory_space<vmem>>, vector<1x256xf32>
    %13 = vector.broadcast %12 : vector<1x256xf32> to vector<128x256xf32>
    %14 = arith.mulf %11, %13 : vector<128x256xf32>
    %15 = arith.truncf %14 : vector<128x256xf32> to vector<128x256xbf16>
    %c0_6 = arith.constant 0 : index
    %c0_7 = arith.constant 0 : index
    %16 = vector.load %arg8[%c0_6, %c0_7] : memref<256x896xbf16, #tpu.memory_space<vmem>>, vector<256x896xbf16>
    %cst_8 = arith.constant dense<0.000000e+00> : vector<128x896xf32>
    %17 = tpu.matmul %15, %16, %cst_8 {dimension_numbers = #tpu.dot_dimension_numbers<[1], [0], [0], [1], [0, 0, 1, 1], [], []>} : vector<128x256xbf16>, vector<256x896xbf16>, vector<128x896xf32> -> vector<128x896xf32>
    %18 = vector.extract_strided_slice %17 {offsets = [0, 0], sizes = [128, 256], strides = [1, 1]} : vector<128x896xf32> to vector<128x256xf32>
    %19 = vector.extract_strided_slice %17 {offsets = [0, 256], sizes = [128, 128], strides = [1, 1]} : vector<128x896xf32> to vector<128x128xf32>
    %20 = vector.extract_strided_slice %17 {offsets = [0, 384], sizes = [128, 128], strides = [1, 1]} : vector<128x896xf32> to vector<128x128xf32>
    %21 = vector.extract_strided_slice %17 {offsets = [0, 512], sizes = [128, 256], strides = [1, 1]} : vector<128x896xf32> to vector<128x256xf32>
    %22 = vector.extract_strided_slice %17 {offsets = [0, 768], sizes = [128, 128], strides = [1, 1]} : vector<128x896xf32> to vector<128x128xf32>
    %c0_9 = arith.constant 0 : index
    %c0_10 = arith.constant 0 : index
    %23 = vector.load %arg2[%c0_9, %c0_10] : memref<128x256xf32, #tpu.memory_space<vmem>>, vector<128x256xf32>
    %24 = arith.mulf %18, %23 : vector<128x256xf32>
    %c0_11 = arith.constant 0 : index
    %c0_12 = arith.constant 0 : index
    %25 = vector.load %arg3[%c0_11, %c0_12] : memref<128x256xf32, #tpu.memory_space<vmem>>, vector<128x256xf32>
    %26 = arith.mulf %21, %25 : vector<128x256xf32>
    %27 = arith.addf %24, %26 : vector<128x256xf32>
    %c0_13 = arith.constant 0 : index
    %c0_14 = arith.constant 0 : index
    %28 = vector.load %arg4[%c0_13, %c0_14] : memref<128x128xf32, #tpu.memory_space<vmem>>, vector<128x128xf32>
    %29 = arith.mulf %19, %28 : vector<128x128xf32>
    %c0_15 = arith.constant 0 : index
    %c0_16 = arith.constant 0 : index
    %30 = vector.load %arg5[%c0_15, %c0_16] : memref<128x128xf32, #tpu.memory_space<vmem>>, vector<128x128xf32>
    %31 = arith.mulf %22, %30 : vector<128x128xf32>
    %32 = arith.addf %29, %31 : vector<128x128xf32>
    %33 = tpu.iota {dimensions = array<i32: 0>} : vector<128x128xi32>
    %34 = tpu.iota {dimensions = array<i32: 1>} : vector<128x128xi32>
    %35 = arith.cmpi sle, %34, %33 : vector<128x128xi32>
    %cst_17 = arith.constant 0.000000e+00 : f32
    %36 = vector.broadcast %cst_17 : f32 to vector<128x256xf32>
    %37 = vector.extract_strided_slice %27 {offsets = [0, 0], sizes = [128, 64], strides = [1, 1]} : vector<128x256xf32> to vector<128x64xf32>
    %38 = vector.extract_strided_slice %32 {offsets = [0, 0], sizes = [128, 64], strides = [1, 1]} : vector<128x128xf32> to vector<128x64xf32>
    %39 = vector.extract_strided_slice %20 {offsets = [0, 0], sizes = [128, 64], strides = [1, 1]} : vector<128x128xf32> to vector<128x64xf32>
    %cst_18 = arith.constant dense<0.000000e+00> : vector<128x128xf32>
    %40 = tpu.matmul %37, %38, %cst_18 {dimension_numbers = #tpu.dot_dimension_numbers<[1], [1], [0], [0], [0, 0, 1, 0], [], []>} : vector<128x64xf32>, vector<128x64xf32>, vector<128x128xf32> -> vector<128x128xf32>
    %cst_19 = arith.constant 1.250000e-01 : f32
    %41 = vector.broadcast %cst_19 : f32 to vector<128x128xf32>
    %42 = arith.mulf %40, %41 : vector<128x128xf32>
    %cst_20 = arith.constant -1.000000e+30 : f32
    %43 = vector.broadcast %cst_20 : f32 to vector<128x128xf32>
    %44 = arith.select %35, %42, %43 : vector<128x128xi1>, vector<128x128xf32>
    %cst_21 = arith.constant dense<0xFF800000> : vector<128xf32>
    %45 = vector.multi_reduction <maximumf>, %44, %cst_21 [1] : vector<128x128xf32> to vector<128xf32>
    %46 = vector.shape_cast %45 : vector<128xf32> to vector<128x1xf32>
    %47 = vector.broadcast %46 : vector<128x1xf32> to vector<128x128xf32>
    %48 = arith.subf %44, %47 : vector<128x128xf32>
    %49 = math.exp %48 : vector<128x128xf32>
    %cst_22 = arith.constant dense<0.000000e+00> : vector<128xf32>
    %50 = vector.multi_reduction <add>, %49, %cst_22 [1] : vector<128x128xf32> to vector<128xf32>
    %51 = vector.shape_cast %50 : vector<128xf32> to vector<128x1xf32>
    %52 = tpu.reciprocal %51 {approx = true} : vector<128x1xf32> -> vector<128x1xf32>
    %53 = vector.broadcast %52 : vector<128x1xf32> to vector<128x128xf32>
    %54 = arith.mulf %49, %53 : vector<128x128xf32>
    %cst_23 = arith.constant dense<0.000000e+00> : vector<128x64xf32>
    %55 = tpu.matmul %54, %39, %cst_23 {dimension_numbers = #tpu.dot_dimension_numbers<[1], [0], [0], [1], [0, 0, 1, 1], [], []>} : vector<128x128xf32>, vector<128x64xf32>, vector<128x64xf32> -> vector<128x64xf32>
    %56 = arith.truncf %55 : vector<128x64xf32> to vector<128x64xbf16>
    %c0_24 = arith.constant 0 : index
    %c0_25 = arith.constant 0 : index
    %57 = vector.load %arg9[%c0_24, %c0_25] : memref<256x256xbf16, #tpu.memory_space<vmem>>, vector<64x256xbf16>
    %cst_26 = arith.constant dense<0.000000e+00> : vector<128x256xf32>
    %58 = tpu.matmul %56, %57, %cst_26 {dimension_numbers = #tpu.dot_dimension_numbers<[1], [0], [0], [1], [0, 0, 1, 1], [], []>} : vector<128x64xbf16>, vector<64x256xbf16>, vector<128x256xf32> -> vector<128x256xf32>
    %59 = arith.addf %36, %58 : vector<128x256xf32>
    %60 = vector.extract_strided_slice %27 {offsets = [0, 64], sizes = [128, 64], strides = [1, 1]} : vector<128x256xf32> to vector<128x64xf32>
    %61 = vector.extract_strided_slice %32 {offsets = [0, 0], sizes = [128, 64], strides = [1, 1]} : vector<128x128xf32> to vector<128x64xf32>
    %62 = vector.extract_strided_slice %20 {offsets = [0, 0], sizes = [128, 64], strides = [1, 1]} : vector<128x128xf32> to vector<128x64xf32>
    %cst_27 = arith.constant dense<0.000000e+00> : vector<128x128xf32>
    %63 = tpu.matmul %60, %61, %cst_27 {dimension_numbers = #tpu.dot_dimension_numbers<[1], [1], [0], [0], [0, 0, 1, 0], [], []>} : vector<128x64xf32>, vector<128x64xf32>, vector<128x128xf32> -> vector<128x128xf32>
    %cst_28 = arith.constant 1.250000e-01 : f32
    %64 = vector.broadcast %cst_28 : f32 to vector<128x128xf32>
    %65 = arith.mulf %63, %64 : vector<128x128xf32>
    %cst_29 = arith.constant -1.000000e+30 : f32
    %66 = vector.broadcast %cst_29 : f32 to vector<128x128xf32>
    %67 = arith.select %35, %65, %66 : vector<128x128xi1>, vector<128x128xf32>
    %cst_30 = arith.constant dense<0xFF800000> : vector<128xf32>
    %68 = vector.multi_reduction <maximumf>, %67, %cst_30 [1] : vector<128x128xf32> to vector<128xf32>
    %69 = vector.shape_cast %68 : vector<128xf32> to vector<128x1xf32>
    %70 = vector.broadcast %69 : vector<128x1xf32> to vector<128x128xf32>
    %71 = arith.subf %67, %70 : vector<128x128xf32>
    %72 = math.exp %71 : vector<128x128xf32>
    %cst_31 = arith.constant dense<0.000000e+00> : vector<128xf32>
    %73 = vector.multi_reduction <add>, %72, %cst_31 [1] : vector<128x128xf32> to vector<128xf32>
    %74 = vector.shape_cast %73 : vector<128xf32> to vector<128x1xf32>
    %75 = tpu.reciprocal %74 {approx = true} : vector<128x1xf32> -> vector<128x1xf32>
    %76 = vector.broadcast %75 : vector<128x1xf32> to vector<128x128xf32>
    %77 = arith.mulf %72, %76 : vector<128x128xf32>
    %cst_32 = arith.constant dense<0.000000e+00> : vector<128x64xf32>
    %78 = tpu.matmul %77, %62, %cst_32 {dimension_numbers = #tpu.dot_dimension_numbers<[1], [0], [0], [1], [0, 0, 1, 1], [], []>} : vector<128x128xf32>, vector<128x64xf32>, vector<128x64xf32> -> vector<128x64xf32>
    %79 = arith.truncf %78 : vector<128x64xf32> to vector<128x64xbf16>
    %c64 = arith.constant 64 : index
    %c0_33 = arith.constant 0 : index
    %80 = vector.load %arg9[%c64, %c0_33] : memref<256x256xbf16, #tpu.memory_space<vmem>>, vector<64x256xbf16>
    %cst_34 = arith.constant dense<0.000000e+00> : vector<128x256xf32>
    %81 = tpu.matmul %79, %80, %cst_34 {dimension_numbers = #tpu.dot_dimension_numbers<[1], [0], [0], [1], [0, 0, 1, 1], [], []>} : vector<128x64xbf16>, vector<64x256xbf16>, vector<128x256xf32> -> vector<128x256xf32>
    %82 = arith.addf %59, %81 : vector<128x256xf32>
    %83 = vector.extract_strided_slice %27 {offsets = [0, 128], sizes = [128, 64], strides = [1, 1]} : vector<128x256xf32> to vector<128x64xf32>
    %84 = vector.extract_strided_slice %32 {offsets = [0, 64], sizes = [128, 64], strides = [1, 1]} : vector<128x128xf32> to vector<128x64xf32>
    %85 = vector.extract_strided_slice %20 {offsets = [0, 64], sizes = [128, 64], strides = [1, 1]} : vector<128x128xf32> to vector<128x64xf32>
    %cst_35 = arith.constant dense<0.000000e+00> : vector<128x128xf32>
    %86 = tpu.matmul %83, %84, %cst_35 {dimension_numbers = #tpu.dot_dimension_numbers<[1], [1], [0], [0], [0, 0, 1, 0], [], []>} : vector<128x64xf32>, vector<128x64xf32>, vector<128x128xf32> -> vector<128x128xf32>
    %cst_36 = arith.constant 1.250000e-01 : f32
    %87 = vector.broadcast %cst_36 : f32 to vector<128x128xf32>
    %88 = arith.mulf %86, %87 : vector<128x128xf32>
    %cst_37 = arith.constant -1.000000e+30 : f32
    %89 = vector.broadcast %cst_37 : f32 to vector<128x128xf32>
    %90 = arith.select %35, %88, %89 : vector<128x128xi1>, vector<128x128xf32>
    %cst_38 = arith.constant dense<0xFF800000> : vector<128xf32>
    %91 = vector.multi_reduction <maximumf>, %90, %cst_38 [1] : vector<128x128xf32> to vector<128xf32>
    %92 = vector.shape_cast %91 : vector<128xf32> to vector<128x1xf32>
    %93 = vector.broadcast %92 : vector<128x1xf32> to vector<128x128xf32>
    %94 = arith.subf %90, %93 : vector<128x128xf32>
    %95 = math.exp %94 : vector<128x128xf32>
    %cst_39 = arith.constant dense<0.000000e+00> : vector<128xf32>
    %96 = vector.multi_reduction <add>, %95, %cst_39 [1] : vector<128x128xf32> to vector<128xf32>
    %97 = vector.shape_cast %96 : vector<128xf32> to vector<128x1xf32>
    %98 = tpu.reciprocal %97 {approx = true} : vector<128x1xf32> -> vector<128x1xf32>
    %99 = vector.broadcast %98 : vector<128x1xf32> to vector<128x128xf32>
    %100 = arith.mulf %95, %99 : vector<128x128xf32>
    %cst_40 = arith.constant dense<0.000000e+00> : vector<128x64xf32>
    %101 = tpu.matmul %100, %85, %cst_40 {dimension_numbers = #tpu.dot_dimension_numbers<[1], [0], [0], [1], [0, 0, 1, 1], [], []>} : vector<128x128xf32>, vector<128x64xf32>, vector<128x64xf32> -> vector<128x64xf32>
    %102 = arith.truncf %101 : vector<128x64xf32> to vector<128x64xbf16>
    %c128 = arith.constant 128 : index
    %c0_41 = arith.constant 0 : index
    %103 = vector.load %arg9[%c128, %c0_41] : memref<256x256xbf16, #tpu.memory_space<vmem>>, vector<64x256xbf16>
    %cst_42 = arith.constant dense<0.000000e+00> : vector<128x256xf32>
    %104 = tpu.matmul %102, %103, %cst_42 {dimension_numbers = #tpu.dot_dimension_numbers<[1], [0], [0], [1], [0, 0, 1, 1], [], []>} : vector<128x64xbf16>, vector<64x256xbf16>, vector<128x256xf32> -> vector<128x256xf32>
    %105 = arith.addf %82, %104 : vector<128x256xf32>
    %106 = vector.extract_strided_slice %27 {offsets = [0, 192], sizes = [128, 64], strides = [1, 1]} : vector<128x256xf32> to vector<128x64xf32>
    %107 = vector.extract_strided_slice %32 {offsets = [0, 64], sizes = [128, 64], strides = [1, 1]} : vector<128x128xf32> to vector<128x64xf32>
    %108 = vector.extract_strided_slice %20 {offsets = [0, 64], sizes = [128, 64], strides = [1, 1]} : vector<128x128xf32> to vector<128x64xf32>
    %cst_43 = arith.constant dense<0.000000e+00> : vector<128x128xf32>
    %109 = tpu.matmul %106, %107, %cst_43 {dimension_numbers = #tpu.dot_dimension_numbers<[1], [1], [0], [0], [0, 0, 1, 0], [], []>} : vector<128x64xf32>, vector<128x64xf32>, vector<128x128xf32> -> vector<128x128xf32>
    %cst_44 = arith.constant 1.250000e-01 : f32
    %110 = vector.broadcast %cst_44 : f32 to vector<128x128xf32>
    %111 = arith.mulf %109, %110 : vector<128x128xf32>
    %cst_45 = arith.constant -1.000000e+30 : f32
    %112 = vector.broadcast %cst_45 : f32 to vector<128x128xf32>
    %113 = arith.select %35, %111, %112 : vector<128x128xi1>, vector<128x128xf32>
    %cst_46 = arith.constant dense<0xFF800000> : vector<128xf32>
    %114 = vector.multi_reduction <maximumf>, %113, %cst_46 [1] : vector<128x128xf32> to vector<128xf32>
    %115 = vector.shape_cast %114 : vector<128xf32> to vector<128x1xf32>
    %116 = vector.broadcast %115 : vector<128x1xf32> to vector<128x128xf32>
    %117 = arith.subf %113, %116 : vector<128x128xf32>
    %118 = math.exp %117 : vector<128x128xf32>
    %cst_47 = arith.constant dense<0.000000e+00> : vector<128xf32>
    %119 = vector.multi_reduction <add>, %118, %cst_47 [1] : vector<128x128xf32> to vector<128xf32>
    %120 = vector.shape_cast %119 : vector<128xf32> to vector<128x1xf32>
    %121 = tpu.reciprocal %120 {approx = true} : vector<128x1xf32> -> vector<128x1xf32>
    %122 = vector.broadcast %121 : vector<128x1xf32> to vector<128x128xf32>
    %123 = arith.mulf %118, %122 : vector<128x128xf32>
    %cst_48 = arith.constant dense<0.000000e+00> : vector<128x64xf32>
    %124 = tpu.matmul %123, %108, %cst_48 {dimension_numbers = #tpu.dot_dimension_numbers<[1], [0], [0], [1], [0, 0, 1, 1], [], []>} : vector<128x128xf32>, vector<128x64xf32>, vector<128x64xf32> -> vector<128x64xf32>
    %125 = arith.truncf %124 : vector<128x64xf32> to vector<128x64xbf16>
    %c192 = arith.constant 192 : index
    %c0_49 = arith.constant 0 : index
    %126 = vector.load %arg9[%c192, %c0_49] : memref<256x256xbf16, #tpu.memory_space<vmem>>, vector<64x256xbf16>
    %cst_50 = arith.constant dense<0.000000e+00> : vector<128x256xf32>
    %127 = tpu.matmul %125, %126, %cst_50 {dimension_numbers = #tpu.dot_dimension_numbers<[1], [0], [0], [1], [0, 0, 1, 1], [], []>} : vector<128x64xbf16>, vector<64x256xbf16>, vector<128x256xf32> -> vector<128x256xf32>
    %128 = arith.addf %105, %127 : vector<128x256xf32>
    %129 = arith.addf %128, %1 : vector<128x256xf32>
    %c0_51 = arith.constant 0 : index
    %c0_52 = arith.constant 0 : index
    %c0_53 = arith.constant 0 : index
    %130 = vector.load %arg13[%c0_51, %c0_52, %c0_53] : memref<1x128x256xf32, #tpu.memory_space<vmem>>, vector<1x128x256xf32>
    %131 = vector.shape_cast %130 : vector<1x128x256xf32> to vector<128x256xf32>
    %132 = vector.shape_cast %129 : vector<128x256xf32> to vector<1x128x256xf32>
    tpu.vector_store %arg13[%c0_51, %c0_52, %c0_53], %132 {strides = array<i32>} : memref<1x128x256xf32, #tpu.memory_space<vmem>>, vector<1x128x256xf32>,
    %133 = arith.mulf %129, %129 : vector<128x256xf32>
    %cst_54 = arith.constant dense<0.000000e+00> : vector<128xf32>
    %134 = vector.multi_reduction <add>, %133, %cst_54 [1] : vector<128x256xf32> to vector<128xf32>
    %135 = vector.shape_cast %134 : vector<128xf32> to vector<128x1xf32>
    %cst_55 = arith.constant 2.560000e+02 : f32
    %136 = vector.broadcast %cst_55 : f32 to vector<128x1xf32>
    %137 = arith.divf %135, %136 : vector<128x1xf32>
    %cst_56 = arith.constant 9.99999974E-6 : f32
    %138 = vector.broadcast %cst_56 : f32 to vector<128x1xf32>
    %139 = arith.addf %137, %138 : vector<128x1xf32>
    %140 = math.rsqrt %139 : vector<128x1xf32>
    %141 = vector.broadcast %140 : vector<128x1xf32> to vector<128x256xf32>
    %142 = arith.mulf %129, %141 : vector<128x256xf32>
    %c0_57 = arith.constant 0 : index
    %c0_58 = arith.constant 0 : index
    %143 = vector.load %arg7[%c0_57, %c0_58] : memref<1x256xf32, #tpu.memory_space<vmem>>, vector<1x256xf32>
    %144 = vector.broadcast %143 : vector<1x256xf32> to vector<128x256xf32>
    %145 = arith.mulf %142, %144 : vector<128x256xf32>
    %146 = arith.truncf %145 : vector<128x256xf32> to vector<128x256xbf16>
    %c0_59 = arith.constant 0 : index
    %c0_60 = arith.constant 0 : index
    %147 = vector.load %arg10[%c0_59, %c0_60] : memref<256x1024xbf16, #tpu.memory_space<vmem>>, vector<256x1024xbf16>
    %cst_61 = arith.constant dense<0.000000e+00> : vector<128x1024xf32>
    %148 = tpu.matmul %146, %147, %cst_61 {dimension_numbers = #tpu.dot_dimension_numbers<[1], [0], [0], [1], [0, 0, 1, 1], [], []>} : vector<128x256xbf16>, vector<256x1024xbf16>, vector<128x1024xf32> -> vector<128x1024xf32>
    %149 = vector.extract_strided_slice %148 {offsets = [0, 0], sizes = [128, 512], strides = [1, 1]} : vector<128x1024xf32> to vector<128x512xf32>
    %150 = vector.extract_strided_slice %148 {offsets = [0, 512], sizes = [128, 512], strides = [1, 1]} : vector<128x1024xf32> to vector<128x512xf32>
    %151 = arith.negf %149 : vector<128x512xf32>
    %152 = math.exp %151 : vector<128x512xf32>
    %cst_62 = arith.constant 1.000000e+00 : f32
    %153 = vector.broadcast %cst_62 : f32 to vector<128x512xf32>
    %154 = arith.addf %153, %152 : vector<128x512xf32>
    %155 = arith.divf %153, %154 : vector<128x512xf32>
    %156 = arith.mulf %149, %155 : vector<128x512xf32>
    %157 = arith.mulf %156, %150 : vector<128x512xf32>
    %158 = arith.truncf %157 : vector<128x512xf32> to vector<128x512xbf16>
    %c0_63 = arith.constant 0 : index
    %c0_64 = arith.constant 0 : index
    %159 = vector.load %arg11[%c0_63, %c0_64] : memref<512x256xbf16, #tpu.memory_space<vmem>>, vector<512x256xbf16>
    %cst_65 = arith.constant dense<0.000000e+00> : vector<128x256xf32>
    %160 = tpu.matmul %158, %159, %cst_65 {dimension_numbers = #tpu.dot_dimension_numbers<[1], [0], [0], [1], [0, 0, 1, 1], [], []>} : vector<128x512xbf16>, vector<512x256xbf16>, vector<128x256xf32> -> vector<128x256xf32>
    %c0_66 = arith.constant 0 : index
    %c0_67 = arith.constant 0 : index
    %c0_68 = arith.constant 0 : index
    %161 = vector.load %arg12[%c0_66, %c0_67, %c0_68] : memref<1x128x256xf32, #tpu.memory_space<vmem>>, vector<1x128x256xf32>
    %162 = vector.shape_cast %161 : vector<1x128x256xf32> to vector<128x256xf32>
    %163 = vector.shape_cast %160 : vector<128x256xf32> to vector<1x128x256xf32>
    tpu.vector_store %arg12[%c0_66, %c0_67, %c0_68], %163 {strides = array<i32>} : memref<1x128x256xf32, #tpu.memory_space<vmem>>, vector<1x128x256xf32>,
    return
  }
  func.func @transform_0(%arg0: i32) -> (i32, i32, i32) {
    %c0_i32 = arith.constant 0 : i32
    %c0_i32_0 = arith.constant 0 : i32
    %c0_i32_1 = arith.constant 0 : i32
    return %arg0, %c0_i32, %c0_i32_0 : i32, i32, i32
  }
  func.func @transform_1(%arg0: i32) -> (i32, i32) {
    %c0_i32 = arith.constant 0 : i32
    %c0_i32_0 = arith.constant 0 : i32
    %c0_i32_1 = arith.constant 0 : i32
    return %c0_i32, %c0_i32_0 : i32, i32
  }
  func.func @transform_2(%arg0: i32) -> (i32, i32) {
    %c0_i32 = arith.constant 0 : i32
    %c0_i32_0 = arith.constant 0 : i32
    %c0_i32_1 = arith.constant 0 : i32
    return %c0_i32, %c0_i32_0 : i32, i32
  }
  func.func @transform_3(%arg0: i32) -> (i32, i32) {
    %c0_i32 = arith.constant 0 : i32
    %c0_i32_0 = arith.constant 0 : i32
    %c0_i32_1 = arith.constant 0 : i32
    return %c0_i32, %c0_i32_0 : i32, i32
  }
  func.func @transform_4(%arg0: i32) -> (i32, i32) {
    %c0_i32 = arith.constant 0 : i32
    %c0_i32_0 = arith.constant 0 : i32
    %c0_i32_1 = arith.constant 0 : i32
    return %c0_i32, %c0_i32_0 : i32, i32
  }
  func.func @transform_5(%arg0: i32) -> (i32, i32) {
    %c0_i32 = arith.constant 0 : i32
    %c0_i32_0 = arith.constant 0 : i32
    %c0_i32_1 = arith.constant 0 : i32
    return %c0_i32, %c0_i32_0 : i32, i32
  }
  func.func @transform_6(%arg0: i32) -> (i32, i32) {
    %c0_i32 = arith.constant 0 : i32
    %c0_i32_0 = arith.constant 0 : i32
    %c0_i32_1 = arith.constant 0 : i32
    return %c0_i32, %c0_i32_0 : i32, i32
  }
  func.func @transform_7(%arg0: i32) -> (i32, i32) {
    %c0_i32 = arith.constant 0 : i32
    %c0_i32_0 = arith.constant 0 : i32
    %c0_i32_1 = arith.constant 0 : i32
    return %c0_i32, %c0_i32_0 : i32, i32
  }
  func.func @transform_8(%arg0: i32) -> (i32, i32) {
    %c0_i32 = arith.constant 0 : i32
    %c0_i32_0 = arith.constant 0 : i32
    %c0_i32_1 = arith.constant 0 : i32
    return %c0_i32, %c0_i32_0 : i32, i32
  }
  func.func @transform_9(%arg0: i32) -> (i32, i32) {
    %c0_i32 = arith.constant 0 : i32
    %c0_i32_0 = arith.constant 0 : i32
    %c0_i32_1 = arith.constant 0 : i32
    return %c0_i32, %c0_i32_0 : i32, i32
  }
  func.func @transform_10(%arg0: i32) -> (i32, i32) {
    %c0_i32 = arith.constant 0 : i32
    %c0_i32_0 = arith.constant 0 : i32
    %c0_i32_1 = arith.constant 0 : i32
    return %c0_i32, %c0_i32_0 : i32, i32
  }
  func.func @transform_11(%arg0: i32) -> (i32, i32, i32) {
    %c0_i32 = arith.constant 0 : i32
    %c0_i32_0 = arith.constant 0 : i32
    %c0_i32_1 = arith.constant 0 : i32
    return %arg0, %c0_i32, %c0_i32_0 : i32, i32, i32
  }
  func.func @transform_12(%arg0: i32) -> (i32, i32, i32) {
    %c0_i32 = arith.constant 0 : i32
    %c0_i32_0 = arith.constant 0 : i32
    %c0_i32_1 = arith.constant 0 : i32
    return %arg0, %c0_i32, %c0_i32_0 : i32, i32, i32
  }
}

</mosaic_0001>

<llo_original>
// kernel: llama_decoder_layer.1
$region0: #{llama_decoder_layer.1}
  #allocation0 [shape = 'u32[]', space=smem, size = 0x4, offset = 0x4, fixed_abs, tag = 'smem constant byte address 0x4 - core index']
  #allocation1 [shape = 'u32[144,128]{1,0:T(1,128)}', space=vmem, size = 0x12000, scoped, tag = 'internal scratch']
  %s0 = inlined_call_operand.hbm [shape: f32[2,128,256], index: 0, kind: input, shape index: {}]
  %s1 = inlined_call_operand.hbm [shape: f32[128,256], index: 1, kind: input, shape index: {}]
  %s2 = inlined_call_operand.hbm [shape: f32[128,256], index: 2, kind: input, shape index: {}]
  %s3 = inlined_call_operand.hbm [shape: f32[128,128], index: 3, kind: input, shape index: {}]
  %s4 = inlined_call_operand.hbm [shape: f32[128,128], index: 4, kind: input, shape index: {}]
  %s5 = inlined_call_operand.vmem [shape: f32[1,256], index: 5, kind: input, shape index: {}]
  %s6 = inlined_call_operand.vmem [shape: f32[1,256], index: 6, kind: input, shape index: {}]
  %s7 = inlined_call_operand.hbm [shape: bf16[256,896], index: 7, kind: input, shape index: {}]
  %s8 = inlined_call_operand.hbm [shape: bf16[256,256], index: 8, kind: input, shape index: {}]
  %s9 = inlined_call_operand.hbm [shape: bf16[256,1024], index: 9, kind: input, shape index: {}]
  %s10 = inlined_call_operand.hbm [shape: bf16[512,256], index: 10, kind: input, shape index: {}]
  %s11 = inlined_call_operand.hbm [shape: f32[2,128,256], index: 11, kind: output, shape index: {0}]
  %s12 = inlined_call_operand.hbm [shape: f32[2,128,256], index: 12, kind: output, shape index: {1}]
  %13 = xla_tuple %s11, %s12
  %s14 = sld [smem:[#allocation0]]
  $region121: #{llama_decoder_layer.1} parent=0
    _
  %s16 = ssub.s32 1, %s14
  %s17 = scalar_select 0, %s16, %s14
  $region1: #{llama_decoder_layer.1} parent=0
    #allocation2 [shape = 'u8[262144]{0}', space=vmem, size = 0x40000, scoped, tag = 'input window, operand 0']
    #allocation3 [shape = 's32[2]{0}', space=sflag, size = 0x8, scoped, tag = 'scoped memory for llama_decoder_layer.1']
    #allocation4 [shape = 's32[2]{0}', space=sflag, size = 0x8, scoped, tag = 'scoped memory for llama_decoder_layer.1']
    #allocation5 [shape = 'u8[131072]{0}', space=vmem, size = 0x20000, scoped, tag = 'input window, operand 1, single buffered']
    #allocation6 [shape = 's32[1]{0}', space=sflag, size = 0x4, scoped, tag = 'scoped memory for llama_decoder_layer.1']
    #allocation7 [shape = 'u8[131072]{0}', space=vmem, size = 0x20000, scoped, tag = 'input window, operand 2, single buffered']
    #allocation8 [shape = 'u8[65536]{0}', space=vmem, size = 0x10000, scoped, tag = 'input window, operand 3, single buffered']
    #allocation9 [shape = 's32[1]{0}', space=sflag, size = 0x4, scoped, tag = 'scoped memory for llama_decoder_layer.1']
    #allocation10 [shape = 'u8[65536]{0}', space=vmem, size = 0x10000, scoped, tag = 'input window, operand 4, single buffered']
    #allocation11 [shape = 'u8[458752]{0}', space=vmem, size = 0x70000, scoped, tag = 'input window, operand 7, single buffered']
    #allocation12 [shape = 's32[1]{0}', space=sflag, size = 0x4, scoped, tag = 'scoped memory for llama_decoder_layer.1']
    #allocation13 [shape = 'u8[131072]{0}', space=vmem, size = 0x20000, scoped, tag = 'input window, operand 8, single buffered']
    #allocation14 [shape = 'u8[524288]{0}', space=vmem, size = 0x80000, scoped, tag = 'input window, operand 9, single buffered']
    #allocation15 [shape = 's32[1]{0}', space=sflag, size = 0x4, scoped, tag = 'scoped memory for llama_decoder_layer.1']
    #allocation16 [shape = 'u8[262144]{0}', space=vmem, size = 0x40000, scoped, tag = 'input window, operand 10, single buffered']
    #allocation17 [shape = 'u8[262144]{0}', space=vmem, size = 0x40000, scoped, tag = 'output window, operand 0']
    #allocation18 [shape = 'u8[262144]{0}', space=vmem, size = 0x40000, scoped, tag = 'output window, operand 1']
    #allocation19 [shape = 's32[2]{0}', space=sflag, size = 0x8, scoped, tag = 'scoped memory for llama_decoder_layer.1']
    %18 = vsyncpa [#allocation3], 0
    %s19 = scalar_lea.sflag [#allocation3], 1
    %20 = vsyncpa %s19, 0
    %21 = vsyncpa [#allocation6], 0
    %22 = vsyncpa [#allocation9], 0
    %23 = vsyncpa [#allocation12], 0
    %24 = vsyncpa [#allocation15], 0
    %25 = vsyncpa [#allocation4], 0
    %s26 = scalar_lea.sflag [#allocation4], 1
    %27 = vsyncpa %s26, 0
    %28 = vsyncpa [#allocation19], 0
    %s29 = scalar_lea.sflag [#allocation19], 1
    %30 = vsyncpa %s29, 0
    loop: start=0, step=1, limit=4
    $region2: #{llama_decoder_layer.1} parent=1 // loop_pre_header
      _
    $region3: #{llama_decoder_layer.1} parent=1 // loop_header
      %s32 = sphi 0, %s36
      %p33 = scmp.ge.s32.totalorder %s32, 4
      %s42 = sphi 0, %s44
      %s45 = sphi 0, %s42
      %s46 = sphi 0, %s45
      %s62 = sphi 0, %s46
      %s66 = sphi 0, %s66
      %s68 = sphi 0, %s66
      %s69 = sphi 0, %s68
      %s83 = sphi 0, %s69
      %s87 = sphi 0, %s87
      %s89 = sphi 0, %s87
      %s90 = sphi 0, %s89
      %s104 = sphi 0, %s90
      %s108 = sphi 0, %s108
      %s110 = sphi 0, %s108
      %s111 = sphi 0, %s110
      %s125 = sphi 0, %s111
      %s129 = sphi 0, %s129
      %s131 = sphi 0, %s129
      %s132 = sphi 0, %s131
      %s146 = sphi 0, %s132
      %s150 = sphi 0, %s150
      %s152 = sphi 0, %s150
      %s153 = sphi 0, %s152
      %s167 = sphi 0, %s153
      %s171 = sphi 0, %s171
      %s173 = sphi 0, %s171
      %s174 = sphi 0, %s173
      %s188 = sphi 0, %s174
      %s192 = sphi 0, %s192
      %s194 = sphi 0, %s192
      %s195 = sphi 0, %s194
      %s209 = sphi 0, %s195
      %s213 = sphi 0, %s213
      %s215 = sphi 0, %s213
      %s216 = sphi 0, %s215
      %s230 = sphi 0, %s216
      %s234 = sphi 0, %s234
      %s236 = sphi 0, %s234
      %s237 = sphi 0, %s236
      %s251 = sphi 0, %s237
      %s255 = sphi 0, %s255
      %s257 = sphi 0, %s255
      %s258 = sphi 0, %s257
      %s272 = sphi 0, %s258
      %s278 = sphi 0, %s280
      %s281 = sphi 0, %s278
      %s282 = sphi 0, %s281
      %s298 = sphi 0, %s282
      %s304 = sphi 0, %s306
      %s307 = sphi 0, %s304
      %s308 = sphi 0, %s307
      %s324 = sphi 0, %s308
    $region4: #{llama_decoder_layer.1} parent=1 // loop_header_branch
      %35 = sbr.rel (%p33) target = $region8
    $region5: #{llama_decoder_layer.1} parent=1 // loop_body
      %s37 = ssub.s32 %s32, 1
      %s38 = ssub.s32 %s32, 2
      %s39 = sadd.s32 %s32, 1
      %s40 = ssub.s32 %s32, %s39
      %p41 = scmp.eq.s32.totalorder %s40, 0
      %s43 = sadd.s32 %s42, 1
      %s44 = scalar_select %p41, %s42, %s43
      %p47 = pneg %p41
      %p48 = scmp.eq.s32.totalorder %s32, 1
      %p49 = por %p47, %p48
      %p50 = scmp.ne.s32.totalorder %s42, %s45
      %p51 = scmp.eq.s32.totalorder %s32, 0
      %p52 = por %p50, %p51
      %p53 = scmp.ne.s32.totalorder %s42, %s45
      %p54 = scmp.eq.s32.totalorder %s37, 1
      %p55 = por %p53, %p54
      %p56 = scmp.ne.s32.totalorder %s45, %s46
      %p57 = scmp.eq.s32.totalorder %s37, 0
      %p58 = por %p56, %p57
      %p59 = scmp.ne.s32.totalorder %s45, %s46
      %p60 = scmp.eq.s32.totalorder %s38, 1
      %p61 = por %p59, %p60
      %p63 = scmp.ne.s32.totalorder %s46, %s62
      %p64 = scmp.eq.s32.totalorder %s38, 0
      %p65 = por %p63, %p64
      %s67 = sadd.s32 %s66, 1
      %p70 = scmp.eq.s32.totalorder %s32, 1
      %p71 = scmp.ne.s32.totalorder %s66, %s68
      %p72 = scmp.eq.s32.totalorder %s32, 0
      %p73 = por %p71, %p72
      %p74 = scmp.ne.s32.totalorder %s66, %s68
      %p75 = scmp.eq.s32.totalorder %s37, 1
      %p76 = por %p74, %p75
      %p77 = scmp.ne.s32.totalorder %s68, %s69
      %p78 = scmp.eq.s32.totalorder %s37, 0
      %p79 = por %p77, %p78
      %p80 = scmp.ne.s32.totalorder %s68, %s69
      %p81 = scmp.eq.s32.totalorder %s38, 1
      %p82 = por %p80, %p81
      %p84 = scmp.ne.s32.totalorder %s69, %s83
      %p85 = scmp.eq.s32.totalorder %s38, 0
      %p86 = por %p84, %p85
      %s88 = sadd.s32 %s87, 1
      %p91 = scmp.eq.s32.totalorder %s32, 1
      %p92 = scmp.ne.s32.totalorder %s87, %s89
      %p93 = scmp.eq.s32.totalorder %s32, 0
      %p94 = por %p92, %p93
      %p95 = scmp.ne.s32.totalorder %s87, %s89
      %p96 = scmp.eq.s32.totalorder %s37, 1
      %p97 = por %p95, %p96
      %p98 = scmp.ne.s32.totalorder %s89, %s90
      %p99 = scmp.eq.s32.totalorder %s37, 0
      %p100 = por %p98, %p99
      %p101 = scmp.ne.s32.totalorder %s89, %s90
      %p102 = scmp.eq.s32.totalorder %s38, 1
      %p103 = por %p101, %p102
      %p105 = scmp.ne.s32.totalorder %s90, %s104
      %p106 = scmp.eq.s32.totalorder %s38, 0
      %p107 = por %p105, %p106
      %s109 = sadd.s32 %s108, 1
      %p112 = scmp.eq.s32.totalorder %s32, 1
      %p113 = scmp.ne.s32.totalorder %s108, %s110
      %p114 = scmp.eq.s32.totalorder %s32, 0
      %p115 = por %p113, %p114
      %p116 = scmp.ne.s32.totalorder %s108, %s110
      %p117 = scmp.eq.s32.totalorder %s37, 1
      %p118 = por %p116, %p117
      %p119 = scmp.ne.s32.totalorder %s110, %s111
      %p120 = scmp.eq.s32.totalorder %s37, 0
      %p121 = por %p119, %p120
      %p122 = scmp.ne.s32.totalorder %s110, %s111
      %p123 = scmp.eq.s32.totalorder %s38, 1
      %p124 = por %p122, %p123
      %p126 = scmp.ne.s32.totalorder %s111, %s125
      %p127 = scmp.eq.s32.totalorder %s38, 0
      %p128 = por %p126, %p127
      %s130 = sadd.s32 %s129, 1
      %p133 = scmp.eq.s32.totalorder %s32, 1
      %p134 = scmp.ne.s32.totalorder %s129, %s131
      %p135 = scmp.eq.s32.totalorder %s32, 0
      %p136 = por %p134, %p135
      %p137 = scmp.ne.s32.totalorder %s129, %s131
      %p138 = scmp.eq.s32.totalorder %s37, 1
      %p139 = por %p137, %p138
      %p140 = scmp.ne.s32.totalorder %s131, %s132
      %p141 = scmp.eq.s32.totalorder %s37, 0
      %p142 = por %p140, %p141
      %p143 = scmp.ne.s32.totalorder %s131, %s132
      %p144 = scmp.eq.s32.totalorder %s38, 1
      %p145 = por %p143, %p144
      %p147 = scmp.ne.s32.totalorder %s132, %s146
      %p148 = scmp.eq.s32.totalorder %s38, 0
      %p149 = por %p147, %p148
      %s151 = sadd.s32 %s150, 1
      %p154 = scmp.eq.s32.totalorder %s32, 1
      %p155 = scmp.ne.s32.totalorder %s150, %s152
      %p156 = scmp.eq.s32.totalorder %s32, 0
      %p157 = por %p155, %p156
      %p158 = scmp.ne.s32.totalorder %s150, %s152
      %p159 = scmp.eq.s32.totalorder %s37, 1
      %p160 = por %p158, %p159
      %p161 = scmp.ne.s32.totalorder %s152, %s153
      %p162 = scmp.eq.s32.totalorder %s37, 0
      %p163 = por %p161, %p162
      %p164 = scmp.ne.s32.totalorder %s152, %s153
      %p165 = scmp.eq.s32.totalorder %s38, 1
      %p166 = por %p164, %p165
      %p168 = scmp.ne.s32.totalorder %s153, %s167
      %p169 = scmp.eq.s32.totalorder %s38, 0
      %p170 = por %p168, %p169
      %s172 = sadd.s32 %s171, 1
      %p175 = scmp.eq.s32.totalorder %s32, 1
      %p176 = scmp.ne.s32.totalorder %s171, %s173
      %p177 = scmp.eq.s32.totalorder %s32, 0
      %p178 = por %p176, %p177
      %p179 = scmp.ne.s32.totalorder %s171, %s173
      %p180 = scmp.eq.s32.totalorder %s37, 1
      %p181 = por %p179, %p180
      %p182 = scmp.ne.s32.totalorder %s173, %s174
      %p183 = scmp.eq.s32.totalorder %s37, 0
      %p184 = por %p182, %p183
      %p185 = scmp.ne.s32.totalorder %s173, %s174
      %p186 = scmp.eq.s32.totalorder %s38, 1
      %p187 = por %p185, %p186
      %p189 = scmp.ne.s32.totalorder %s174, %s188
      %p190 = scmp.eq.s32.totalorder %s38, 0
      %p191 = por %p189, %p190
      %s193 = sadd.s32 %s192, 1
      %p196 = scmp.eq.s32.totalorder %s32, 1
      %p197 = scmp.ne.s32.totalorder %s192, %s194
      %p198 = scmp.eq.s32.totalorder %s32, 0
      %p199 = por %p197, %p198
      %p200 = scmp.ne.s32.totalorder %s192, %s194
      %p201 = scmp.eq.s32.totalorder %s37, 1
      %p202 = por %p200, %p201
      %p203 = scmp.ne.s32.totalorder %s194, %s195
      %p204 = scmp.eq.s32.totalorder %s37, 0
      %p205 = por %p203, %p204
      %p206 = scmp.ne.s32.totalorder %s194, %s195
      %p207 = scmp.eq.s32.totalorder %s38, 1
      %p208 = por %p206, %p207
      %p210 = scmp.ne.s32.totalorder %s195, %s209
      %p211 = scmp.eq.s32.totalorder %s38, 0
      %p212 = por %p210, %p211
      %s214 = sadd.s32 %s213, 1
      %p217 = scmp.eq.s32.totalorder %s32, 1
      %p218 = scmp.ne.s32.totalorder %s213, %s215
      %p219 = scmp.eq.s32.totalorder %s32, 0
      %p220 = por %p218, %p219
      %p221 = scmp.ne.s32.totalorder %s213, %s215
      %p222 = scmp.eq.s32.totalorder %s37, 1
      %p223 = por %p221, %p222
      %p224 = scmp.ne.s32.totalorder %s215, %s216
      %p225 = scmp.eq.s32.totalorder %s37, 0
      %p226 = por %p224, %p225
      %p227 = scmp.ne.s32.totalorder %s215, %s216
      %p228 = scmp.eq.s32.totalorder %s38, 1
      %p229 = por %p227, %p228
      %p231 = scmp.ne.s32.totalorder %s216, %s230
      %p232 = scmp.eq.s32.totalorder %s38, 0
      %p233 = por %p231, %p232
      %s235 = sadd.s32 %s234, 1
      %p238 = scmp.eq.s32.totalorder %s32, 1
      %p239 = scmp.ne.s32.totalorder %s234, %s236
      %p240 = scmp.eq.s32.totalorder %s32, 0
      %p241 = por %p239, %p240
      %p242 = scmp.ne.s32.totalorder %s234, %s236
      %p243 = scmp.eq.s32.totalorder %s37, 1
      %p244 = por %p242, %p243
      %p245 = scmp.ne.s32.totalorder %s236, %s237
      %p246 = scmp.eq.s32.totalorder %s37, 0
      %p247 = por %p245, %p246
      %p248 = scmp.ne.s32.totalorder %s236, %s237
      %p249 = scmp.eq.s32.totalorder %s38, 1
      %p250 = por %p248, %p249
      %p252 = scmp.ne.s32.totalorder %s237, %s251
      %p253 = scmp.eq.s32.totalorder %s38, 0
      %p254 = por %p252, %p253
      %s256 = sadd.s32 %s255, 1
      %p259 = scmp.eq.s32.totalorder %s32, 1
      %p260 = scmp.ne.s32.totalorder %s255, %s257
      %p261 = scmp.eq.s32.totalorder %s32, 0
      %p262 = por %p260, %p261
      %p263 = scmp.ne.s32.totalorder %s255, %s257
      %p264 = scmp.eq.s32.totalorder %s37, 1
      %p265 = por %p263, %p264
      %p266 = scmp.ne.s32.totalorder %s257, %s258
      %p267 = scmp.eq.s32.totalorder %s37, 0
      %p268 = por %p266, %p267
      %p269 = scmp.ne.s32.totalorder %s257, %s258
      %p270 = scmp.eq.s32.totalorder %s38, 1
      %p271 = por %p269, %p270
      %p273 = scmp.ne.s32.totalorder %s258, %s272
      %p274 = scmp.eq.s32.totalorder %s38, 0
      %p275 = por %p273, %p274
      %s276 = ssub.s32 %s32, %s39
      %p277 = scmp.eq.s32.totalorder %s276, 0
      %s279 = sadd.s32 %s278, 1
      %s280 = scalar_select %p277, %s278, %s279
      %p283 = pneg %p277
      %p284 = scmp.eq.s32.totalorder %s32, 1
      %p285 = por %p283, %p284
      %p286 = scmp.ne.s32.totalorder %s278, %s281
      %p287 = scmp.eq.s32.totalorder %s32, 0
      %p288 = por %p286, %p287
      %p289 = scmp.ne.s32.totalorder %s278, %s281
      %p290 = scmp.eq.s32.totalorder %s37, 1
      %p291 = por %p289, %p290
      %p292 = scmp.ne.s32.totalorder %s281, %s282
      %p293 = scmp.eq.s32.totalorder %s37, 0
      %p294 = por %p292, %p293
      %p295 = scmp.ne.s32.totalorder %s281, %s282
      %p296 = scmp.eq.s32.totalorder %s38, 1
      %p297 = por %p295, %p296
      %p299 = scmp.ne.s32.totalorder %s282, %s298
      %p300 = scmp.eq.s32.totalorder %s38, 0
      %p301 = por %p299, %p300
      %s302 = ssub.s32 %s32, %s39
      %p303 = scmp.eq.s32.totalorder %s302, 0
      %s305 = sadd.s32 %s304, 1
      %s306 = scalar_select %p303, %s304, %s305
      %p309 = pneg %p303
      %p310 = scmp.eq.s32.totalorder %s32, 1
      %p311 = por %p309, %p310
      %p312 = scmp.ne.s32.totalorder %s304, %s307
      %p313 = scmp.eq.s32.totalorder %s32, 0
      %p314 = por %p312, %p313
      %p315 = scmp.ne.s32.totalorder %s304, %s307
      %p316 = scmp.eq.s32.totalorder %s37, 1
      %p317 = por %p315, %p316
      %p318 = scmp.ne.s32.totalorder %s307, %s308
      %p319 = scmp.eq.s32.totalorder %s37, 0
      %p320 = por %p318, %p319
      %p321 = scmp.ne.s32.totalorder %s307, %s308
      %p322 = scmp.eq.s32.totalorder %s38, 1
      %p323 = por %p321, %p322
      %p325 = scmp.ne.s32.totalorder %s308, %s324
      %p326 = scmp.eq.s32.totalorder %s38, 0
      %p327 = por %p325, %p326
      %p328 = scmp.le.s32.totalorder 1, %s32
      %p329 = scmp.lt.s32.totalorder %s32, 3
      %p330 = pnand %p328, %p329
      %p331 = pneg %p330
      // Predicated region
      $region9: #{llama_decoder_layer.1} parent=5 // pred_check
        _
      $region10: #{llama_decoder_layer.1} parent=5 // pred_check_branch
        %333 = sbr.rel (%p330) target = $region12
      $region11: #{llama_decoder_layer.1} parent=5 // pred_region
        %s334 = ssub.s32 %s32, 1
        // Predicated region
        $region13: #{llama_decoder_layer.1} parent=11 // pred_check
          %p335 = pneg %p79
        $region14: #{llama_decoder_layer.1} parent=11 // pred_check_branch
          %337 = sbr.rel (%p335) target = $region16
        $region15: #{llama_decoder_layer.1} parent=11 // pred_region
          %s339 = ssub.s32 4096, 4096
          %340 = vsyncadd [#allocation6], %s339
          %s341 = sshll.u32 [#allocation5], 4
          %s342 = int_to_ptr.vmem [resolvable:$true] %s341
          %347 = dma.hbm_to_vmem [thread:$0]  %s1, 4096, %s342, [#allocation6], 256, 256, 16
        $region16: #{llama_decoder_layer.1} parent=11 // pred_fallthru
          _
        // Predicated region
        $region17: #{llama_decoder_layer.1} parent=11 // pred_check
          %p348 = pneg %p100
        $region18: #{llama_decoder_layer.1} parent=11 // pred_check_branch
          %350 = sbr.rel (%p348) target = $region20
        $region19: #{llama_decoder_layer.1} parent=11 // pred_region
          %s352 = ssub.s32 4096, 4096
          %353 = vsyncadd [#allocation6], %s352
          %s354 = sshll.u32 [#allocation7], 4
          %s355 = int_to_ptr.vmem [resolvable:$true] %s354
          %360 = dma.hbm_to_vmem [thread:$0]  %s2, 4096, %s355, [#allocation6], 256, 256, 16
        $region20: #{llama_decoder_layer.1} parent=11 // pred_fallthru
          _
        // Predicated region
        $region21: #{llama_decoder_layer.1} parent=11 // pred_check
          %p361 = pneg %p121
        $region22: #{llama_decoder_layer.1} parent=11 // pred_check_branch
          %363 = sbr.rel (%p361) target = $region24
        $region23: #{llama_decoder_layer.1} parent=11 // pred_region
          %s365 = ssub.s32 2048, 2048
          %366 = vsyncadd [#allocation9], %s365
          %s367 = sshll.u32 [#allocation8], 4
          %s368 = int_to_ptr.vmem [resolvable:$true] %s367
          %373 = dma.hbm_to_vmem [thread:$0]  %s3, 2048, %s368, [#allocation9], 128, 128, 8
        $region24: #{llama_decoder_layer.1} parent=11 // pred_fallthru
          _
        // Predicated region
        $region25: #{llama_decoder_layer.1} parent=11 // pred_check
          %p374 = pneg %p142
        $region26: #{llama_decoder_layer.1} parent=11 // pred_check_branch
          %376 = sbr.rel (%p374) target = $region28
        $region27: #{llama_decoder_layer.1} parent=11 // pred_region
          %s378 = ssub.s32 2048, 2048
          %379 = vsyncadd [#allocation9], %s378
          %s380 = sshll.u32 [#allocation10], 4
          %s381 = int_to_ptr.vmem [resolvable:$true] %s380
          %386 = dma.hbm_to_vmem [thread:$0]  %s4, 2048, %s381, [#allocation9], 128, 128, 8
        $region28: #{llama_decoder_layer.1} parent=11 // pred_fallthru
          _
        // Predicated region
        $region29: #{llama_decoder_layer.1} parent=11 // pred_check
          %p387 = pneg %p163
        $region30: #{llama_decoder_layer.1} parent=11 // pred_check_branch
          %389 = sbr.rel (%p387) target = $region32
        $region31: #{llama_decoder_layer.1} parent=11 // pred_region
          _
        $region32: #{llama_decoder_layer.1} parent=11 // pred_fallthru
          _
        // Predicated region
        $region33: #{llama_decoder_layer.1} parent=11 // pred_check
          %p390 = pneg %p184
        $region34: #{llama_decoder_layer.1} parent=11 // pred_check_branch
          %392 = sbr.rel (%p390) target = $region36
        $region35: #{llama_decoder_layer.1} parent=11 // pred_region
          _
        $region36: #{llama_decoder_layer.1} parent=11 // pred_fallthru
          _
        // Predicated region
        $region37: #{llama_decoder_layer.1} parent=11 // pred_check
          %p393 = pneg %p205
        $region38: #{llama_decoder_layer.1} parent=11 // pred_check_branch
          %395 = sbr.rel (%p393) target = $region40
        $region39: #{llama_decoder_layer.1} parent=11 // pred_region
          %s397 = ssub.s32 14336, 14336
          %398 = vsyncadd [#allocation12], %s397
          %s399 = sshll.u32 [#allocation11], 4
          %s400 = int_to_ptr.vmem [resolvable:$true] %s399
          %405 = dma.hbm_to_vmem [thread:$0]  %s7, 14336, %s400, [#allocation12], 448, 448, 28
        $region40: #{llama_decoder_layer.1} parent=11 // pred_fallthru
          _
        // Predicated region
        $region41: #{llama_decoder_layer.1} parent=11 // pred_check
          %p406 = pneg %p226
        $region42: #{llama_decoder_layer.1} parent=11 // pred_check_branch
          %408 = sbr.rel (%p406) target = $region44
        $region43: #{llama_decoder_layer.1} parent=11 // pred_region
          %s410 = ssub.s32 4096, 4096
          %411 = vsyncadd [#allocation12], %s410
          %s412 = sshll.u32 [#allocation13], 4
          %s413 = int_to_ptr.vmem [resolvable:$true] %s412
          %418 = dma.hbm_to_vmem [thread:$0]  %s8, 4096, %s413, [#allocation12], 128, 128, 8
        $region44: #{llama_decoder_layer.1} parent=11 // pred_fallthru
          _
        // Predicated region
        $region45: #{llama_decoder_layer.1} parent=11 // pred_check
          %p419 = pneg %p247
        $region46: #{llama_decoder_layer.1} parent=11 // pred_check_branch
          %421 = sbr.rel (%p419) target = $region48
        $region47: #{llama_decoder_layer.1} parent=11 // pred_region
          %s423 = ssub.s32 16384, 16384
          %424 = vsyncadd [#allocation15], %s423
          %s425 = sshll.u32 [#allocation14], 4
          %s426 = int_to_ptr.vmem [resolvable:$true] %s425
          %431 = dma.hbm_to_vmem [thread:$0]  %s9, 16384, %s426, [#allocation15], 512, 512, 32
        $region48: #{llama_decoder_layer.1} parent=11 // pred_fallthru
          _
        // Predicated region
        $region49: #{llama_decoder_layer.1} parent=11 // pred_check
          %p432 = pneg %p268
        $region50: #{llama_decoder_layer.1} parent=11 // pred_check_branch
          %434 = sbr.rel (%p432) target = $region52
        $region51: #{llama_decoder_layer.1} parent=11 // pred_region
          %s436 = ssub.s32 8192, 8192
          %437 = vsyncadd [#allocation15], %s436
          %s438 = sshll.u32 [#allocation16], 4
          %s439 = int_to_ptr.vmem [resolvable:$true] %s438
          %444 = dma.hbm_to_vmem [thread:$0]  %s10, 8192, %s439, [#allocation15], 128, 128, 8
        $region52: #{llama_decoder_layer.1} parent=11 // pred_fallthru
          _
      $region12: #{llama_decoder_layer.1} parent=5 // pred_fallthru
        _
      %p445 = scmp.lt.s32.totalorder %s32, 2
      // Predicated region
      $region53: #{llama_decoder_layer.1} parent=5 // pred_check
        %p446 = pneg %p445
      $region54: #{llama_decoder_layer.1} parent=5 // pred_check_branch
        %448 = sbr.rel (%p446) target = $region56
      $region55: #{llama_decoder_layer.1} parent=5 // pred_region
        // Predicated region
        $region57: #{llama_decoder_layer.1} parent=55 // pred_check
          %p449 = pneg %p52
        $region58: #{llama_decoder_layer.1} parent=55 // pred_check_branch
          %451 = sbr.rel (%p449) target = $region60
        $region59: #{llama_decoder_layer.1} parent=55 // pred_region
          %s452 = sand.u32 %s42, 1
          %s453 = scalar_lea.sflag [#allocation3], %s452
          %s454 = sand.u32 %s42, 1
          %s455 = smul.addr %s454, 256
          %s456 = scalar_lea.vmem [#allocation2], %s455
          %s458 = ssub.s32 4096, 4096
          %459 = vsyncadd %s453, %s458
          %s460 = smul.addr %s32, 32
          %s461 = smul.addr %s460, 128
          %s462 = scalar_lea.hbm %s0, %s461
          %s463 = sshll.u32 %s456, 4
          %s464 = int_to_ptr.vmem [resolvable:$true] %s463
          %469 = dma.hbm_to_vmem [thread:$0]  %s462, 4096, %s464, %s453, 256, 256, 16
        $region60: #{llama_decoder_layer.1} parent=55 // pred_fallthru
          _
      $region56: #{llama_decoder_layer.1} parent=5 // pred_fallthru
        _
      %p470 = scmp.le.s32.totalorder 1, %s32
      %p471 = scmp.lt.s32.totalorder %s32, 3
      %p472 = pnand %p470, %p471
      %p473 = pneg %p472
      // Predicated region
      $region61: #{llama_decoder_layer.1} parent=5 // pred_check
        _
      $region62: #{llama_decoder_layer.1} parent=5 // pred_check_branch
        %475 = sbr.rel (%p472) target = $region64
      $region63: #{llama_decoder_layer.1} parent=5 // pred_region
        %s476 = ssub.s32 %s32, 1
        %s477 = sand.u32 %s45, 1
        %s478 = scalar_lea.sflag [#allocation3], %s477
        %s479 = sand.u32 %s45, 1
        %s480 = smul.addr %s479, 256
        %s481 = scalar_lea.vmem [#allocation2], %s480
        // Predicated region
        $region65: #{llama_decoder_layer.1} parent=63 // pred_check
          %p482 = pneg %p58
        $region66: #{llama_decoder_layer.1} parent=63 // pred_check_branch
          %484 = sbr.rel (%p482) target = $region68
        $region67: #{llama_decoder_layer.1} parent=63 // pred_region
          %485 = dma.done %s478, 4096
        $region68: #{llama_decoder_layer.1} parent=63 // pred_fallthru
          _
        // Predicated region
        $region69: #{llama_decoder_layer.1} parent=63 // pred_check
          %p486 = pneg %p79
        $region70: #{llama_decoder_layer.1} parent=63 // pred_check_branch
          %488 = sbr.rel (%p486) target = $region72
        $region71: #{llama_decoder_layer.1} parent=63 // pred_region
          %489 = dma.done [#allocation6], 4096
        $region72: #{llama_decoder_layer.1} parent=63 // pred_fallthru
          _
        // Predicated region
        $region73: #{llama_decoder_layer.1} parent=63 // pred_check
          %p490 = pneg %p100
        $region74: #{llama_decoder_layer.1} parent=63 // pred_check_branch
          %492 = sbr.rel (%p490) target = $region76
        $region75: #{llama_decoder_layer.1} parent=63 // pred_region
          %493 = dma.done [#allocation6], 4096
        $region76: #{llama_decoder_layer.1} parent=63 // pred_fallthru
          _
        // Predicated region
        $region77: #{llama_decoder_layer.1} parent=63 // pred_check
          %p494 = pneg %p121
        $region78: #{llama_decoder_layer.1} parent=63 // pred_check_branch
          %496 = sbr.rel (%p494) target = $region80
        $region79: #{llama_decoder_layer.1} parent=63 // pred_region
          %497 = dma.done [#allocation9], 2048
        $region80: #{llama_decoder_layer.1} parent=63 // pred_fallthru
          _
        // Predicated region
        $region81: #{llama_decoder_layer.1} parent=63 // pred_check
          %p498 = pneg %p142
        $region82: #{llama_decoder_layer.1} parent=63 // pred_check_branch
          %500 = sbr.rel (%p498) target = $region84
        $region83: #{llama_decoder_layer.1} parent=63 // pred_region
          %501 = dma.done [#allocation9], 2048
        $region84: #{llama_decoder_layer.1} parent=63 // pred_fallthru
          _
        // Predicated region
        $region85: #{llama_decoder_layer.1} parent=63 // pred_check
          %p502 = pneg %p205
        $region86: #{llama_decoder_layer.1} parent=63 // pred_check_branch
          %504 = sbr.rel (%p502) target = $region88
        $region87: #{llama_decoder_layer.1} parent=63 // pred_region
          %505 = dma.done [#allocation12], 14336
        $region88: #{llama_decoder_layer.1} parent=63 // pred_fallthru
          _
        // Predicated region
        $region89: #{llama_decoder_layer.1} parent=63 // pred_check
          %p506 = pneg %p226
        $region90: #{llama_decoder_layer.1} parent=63 // pred_check_branch
          %508 = sbr.rel (%p506) target = $region92
        $region91: #{llama_decoder_layer.1} parent=63 // pred_region
          %509 = dma.done [#allocation12], 4096
        $region92: #{llama_decoder_layer.1} parent=63 // pred_fallthru
          _
        // Predicated region
        $region93: #{llama_decoder_layer.1} parent=63 // pred_check
          %p510 = pneg %p247
        $region94: #{llama_decoder_layer.1} parent=63 // pred_check_branch
          %512 = sbr.rel (%p510) target = $region96
        $region95: #{llama_decoder_layer.1} parent=63 // pred_region
          %513 = dma.done [#allocation15], 16384
        $region96: #{llama_decoder_layer.1} parent=63 // pred_fallthru
          _
        // Predicated region
        $region97: #{llama_decoder_layer.1} parent=63 // pred_check
          %p514 = pneg %p268
        $region98: #{llama_decoder_layer.1} parent=63 // pred_check_branch
          %516 = sbr.rel (%p514) target = $region100
        $region99: #{llama_decoder_layer.1} parent=63 // pred_region
          %517 = dma.done [#allocation15], 8192
        $region100: #{llama_decoder_layer.1} parent=63 // pred_fallthru
          _
        %s518 = sand.u32 %s45, 1
        %s519 = scalar_lea.sflag [#allocation3], %s518
        %s520 = sand.u32 %s45, 1
        %s521 = smul.addr %s520, 256
        %s522 = scalar_lea.vmem [#allocation2], %s521
        %p523 = pneg %p58
        %p524 = pneg %p55
        %p525 = pneg %p79
        %p526 = pneg %p76
        %p527 = pneg %p100
        %p528 = pneg %p97
        %p529 = pneg %p121
        %p530 = pneg %p118
        %p531 = pneg %p142
        %p532 = pneg %p139
        %p533 = pneg %p163
        %p534 = pneg %p160
        %p535 = pneg %p184
        %p536 = pneg %p181
        %p537 = pneg %p205
        %p538 = pneg %p202
        %p539 = pneg %p226
        %p540 = pneg %p223
        %p541 = pneg %p247
        %p542 = pneg %p244
        %p543 = pneg %p268
        %p544 = pneg %p265
        %p545 = pneg %p294
        %p546 = pneg %p291
        %s547 = sand.u32 %s281, 1
        %s548 = scalar_lea.sflag [#allocation4], %s547
        %s549 = sand.u32 %s281, 1
        %s550 = smul.addr %s549, 256
        %s551 = scalar_lea.vmem [#allocation17], %s550
        %p552 = pneg %p320
        %p553 = pneg %p317
        %s554 = sand.u32 %s307, 1
        %s555 = scalar_lea.sflag [#allocation19], %s554
        %s556 = sand.u32 %s307, 1
        %s557 = smul.addr %s556, 256
        %s558 = scalar_lea.vmem [#allocation18], %s557
        %v560 = vld [vmem:[%s481] sm:$0xff]
        %v561 = vld [vmem:[%s481 + $0x8] sm:$0xff]
        %v562 = vld [vmem:[%s481 + $0x10] sm:$0xff]
        %v563 = vld [vmem:[%s481 + $0x18] sm:$0xff]
        %v564 = vld [vmem:[%s481 + $0x20] sm:$0xff]
        %v565 = vld [vmem:[%s481 + $0x28] sm:$0xff]
        %v566 = vld [vmem:[%s481 + $0x30] sm:$0xff]
        %v567 = vld [vmem:[%s481 + $0x38] sm:$0xff]
        %v568 = vld [vmem:[%s481 + $0x40] sm:$0xff]
        %v569 = vld [vmem:[%s481 + $0x48] sm:$0xff]
        %v570 = vld [vmem:[%s481 + $0x50] sm:$0xff]
        %v571 = vld [vmem:[%s481 + $0x58] sm:$0xff]
        %v572 = vld [vmem:[%s481 + $0x60] sm:$0xff]
        %v573 = vld [vmem:[%s481 + $0x68] sm:$0xff]
        %v574 = vld [vmem:[%s481 + $0x70] sm:$0xff]
        %v575 = vld [vmem:[%s481 + $0x78] sm:$0xff]
        %v576 = vld [vmem:[%s481 + $0x80] sm:$0xff]
        %v577 = vld [vmem:[%s481 + $0x88] sm:$0xff]
        %v578 = vld [vmem:[%s481 + $0x90] sm:$0xff]
        %v579 = vld [vmem:[%s481 + $0x98] sm:$0xff]
        %v580 = vld [vmem:[%s481 + $0xa0] sm:$0xff]
        %v581 = vld [vmem:[%s481 + $0xa8] sm:$0xff]
        %v582 = vld [vmem:[%s481 + $0xb0] sm:$0xff]
        %v583 = vld [vmem:[%s481 + $0xb8] sm:$0xff]
        %v584 = vld [vmem:[%s481 + $0xc0] sm:$0xff]
        %v585 = vld [vmem:[%s481 + $0xc8] sm:$0xff]
        %v586 = vld [vmem:[%s481 + $0xd0] sm:$0xff]
        %v587 = vld [vmem:[%s481 + $0xd8] sm:$0xff]
        %v588 = vld [vmem:[%s481 + $0xe0] sm:$0xff]
        %v589 = vld [vmem:[%s481 + $0xe8] sm:$0xff]
        %v590 = vld [vmem:[%s481 + $0xf0] sm:$0xff]
        %v591 = vld [vmem:[%s481 + $0xf8] sm:$0xff]
        %v592 = vmul.f32 %v560, %v560
        %v593 = vmul.f32 %v561, %v561
        %v594 = vmul.f32 %v562, %v562
        %v595 = vmul.f32 %v563, %v563
        %v596 = vmul.f32 %v564, %v564
        %v597 = vmul.f32 %v565, %v565
        %v598 = vmul.f32 %v566, %v566
        %v599 = vmul.f32 %v567, %v567
        %v600 = vmul.f32 %v568, %v568
        %v601 = vmul.f32 %v569, %v569
        %v602 = vmul.f32 %v570, %v570
        %v603 = vmul.f32 %v571, %v571
        %v604 = vmul.f32 %v572, %v572
        %v605 = vmul.f32 %v573, %v573
        %v606 = vmul.f32 %v574, %v574
        %v607 = vmul.f32 %v575, %v575
        %v608 = vmul.f32 %v576, %v576
        %v609 = vmul.f32 %v577, %v577
        %v610 = vmul.f32 %v578, %v578
        %v611 = vmul.f32 %v579, %v579
        %v612 = vmul.f32 %v580, %v580
        %v613 = vmul.f32 %v581, %v581
        %v614 = vmul.f32 %v582, %v582
        %v615 = vmul.f32 %v583, %v583
        %v616 = vmul.f32 %v584, %v584
        %v617 = vmul.f32 %v585, %v585
        %v618 = vmul.f32 %v586, %v586
        %v619 = vmul.f32 %v587, %v587
        %v620 = vmul.f32 %v588, %v588
        %v621 = vmul.f32 %v589, %v589
        %v622 = vmul.f32 %v590, %v590
        %v623 = vmul.f32 %v591, %v591
        %v624 = vadd.f32 %v592, %v593
        %625 = vadd.xlane.f32.xlu0 %v624
        %v626 = vpop.xlane.xlu0 %625
        %v627 = vadd.f32 %v594, %v595
        %628 = vadd.xlane.f32.xlu0 %v627
        %v629 = vpop.xlane.xlu0 %628
        %v630 = vadd.f32 %v596, %v597
        %631 = vadd.xlane.f32.xlu0 %v630
        %v632 = vpop.xlane.xlu0 %631
        %v633 = vadd.f32 %v598, %v599
        %634 = vadd.xlane.f32.xlu0 %v633
        %v635 = vpop.xlane.xlu0 %634
        %v636 = vadd.f32 %v600, %v601
        %637 = vadd.xlane.f32.xlu0 %v636
        %v638 = vpop.xlane.xlu0 %637
        %v639 = vadd.f32 %v602, %v603
        %640 = vadd.xlane.f32.xlu0 %v639
        %v641 = vpop.xlane.xlu0 %640
        %v642 = vadd.f32 %v604, %v605
        %643 = vadd.xlane.f32.xlu0 %v642
        %v644 = vpop.xlane.xlu0 %643
        %v645 = vadd.f32 %v606, %v607
        %646 = vadd.xlane.f32.xlu0 %v645
        %v647 = vpop.xlane.xlu0 %646
        %v648 = vadd.f32 %v608, %v609
        %649 = vadd.xlane.f32.xlu0 %v648
        %v650 = vpop.xlane.xlu0 %649
        %v651 = vadd.f32 %v610, %v611
        %652 = vadd.xlane.f32.xlu0 %v651
        %v653 = vpop.xlane.xlu0 %652
        %v654 = vadd.f32 %v612, %v613
        %655 = vadd.xlane.f32.xlu0 %v654
        %v656 = vpop.xlane.xlu0 %655
        %v657 = vadd.f32 %v614, %v615
        %658 = vadd.xlane.f32.xlu0 %v657
        %v659 = vpop.xlane.xlu0 %658
        %v660 = vadd.f32 %v616, %v617
        %661 = vadd.xlane.f32.xlu0 %v660
        %v662 = vpop.xlane.xlu0 %661
        %v663 = vadd.f32 %v618, %v619
        %664 = vadd.xlane.f32.xlu0 %v663
        %v665 = vpop.xlane.xlu0 %664
        %v666 = vadd.f32 %v620, %v621
        %667 = vadd.xlane.f32.xlu0 %v666
        %v668 = vpop.xlane.xlu0 %667
        %v669 = vadd.f32 %v622, %v623
        %670 = vadd.xlane.f32.xlu0 %v669
        %v671 = vpop.xlane.xlu0 %670
        %v672 = vrcp.pop 256.0
        %v673 = vmul.f32 %v626, %v672
        %v674 = vmul.f32 %v629, %v672
        %v675 = vmul.f32 %v632, %v672
        %v676 = vmul.f32 %v635, %v672
        %v677 = vmul.f32 %v638, %v672
        %v678 = vmul.f32 %v641, %v672
        %v679 = vmul.f32 %v644, %v672
        %v680 = vmul.f32 %v647, %v672
        %v681 = vmul.f32 %v650, %v672
        %v682 = vmul.f32 %v653, %v672
        %v683 = vmul.f32 %v656, %v672
        %v684 = vmul.f32 %v659, %v672
        %v685 = vmul.f32 %v662, %v672
        %v686 = vmul.f32 %v665, %v672
        %v687 = vmul.f32 %v668, %v672
        %v688 = vmul.f32 %v671, %v672
        %v689 = vadd.f32 %v673, 1e-05
        %v690 = vadd.f32 %v674, 1e-05
        %v691 = vadd.f32 %v675, 1e-05
        %v692 = vadd.f32 %v676, 1e-05
        %v693 = vadd.f32 %v677, 1e-05
        %v694 = vadd.f32 %v678, 1e-05
        %v695 = vadd.f32 %v679, 1e-05
        %v696 = vadd.f32 %v680, 1e-05
        %v697 = vadd.f32 %v681, 1e-05
        %v698 = vadd.f32 %v682, 1e-05
        %v699 = vadd.f32 %v683, 1e-05
        %v700 = vadd.f32 %v684, 1e-05
        %v701 = vadd.f32 %v685, 1e-05
        %v702 = vadd.f32 %v686, 1e-05
        %v703 = vadd.f32 %v687, 1e-05
        %v704 = vadd.f32 %v688, 1e-05
        %v705 = vrsqrt.pop %v689
        %v706 = vrsqrt.pop %v690
        %v707 = vrsqrt.pop %v691
        %v708 = vrsqrt.pop %v692
        %v709 = vrsqrt.pop %v693
        %v710 = vrsqrt.pop %v694
        %v711 = vrsqrt.pop %v695
        %v712 = vrsqrt.pop %v696
        %v713 = vrsqrt.pop %v697
        %v714 = vrsqrt.pop %v698
        %v715 = vrsqrt.pop %v699
        %v716 = vrsqrt.pop %v700
        %v717 = vrsqrt.pop %v701
        %v718 = vrsqrt.pop %v702
        %v719 = vrsqrt.pop %v703
        %v720 = vrsqrt.pop %v704
        %v721 = vmul.f32 %v560, %v705
        %v722 = vmul.f32 %v561, %v705
        %v723 = vmul.f32 %v562, %v706
        %v724 = vmul.f32 %v563, %v706
        %v725 = vmul.f32 %v564, %v707
        %v726 = vmul.f32 %v565, %v707
        %v727 = vmul.f32 %v566, %v708
        %v728 = vmul.f32 %v567, %v708
        %v729 = vmul.f32 %v568, %v709
        %v730 = vmul.f32 %v569, %v709
        %v731 = vmul.f32 %v570, %v710
        %v732 = vmul.f32 %v571, %v710
        %v733 = vmul.f32 %v572, %v711
        %v734 = vmul.f32 %v573, %v711
        %v735 = vmul.f32 %v574, %v712
        %v736 = vmul.f32 %v575, %v712
        %v737 = vmul.f32 %v576, %v713
        %v738 = vmul.f32 %v577, %v713
        %v739 = vmul.f32 %v578, %v714
        %v740 = vmul.f32 %v579, %v714
        %v741 = vmul.f32 %v580, %v715
        %v742 = vmul.f32 %v581, %v715
        %v743 = vmul.f32 %v582, %v716
        %v744 = vmul.f32 %v583, %v716
        %v745 = vmul.f32 %v584, %v717
        %v746 = vmul.f32 %v585, %v717
        %v747 = vmul.f32 %v586, %v718
        %v748 = vmul.f32 %v587, %v718
        %v749 = vmul.f32 %v588, %v719
        %v750 = vmul.f32 %v589, %v719
        %v751 = vmul.f32 %v590, %v720
        %v752 = vmul.f32 %v591, %v720
        %v753 = vld [vmem:[%s5] sm:$0x3]
        %v755 = vlaneseq
        %v756 = vshrl.u32 %v755, 7
        %v757 = vsub.s32 0, %v756
        %v758 = vrot.slane %v753, %v757
        %v759 = vlaneseq
        %v760 = vshrl.u32 %v759, 7
        %v761 = vsub.s32 1, %v760
        %v762 = vrot.slane %v753, %v761
        %v765 = vmul.f32 %v721, %v758
        %v766 = vmul.f32 %v722, %v762
        %v767 = vmul.f32 %v723, %v758
        %v768 = vmul.f32 %v724, %v762
        %v769 = vmul.f32 %v725, %v758
        %v770 = vmul.f32 %v726, %v762
        %v771 = vmul.f32 %v727, %v758
        %v772 = vmul.f32 %v728, %v762
        %v773 = vmul.f32 %v729, %v758
        %v774 = vmul.f32 %v730, %v762
        %v775 = vmul.f32 %v731, %v758
        %v776 = vmul.f32 %v732, %v762
        %v777 = vmul.f32 %v733, %v758
        %v778 = vmul.f32 %v734, %v762
        %v779 = vmul.f32 %v735, %v758
        %v780 = vmul.f32 %v736, %v762
        %v781 = vmul.f32 %v737, %v758
        %v782 = vmul.f32 %v738, %v762
        %v783 = vmul.f32 %v739, %v758
        %v784 = vmul.f32 %v740, %v762
        %v785 = vmul.f32 %v741, %v758
        %v786 = vmul.f32 %v742, %v762
        %v787 = vmul.f32 %v743, %v758
        %v788 = vmul.f32 %v744, %v762
        %v789 = vmul.f32 %v745, %v758
        %v790 = vmul.f32 %v746, %v762
        %v791 = vmul.f32 %v747, %v758
        %v792 = vmul.f32 %v748, %v762
        %v793 = vmul.f32 %v749, %v758
        %v794 = vmul.f32 %v750, %v762
        %v795 = vmul.f32 %v751, %v758
        %v796 = vmul.f32 %v752, %v762
        %v797 = vpack.c.bf16 %v767, %v765
        %v798 = vpack.c.bf16 %v768, %v766
        %v799 = vpack.c.bf16 %v771, %v769
        %v800 = vpack.c.bf16 %v772, %v770
        %v801 = vpack.c.bf16 %v775, %v773
        %v802 = vpack.c.bf16 %v776, %v774
        %v803 = vpack.c.bf16 %v779, %v777
        %v804 = vpack.c.bf16 %v780, %v778
        %v805 = vpack.c.bf16 %v783, %v781
        %v806 = vpack.c.bf16 %v784, %v782
        %v807 = vpack.c.bf16 %v787, %v785
        %v808 = vpack.c.bf16 %v788, %v786
        %v809 = vpack.c.bf16 %v791, %v789
        %v810 = vpack.c.bf16 %v792, %v790
        %v811 = vpack.c.bf16 %v795, %v793
        %v812 = vpack.c.bf16 %v796, %v794
        %v813 = vld [vmem:[#allocation11] sm:$0xff]
        %v814 = vld [vmem:[#allocation11 + $0x8] sm:$0xff]
        %v815 = vld [vmem:[#allocation11 + $0x10] sm:$0xff]
        %v816 = vld [vmem:[#allocation11 + $0x18] sm:$0xf]
        %v817 = vld [vmem:[#allocation11 + $0x1c] sm:$0xff]
        %v818 = vld [vmem:[#allocation11 + $0x24] sm:$0xff]
        %v819 = vld [vmem:[#allocation11 + $0x2c] sm:$0xff]
        %v820 = vld [vmem:[#allocation11 + $0x34] sm:$0xf]
        %v821 = vld [vmem:[#allocation11 + $0x38] sm:$0xff]
        %v822 = vld [vmem:[#allocation11 + $0x40] sm:$0xff]
        %v823 = vld [vmem:[#allocation11 + $0x48] sm:$0xff]
        %v824 = vld [vmem:[#allocation11 + $0x50] sm:$0xf]
        %v825 = vld [vmem:[#allocation11 + $0x54] sm:$0xff]
        %v826 = vld [vmem:[#allocation11 + $0x5c] sm:$0xff]
        %v827 = vld [vmem:[#allocation11 + $0x64] sm:$0xff]
        %v828 = vld [vmem:[#allocation11 + $0x6c] sm:$0xf]
        %v829 = vld [vmem:[#allocation11 + $0x70] sm:$0xff]
        %v830 = vld [vmem:[#allocation11 + $0x78] sm:$0xff]
        %v831 = vld [vmem:[#allocation11 + $0x80] sm:$0xff]
        %v832 = vld [vmem:[#allocation11 + $0x88] sm:$0xf]
        %v833 = vld [vmem:[#allocation11 + $0x8c] sm:$0xff]
        %v834 = vld [vmem:[#allocation11 + $0x94] sm:$0xff]
        %v835 = vld [vmem:[#allocation11 + $0x9c] sm:$0xff]
        %v836 = vld [vmem:[#allocation11 + $0xa4] sm:$0xf]
        %v837 = vld [vmem:[#allocation11 + $0xa8] sm:$0xff]
        %v838 = vld [vmem:[#allocation11 + $0xb0] sm:$0xff]
        %v839 = vld [vmem:[#allocation11 + $0xb8] sm:$0xff]
        %v840 = vld [vmem:[#allocation11 + $0xc0] sm:$0xf]
        %v841 = vld [vmem:[#allocation11 + $0xc4] sm:$0xff]
        %v842 = vld [vmem:[#allocation11 + $0xcc] sm:$0xff]
        %v843 = vld [vmem:[#allocation11 + $0xd4] sm:$0xff]
        %v844 = vld [vmem:[#allocation11 + $0xdc] sm:$0xf]
        %v845 = vld [vmem:[#allocation11 + $0xe0] sm:$0xff]
        %v846 = vld [vmem:[#allocation11 + $0xe8] sm:$0xff]
        %v847 = vld [vmem:[#allocation11 + $0xf0] sm:$0xff]
        %v848 = vld [vmem:[#allocation11 + $0xf8] sm:$0xf]
        %v849 = vld [vmem:[#allocation11 + $0xfc] sm:$0xff]
        %v850 = vld [vmem:[#allocation11 + $0x104] sm:$0xff]
        %v851 = vld [vmem:[#allocation11 + $0x10c] sm:$0xff]
        %v852 = vld [vmem:[#allocation11 + $0x114] sm:$0xf]
        %v853 = vld [vmem:[#allocation11 + $0x118] sm:$0xff]
        %v854 = vld [vmem:[#allocation11 + $0x120] sm:$0xff]
        %v855 = vld [vmem:[#allocation11 + $0x128] sm:$0xff]
        %v856 = vld [vmem:[#allocation11 + $0x130] sm:$0xf]
        %v857 = vld [vmem:[#allocation11 + $0x134] sm:$0xff]
        %v858 = vld [vmem:[#allocation11 + $0x13c] sm:$0xff]
        %v859 = vld [vmem:[#allocation11 + $0x144] sm:$0xff]
        %v860 = vld [vmem:[#allocation11 + $0x14c] sm:$0xf]
        %v861 = vld [vmem:[#allocation11 + $0x150] sm:$0xff]
        %v862 = vld [vmem:[#allocation11 + $0x158] sm:$0xff]
        %v863 = vld [vmem:[#allocation11 + $0x160] sm:$0xff]
        %v864 = vld [vmem:[#allocation11 + $0x168] sm:$0xf]
        %v865 = vld [vmem:[#allocation11 + $0x16c] sm:$0xff]
        %v866 = vld [vmem:[#allocation11 + $0x174] sm:$0xff]
        %v867 = vld [vmem:[#allocation11 + $0x17c] sm:$0xff]
        %v868 = vld [vmem:[#allocation11 + $0x184] sm:$0xf]
        %v869 = vld [vmem:[#allocation11 + $0x188] sm:$0xff]
        %v870 = vld [vmem:[#allocation11 + $0x190] sm:$0xff]
        %v871 = vld [vmem:[#allocation11 + $0x198] sm:$0xff]
        %v872 = vld [vmem:[#allocation11 + $0x1a0] sm:$0xf]
        %v873 = vld [vmem:[#allocation11 + $0x1a4] sm:$0xff]
        %v874 = vld [vmem:[#allocation11 + $0x1ac] sm:$0xff]
        %v875 = vld [vmem:[#allocation11 + $0x1b4] sm:$0xff]
        %v876 = vld [vmem:[#allocation11 + $0x1bc] sm:$0xf]
        %v877 = vld [vmem:[#allocation11 + $0x1c0] sm:$0xff]
        %v878 = vld [vmem:[#allocation11 + $0x1c8] sm:$0xff]
        %v879 = vld [vmem:[#allocation11 + $0x1d0] sm:$0xff]
        %v880 = vld [vmem:[#allocation11 + $0x1d8] sm:$0xf]
        %v881 = vld [vmem:[#allocation11 + $0x1dc] sm:$0xff]
        %v882 = vld [vmem:[#allocation11 + $0x1e4] sm:$0xff]
        %v883 = vld [vmem:[#allocation11 + $0x1ec] sm:$0xff]
        %v884 = vld [vmem:[#allocation11 + $0x1f4] sm:$0xf]
        %v885 = vld [vmem:[#allocation11 + $0x1f8] sm:$0xff]
        %v886 = vld [vmem:[#allocation11 + $0x200] sm:$0xff]
        %v887 = vld [vmem:[#allocation11 + $0x208] sm:$0xff]
        %v888 = vld [vmem:[#allocation11 + $0x210] sm:$0xf]
        %v889 = vld [vmem:[#allocation11 + $0x214] sm:$0xff]
        %v890 = vld [vmem:[#allocation11 + $0x21c] sm:$0xff]
        %v891 = vld [vmem:[#allocation11 + $0x224] sm:$0xff]
        %v892 = vld [vmem:[#allocation11 + $0x22c] sm:$0xf]
        %v893 = vld [vmem:[#allocation11 + $0x230] sm:$0xff]
        %v894 = vld [vmem:[#allocation11 + $0x238] sm:$0xff]
        %v895 = vld [vmem:[#allocation11 + $0x240] sm:$0xff]
        %v896 = vld [vmem:[#allocation11 + $0x248] sm:$0xf]
        %v897 = vld [vmem:[#allocation11 + $0x24c] sm:$0xff]
        %v898 = vld [vmem:[#allocation11 + $0x254] sm:$0xff]
        %v899 = vld [vmem:[#allocation11 + $0x25c] sm:$0xff]
        %v900 = vld [vmem:[#allocation11 + $0x264] sm:$0xf]
        %v901 = vld [vmem:[#allocation11 + $0x268] sm:$0xff]
        %v902 = vld [vmem:[#allocation11 + $0x270] sm:$0xff]
        %v903 = vld [vmem:[#allocation11 + $0x278] sm:$0xff]
        %v904 = vld [vmem:[#allocation11 + $0x280] sm:$0xf]
        %v905 = vld [vmem:[#allocation11 + $0x284] sm:$0xff]
        %v906 = vld [vmem:[#allocation11 + $0x28c] sm:$0xff]
        %v907 = vld [vmem:[#allocation11 + $0x294] sm:$0xff]
        %v908 = vld [vmem:[#allocation11 + $0x29c] sm:$0xf]
        %v909 = vld [vmem:[#allocation11 + $0x2a0] sm:$0xff]
        %v910 = vld [vmem:[#allocation11 + $0x2a8] sm:$0xff]
        %v911 = vld [vmem:[#allocation11 + $0x2b0] sm:$0xff]
        %v912 = vld [vmem:[#allocation11 + $0x2b8] sm:$0xf]
        %v913 = vld [vmem:[#allocation11 + $0x2bc] sm:$0xff]
        %v914 = vld [vmem:[#allocation11 + $0x2c4] sm:$0xff]
        %v915 = vld [vmem:[#allocation11 + $0x2cc] sm:$0xff]
        %v916 = vld [vmem:[#allocation11 + $0x2d4] sm:$0xf]
        %v917 = vld [vmem:[#allocation11 + $0x2d8] sm:$0xff]
        %v918 = vld [vmem:[#allocation11 + $0x2e0] sm:$0xff]
        %v919 = vld [vmem:[#allocation11 + $0x2e8] sm:$0xff]
        %v920 = vld [vmem:[#allocation11 + $0x2f0] sm:$0xf]
        %v921 = vld [vmem:[#allocation11 + $0x2f4] sm:$0xff]
        %v922 = vld [vmem:[#allocation11 + $0x2fc] sm:$0xff]
        %v923 = vld [vmem:[#allocation11 + $0x304] sm:$0xff]
        %v924 = vld [vmem:[#allocation11 + $0x30c] sm:$0xf]
        %v925 = vld [vmem:[#allocation11 + $0x310] sm:$0xff]
        %v926 = vld [vmem:[#allocation11 + $0x318] sm:$0xff]
        %v927 = vld [vmem:[#allocation11 + $0x320] sm:$0xff]
        %v928 = vld [vmem:[#allocation11 + $0x328] sm:$0xf]
        %v929 = vld [vmem:[#allocation11 + $0x32c] sm:$0xff]
        %v930 = vld [vmem:[#allocation11 + $0x334] sm:$0xff]
        %v931 = vld [vmem:[#allocation11 + $0x33c] sm:$0xff]
        %v932 = vld [vmem:[#allocation11 + $0x344] sm:$0xf]
        %v933 = vld [vmem:[#allocation11 + $0x348] sm:$0xff]
        %v934 = vld [vmem:[#allocation11 + $0x350] sm:$0xff]
        %v935 = vld [vmem:[#allocation11 + $0x358] sm:$0xff]
        %v936 = vld [vmem:[#allocation11 + $0x360] sm:$0xf]
        %v937 = vld [vmem:[#allocation11 + $0x364] sm:$0xff]
        %v938 = vld [vmem:[#allocation11 + $0x36c] sm:$0xff]
        %v939 = vld [vmem:[#allocation11 + $0x374] sm:$0xff]
        %v940 = vld [vmem:[#allocation11 + $0x37c] sm:$0xf]
        %v1069 = vunpack.c.l.b16 %v813
        %v1070 = vunpack.c.h.b16 %v813
        %v1071 = vunpack.c.l.b16 %v814
        %v1072 = vunpack.c.h.b16 %v814
        %v1073 = vunpack.c.l.b16 %v815
        %v1074 = vunpack.c.h.b16 %v815
        %v1075 = vunpack.c.l.b16 %v816
        %v1076 = vunpack.c.l.b16 %v817
        %v1077 = vunpack.c.h.b16 %v817
        %v1078 = vunpack.c.l.b16 %v818
        %v1079 = vunpack.c.h.b16 %v818
        %v1080 = vunpack.c.l.b16 %v819
        %v1081 = vunpack.c.h.b16 %v819
        %v1082 = vunpack.c.l.b16 %v820
        %v1083 = vunpack.c.l.b16 %v821
        %v1084 = vunpack.c.h.b16 %v821
        %v1085 = vunpack.c.l.b16 %v822
        %v1086 = vunpack.c.h.b16 %v822
        %v1087 = vunpack.c.l.b16 %v823
        %v1088 = vunpack.c.h.b16 %v823
        %v1089 = vunpack.c.l.b16 %v824
        %v1090 = vunpack.c.l.b16 %v825
        %v1091 = vunpack.c.h.b16 %v825
        %v1092 = vunpack.c.l.b16 %v826
        %v1093 = vunpack.c.h.b16 %v826
        %v1094 = vunpack.c.l.b16 %v827
        %v1095 = vunpack.c.h.b16 %v827
        %v1096 = vunpack.c.l.b16 %v828
        %v1097 = vunpack.c.l.b16 %v829
        %v1098 = vunpack.c.h.b16 %v829
        %v1099 = vunpack.c.l.b16 %v830
        %v1100 = vunpack.c.h.b16 %v830
        %v1101 = vunpack.c.l.b16 %v831
        %v1102 = vunpack.c.h.b16 %v831
        %v1103 = vunpack.c.l.b16 %v832
        %v1104 = vunpack.c.l.b16 %v833
        %v1105 = vunpack.c.h.b16 %v833
        %v1106 = vunpack.c.l.b16 %v834
        %v1107 = vunpack.c.h.b16 %v834
        %v1108 = vunpack.c.l.b16 %v835
        %v1109 = vunpack.c.h.b16 %v835
        %v1110 = vunpack.c.l.b16 %v836
        %v1111 = vunpack.c.l.b16 %v837
        %v1112 = vunpack.c.h.b16 %v837
        %v1113 = vunpack.c.l.b16 %v838
        %v1114 = vunpack.c.h.b16 %v838
        %v1115 = vunpack.c.l.b16 %v839
        %v1116 = vunpack.c.h.b16 %v839
        %v1117 = vunpack.c.l.b16 %v840
        %v1118 = vunpack.c.l.b16 %v841
        %v1119 = vunpack.c.h.b16 %v841
        %v1120 = vunpack.c.l.b16 %v842
        %v1121 = vunpack.c.h.b16 %v842
        %v1122 = vunpack.c.l.b16 %v843
        %v1123 = vunpack.c.h.b16 %v843
        %v1124 = vunpack.c.l.b16 %v844
        %v1125 = vunpack.c.l.b16 %v845
        %v1126 = vunpack.c.h.b16 %v845
        %v1127 = vunpack.c.l.b16 %v846
        %v1128 = vunpack.c.h.b16 %v846
        %v1129 = vunpack.c.l.b16 %v847
        %v1130 = vunpack.c.h.b16 %v847
        %v1131 = vunpack.c.l.b16 %v848
        %v1132 = vunpack.c.l.b16 %v849
        %v1133 = vunpack.c.h.b16 %v849
        %v1134 = vunpack.c.l.b16 %v850
        %v1135 = vunpack.c.h.b16 %v850
        %v1136 = vunpack.c.l.b16 %v851
        %v1137 = vunpack.c.h.b16 %v851
        %v1138 = vunpack.c.l.b16 %v852
        %v1139 = vunpack.c.l.b16 %v853
        %v1140 = vunpack.c.h.b16 %v853
        %v1141 = vunpack.c.l.b16 %v854
        %v1142 = vunpack.c.h.b16 %v854
        %v1143 = vunpack.c.l.b16 %v855
        %v1144 = vunpack.c.h.b16 %v855
        %v1145 = vunpack.c.l.b16 %v856
        %v1146 = vunpack.c.l.b16 %v857
        %v1147 = vunpack.c.h.b16 %v857
        %v1148 = vunpack.c.l.b16 %v858
        %v1149 = vunpack.c.h.b16 %v858
        %v1150 = vunpack.c.l.b16 %v859
        %v1151 = vunpack.c.h.b16 %v859
        %v1152 = vunpack.c.l.b16 %v860
        %v1153 = vunpack.c.l.b16 %v861
        %v1154 = vunpack.c.h.b16 %v861
        %v1155 = vunpack.c.l.b16 %v862
        %v1156 = vunpack.c.h.b16 %v862
        %v1157 = vunpack.c.l.b16 %v863
        %v1158 = vunpack.c.h.b16 %v863
        %v1159 = vunpack.c.l.b16 %v864
        %v1160 = vunpack.c.l.b16 %v865
        %v1161 = vunpack.c.h.b16 %v865
        %v1162 = vunpack.c.l.b16 %v866
        %v1163 = vunpack.c.h.b16 %v866
        %v1164 = vunpack.c.l.b16 %v867
        %v1165 = vunpack.c.h.b16 %v867
        %v1166 = vunpack.c.l.b16 %v868
        %v1167 = vunpack.c.l.b16 %v869
        %v1168 = vunpack.c.h.b16 %v869
        %v1169 = vunpack.c.l.b16 %v870
        %v1170 = vunpack.c.h.b16 %v870
        %v1171 = vunpack.c.l.b16 %v871
        %v1172 = vunpack.c.h.b16 %v871
        %v1173 = vunpack.c.l.b16 %v872
        %v1174 = vunpack.c.l.b16 %v873
        %v1175 = vunpack.c.h.b16 %v873
        %v1176 = vunpack.c.l.b16 %v874
        %v1177 = vunpack.c.h.b16 %v874
        %v1178 = vunpack.c.l.b16 %v875
        %v1179 = vunpack.c.h.b16 %v875
        %v1180 = vunpack.c.l.b16 %v876
        %v1181 = vunpack.c.l.b16 %v877
        %v1182 = vunpack.c.h.b16 %v877
        %v1183 = vunpack.c.l.b16 %v878
        %v1184 = vunpack.c.h.b16 %v878
        %v1185 = vunpack.c.l.b16 %v879
        %v1186 = vunpack.c.h.b16 %v879
        %v1187 = vunpack.c.l.b16 %v880
        %v1188 = vunpack.c.l.b16 %v881
        %v1189 = vunpack.c.h.b16 %v881
        %v1190 = vunpack.c.l.b16 %v882
        %v1191 = vunpack.c.h.b16 %v882
        %v1192 = vunpack.c.l.b16 %v883
        %v1193 = vunpack.c.h.b16 %v883
        %v1194 = vunpack.c.l.b16 %v884
        %v1195 = vunpack.c.l.b16 %v885
        %v1196 = vunpack.c.h.b16 %v885
        %v1197 = vunpack.c.l.b16 %v886
        %v1198 = vunpack.c.h.b16 %v886
        %v1199 = vunpack.c.l.b16 %v887
        %v1200 = vunpack.c.h.b16 %v887
        %v1201 = vunpack.c.l.b16 %v888
        %v1202 = vunpack.c.l.b16 %v889
        %v1203 = vunpack.c.h.b16 %v889
        %v1204 = vunpack.c.l.b16 %v890
        %v1205 = vunpack.c.h.b16 %v890
        %v1206 = vunpack.c.l.b16 %v891
        %v1207 = vunpack.c.h.b16 %v891
        %v1208 = vunpack.c.l.b16 %v892
        %v1209 = vunpack.c.l.b16 %v893
        %v1210 = vunpack.c.h.b16 %v893
        %v1211 = vunpack.c.l.b16 %v894
        %v1212 = vunpack.c.h.b16 %v894
        %v1213 = vunpack.c.l.b16 %v895
        %v1214 = vunpack.c.h.b16 %v895
        %v1215 = vunpack.c.l.b16 %v896
        %v1216 = vunpack.c.l.b16 %v897
        %v1217 = vunpack.c.h.b16 %v897
        %v1218 = vunpack.c.l.b16 %v898
        %v1219 = vunpack.c.h.b16 %v898
        %v1220 = vunpack.c.l.b16 %v899
        %v1221 = vunpack.c.h.b16 %v899
        %v1222 = vunpack.c.l.b16 %v900
        %v1223 = vunpack.c.l.b16 %v901
        %v1224 = vunpack.c.h.b16 %v901
        %v1225 = vunpack.c.l.b16 %v902
        %v1226 = vunpack.c.h.b16 %v902
        %v1227 = vunpack.c.l.b16 %v903
        %v1228 = vunpack.c.h.b16 %v903
        %v1229 = vunpack.c.l.b16 %v904
        %v1230 = vunpack.c.l.b16 %v905
        %v1231 = vunpack.c.h.b16 %v905
        %v1232 = vunpack.c.l.b16 %v906
        %v1233 = vunpack.c.h.b16 %v906
        %v1234 = vunpack.c.l.b16 %v907
        %v1235 = vunpack.c.h.b16 %v907
        %v1236 = vunpack.c.l.b16 %v908
        %v1237 = vunpack.c.l.b16 %v909
        %v1238 = vunpack.c.h.b16 %v909
        %v1239 = vunpack.c.l.b16 %v910
        %v1240 = vunpack.c.h.b16 %v910
        %v1241 = vunpack.c.l.b16 %v911
        %v1242 = vunpack.c.h.b16 %v911
        %v1243 = vunpack.c.l.b16 %v912
        %v1244 = vunpack.c.l.b16 %v913
        %v1245 = vunpack.c.h.b16 %v913
        %v1246 = vunpack.c.l.b16 %v914
        %v1247 = vunpack.c.h.b16 %v914
        %v1248 = vunpack.c.l.b16 %v915
        %v1249 = vunpack.c.h.b16 %v915
        %v1250 = vunpack.c.l.b16 %v916
        %v1251 = vunpack.c.l.b16 %v917
        %v1252 = vunpack.c.h.b16 %v917
        %v1253 = vunpack.c.l.b16 %v918
        %v1254 = vunpack.c.h.b16 %v918
        %v1255 = vunpack.c.l.b16 %v919
        %v1256 = vunpack.c.h.b16 %v919
        %v1257 = vunpack.c.l.b16 %v920
        %v1258 = vunpack.c.l.b16 %v921
        %v1259 = vunpack.c.h.b16 %v921
        %v1260 = vunpack.c.l.b16 %v922
        %v1261 = vunpack.c.h.b16 %v922
        %v1262 = vunpack.c.l.b16 %v923
        %v1263 = vunpack.c.h.b16 %v923
        %v1264 = vunpack.c.l.b16 %v924
        %v1265 = vunpack.c.l.b16 %v925
        %v1266 = vunpack.c.h.b16 %v925
        %v1267 = vunpack.c.l.b16 %v926
        %v1268 = vunpack.c.h.b16 %v926
        %v1269 = vunpack.c.l.b16 %v927
        %v1270 = vunpack.c.h.b16 %v927
        %v1271 = vunpack.c.l.b16 %v928
        %v1272 = vunpack.c.l.b16 %v929
        %v1273 = vunpack.c.h.b16 %v929
        %v1274 = vunpack.c.l.b16 %v930
        %v1275 = vunpack.c.h.b16 %v930
        %v1276 = vunpack.c.l.b16 %v931
        %v1277 = vunpack.c.h.b16 %v931
        %v1278 = vunpack.c.l.b16 %v932
        %v1279 = vunpack.c.l.b16 %v933
        %v1280 = vunpack.c.h.b16 %v933
        %v1281 = vunpack.c.l.b16 %v934
        %v1282 = vunpack.c.h.b16 %v934
        %v1283 = vunpack.c.l.b16 %v935
        %v1284 = vunpack.c.h.b16 %v935
        %v1285 = vunpack.c.l.b16 %v936
        %v1286 = vunpack.c.l.b16 %v937
        %v1287 = vunpack.c.h.b16 %v937
        %v1288 = vunpack.c.l.b16 %v938
        %v1289 = vunpack.c.h.b16 %v938
        %v1290 = vunpack.c.l.b16 %v939
        %v1291 = vunpack.c.h.b16 %v939
        %v1292 = vunpack.c.l.b16 %v940
        %v1293 = vpack.c.b16 %v1076, %v1069
        %v1294 = vpack.c.b16 %v1077, %v1070
        %v1295 = vpack.c.b16 %v1078, %v1071
        %v1296 = vpack.c.b16 %v1079, %v1072
        %v1297 = vpack.c.b16 %v1080, %v1073
        %v1298 = vpack.c.b16 %v1081, %v1074
        %v1299 = vpack.c.b16 %v1082, %v1075
        %v1300 = vpack.c.b16 %v1090, %v1083
        %v1301 = vpack.c.b16 %v1091, %v1084
        %v1302 = vpack.c.b16 %v1092, %v1085
        %v1303 = vpack.c.b16 %v1093, %v1086
        %v1304 = vpack.c.b16 %v1094, %v1087
        %v1305 = vpack.c.b16 %v1095, %v1088
        %v1306 = vpack.c.b16 %v1096, %v1089
        %v1307 = vpack.c.b16 %v1104, %v1097
        %v1308 = vpack.c.b16 %v1105, %v1098
        %v1309 = vpack.c.b16 %v1106, %v1099
        %v1310 = vpack.c.b16 %v1107, %v1100
        %v1311 = vpack.c.b16 %v1108, %v1101
        %v1312 = vpack.c.b16 %v1109, %v1102
        %v1313 = vpack.c.b16 %v1110, %v1103
        %v1314 = vpack.c.b16 %v1118, %v1111
        %v1315 = vpack.c.b16 %v1119, %v1112
        %v1316 = vpack.c.b16 %v1120, %v1113
        %v1317 = vpack.c.b16 %v1121, %v1114
        %v1318 = vpack.c.b16 %v1122, %v1115
        %v1319 = vpack.c.b16 %v1123, %v1116
        %v1320 = vpack.c.b16 %v1124, %v1117
        %v1321 = vpack.c.b16 %v1132, %v1125
        %v1322 = vpack.c.b16 %v1133, %v1126
        %v1323 = vpack.c.b16 %v1134, %v1127
        %v1324 = vpack.c.b16 %v1135, %v1128
        %v1325 = vpack.c.b16 %v1136, %v1129
        %v1326 = vpack.c.b16 %v1137, %v1130
        %v1327 = vpack.c.b16 %v1138, %v1131
        %v1328 = vpack.c.b16 %v1146, %v1139
        %v1329 = vpack.c.b16 %v1147, %v1140
        %v1330 = vpack.c.b16 %v1148, %v1141
        %v1331 = vpack.c.b16 %v1149, %v1142
        %v1332 = vpack.c.b16 %v1150, %v1143
        %v1333 = vpack.c.b16 %v1151, %v1144
        %v1334 = vpack.c.b16 %v1152, %v1145
        %v1335 = vpack.c.b16 %v1160, %v1153
        %v1336 = vpack.c.b16 %v1161, %v1154
        %v1337 = vpack.c.b16 %v1162, %v1155
        %v1338 = vpack.c.b16 %v1163, %v1156
        %v1339 = vpack.c.b16 %v1164, %v1157
        %v1340 = vpack.c.b16 %v1165, %v1158
        %v1341 = vpack.c.b16 %v1166, %v1159
        %v1342 = vpack.c.b16 %v1174, %v1167
        %v1343 = vpack.c.b16 %v1175, %v1168
        %v1344 = vpack.c.b16 %v1176, %v1169
        %v1345 = vpack.c.b16 %v1177, %v1170
        %v1346 = vpack.c.b16 %v1178, %v1171
        %v1347 = vpack.c.b16 %v1179, %v1172
        %v1348 = vpack.c.b16 %v1180, %v1173
        %v1349 = vpack.c.b16 %v1188, %v1181
        %v1350 = vpack.c.b16 %v1189, %v1182
        %v1351 = vpack.c.b16 %v1190, %v1183
        %v1352 = vpack.c.b16 %v1191, %v1184
        %v1353 = vpack.c.b16 %v1192, %v1185
        %v1354 = vpack.c.b16 %v1193, %v1186
        %v1355 = vpack.c.b16 %v1194, %v1187
        %v1356 = vpack.c.b16 %v1202, %v1195
        %v1357 = vpack.c.b16 %v1203, %v1196
        %v1358 = vpack.c.b16 %v1204, %v1197
        %v1359 = vpack.c.b16 %v1205, %v1198
        %v1360 = vpack.c.b16 %v1206, %v1199
        %v1361 = vpack.c.b16 %v1207, %v1200
        %v1362 = vpack.c.b16 %v1208, %v1201
        %v1363 = vpack.c.b16 %v1216, %v1209
        %v1364 = vpack.c.b16 %v1217, %v1210
        %v1365 = vpack.c.b16 %v1218, %v1211
        %v1366 = vpack.c.b16 %v1219, %v1212
        %v1367 = vpack.c.b16 %v1220, %v1213
        %v1368 = vpack.c.b16 %v1221, %v1214
        %v1369 = vpack.c.b16 %v1222, %v1215
        %v1370 = vpack.c.b16 %v1230, %v1223
        %v1371 = vpack.c.b16 %v1231, %v1224
        %v1372 = vpack.c.b16 %v1232, %v1225
        %v1373 = vpack.c.b16 %v1233, %v1226
        %v1374 = vpack.c.b16 %v1234, %v1227
        %v1375 = vpack.c.b16 %v1235, %v1228
        %v1376 = vpack.c.b16 %v1236, %v1229
        %v1377 = vpack.c.b16 %v1244, %v1237
        %v1378 = vpack.c.b16 %v1245, %v1238
        %v1379 = vpack.c.b16 %v1246, %v1239
        %v1380 = vpack.c.b16 %v1247, %v1240
        %v1381 = vpack.c.b16 %v1248, %v1241
        %v1382 = vpack.c.b16 %v1249, %v1242
        %v1383 = vpack.c.b16 %v1250, %v1243
        %v1384 = vpack.c.b16 %v1258, %v1251
        %v1385 = vpack.c.b16 %v1259, %v1252
        %v1386 = vpack.c.b16 %v1260, %v1253
        %v1387 = vpack.c.b16 %v1261, %v1254
        %v1388 = vpack.c.b16 %v1262, %v1255
        %v1389 = vpack.c.b16 %v1263, %v1256
        %v1390 = vpack.c.b16 %v1264, %v1257
        %v1391 = vpack.c.b16 %v1272, %v1265
        %v1392 = vpack.c.b16 %v1273, %v1266
        %v1393 = vpack.c.b16 %v1274, %v1267
        %v1394 = vpack.c.b16 %v1275, %v1268
        %v1395 = vpack.c.b16 %v1276, %v1269
        %v1396 = vpack.c.b16 %v1277, %v1270
        %v1397 = vpack.c.b16 %v1278, %v1271
        %v1398 = vpack.c.b16 %v1286, %v1279
        %v1399 = vpack.c.b16 %v1287, %v1280
        %v1400 = vpack.c.b16 %v1288, %v1281
        %v1401 = vpack.c.b16 %v1289, %v1282
        %v1402 = vpack.c.b16 %v1290, %v1283
        %v1403 = vpack.c.b16 %v1291, %v1284
        %v1404 = vpack.c.b16 %v1292, %v1285
        %1517 = vmatprep.subr.bf16.mxu0 %v1343
        %1518 = vmatpush1.bf16.msra.mxu0 %v1342
        %1519 = vmatprep.subr.bf16.mxu0 %v1336
        %1520 = vmatpush1.bf16.msra.mxu0 %v1335
        %1521 = vmatprep.subr.bf16.mxu0 %v1329
        %1522 = vmatpush1.bf16.msra.mxu0 %v1328
        %1523 = vmatprep.subr.bf16.mxu0 %v1322
        %1524 = vmatpush1.bf16.msra.mxu0 %v1321
        %1525 = vmatprep.subr.bf16.mxu0 %v1315
        %1526 = vmatpush1.bf16.msra.mxu0 %v1314
        %1527 = vmatprep.subr.bf16.mxu0 %v1308
        %1528 = vmatpush1.bf16.msra.mxu0 %v1307
        %1529 = vmatprep.subr.bf16.mxu0 %v1301
        %1530 = vmatpush1.bf16.msra.mxu0 %v1300
        %1531 = vmatprep.subr.bf16.mxu0 %v1294
        %1532 = vmatpush1.bf16.msra.mxu0 %v1293
        %1533 = vmatprep.subr.bf16.mxu0 %v1399
        %1534 = vmatpush2.bf16.msra.mxu0 %v1398
        %1535 = vmatprep.subr.bf16.mxu0 %v1392
        %1536 = vmatpush2.bf16.msra.mxu0 %v1391
        %1537 = vmatprep.subr.bf16.mxu0 %v1385
        %1538 = vmatpush2.bf16.msra.mxu0 %v1384
        %1539 = vmatprep.subr.bf16.mxu0 %v1378
        %1540 = vmatpush2.bf16.msra.mxu0 %v1377
        %1541 = vmatprep.subr.bf16.mxu0 %v1371
        %1542 = vmatpush2.bf16.msra.mxu0 %v1370
        %1543 = vmatprep.subr.bf16.mxu0 %v1364
        %1544 = vmatpush2.bf16.msra.mxu0 %v1363
        %1545 = vmatprep.subr.bf16.mxu0 %v1357
        %1546 = vmatpush2.bf16.msra.mxu0 %v1356
        %1547 = vmatprep.subr.bf16.mxu0 %v1350
        %1548 = vmatpush2.bf16.msra.mxu0 %v1349
        %1549 = vmatprep.mubr.bf16.mxu0 %v798
        %1550 = vmatmul.mubr.bf16.gmra.mxu0 %v797
        %v1551 = vpop.f32.mrf.mxu0
        %v1552 = vadd.f32 0.0, %v1551
        %v1553 = vpop.f32.mrf.mxu0
        %v1554 = vadd.f32 0.0, %v1553
        %v1555 = vpop.f32.mrf.mxu0
        %v1556 = vadd.f32 0.0, %v1555
        %v1557 = vpop.f32.mrf.mxu0
        %v1558 = vadd.f32 0.0, %v1557
        %1559 = vmatprep.mubr.bf16.mxu0 %v800
        %1560 = vmatmul.mubr.bf16.gmra.mxu0 %v799
        %v1561 = vpop.f32.mrf.mxu0
        %v1562 = vadd.f32 0.0, %v1561
        %v1563 = vpop.f32.mrf.mxu0
        %v1564 = vadd.f32 0.0, %v1563
        %v1565 = vpop.f32.mrf.mxu0
        %v1566 = vadd.f32 0.0, %v1565
        %v1567 = vpop.f32.mrf.mxu0
        %v1568 = vadd.f32 0.0, %v1567
        %1569 = vmatprep.mubr.bf16.mxu0 %v802
        %1570 = vmatmul.mubr.bf16.gmra.mxu0 %v801
        %v1571 = vpop.f32.mrf.mxu0
        %v1572 = vadd.f32 0.0, %v1571
        %v1573 = vpop.f32.mrf.mxu0
        %v1574 = vadd.f32 0.0, %v1573
        %v1575 = vpop.f32.mrf.mxu0
        %v1576 = vadd.f32 0.0, %v1575
        %v1577 = vpop.f32.mrf.mxu0
        %v1578 = vadd.f32 0.0, %v1577
        %1579 = vmatprep.mubr.bf16.mxu0 %v804
        %1580 = vmatmul.mubr.bf16.gmra.mxu0 %v803
        %v1581 = vpop.f32.mrf.mxu0
        %v1582 = vadd.f32 0.0, %v1581
        %v1583 = vpop.f32.mrf.mxu0
        %v1584 = vadd.f32 0.0, %v1583
        %v1585 = vpop.f32.mrf.mxu0
        %v1586 = vadd.f32 0.0, %v1585
        %v1587 = vpop.f32.mrf.mxu0
        %v1588 = vadd.f32 0.0, %v1587
        %1589 = vmatprep.mubr.bf16.mxu0 %v806
        %1590 = vmatmul.mubr.bf16.gmra.mxu0 %v805
        %v1591 = vpop.f32.mrf.mxu0
        %v1592 = vadd.f32 0.0, %v1591
        %v1593 = vpop.f32.mrf.mxu0
        %v1594 = vadd.f32 0.0, %v1593
        %v1595 = vpop.f32.mrf.mxu0
        %v1596 = vadd.f32 0.0, %v1595
        %v1597 = vpop.f32.mrf.mxu0
        %v1598 = vadd.f32 0.0, %v1597
        %1599 = vmatprep.mubr.bf16.mxu0 %v808
        %1600 = vmatmul.mubr.bf16.gmra.mxu0 %v807
        %v1601 = vpop.f32.mrf.mxu0
        %v1602 = vadd.f32 0.0, %v1601
        %v1603 = vpop.f32.mrf.mxu0
        %v1604 = vadd.f32 0.0, %v1603
        %v1605 = vpop.f32.mrf.mxu0
        %v1606 = vadd.f32 0.0, %v1605
        %v1607 = vpop.f32.mrf.mxu0
        %v1608 = vadd.f32 0.0, %v1607
        %1609 = vmatprep.mubr.bf16.mxu0 %v810
        %1610 = vmatmul.mubr.bf16.gmra.mxu0 %v809
        %v1611 = vpop.f32.mrf.mxu0
        %v1612 = vadd.f32 0.0, %v1611
        %v1613 = vpop.f32.mrf.mxu0
        %v1614 = vadd.f32 0.0, %v1613
        %v1615 = vpop.f32.mrf.mxu0
        %v1616 = vadd.f32 0.0, %v1615
        %v1617 = vpop.f32.mrf.mxu0
        %v1618 = vadd.f32 0.0, %v1617
        %1619 = vmatprep.mubr.bf16.mxu0 %v812
        %1620 = vmatmul.mubr.bf16.gmra.mxu0 %v811
        %v1621 = vpop.f32.mrf.mxu0
        %v1622 = vadd.f32 0.0, %v1621
        %v1623 = vpop.f32.mrf.mxu0
        %v1624 = vadd.f32 0.0, %v1623
        %v1625 = vpop.f32.mrf.mxu0
        %v1626 = vadd.f32 0.0, %v1625
        %v1627 = vpop.f32.mrf.mxu0
        %v1628 = vadd.f32 0.0, %v1627
        %1629 = vdwg.mxu0
        %1630 = vmatprep.subr.bf16.mxu0 %v1345
        %1631 = vmatpush1.bf16.msra.mxu0 %v1344
        %1632 = vmatprep.subr.bf16.mxu0 %v1338
        %1633 = vmatpush1.bf16.msra.mxu0 %v1337
        %1634 = vmatprep.subr.bf16.mxu0 %v1331
        %1635 = vmatpush1.bf16.msra.mxu0 %v1330
        %1636 = vmatprep.subr.bf16.mxu0 %v1324
        %1637 = vmatpush1.bf16.msra.mxu0 %v1323
        %1638 = vmatprep.subr.bf16.mxu0 %v1317
        %1639 = vmatpush1.bf16.msra.mxu0 %v1316
        %1640 = vmatprep.subr.bf16.mxu0 %v1310
        %1641 = vmatpush1.bf16.msra.mxu0 %v1309
        %1642 = vmatprep.subr.bf16.mxu0 %v1303
        %1643 = vmatpush1.bf16.msra.mxu0 %v1302
        %1644 = vmatprep.subr.bf16.mxu0 %v1296
        %1645 = vmatpush1.bf16.msra.mxu0 %v1295
        %1646 = vmatprep.subr.bf16.mxu0 %v1401
        %1647 = vmatpush2.bf16.msra.mxu0 %v1400
        %1648 = vmatprep.subr.bf16.mxu0 %v1394
        %1649 = vmatpush2.bf16.msra.mxu0 %v1393
        %1650 = vmatprep.subr.bf16.mxu0 %v1387
        %1651 = vmatpush2.bf16.msra.mxu0 %v1386
        %1652 = vmatprep.subr.bf16.mxu0 %v1380
        %1653 = vmatpush2.bf16.msra.mxu0 %v1379
        %1654 = vmatprep.subr.bf16.mxu0 %v1373
        %1655 = vmatpush2.bf16.msra.mxu0 %v1372
        %1656 = vmatprep.subr.bf16.mxu0 %v1366
        %1657 = vmatpush2.bf16.msra.mxu0 %v1365
        %1658 = vmatprep.subr.bf16.mxu0 %v1359
        %1659 = vmatpush2.bf16.msra.mxu0 %v1358
        %1660 = vmatprep.subr.bf16.mxu0 %v1352
        %1661 = vmatpush2.bf16.msra.mxu0 %v1351
        %1662 = vmatprep.mubr.bf16.mxu0 %v798
        %1663 = vmatmul.mubr.bf16.gmra.mxu0 %v797
        %v1664 = vpop.f32.mrf.mxu0
        %v1665 = vadd.f32 0.0, %v1664
        %v1666 = vpop.f32.mrf.mxu0
        %v1667 = vadd.f32 0.0, %v1666
        %v1668 = vpop.f32.mrf.mxu0
        %v1669 = vadd.f32 0.0, %v1668
        %v1670 = vpop.f32.mrf.mxu0
        %v1671 = vadd.f32 0.0, %v1670
        %1672 = vmatprep.mubr.bf16.mxu0 %v800
        %1673 = vmatmul.mubr.bf16.gmra.mxu0 %v799
        %v1674 = vpop.f32.mrf.mxu0
        %v1675 = vadd.f32 0.0, %v1674
        %v1676 = vpop.f32.mrf.mxu0
        %v1677 = vadd.f32 0.0, %v1676
        %v1678 = vpop.f32.mrf.mxu0
        %v1679 = vadd.f32 0.0, %v1678
        %v1680 = vpop.f32.mrf.mxu0
        %v1681 = vadd.f32 0.0, %v1680
        %1682 = vmatprep.mubr.bf16.mxu0 %v802
        %1683 = vmatmul.mubr.bf16.gmra.mxu0 %v801
        %v1684 = vpop.f32.mrf.mxu0
        %v1685 = vadd.f32 0.0, %v1684
        %v1686 = vpop.f32.mrf.mxu0
        %v1687 = vadd.f32 0.0, %v1686
        %v1688 = vpop.f32.mrf.mxu0
        %v1689 = vadd.f32 0.0, %v1688
        %v1690 = vpop.f32.mrf.mxu0
        %v1691 = vadd.f32 0.0, %v1690
        %1692 = vmatprep.mubr.bf16.mxu0 %v804
        %1693 = vmatmul.mubr.bf16.gmra.mxu0 %v803
        %v1694 = vpop.f32.mrf.mxu0
        %v1695 = vadd.f32 0.0, %v1694
        %v1696 = vpop.f32.mrf.mxu0
        %v1697 = vadd.f32 0.0, %v1696
        %v1698 = vpop.f32.mrf.mxu0
        %v1699 = vadd.f32 0.0, %v1698
        %v1700 = vpop.f32.mrf.mxu0
        %v1701 = vadd.f32 0.0, %v1700
        %1702 = vmatprep.mubr.bf16.mxu0 %v806
        %1703 = vmatmul.mubr.bf16.gmra.mxu0 %v805
        %v1704 = vpop.f32.mrf.mxu0
        %v1705 = vadd.f32 0.0, %v1704
        %v1706 = vpop.f32.mrf.mxu0
        %v1707 = vadd.f32 0.0, %v1706
        %v1708 = vpop.f32.mrf.mxu0
        %v1709 = vadd.f32 0.0, %v1708
        %v1710 = vpop.f32.mrf.mxu0
        %v1711 = vadd.f32 0.0, %v1710
        %1712 = vmatprep.mubr.bf16.mxu0 %v808
        %1713 = vmatmul.mubr.bf16.gmra.mxu0 %v807
        %v1714 = vpop.f32.mrf.mxu0
        %v1715 = vadd.f32 0.0, %v1714
        %v1716 = vpop.f32.mrf.mxu0
        %v1717 = vadd.f32 0.0, %v1716
        %v1718 = vpop.f32.mrf.mxu0
        %v1719 = vadd.f32 0.0, %v1718
        %v1720 = vpop.f32.mrf.mxu0
        %v1721 = vadd.f32 0.0, %v1720
        %1722 = vmatprep.mubr.bf16.mxu0 %v810
        %1723 = vmatmul.mubr.bf16.gmra.mxu0 %v809
        %v1724 = vpop.f32.mrf.mxu0
        %v1725 = vadd.f32 0.0, %v1724
        %v1726 = vpop.f32.mrf.mxu0
        %v1727 = vadd.f32 0.0, %v1726
        %v1728 = vpop.f32.mrf.mxu0
        %v1729 = vadd.f32 0.0, %v1728
        %v1730 = vpop.f32.mrf.mxu0
        %v1731 = vadd.f32 0.0, %v1730
        %1732 = vmatprep.mubr.bf16.mxu0 %v812
        %1733 = vmatmul.mubr.bf16.gmra.mxu0 %v811
        %v1734 = vpop.f32.mrf.mxu0
        %v1735 = vadd.f32 0.0, %v1734
        %v1736 = vpop.f32.mrf.mxu0
        %v1737 = vadd.f32 0.0, %v1736
        %v1738 = vpop.f32.mrf.mxu0
        %v1739 = vadd.f32 0.0, %v1738
        %v1740 = vpop.f32.mrf.mxu0
        %v1741 = vadd.f32 0.0, %v1740
        %1742 = vdwg.mxu0
        %1743 = vmatprep.subr.bf16.mxu0 %v1347
        %1744 = vmatpush1.bf16.msra.mxu0 %v1346
        %1745 = vmatprep.subr.bf16.mxu0 %v1340
        %1746 = vmatpush1.bf16.msra.mxu0 %v1339
        %1747 = vmatprep.subr.bf16.mxu0 %v1333
        %1748 = vmatpush1.bf16.msra.mxu0 %v1332
        %1749 = vmatprep.subr.bf16.mxu0 %v1326
        %1750 = vmatpush1.bf16.msra.mxu0 %v1325
        %1751 = vmatprep.subr.bf16.mxu0 %v1319
        %1752 = vmatpush1.bf16.msra.mxu0 %v1318
        %1753 = vmatprep.subr.bf16.mxu0 %v1312
        %1754 = vmatpush1.bf16.msra.mxu0 %v1311
        %1755 = vmatprep.subr.bf16.mxu0 %v1305
        %1756 = vmatpush1.bf16.msra.mxu0 %v1304
        %1757 = vmatprep.subr.bf16.mxu0 %v1298
        %1758 = vmatpush1.bf16.msra.mxu0 %v1297
        %1759 = vmatprep.subr.bf16.mxu0 %v1403
        %1760 = vmatpush2.bf16.msra.mxu0 %v1402
        %1761 = vmatprep.subr.bf16.mxu0 %v1396
        %1762 = vmatpush2.bf16.msra.mxu0 %v1395
        %1763 = vmatprep.subr.bf16.mxu0 %v1389
        %1764 = vmatpush2.bf16.msra.mxu0 %v1388
        %1765 = vmatprep.subr.bf16.mxu0 %v1382
        %1766 = vmatpush2.bf16.msra.mxu0 %v1381
        %1767 = vmatprep.subr.bf16.mxu0 %v1375
        %1768 = vmatpush2.bf16.msra.mxu0 %v1374
        %1769 = vmatprep.subr.bf16.mxu0 %v1368
        %1770 = vmatpush2.bf16.msra.mxu0 %v1367
        %1771 = vmatprep.subr.bf16.mxu0 %v1361
        %1772 = vmatpush2.bf16.msra.mxu0 %v1360
        %1773 = vmatprep.subr.bf16.mxu0 %v1354
        %1774 = vmatpush2.bf16.msra.mxu0 %v1353
        %1775 = vmatprep.mubr.bf16.mxu0 %v798
        %1776 = vmatmul.mubr.bf16.gmra.mxu0 %v797
        %v1777 = vpop.f32.mrf.mxu0
        %v1778 = vadd.f32 0.0, %v1777
        %v1779 = vpop.f32.mrf.mxu0
        %v1780 = vadd.f32 0.0, %v1779
        %v1781 = vpop.f32.mrf.mxu0
        %v1782 = vadd.f32 0.0, %v1781
        %v1783 = vpop.f32.mrf.mxu0
        %v1784 = vadd.f32 0.0, %v1783
        %1785 = vmatprep.mubr.bf16.mxu0 %v800
        %1786 = vmatmul.mubr.bf16.gmra.mxu0 %v799
        %v1787 = vpop.f32.mrf.mxu0
        %v1788 = vadd.f32 0.0, %v1787
        %v1789 = vpop.f32.mrf.mxu0
        %v1790 = vadd.f32 0.0, %v1789
        %v1791 = vpop.f32.mrf.mxu0
        %v1792 = vadd.f32 0.0, %v1791
        %v1793 = vpop.f32.mrf.mxu0
        %v1794 = vadd.f32 0.0, %v1793
        %1795 = vmatprep.mubr.bf16.mxu0 %v802
        %1796 = vmatmul.mubr.bf16.gmra.mxu0 %v801
        %v1797 = vpop.f32.mrf.mxu0
        %v1798 = vadd.f32 0.0, %v1797
        %v1799 = vpop.f32.mrf.mxu0
        %v1800 = vadd.f32 0.0, %v1799
        %v1801 = vpop.f32.mrf.mxu0
        %v1802 = vadd.f32 0.0, %v1801
        %v1803 = vpop.f32.mrf.mxu0
        %v1804 = vadd.f32 0.0, %v1803
        %1805 = vmatprep.mubr.bf16.mxu0 %v804
        %1806 = vmatmul.mubr.bf16.gmra.mxu0 %v803
        %v1807 = vpop.f32.mrf.mxu0
        %v1808 = vadd.f32 0.0, %v1807
        %v1809 = vpop.f32.mrf.mxu0
        %v1810 = vadd.f32 0.0, %v1809
        %v1811 = vpop.f32.mrf.mxu0
        %v1812 = vadd.f32 0.0, %v1811
        %v1813 = vpop.f32.mrf.mxu0
        %v1814 = vadd.f32 0.0, %v1813
        %1815 = vmatprep.mubr.bf16.mxu0 %v806
        %1816 = vmatmul.mubr.bf16.gmra.mxu0 %v805
        %v1817 = vpop.f32.mrf.mxu0
        %v1818 = vadd.f32 0.0, %v1817
        %v1819 = vpop.f32.mrf.mxu0
        %v1820 = vadd.f32 0.0, %v1819
        %v1821 = vpop.f32.mrf.mxu0
        %v1822 = vadd.f32 0.0, %v1821
        %v1823 = vpop.f32.mrf.mxu0
        %v1824 = vadd.f32 0.0, %v1823
        %1825 = vmatprep.mubr.bf16.mxu0 %v808
        %1826 = vmatmul.mubr.bf16.gmra.mxu0 %v807
        %v1827 = vpop.f32.mrf.mxu0
        %v1828 = vadd.f32 0.0, %v1827
        %v1829 = vpop.f32.mrf.mxu0
        %v1830 = vadd.f32 0.0, %v1829
        %v1831 = vpop.f32.mrf.mxu0
        %v1832 = vadd.f32 0.0, %v1831
        %v1833 = vpop.f32.mrf.mxu0
        %v1834 = vadd.f32 0.0, %v1833
        %1835 = vmatprep.mubr.bf16.mxu0 %v810
        %1836 = vmatmul.mubr.bf16.gmra.mxu0 %v809
        %v1837 = vpop.f32.mrf.mxu0
        %v1838 = vadd.f32 0.0, %v1837
        %v1839 = vpop.f32.mrf.mxu0
        %v1840 = vadd.f32 0.0, %v1839
        %v1841 = vpop.f32.mrf.mxu0
        %v1842 = vadd.f32 0.0, %v1841
        %v1843 = vpop.f32.mrf.mxu0
        %v1844 = vadd.f32 0.0, %v1843
        %1845 = vmatprep.mubr.bf16.mxu0 %v812
        %1846 = vmatmul.mubr.bf16.gmra.mxu0 %v811
        %v1847 = vpop.f32.mrf.mxu0
        %v1848 = vadd.f32 0.0, %v1847
        %v1849 = vpop.f32.mrf.mxu0
        %v1850 = vadd.f32 0.0, %v1849
        %v1851 = vpop.f32.mrf.mxu0
        %v1852 = vadd.f32 0.0, %v1851
        %v1853 = vpop.f32.mrf.mxu0
        %v1854 = vadd.f32 0.0, %v1853
        %1855 = vdwg.mxu0
        %1856 = vmatprep.subr.bf16.mxu0 0
        %1857 = vmatpush1.bf16.msra.mxu0 %v1348
        %1858 = vmatprep.subr.bf16.mxu0 0
        %1859 = vmatpush1.bf16.msra.mxu0 %v1341
        %1860 = vmatprep.subr.bf16.mxu0 0
        %1861 = vmatpush1.bf16.msra.mxu0 %v1334
        %1862 = vmatprep.subr.bf16.mxu0 0
        %1863 = vmatpush1.bf16.msra.mxu0 %v1327
        %1864 = vmatprep.subr.bf16.mxu0 0
        %1865 = vmatpush1.bf16.msra.mxu0 %v1320
        %1866 = vmatprep.subr.bf16.mxu0 0
        %1867 = vmatpush1.bf16.msra.mxu0 %v1313
        %1868 = vmatprep.subr.bf16.mxu0 0
        %1869 = vmatpush1.bf16.msra.mxu0 %v1306
        %1870 = vmatprep.subr.bf16.mxu0 0
        %1871 = vmatpush1.bf16.msra.mxu0 %v1299
        %1872 = vmatprep.subr.bf16.mxu0 0
        %1873 = vmatpush2.bf16.msra.mxu0 %v1404
        %1874 = vmatprep.subr.bf16.mxu0 0
        %1875 = vmatpush2.bf16.msra.mxu0 %v1397
        %1876 = vmatprep.subr.bf16.mxu0 0
        %1877 = vmatpush2.bf16.msra.mxu0 %v1390
        %1878 = vmatprep.subr.bf16.mxu0 0
        %1879 = vmatpush2.bf16.msra.mxu0 %v1383
        %1880 = vmatprep.subr.bf16.mxu0 0
        %1881 = vmatpush2.bf16.msra.mxu0 %v1376
        %1882 = vmatprep.subr.bf16.mxu0 0
        %1883 = vmatpush2.bf16.msra.mxu0 %v1369
        %1884 = vmatprep.subr.bf16.mxu0 0
        %1885 = vmatpush2.bf16.msra.mxu0 %v1362
        %1886 = vmatprep.subr.bf16.mxu0 0
        %1887 = vmatpush2.bf16.msra.mxu0 %v1355
        %1888 = vmatprep.mubr.bf16.mxu0 %v798
        %1889 = vmatmul.mubr.bf16.gmra.mxu0 %v797
        %v1890 = vpop.f32.mrf.mxu0
        %v1891 = vadd.f32 0.0, %v1890
        %v1892 = vpop.f32.mrf.mxu0
        %v1893 = vpop.f32.mrf.mxu0
        %v1894 = vadd.f32 0.0, %v1893
        %v1895 = vpop.f32.mrf.mxu0
        %1896 = vmatprep.mubr.bf16.mxu0 %v800
        %1897 = vmatmul.mubr.bf16.gmra.mxu0 %v799
        %v1898 = vpop.f32.mrf.mxu0
        %v1899 = vadd.f32 0.0, %v1898
        %v1900 = vpop.f32.mrf.mxu0
        %v1901 = vpop.f32.mrf.mxu0
        %v1902 = vadd.f32 0.0, %v1901
        %v1903 = vpop.f32.mrf.mxu0
        %1904 = vmatprep.mubr.bf16.mxu0 %v802
        %1905 = vmatmul.mubr.bf16.gmra.mxu0 %v801
        %v1906 = vpop.f32.mrf.mxu0
        %v1907 = vadd.f32 0.0, %v1906
        %v1908 = vpop.f32.mrf.mxu0
        %v1909 = vpop.f32.mrf.mxu0
        %v1910 = vadd.f32 0.0, %v1909
        %v1911 = vpop.f32.mrf.mxu0
        %1912 = vmatprep.mubr.bf16.mxu0 %v804
        %1913 = vmatmul.mubr.bf16.gmra.mxu0 %v803
        %v1914 = vpop.f32.mrf.mxu0
        %v1915 = vadd.f32 0.0, %v1914
        %v1916 = vpop.f32.mrf.mxu0
        %v1917 = vpop.f32.mrf.mxu0
        %v1918 = vadd.f32 0.0, %v1917
        %v1919 = vpop.f32.mrf.mxu0
        %1920 = vmatprep.mubr.bf16.mxu0 %v806
        %1921 = vmatmul.mubr.bf16.gmra.mxu0 %v805
        %v1922 = vpop.f32.mrf.mxu0
        %v1923 = vadd.f32 0.0, %v1922
        %v1924 = vpop.f32.mrf.mxu0
        %v1925 = vpop.f32.mrf.mxu0
        %v1926 = vadd.f32 0.0, %v1925
        %v1927 = vpop.f32.mrf.mxu0
        %1928 = vmatprep.mubr.bf16.mxu0 %v808
        %1929 = vmatmul.mubr.bf16.gmra.mxu0 %v807
        %v1930 = vpop.f32.mrf.mxu0
        %v1931 = vadd.f32 0.0, %v1930
        %v1932 = vpop.f32.mrf.mxu0
        %v1933 = vpop.f32.mrf.mxu0
        %v1934 = vadd.f32 0.0, %v1933
        %v1935 = vpop.f32.mrf.mxu0
        %1936 = vmatprep.mubr.bf16.mxu0 %v810
        %1937 = vmatmul.mubr.bf16.gmra.mxu0 %v809
        %v1938 = vpop.f32.mrf.mxu0
        %v1939 = vadd.f32 0.0, %v1938
        %v1940 = vpop.f32.mrf.mxu0
        %v1941 = vpop.f32.mrf.mxu0
        %v1942 = vadd.f32 0.0, %v1941
        %v1943 = vpop.f32.mrf.mxu0
        %1944 = vmatprep.mubr.bf16.mxu0 %v812
        %1945 = vmatmul.mubr.bf16.gmra.mxu0 %v811
        %v1946 = vpop.f32.mrf.mxu0
        %v1947 = vadd.f32 0.0, %v1946
        %v1948 = vpop.f32.mrf.mxu0
        %v1949 = vpop.f32.mrf.mxu0
        %v1950 = vadd.f32 0.0, %v1949
        %v1951 = vpop.f32.mrf.mxu0
        %1952 = vdwg.mxu0
        %v1953 = vld [vmem:[#allocation5] sm:$0xff]
        %v1954 = vld [vmem:[#allocation5 + $0x8] sm:$0xff]
        %v1955 = vld [vmem:[#allocation5 + $0x10] sm:$0xff]
        %v1956 = vld [vmem:[#allocation5 + $0x18] sm:$0xff]
        %v1957 = vld [vmem:[#allocation5 + $0x20] sm:$0xff]
        %v1958 = vld [vmem:[#allocation5 + $0x28] sm:$0xff]
        %v1959 = vld [vmem:[#allocation5 + $0x30] sm:$0xff]
        %v1960 = vld [vmem:[#allocation5 + $0x38] sm:$0xff]
        %v1961 = vld [vmem:[#allocation5 + $0x40] sm:$0xff]
        %v1962 = vld [vmem:[#allocation5 + $0x48] sm:$0xff]
        %v1963 = vld [vmem:[#allocation5 + $0x50] sm:$0xff]
        %v1964 = vld [vmem:[#allocation5 + $0x58] sm:$0xff]
        %v1965 = vld [vmem:[#allocation5 + $0x60] sm:$0xff]
        %v1966 = vld [vmem:[#allocation5 + $0x68] sm:$0xff]
        %v1967 = vld [vmem:[#allocation5 + $0x70] sm:$0xff]
        %v1968 = vld [vmem:[#allocation5 + $0x78] sm:$0xff]
        %v1969 = vld [vmem:[#allocation5 + $0x80] sm:$0xff]
        %v1970 = vld [vmem:[#allocation5 + $0x88] sm:$0xff]
        %v1971 = vld [vmem:[#allocation5 + $0x90] sm:$0xff]
        %v1972 = vld [vmem:[#allocation5 + $0x98] sm:$0xff]
        %v1973 = vld [vmem:[#allocation5 + $0xa0] sm:$0xff]
        %v1974 = vld [vmem:[#allocation5 + $0xa8] sm:$0xff]
        %v1975 = vld [vmem:[#allocation5 + $0xb0] sm:$0xff]
        %v1976 = vld [vmem:[#allocation5 + $0xb8] sm:$0xff]
        %v1977 = vld [vmem:[#allocation5 + $0xc0] sm:$0xff]
        %v1978 = vld [vmem:[#allocation5 + $0xc8] sm:$0xff]
        %v1979 = vld [vmem:[#allocation5 + $0xd0] sm:$0xff]
        %v1980 = vld [vmem:[#allocation5 + $0xd8] sm:$0xff]
        %v1981 = vld [vmem:[#allocation5 + $0xe0] sm:$0xff]
        %v1982 = vld [vmem:[#allocation5 + $0xe8] sm:$0xff]
        %v1983 = vld [vmem:[#allocation5 + $0xf0] sm:$0xff]
        %v1984 = vld [vmem:[#allocation5 + $0xf8] sm:$0xff]
        %v1985 = vmul.f32 %v1552, %v1953
        %v1986 = vmul.f32 %v1554, %v1954
        %v1987 = vmul.f32 %v1556, %v1955
        %v1988 = vmul.f32 %v1558, %v1956
        %v1989 = vmul.f32 %v1562, %v1957
        %v1990 = vmul.f32 %v1564, %v1958
        %v1991 = vmul.f32 %v1566, %v1959
        %v1992 = vmul.f32 %v1568, %v1960
        %v1993 = vmul.f32 %v1572, %v1961
        %v1994 = vmul.f32 %v1574, %v1962
        %v1995 = vmul.f32 %v1576, %v1963
        %v1996 = vmul.f32 %v1578, %v1964
        %v1997 = vmul.f32 %v1582, %v1965
        %v1998 = vmul.f32 %v1584, %v1966
        %v1999 = vmul.f32 %v1586, %v1967
        %v2000 = vmul.f32 %v1588, %v1968
        %v2001 = vmul.f32 %v1592, %v1969
        %v2002 = vmul.f32 %v1594, %v1970
        %v2003 = vmul.f32 %v1596, %v1971
        %v2004 = vmul.f32 %v1598, %v1972
        %v2005 = vmul.f32 %v1602, %v1973
        %v2006 = vmul.f32 %v1604, %v1974
        %v2007 = vmul.f32 %v1606, %v1975
        %v2008 = vmul.f32 %v1608, %v1976
        %v2009 = vmul.f32 %v1612, %v1977
        %v2010 = vmul.f32 %v1614, %v1978
        %v2011 = vmul.f32 %v1616, %v1979
        %v2012 = vmul.f32 %v1618, %v1980
        %v2013 = vmul.f32 %v1622, %v1981
        %v2014 = vmul.f32 %v1624, %v1982
        %v2015 = vmul.f32 %v1626, %v1983
        %v2016 = vmul.f32 %v1628, %v1984
        %v2017 = vld [vmem:[#allocation7] sm:$0xff]
        %v2018 = vld [vmem:[#allocation7 + $0x8] sm:$0xff]
        %v2019 = vld [vmem:[#allocation7 + $0x10] sm:$0xff]
        %v2020 = vld [vmem:[#allocation7 + $0x18] sm:$0xff]
        %v2021 = vld [vmem:[#allocation7 + $0x20] sm:$0xff]
        %v2022 = vld [vmem:[#allocation7 + $0x28] sm:$0xff]
        %v2023 = vld [vmem:[#allocation7 + $0x30] sm:$0xff]
        %v2024 = vld [vmem:[#allocation7 + $0x38] sm:$0xff]
        %v2025 = vld [vmem:[#allocation7 + $0x40] sm:$0xff]
        %v2026 = vld [vmem:[#allocation7 + $0x48] sm:$0xff]
        %v2027 = vld [vmem:[#allocation7 + $0x50] sm:$0xff]
        %v2028 = vld [vmem:[#allocation7 + $0x58] sm:$0xff]
        %v2029 = vld [vmem:[#allocation7 + $0x60] sm:$0xff]
        %v2030 = vld [vmem:[#allocation7 + $0x68] sm:$0xff]
        %v2031 = vld [vmem:[#allocation7 + $0x70] sm:$0xff]
        %v2032 = vld [vmem:[#allocation7 + $0x78] sm:$0xff]
        %v2033 = vld [vmem:[#allocation7 + $0x80] sm:$0xff]
        %v2034 = vld [vmem:[#allocation7 + $0x88] sm:$0xff]
        %v2035 = vld [vmem:[#allocation7 + $0x90] sm:$0xff]
        %v2036 = vld [vmem:[#allocation7 + $0x98] sm:$0xff]
        %v2037 = vld [vmem:[#allocation7 + $0xa0] sm:$0xff]
        %v2038 = vld [vmem:[#allocation7 + $0xa8] sm:$0xff]
        %v2039 = vld [vmem:[#allocation7 + $0xb0] sm:$0xff]
        %v2040 = vld [vmem:[#allocation7 + $0xb8] sm:$0xff]
        %v2041 = vld [vmem:[#allocation7 + $0xc0] sm:$0xff]
        %v2042 = vld [vmem:[#allocation7 + $0xc8] sm:$0xff]
        %v2043 = vld [vmem:[#allocation7 + $0xd0] sm:$0xff]
        %v2044 = vld [vmem:[#allocation7 + $0xd8] sm:$0xff]
        %v2045 = vld [vmem:[#allocation7 + $0xe0] sm:$0xff]
        %v2046 = vld [vmem:[#allocation7 + $0xe8] sm:$0xff]
        %v2047 = vld [vmem:[#allocation7 + $0xf0] sm:$0xff]
        %v2048 = vld [vmem:[#allocation7 + $0xf8] sm:$0xff]
        %v2049 = vmul.f32 %v1778, %v2017
        %v2050 = vmul.f32 %v1780, %v2018
        %v2051 = vmul.f32 %v1782, %v2019
        %v2052 = vmul.f32 %v1784, %v2020
        %v2053 = vmul.f32 %v1788, %v2021
        %v2054 = vmul.f32 %v1790, %v2022
        %v2055 = vmul.f32 %v1792, %v2023
        %v2056 = vmul.f32 %v1794, %v2024
        %v2057 = vmul.f32 %v1798, %v2025
        %v2058 = vmul.f32 %v1800, %v2026
        %v2059 = vmul.f32 %v1802, %v2027
        %v2060 = vmul.f32 %v1804, %v2028
        %v2061 = vmul.f32 %v1808, %v2029
        %v2062 = vmul.f32 %v1810, %v2030
        %v2063 = vmul.f32 %v1812, %v2031
        %v2064 = vmul.f32 %v1814, %v2032
        %v2065 = vmul.f32 %v1818, %v2033
        %v2066 = vmul.f32 %v1820, %v2034
        %v2067 = vmul.f32 %v1822, %v2035
        %v2068 = vmul.f32 %v1824, %v2036
        %v2069 = vmul.f32 %v1828, %v2037
        %v2070 = vmul.f32 %v1830, %v2038
        %v2071 = vmul.f32 %v1832, %v2039
        %v2072 = vmul.f32 %v1834, %v2040
        %v2073 = vmul.f32 %v1838, %v2041
        %v2074 = vmul.f32 %v1840, %v2042
        %v2075 = vmul.f32 %v1842, %v2043
        %v2076 = vmul.f32 %v1844, %v2044
        %v2077 = vmul.f32 %v1848, %v2045
        %v2078 = vmul.f32 %v1850, %v2046
        %v2079 = vmul.f32 %v1852, %v2047
        %v2080 = vmul.f32 %v1854, %v2048
        %v2081 = vadd.f32 %v1985, %v2049
        %v2082 = vadd.f32 %v1986, %v2050
        %v2083 = vadd.f32 %v1987, %v2051
        %v2084 = vadd.f32 %v1988, %v2052
        %v2085 = vadd.f32 %v1989, %v2053
        %v2086 = vadd.f32 %v1990, %v2054
        %v2087 = vadd.f32 %v1991, %v2055
        %v2088 = vadd.f32 %v1992, %v2056
        %v2089 = vadd.f32 %v1993, %v2057
        %v2090 = vadd.f32 %v1994, %v2058
        %v2091 = vadd.f32 %v1995, %v2059
        %v2092 = vadd.f32 %v1996, %v2060
        %v2093 = vadd.f32 %v1997, %v2061
        %v2094 = vadd.f32 %v1998, %v2062
        %v2095 = vadd.f32 %v1999, %v2063
        %v2096 = vadd.f32 %v2000, %v2064
        %v2097 = vadd.f32 %v2001, %v2065
        %v2098 = vadd.f32 %v2002, %v2066
        %v2099 = vadd.f32 %v2003, %v2067
        %v2100 = vadd.f32 %v2004, %v2068
        %v2101 = vadd.f32 %v2005, %v2069
        %v2102 = vadd.f32 %v2006, %v2070
        %v2103 = vadd.f32 %v2007, %v2071
        %v2104 = vadd.f32 %v2008, %v2072
        %v2105 = vadd.f32 %v2009, %v2073
        %v2106 = vadd.f32 %v2010, %v2074
        %v2107 = vadd.f32 %v2011, %v2075
        %v2108 = vadd.f32 %v2012, %v2076
        %v2109 = vadd.f32 %v2013, %v2077
        %v2110 = vadd.f32 %v2014, %v2078
        %v2111 = vadd.f32 %v2015, %v2079
        %v2112 = vadd.f32 %v2016, %v2080
        %v2113 = vld [vmem:[#allocation8] sm:$0xff]
        %v2114 = vld [vmem:[#allocation8 + $0x8] sm:$0xff]
        %v2115 = vld [vmem:[#allocation8 + $0x10] sm:$0xff]
        %v2116 = vld [vmem:[#allocation8 + $0x18] sm:$0xff]
        %v2117 = vld [vmem:[#allocation8 + $0x20] sm:$0xff]
        %v2118 = vld [vmem:[#allocation8 + $0x28] sm:$0xff]
        %v2119 = vld [vmem:[#allocation8 + $0x30] sm:$0xff]
        %v2120 = vld [vmem:[#allocation8 + $0x38] sm:$0xff]
        %v2121 = vld [vmem:[#allocation8 + $0x40] sm:$0xff]
        %v2122 = vld [vmem:[#allocation8 + $0x48] sm:$0xff]
        %v2123 = vld [vmem:[#allocation8 + $0x50] sm:$0xff]
        %v2124 = vld [vmem:[#allocation8 + $0x58] sm:$0xff]
        %v2125 = vld [vmem:[#allocation8 + $0x60] sm:$0xff]
        %v2126 = vld [vmem:[#allocation8 + $0x68] sm:$0xff]
        %v2127 = vld [vmem:[#allocation8 + $0x70] sm:$0xff]
        %v2128 = vld [vmem:[#allocation8 + $0x78] sm:$0xff]
        %v2129 = vmul.f32 %v1665, %v2113
        %v2130 = vmul.f32 %v1669, %v2114
        %v2131 = vmul.f32 %v1675, %v2115
        %v2132 = vmul.f32 %v1679, %v2116
        %v2133 = vmul.f32 %v1685, %v2117
        %v2134 = vmul.f32 %v1689, %v2118
        %v2135 = vmul.f32 %v1695, %v2119
        %v2136 = vmul.f32 %v1699, %v2120
        %v2137 = vmul.f32 %v1705, %v2121
        %v2138 = vmul.f32 %v1709, %v2122
        %v2139 = vmul.f32 %v1715, %v2123
        %v2140 = vmul.f32 %v1719, %v2124
        %v2141 = vmul.f32 %v1725, %v2125
        %v2142 = vmul.f32 %v1729, %v2126
        %v2143 = vmul.f32 %v1735, %v2127
        %v2144 = vmul.f32 %v1739, %v2128
        %v2145 = vld [vmem:[#allocation10] sm:$0xff]
        %v2146 = vld [vmem:[#allocation10 + $0x8] sm:$0xff]
        %v2147 = vld [vmem:[#allocation10 + $0x10] sm:$0xff]
        %v2148 = vld [vmem:[#allocation10 + $0x18] sm:$0xff]
        %v2149 = vld [vmem:[#allocation10 + $0x20] sm:$0xff]
        %v2150 = vld [vmem:[#allocation10 + $0x28] sm:$0xff]
        %v2151 = vld [vmem:[#allocation10 + $0x30] sm:$0xff]
        %v2152 = vld [vmem:[#allocation10 + $0x38] sm:$0xff]
        %v2153 = vld [vmem:[#allocation10 + $0x40] sm:$0xff]
        %v2154 = vld [vmem:[#allocation10 + $0x48] sm:$0xff]
        %v2155 = vld [vmem:[#allocation10 + $0x50] sm:$0xff]
        %v2156 = vld [vmem:[#allocation10 + $0x58] sm:$0xff]
        %v2157 = vld [vmem:[#allocation10 + $0x60] sm:$0xff]
        %v2158 = vld [vmem:[#allocation10 + $0x68] sm:$0xff]
        %v2159 = vld [vmem:[#allocation10 + $0x70] sm:$0xff]
        %v2160 = vld [vmem:[#allocation10 + $0x78] sm:$0xff]
        %v2161 = vmul.f32 %v1891, %v2145
        %v2162 = vmul.f32 %v1894, %v2146
        %v2163 = vmul.f32 %v1899, %v2147
        %v2164 = vmul.f32 %v1902, %v2148
        %v2165 = vmul.f32 %v1907, %v2149
        %v2166 = vmul.f32 %v1910, %v2150
        %v2167 = vmul.f32 %v1915, %v2151
        %v2168 = vmul.f32 %v1918, %v2152
        %v2169 = vmul.f32 %v1923, %v2153
        %v2170 = vmul.f32 %v1926, %v2154
        %v2171 = vmul.f32 %v1931, %v2155
        %v2172 = vmul.f32 %v1934, %v2156
        %v2173 = vmul.f32 %v1939, %v2157
        %v2174 = vmul.f32 %v1942, %v2158
        %v2175 = vmul.f32 %v1947, %v2159
        %v2176 = vmul.f32 %v1950, %v2160
        %v2177 = vadd.f32 %v2129, %v2161
        %v2178 = vadd.f32 %v2130, %v2162
        %v2179 = vadd.f32 %v2131, %v2163
        %v2180 = vadd.f32 %v2132, %v2164
        %v2181 = vadd.f32 %v2133, %v2165
        %v2182 = vadd.f32 %v2134, %v2166
        %v2183 = vadd.f32 %v2135, %v2167
        %v2184 = vadd.f32 %v2136, %v2168
        %v2185 = vadd.f32 %v2137, %v2169
        %v2186 = vadd.f32 %v2138, %v2170
        %v2187 = vadd.f32 %v2139, %v2171
        %v2188 = vadd.f32 %v2140, %v2172
        %v2189 = vadd.f32 %v2141, %v2173
        %v2190 = vadd.f32 %v2142, %v2174
        %v2191 = vadd.f32 %v2143, %v2175
        %v2192 = vadd.f32 %v2144, %v2176
        %v2193 = vlaneseq
        %v2194 = vshrl.u32 %v2193, 7
        %v2195 = vadd.s32 %v2194, 8
        %v2196 = vadd.s32 %v2194, 16
        %v2197 = vadd.s32 %v2194, 24
        %v2198 = vadd.s32 %v2194, 32
        %v2199 = vadd.s32 %v2194, 40
        %v2200 = vadd.s32 %v2194, 48
        %v2201 = vadd.s32 %v2194, 56
        %v2202 = vadd.s32 %v2194, 64
        %v2203 = vadd.s32 %v2194, 72
        %v2204 = vadd.s32 %v2194, 80
        %v2205 = vadd.s32 %v2194, 88
        %v2206 = vadd.s32 %v2194, 96
        %v2207 = vadd.s32 %v2194, 104
        %v2208 = vadd.s32 %v2194, 112
        %v2209 = vadd.s32 %v2194, 120
        %v2210 = vlaneseq
        %v2211 = vand.u32 %v2210, 127
        %vm2212 = vcmp.le.s32.totalorder %v2211, %v2194
        %vm2213 = vcmp.le.s32.totalorder %v2211, %v2195
        %vm2214 = vcmp.le.s32.totalorder %v2211, %v2196
        %vm2215 = vcmp.le.s32.totalorder %v2211, %v2197
        %vm2216 = vcmp.le.s32.totalorder %v2211, %v2198
        %vm2217 = vcmp.le.s32.totalorder %v2211, %v2199
        %vm2218 = vcmp.le.s32.totalorder %v2211, %v2200
        %vm2219 = vcmp.le.s32.totalorder %v2211, %v2201
        %vm2220 = vcmp.le.s32.totalorder %v2211, %v2202
        %vm2221 = vcmp.le.s32.totalorder %v2211, %v2203
        %vm2222 = vcmp.le.s32.totalorder %v2211, %v2204
        %vm2223 = vcmp.le.s32.totalorder %v2211, %v2205
        %vm2224 = vcmp.le.s32.totalorder %v2211, %v2206
        %vm2225 = vcmp.le.s32.totalorder %v2211, %v2207
        %vm2226 = vcmp.le.s32.totalorder %v2211, %v2208
        %vm2227 = vcmp.le.s32.totalorder %v2211, %v2209
        %vm2228 = vcmask 523264
        %v2230 = vsel %vm2228, %v2081, 0
        %v2233 = vsel %vm2228, %v2083, 0
        %v2236 = vsel %vm2228, %v2085, 0
        %v2239 = vsel %vm2228, %v2087, 0
        %v2242 = vsel %vm2228, %v2089, 0
        %v2245 = vsel %vm2228, %v2091, 0
        %v2248 = vsel %vm2228, %v2093, 0
        %v2251 = vsel %vm2228, %v2095, 0
        %v2254 = vsel %vm2228, %v2097, 0
        %v2257 = vsel %vm2228, %v2099, 0
        %v2260 = vsel %vm2228, %v2101, 0
        %v2263 = vsel %vm2228, %v2103, 0
        %v2266 = vsel %vm2228, %v2105, 0
        %v2269 = vsel %vm2228, %v2107, 0
        %v2272 = vsel %vm2228, %v2109, 0
        %v2275 = vsel %vm2228, %v2111, 0
        %v2278 = vsel %vm2228, %v2177, 0
        %v2281 = vsel %vm2228, %v2178, 0
        %v2284 = vsel %vm2228, %v2179, 0
        %v2287 = vsel %vm2228, %v2180, 0
        %v2290 = vsel %vm2228, %v2181, 0
        %v2293 = vsel %vm2228, %v2182, 0
        %v2296 = vsel %vm2228, %v2183, 0
        %v2299 = vsel %vm2228, %v2184, 0
        %v2302 = vsel %vm2228, %v2185, 0
        %v2305 = vsel %vm2228, %v2186, 0
        %v2308 = vsel %vm2228, %v2187, 0
        %v2311 = vsel %vm2228, %v2188, 0
        %v2314 = vsel %vm2228, %v2189, 0
        %v2317 = vsel %vm2228, %v2190, 0
        %v2320 = vsel %vm2228, %v2191, 0
        %v2323 = vsel %vm2228, %v2192, 0
        %2325 = vmatprep.subr.mxu0 0.0
        %2326 = vmatpush1.xpose.msra.mxu0 %v2323
        %2327 = vmatprep.subr.mxu0 0.0
        %2328 = vmatpush1.xpose.msra.mxu0 %v2320
        %2329 = vmatprep.subr.mxu0 0.0
        %2330 = vmatpush1.xpose.msra.mxu0 %v2317
        %2331 = vmatprep.subr.mxu0 0.0
        %2332 = vmatpush1.xpose.msra.mxu0 %v2314
        %2333 = vmatprep.subr.mxu0 0.0
        %2334 = vmatpush1.xpose.msra.mxu0 %v2311
        %2335 = vmatprep.subr.mxu0 0.0
        %2336 = vmatpush1.xpose.msra.mxu0 %v2308
        %2337 = vmatprep.subr.mxu0 0.0
        %2338 = vmatpush1.xpose.msra.mxu0 %v2305
        %2339 = vmatprep.subr.mxu0 0.0
        %2340 = vmatpush1.xpose.msra.mxu0 %v2302
        %2341 = vmatprep.subr.mxu0 0.0
        %2342 = vmatpush1.xpose.msra.mxu0 %v2299
        %2343 = vmatprep.subr.mxu0 0.0
        %2344 = vmatpush1.xpose.msra.mxu0 %v2296
        %2345 = vmatprep.subr.mxu0 0.0
        %2346 = vmatpush1.xpose.msra.mxu0 %v2293
        %2347 = vmatprep.subr.mxu0 0.0
        %2348 = vmatpush1.xpose.msra.mxu0 %v2290
        %2349 = vmatprep.subr.mxu0 0.0
        %2350 = vmatpush1.xpose.msra.mxu0 %v2287
        %2351 = vmatprep.subr.mxu0 0.0
        %2352 = vmatpush1.xpose.msra.mxu0 %v2284
        %2353 = vmatprep.subr.mxu0 0.0
        %2354 = vmatpush1.xpose.msra.mxu0 %v2281
        %2355 = vmatprep.subr.mxu0 0.0
        %2356 = vmatpush1.xpose.msra.mxu0 %v2278
        %2357 = vmatprep.subr.mxu0 0.0
        %2358 = vmatpush2.xpose.msra.mxu0 0.0
        %2359 = vmatprep.subr.mxu0 0.0
        %2360 = vmatpush2.xpose.msra.mxu0 0.0
        %2361 = vmatprep.subr.mxu0 0.0
        %2362 = vmatpush2.xpose.msra.mxu0 0.0
        %2363 = vmatprep.subr.mxu0 0.0
        %2364 = vmatpush2.xpose.msra.mxu0 0.0
        %2365 = vmatprep.subr.mxu0 0.0
        %2366 = vmatpush2.xpose.msra.mxu0 0.0
        %2367 = vmatprep.subr.mxu0 0.0
        %2368 = vmatpush2.xpose.msra.mxu0 0.0
        %2369 = vmatprep.subr.mxu0 0.0
        %2370 = vmatpush2.xpose.msra.mxu0 0.0
        %2371 = vmatprep.subr.mxu0 0.0
        %2372 = vmatpush2.xpose.msra.mxu0 0.0
        %2373 = vmatprep.subr.mxu0 0.0
        %2374 = vmatpush2.xpose.msra.mxu0 0.0
        %2375 = vmatprep.subr.mxu0 0.0
        %2376 = vmatpush2.xpose.msra.mxu0 0.0
        %2377 = vmatprep.subr.mxu0 0.0
        %2378 = vmatpush2.xpose.msra.mxu0 0.0
        %2379 = vmatprep.subr.mxu0 0.0
        %2380 = vmatpush2.xpose.msra.mxu0 0.0
        %2381 = vmatprep.subr.mxu0 0.0
        %2382 = vmatpush2.xpose.msra.mxu0 0.0
        %2383 = vmatprep.subr.mxu0 0.0
        %2384 = vmatpush2.xpose.msra.mxu0 0.0
        %2385 = vmatprep.subr.mxu0 0.0
        %2386 = vmatpush2.xpose.msra.mxu0 0.0
        %2387 = vmatprep.subr.mxu0 0.0
        %2388 = vmatpush2.xpose.msra.mxu0 0.0
        %2389 = vmatprep.mubr.f32.mxu0 0.0
        %2390 = vmatmul.mubr.f32.gmra.mxu0 %v2230
        %v2391 = vpop.f32.mrf.mxu0
        %v2392 = vadd.f32 0.0, %v2391
        %v2393 = vpop.f32.mrf.mxu0
        %2394 = vmatprep.mubr.f32.mxu0 0.0
        %2395 = vmatmul.mubr.f32.gmra.mxu0 %v2233
        %v2396 = vpop.f32.mrf.mxu0
        %v2397 = vadd.f32 0.0, %v2396
        %v2398 = vpop.f32.mrf.mxu0
        %2399 = vmatprep.mubr.f32.mxu0 0.0
        %2400 = vmatmul.mubr.f32.gmra.mxu0 %v2236
        %v2401 = vpop.f32.mrf.mxu0
        %v2402 = vadd.f32 0.0, %v2401
        %v2403 = vpop.f32.mrf.mxu0
        %2404 = vmatprep.mubr.f32.mxu0 0.0
        %2405 = vmatmul.mubr.f32.gmra.mxu0 %v2239
        %v2406 = vpop.f32.mrf.mxu0
        %v2407 = vadd.f32 0.0, %v2406
        %v2408 = vpop.f32.mrf.mxu0
        %2409 = vmatprep.mubr.f32.mxu0 0.0
        %2410 = vmatmul.mubr.f32.gmra.mxu0 %v2242
        %v2411 = vpop.f32.mrf.mxu0
        %v2412 = vadd.f32 0.0, %v2411
        %v2413 = vpop.f32.mrf.mxu0
        %2414 = vmatprep.mubr.f32.mxu0 0.0
        %2415 = vmatmul.mubr.f32.gmra.mxu0 %v2245
        %v2416 = vpop.f32.mrf.mxu0
        %v2417 = vadd.f32 0.0, %v2416
        %v2418 = vpop.f32.mrf.mxu0
        %2419 = vmatprep.mubr.f32.mxu0 0.0
        %2420 = vmatmul.mubr.f32.gmra.mxu0 %v2248
        %v2421 = vpop.f32.mrf.mxu0
        %v2422 = vadd.f32 0.0, %v2421
        %v2423 = vpop.f32.mrf.mxu0
        %2424 = vmatprep.mubr.f32.mxu0 0.0
        %2425 = vmatmul.mubr.f32.gmra.mxu0 %v2251
        %v2426 = vpop.f32.mrf.mxu0
        %v2427 = vadd.f32 0.0, %v2426
        %v2428 = vpop.f32.mrf.mxu0
        %2429 = vmatprep.mubr.f32.mxu0 0.0
        %2430 = vmatmul.mubr.f32.gmra.mxu0 %v2254
        %v2431 = vpop.f32.mrf.mxu0
        %v2432 = vadd.f32 0.0, %v2431
        %v2433 = vpop.f32.mrf.mxu0
        %2434 = vmatprep.mubr.f32.mxu0 0.0
        %2435 = vmatmul.mubr.f32.gmra.mxu0 %v2257
        %v2436 = vpop.f32.mrf.mxu0
        %v2437 = vadd.f32 0.0, %v2436
        %v2438 = vpop.f32.mrf.mxu0
        %2439 = vmatprep.mubr.f32.mxu0 0.0
        %2440 = vmatmul.mubr.f32.gmra.mxu0 %v2260
        %v2441 = vpop.f32.mrf.mxu0
        %v2442 = vadd.f32 0.0, %v2441
        %v2443 = vpop.f32.mrf.mxu0
        %2444 = vmatprep.mubr.f32.mxu0 0.0
        %2445 = vmatmul.mubr.f32.gmra.mxu0 %v2263
        %v2446 = vpop.f32.mrf.mxu0
        %v2447 = vadd.f32 0.0, %v2446
        %v2448 = vpop.f32.mrf.mxu0
        %2449 = vmatprep.mubr.f32.mxu0 0.0
        %2450 = vmatmul.mubr.f32.gmra.mxu0 %v2266
        %v2451 = vpop.f32.mrf.mxu0
        %v2452 = vadd.f32 0.0, %v2451
        %v2453 = vpop.f32.mrf.mxu0
        %2454 = vmatprep.mubr.f32.mxu0 0.0
        %2455 = vmatmul.mubr.f32.gmra.mxu0 %v2269
        %v2456 = vpop.f32.mrf.mxu0
        %v2457 = vadd.f32 0.0, %v2456
        %v2458 = vpop.f32.mrf.mxu0
        %2459 = vmatprep.mubr.f32.mxu0 0.0
        %2460 = vmatmul.mubr.f32.gmra.mxu0 %v2272
        %v2461 = vpop.f32.mrf.mxu0
        %v2462 = vadd.f32 0.0, %v2461
        %v2463 = vpop.f32.mrf.mxu0
        %2464 = vmatprep.mubr.f32.mxu0 0.0
        %2465 = vmatmul.mubr.f32.gmra.mxu0 %v2275
        %v2466 = vpop.f32.mrf.mxu0
        %v2467 = vadd.f32 0.0, %v2466
        %v2468 = vpop.f32.mrf.mxu0
        %2469 = vdwg.mxu0
        %v2470 = vmul.f32 %v2392, 0.125
        %v2471 = vmul.f32 %v2397, 0.125
        %v2472 = vmul.f32 %v2402, 0.125
        %v2473 = vmul.f32 %v2407, 0.125
        %v2474 = vmul.f32 %v2412, 0.125
        %v2475 = vmul.f32 %v2417, 0.125
        %v2476 = vmul.f32 %v2422, 0.125
        %v2477 = vmul.f32 %v2427, 0.125
        %v2478 = vmul.f32 %v2432, 0.125
        %v2479 = vmul.f32 %v2437, 0.125
        %v2480 = vmul.f32 %v2442, 0.125
        %v2481 = vmul.f32 %v2447, 0.125
        %v2482 = vmul.f32 %v2452, 0.125
        %v2483 = vmul.f32 %v2457, 0.125
        %v2484 = vmul.f32 %v2462, 0.125
        %v2485 = vmul.f32 %v2467, 0.125
        %v2486 = vsel %vm2212, %v2470, -1e+30
        %v2487 = vsel %vm2213, %v2471, -1e+30
        %v2488 = vsel %vm2214, %v2472, -1e+30
        %v2489 = vsel %vm2215, %v2473, -1e+30
        %v2490 = vsel %vm2216, %v2474, -1e+30
        %v2491 = vsel %vm2217, %v2475, -1e+30
        %v2492 = vsel %vm2218, %v2476, -1e+30
        %v2493 = vsel %vm2219, %v2477, -1e+30
        %v2494 = vsel %vm2220, %v2478, -1e+30
        %v2495 = vsel %vm2221, %v2479, -1e+30
        %v2496 = vsel %vm2222, %v2480, -1e+30
        %v2497 = vsel %vm2223, %v2481, -1e+30
        %v2498 = vsel %vm2224, %v2482, -1e+30
        %v2499 = vsel %vm2225, %v2483, -1e+30
        %v2500 = vsel %vm2226, %v2484, -1e+30
        %v2501 = vsel %vm2227, %v2485, -1e+30
        %2502 = vmax.xlane.f32.xlu0 %v2486
        %v2503 = vpop.xlane.xlu0 %2502
        %2504 = vmax.xlane.f32.xlu0 %v2487
        %v2505 = vpop.xlane.xlu0 %2504
        %2506 = vmax.xlane.f32.xlu0 %v2488
        %v2507 = vpop.xlane.xlu0 %2506
        %2508 = vmax.xlane.f32.xlu0 %v2489
        %v2509 = vpop.xlane.xlu0 %2508
        %2510 = vmax.xlane.f32.xlu0 %v2490
        %v2511 = vpop.xlane.xlu0 %2510
        %2512 = vmax.xlane.f32.xlu0 %v2491
        %v2513 = vpop.xlane.xlu0 %2512
        %2514 = vmax.xlane.f32.xlu0 %v2492
        %v2515 = vpop.xlane.xlu0 %2514
        %2516 = vmax.xlane.f32.xlu0 %v2493
        %v2517 = vpop.xlane.xlu0 %2516
        %2518 = vmax.xlane.f32.xlu0 %v2494
        %v2519 = vpop.xlane.xlu0 %2518
        %2520 = vmax.xlane.f32.xlu0 %v2495
        %v2521 = vpop.xlane.xlu0 %2520
        %2522 = vmax.xlane.f32.xlu0 %v2496
        %v2523 = vpop.xlane.xlu0 %2522
        %2524 = vmax.xlane.f32.xlu0 %v2497
        %v2525 = vpop.xlane.xlu0 %2524
        %2526 = vmax.xlane.f32.xlu0 %v2498
        %v2527 = vpop.xlane.xlu0 %2526
        %2528 = vmax.xlane.f32.xlu0 %v2499
        %v2529 = vpop.xlane.xlu0 %2528
        %2530 = vmax.xlane.f32.xlu0 %v2500
        %v2531 = vpop.xlane.xlu0 %2530
        %2532 = vmax.xlane.f32.xlu0 %v2501
        %v2533 = vpop.xlane.xlu0 %2532
        %v2534 = vsub.f32 %v2486, %v2503
        %v2535 = vsub.f32 %v2487, %v2505
        %v2536 = vsub.f32 %v2488, %v2507
        %v2537 = vsub.f32 %v2489, %v2509
        %v2538 = vsub.f32 %v2490, %v2511
        %v2539 = vsub.f32 %v2491, %v2513
        %v2540 = vsub.f32 %v2492, %v2515
        %v2541 = vsub.f32 %v2493, %v2517
        %v2542 = vsub.f32 %v2494, %v2519
        %v2543 = vsub.f32 %v2495, %v2521
        %v2544 = vsub.f32 %v2496, %v2523
        %v2545 = vsub.f32 %v2497, %v2525
        %v2546 = vsub.f32 %v2498, %v2527
        %v2547 = vsub.f32 %v2499, %v2529
        %v2548 = vsub.f32 %v2500, %v2531
        %v2549 = vsub.f32 %v2501, %v2533
        %v2550 = vmul.f32 %v2534, 1.442695
        %v2551 = vpow.pop %v2550
        %v2552 = vmul.f32 %v2535, 1.442695
        %v2553 = vpow.pop %v2552
        %v2554 = vmul.f32 %v2536, 1.442695
        %v2555 = vpow.pop %v2554
        %v2556 = vmul.f32 %v2537, 1.442695
        %v2557 = vpow.pop %v2556
        %v2558 = vmul.f32 %v2538, 1.442695
        %v2559 = vpow.pop %v2558
        %v2560 = vmul.f32 %v2539, 1.442695
        %v2561 = vpow.pop %v2560
        %v2562 = vmul.f32 %v2540, 1.442695
        %v2563 = vpow.pop %v2562
        %v2564 = vmul.f32 %v2541, 1.442695
        %v2565 = vpow.pop %v2564
        %v2566 = vmul.f32 %v2542, 1.442695
        %v2567 = vpow.pop %v2566
        %v2568 = vmul.f32 %v2543, 1.442695
        %v2569 = vpow.pop %v2568
        %v2570 = vmul.f32 %v2544, 1.442695
        %v2571 = vpow.pop %v2570
        %v2572 = vmul.f32 %v2545, 1.442695
        %v2573 = vpow.pop %v2572
        %v2574 = vmul.f32 %v2546, 1.442695
        %v2575 = vpow.pop %v2574
        %v2576 = vmul.f32 %v2547, 1.442695
        %v2577 = vpow.pop %v2576
        %v2578 = vmul.f32 %v2548, 1.442695
        %v2579 = vpow.pop %v2578
        %v2580 = vmul.f32 %v2549, 1.442695
        %v2581 = vpow.pop %v2580
        %2582 = vadd.xlane.f32.xlu0 %v2551
        %v2583 = vpop.xlane.xlu0 %2582
        %2584 = vadd.xlane.f32.xlu0 %v2553
        %v2585 = vpop.xlane.xlu0 %2584
        %2586 = vadd.xlane.f32.xlu0 %v2555
        %v2587 = vpop.xlane.xlu0 %2586
        %2588 = vadd.xlane.f32.xlu0 %v2557
        %v2589 = vpop.xlane.xlu0 %2588
        %2590 = vadd.xlane.f32.xlu0 %v2559
        %v2591 = vpop.xlane.xlu0 %2590
        %2592 = vadd.xlane.f32.xlu0 %v2561
        %v2593 = vpop.xlane.xlu0 %2592
        %2594 = vadd.xlane.f32.xlu0 %v2563
        %v2595 = vpop.xlane.xlu0 %2594
        %2596 = vadd.xlane.f32.xlu0 %v2565
        %v2597 = vpop.xlane.xlu0 %2596
        %2598 = vadd.xlane.f32.xlu0 %v2567
        %v2599 = vpop.xlane.xlu0 %2598
        %2600 = vadd.xlane.f32.xlu0 %v2569
        %v2601 = vpop.xlane.xlu0 %2600
        %2602 = vadd.xlane.f32.xlu0 %v2571
        %v2603 = vpop.xlane.xlu0 %2602
        %2604 = vadd.xlane.f32.xlu0 %v2573
        %v2605 = vpop.xlane.xlu0 %2604
        %2606 = vadd.xlane.f32.xlu0 %v2575
        %v2607 = vpop.xlane.xlu0 %2606
        %2608 = vadd.xlane.f32.xlu0 %v2577
        %v2609 = vpop.xlane.xlu0 %2608
        %2610 = vadd.xlane.f32.xlu0 %v2579
        %v2611 = vpop.xlane.xlu0 %2610
        %2612 = vadd.xlane.f32.xlu0 %v2581
        %v2613 = vpop.xlane.xlu0 %2612
        %v2614 = vrcp.pop %v2583
        %v2615 = vrcp.pop %v2585
        %v2616 = vrcp.pop %v2587
        %v2617 = vrcp.pop %v2589
        %v2618 = vrcp.pop %v2591
        %v2619 = vrcp.pop %v2593
        %v2620 = vrcp.pop %v2595
        %v2621 = vrcp.pop %v2597
        %v2622 = vrcp.pop %v2599
        %v2623 = vrcp.pop %v2601
        %v2624 = vrcp.pop %v2603
        %v2625 = vrcp.pop %v2605
        %v2626 = vrcp.pop %v2607
        %v2627 = vrcp.pop %v2609
        %v2628 = vrcp.pop %v2611
        %v2629 = vrcp.pop %v2613
        %v2630 = vmul.f32 %v2551, %v2614
        %v2631 = vmul.f32 %v2553, %v2615
        %v2632 = vmul.f32 %v2555, %v2616
        %v2633 = vmul.f32 %v2557, %v2617
        %v2634 = vmul.f32 %v2559, %v2618
        %v2635 = vmul.f32 %v2561, %v2619
        %v2636 = vmul.f32 %v2563, %v2620
        %v2637 = vmul.f32 %v2565, %v2621
        %v2638 = vmul.f32 %v2567, %v2622
        %v2639 = vmul.f32 %v2569, %v2623
        %v2640 = vmul.f32 %v2571, %v2624
        %v2641 = vmul.f32 %v2573, %v2625
        %v2642 = vmul.f32 %v2575, %v2626
        %v2643 = vmul.f32 %v2577, %v2627
        %v2644 = vmul.f32 %v2579, %v2628
        %v2645 = vmul.f32 %v2581, %v2629
        %2646 = vmatprep.subr.mxu0 0.0
        %2647 = vmatpush1.msra.mxu0 %v1741
        %2648 = vmatprep.subr.mxu0 0.0
        %2649 = vmatpush1.msra.mxu0 %v1737
        %2650 = vmatprep.subr.mxu0 0.0
        %2651 = vmatpush1.msra.mxu0 %v1731
        %2652 = vmatprep.subr.mxu0 0.0
        %2653 = vmatpush1.msra.mxu0 %v1727
        %2654 = vmatprep.subr.mxu0 0.0
        %2655 = vmatpush1.msra.mxu0 %v1721
        %2656 = vmatprep.subr.mxu0 0.0
        %2657 = vmatpush1.msra.mxu0 %v1717
        %2658 = vmatprep.subr.mxu0 0.0
        %2659 = vmatpush1.msra.mxu0 %v1711
        %2660 = vmatprep.subr.mxu0 0.0
        %2661 = vmatpush1.msra.mxu0 %v1707
        %2662 = vmatprep.subr.mxu0 0.0
        %2663 = vmatpush1.msra.mxu0 %v1701
        %2664 = vmatprep.subr.mxu0 0.0
        %2665 = vmatpush1.msra.mxu0 %v1697
        %2666 = vmatprep.subr.mxu0 0.0
        %2667 = vmatpush1.msra.mxu0 %v1691
        %2668 = vmatprep.subr.mxu0 0.0
        %2669 = vmatpush1.msra.mxu0 %v1687
        %2670 = vmatprep.subr.mxu0 0.0
        %2671 = vmatpush1.msra.mxu0 %v1681
        %2672 = vmatprep.subr.mxu0 0.0
        %2673 = vmatpush1.msra.mxu0 %v1677
        %2674 = vmatprep.subr.mxu0 0.0
        %2675 = vmatpush1.msra.mxu0 %v1671
        %2676 = vmatprep.subr.mxu0 0.0
        %2677 = vmatpush1.msra.mxu0 %v1667
        %2678 = vmatprep.subr.mxu0 0.0
        %2679 = vmatpush2.msra.mxu0 0.0
        %2680 = vmatprep.subr.mxu0 0.0
        %2681 = vmatpush2.msra.mxu0 0.0
        %2682 = vmatprep.subr.mxu0 0.0
        %2683 = vmatpush2.msra.mxu0 0.0
        %2684 = vmatprep.subr.mxu0 0.0
        %2685 = vmatpush2.msra.mxu0 0.0
        %2686 = vmatprep.subr.mxu0 0.0
        %2687 = vmatpush2.msra.mxu0 0.0
        %2688 = vmatprep.subr.mxu0 0.0
        %2689 = vmatpush2.msra.mxu0 0.0
        %2690 = vmatprep.subr.mxu0 0.0
        %2691 = vmatpush2.msra.mxu0 0.0
        %2692 = vmatprep.subr.mxu0 0.0
        %2693 = vmatpush2.msra.mxu0 0.0
        %2694 = vmatprep.subr.mxu0 0.0
        %2695 = vmatpush2.msra.mxu0 0.0
        %2696 = vmatprep.subr.mxu0 0.0
        %2697 = vmatpush2.msra.mxu0 0.0
        %2698 = vmatprep.subr.mxu0 0.0
        %2699 = vmatpush2.msra.mxu0 0.0
        %2700 = vmatprep.subr.mxu0 0.0
        %2701 = vmatpush2.msra.mxu0 0.0
        %2702 = vmatprep.subr.mxu0 0.0
        %2703 = vmatpush2.msra.mxu0 0.0
        %2704 = vmatprep.subr.mxu0 0.0
        %2705 = vmatpush2.msra.mxu0 0.0
        %2706 = vmatprep.subr.mxu0 0.0
        %2707 = vmatpush2.msra.mxu0 0.0
        %2708 = vmatprep.subr.mxu0 0.0
        %2709 = vmatpush2.msra.mxu0 0.0
        %2710 = vmatprep.mubr.f32.mxu0 0.0
        %2711 = vmatmul.mubr.f32.gmra.mxu0 %v2630
        %v2712 = vpop.f32.mrf.mxu0
        %v2713 = vadd.f32 0.0, %v2712
        %v2714 = vpop.f32.mrf.mxu0
        %2715 = vmatprep.mubr.f32.mxu0 0.0
        %2716 = vmatmul.mubr.f32.gmra.mxu0 %v2631
        %v2717 = vpop.f32.mrf.mxu0
        %v2718 = vadd.f32 0.0, %v2717
        %v2719 = vpop.f32.mrf.mxu0
        %2720 = vmatprep.mubr.f32.mxu0 0.0
        %2721 = vmatmul.mubr.f32.gmra.mxu0 %v2632
        %v2722 = vpop.f32.mrf.mxu0
        %v2723 = vadd.f32 0.0, %v2722
        %v2724 = vpop.f32.mrf.mxu0
        %2725 = vmatprep.mubr.f32.mxu0 0.0
        %2726 = vmatmul.mubr.f32.gmra.mxu0 %v2633
        %v2727 = vpop.f32.mrf.mxu0
        %v2728 = vadd.f32 0.0, %v2727
        %v2729 = vpop.f32.mrf.mxu0
        %2730 = vmatprep.mubr.f32.mxu0 0.0
        %2731 = vmatmul.mubr.f32.gmra.mxu0 %v2634
        %v2732 = vpop.f32.mrf.mxu0
        %v2733 = vadd.f32 0.0, %v2732
        %v2734 = vpop.f32.mrf.mxu0
        %2735 = vmatprep.mubr.f32.mxu0 0.0
        %2736 = vmatmul.mubr.f32.gmra.mxu0 %v2635
        %v2737 = vpop.f32.mrf.mxu0
        %v2738 = vadd.f32 0.0, %v2737
        %v2739 = vpop.f32.mrf.mxu0
        %2740 = vmatprep.mubr.f32.mxu0 0.0
        %2741 = vmatmul.mubr.f32.gmra.mxu0 %v2636
        %v2742 = vpop.f32.mrf.mxu0
        %v2743 = vadd.f32 0.0, %v2742
        %v2744 = vpop.f32.mrf.mxu0
        %2745 = vmatprep.mubr.f32.mxu0 0.0
        %2746 = vmatmul.mubr.f32.gmra.mxu0 %v2637
        %v2747 = vpop.f32.mrf.mxu0
        %v2748 = vadd.f32 0.0, %v2747
        %v2749 = vpop.f32.mrf.mxu0
        %2750 = vmatprep.mubr.f32.mxu0 0.0
        %2751 = vmatmul.mubr.f32.gmra.mxu0 %v2638
        %v2752 = vpop.f32.mrf.mxu0
        %v2753 = vadd.f32 0.0, %v2752
        %v2754 = vpop.f32.mrf.mxu0
        %2755 = vmatprep.mubr.f32.mxu0 0.0
        %2756 = vmatmul.mubr.f32.gmra.mxu0 %v2639
        %v2757 = vpop.f32.mrf.mxu0
        %v2758 = vadd.f32 0.0, %v2757
        %v2759 = vpop.f32.mrf.mxu0
        %2760 = vmatprep.mubr.f32.mxu0 0.0
        %2761 = vmatmul.mubr.f32.gmra.mxu0 %v2640
        %v2762 = vpop.f32.mrf.mxu0
        %v2763 = vadd.f32 0.0, %v2762
        %v2764 = vpop.f32.mrf.mxu0
        %2765 = vmatprep.mubr.f32.mxu0 0.0
        %2766 = vmatmul.mubr.f32.gmra.mxu0 %v2641
        %v2767 = vpop.f32.mrf.mxu0
        %v2768 = vadd.f32 0.0, %v2767
        %v2769 = vpop.f32.mrf.mxu0
        %2770 = vmatprep.mubr.f32.mxu0 0.0
        %2771 = vmatmul.mubr.f32.gmra.mxu0 %v2642
        %v2772 = vpop.f32.mrf.mxu0
        %v2773 = vadd.f32 0.0, %v2772
        %v2774 = vpop.f32.mrf.mxu0
        %2775 = vmatprep.mubr.f32.mxu0 0.0
        %2776 = vmatmul.mubr.f32.gmra.mxu0 %v2643
        %v2777 = vpop.f32.mrf.mxu0
        %v2778 = vadd.f32 0.0, %v2777
        %v2779 = vpop.f32.mrf.mxu0
        %2780 = vmatprep.mubr.f32.mxu0 0.0
        %2781 = vmatmul.mubr.f32.gmra.mxu0 %v2644
        %v2782 = vpop.f32.mrf.mxu0
        %v2783 = vadd.f32 0.0, %v2782
        %v2784 = vpop.f32.mrf.mxu0
        %2785 = vmatprep.mubr.f32.mxu0 0.0
        %2786 = vmatmul.mubr.f32.gmra.mxu0 %v2645
        %v2787 = vpop.f32.mrf.mxu0
        %v2788 = vadd.f32 0.0, %v2787
        %v2789 = vpop.f32.mrf.mxu0
        %2790 = vdwg.mxu0
        %v2791 = vpack.c.bf16 %v2718, %v2713
        %v2792 = vpack.c.bf16 %v2728, %v2723
        %v2793 = vpack.c.bf16 %v2738, %v2733
        %v2794 = vpack.c.bf16 %v2748, %v2743
        %v2795 = vpack.c.bf16 %v2758, %v2753
        %v2796 = vpack.c.bf16 %v2768, %v2763
        %v2797 = vpack.c.bf16 %v2778, %v2773
        %v2798 = vpack.c.bf16 %v2788, %v2783
        %v2799 = vld [vmem:[#allocation13] sm:$0xff]
        %v2800 = vld [vmem:[#allocation13 + $0x8] sm:$0xff]
        %v2801 = vld [vmem:[#allocation13 + $0x10] sm:$0xff]
        %v2802 = vld [vmem:[#allocation13 + $0x18] sm:$0xff]
        %v2803 = vld [vmem:[#allocation13 + $0x20] sm:$0xff]
        %v2804 = vld [vmem:[#allocation13 + $0x28] sm:$0xff]
        %v2805 = vld [vmem:[#allocation13 + $0x30] sm:$0xff]
        %v2806 = vld [vmem:[#allocation13 + $0x38] sm:$0xff]
        %2807 = vrot.lane.b32.xlu0 %v2081, 64
        %v2808 = vpop.permute.xlu0 %2807
        %2809 = vrot.lane.b32.xlu0 %v2083, 64
        %v2810 = vpop.permute.xlu0 %2809
        %2811 = vrot.lane.b32.xlu0 %v2085, 64
        %v2812 = vpop.permute.xlu0 %2811
        %2813 = vrot.lane.b32.xlu0 %v2087, 64
        %v2814 = vpop.permute.xlu0 %2813
        %2815 = vrot.lane.b32.xlu0 %v2089, 64
        %v2816 = vpop.permute.xlu0 %2815
        %2817 = vrot.lane.b32.xlu0 %v2091, 64
        %v2818 = vpop.permute.xlu0 %2817
        %2819 = vrot.lane.b32.xlu0 %v2093, 64
        %v2820 = vpop.permute.xlu0 %2819
        %2821 = vrot.lane.b32.xlu0 %v2095, 64
        %v2822 = vpop.permute.xlu0 %2821
        %2823 = vrot.lane.b32.xlu0 %v2097, 64
        %v2824 = vpop.permute.xlu0 %2823
        %2825 = vrot.lane.b32.xlu0 %v2099, 64
        %v2826 = vpop.permute.xlu0 %2825
        %2827 = vrot.lane.b32.xlu0 %v2101, 64
        %v2828 = vpop.permute.xlu0 %2827
        %2829 = vrot.lane.b32.xlu0 %v2103, 64
        %v2830 = vpop.permute.xlu0 %2829
        %2831 = vrot.lane.b32.xlu0 %v2105, 64
        %v2832 = vpop.permute.xlu0 %2831
        %2833 = vrot.lane.b32.xlu0 %v2107, 64
        %v2834 = vpop.permute.xlu0 %2833
        %2835 = vrot.lane.b32.xlu0 %v2109, 64
        %v2836 = vpop.permute.xlu0 %2835
        %2837 = vrot.lane.b32.xlu0 %v2111, 64
        %v2838 = vpop.permute.xlu0 %2837
        %v2839 = vsel %vm2228, %v2808, 0
        %v2841 = vsel %vm2228, %v2810, 0
        %v2843 = vsel %vm2228, %v2812, 0
        %v2845 = vsel %vm2228, %v2814, 0
        %v2847 = vsel %vm2228, %v2816, 0
        %v2849 = vsel %vm2228, %v2818, 0
        %v2851 = vsel %vm2228, %v2820, 0
        %v2853 = vsel %vm2228, %v2822, 0
        %v2855 = vsel %vm2228, %v2824, 0
        %v2857 = vsel %vm2228, %v2826, 0
        %v2859 = vsel %vm2228, %v2828, 0
        %v2861 = vsel %vm2228, %v2830, 0
        %v2863 = vsel %vm2228, %v2832, 0
        %v2865 = vsel %vm2228, %v2834, 0
        %v2867 = vsel %vm2228, %v2836, 0
        %v2869 = vsel %vm2228, %v2838, 0
        %2871 = vmatprep.subr.mxu0 0.0
        %2872 = vmatpush1.xpose.msra.mxu0 %v2323
        %2873 = vmatprep.subr.mxu0 0.0
        %2874 = vmatpush1.xpose.msra.mxu0 %v2320
        %2875 = vmatprep.subr.mxu0 0.0
        %2876 = vmatpush1.xpose.msra.mxu0 %v2317
        %2877 = vmatprep.subr.mxu0 0.0
        %2878 = vmatpush1.xpose.msra.mxu0 %v2314
        %2879 = vmatprep.subr.mxu0 0.0
        %2880 = vmatpush1.xpose.msra.mxu0 %v2311
        %2881 = vmatprep.subr.mxu0 0.0
        %2882 = vmatpush1.xpose.msra.mxu0 %v2308
        %2883 = vmatprep.subr.mxu0 0.0
        %2884 = vmatpush1.xpose.msra.mxu0 %v2305
        %2885 = vmatprep.subr.mxu0 0.0
        %2886 = vmatpush1.xpose.msra.mxu0 %v2302
        %2887 = vmatprep.subr.mxu0 0.0
        %2888 = vmatpush1.xpose.msra.mxu0 %v2299
        %2889 = vmatprep.subr.mxu0 0.0
        %2890 = vmatpush1.xpose.msra.mxu0 %v2296
        %2891 = vmatprep.subr.mxu0 0.0
        %2892 = vmatpush1.xpose.msra.mxu0 %v2293
        %2893 = vmatprep.subr.mxu0 0.0
        %2894 = vmatpush1.xpose.msra.mxu0 %v2290
        %2895 = vmatprep.subr.mxu0 0.0
        %2896 = vmatpush1.xpose.msra.mxu0 %v2287
        %2897 = vmatprep.subr.mxu0 0.0
        %2898 = vmatpush1.xpose.msra.mxu0 %v2284
        %2899 = vmatprep.subr.mxu0 0.0
        %2900 = vmatpush1.xpose.msra.mxu0 %v2281
        %2901 = vmatprep.subr.mxu0 0.0
        %2902 = vmatpush1.xpose.msra.mxu0 %v2278
        %2903 = vmatprep.subr.mxu0 0.0
        %2904 = vmatpush2.xpose.msra.mxu0 0.0
        %2905 = vmatprep.subr.mxu0 0.0
        %2906 = vmatpush2.xpose.msra.mxu0 0.0
        %2907 = vmatprep.subr.mxu0 0.0
        %2908 = vmatpush2.xpose.msra.mxu0 0.0
        %2909 = vmatprep.subr.mxu0 0.0
        %2910 = vmatpush2.xpose.msra.mxu0 0.0
        %2911 = vmatprep.subr.mxu0 0.0
        %2912 = vmatpush2.xpose.msra.mxu0 0.0
        %2913 = vmatprep.subr.mxu0 0.0
        %2914 = vmatpush2.xpose.msra.mxu0 0.0
        %2915 = vmatprep.subr.mxu0 0.0
        %2916 = vmatpush2.xpose.msra.mxu0 0.0
        %2917 = vmatprep.subr.mxu0 0.0
        %2918 = vmatpush2.xpose.msra.mxu0 0.0
        %2919 = vmatprep.subr.mxu0 0.0
        %2920 = vmatpush2.xpose.msra.mxu0 0.0
        %2921 = vmatprep.subr.mxu0 0.0
        %2922 = vmatpush2.xpose.msra.mxu0 0.0
        %2923 = vmatprep.subr.mxu0 0.0
        %2924 = vmatpush2.xpose.msra.mxu0 0.0
        %2925 = vmatprep.subr.mxu0 0.0
        %2926 = vmatpush2.xpose.msra.mxu0 0.0
        %2927 = vmatprep.subr.mxu0 0.0
        %2928 = vmatpush2.xpose.msra.mxu0 0.0
        %2929 = vmatprep.subr.mxu0 0.0
        %2930 = vmatpush2.xpose.msra.mxu0 0.0
        %2931 = vmatprep.subr.mxu0 0.0
        %2932 = vmatpush2.xpose.msra.mxu0 0.0
        %2933 = vmatprep.subr.mxu0 0.0
        %2934 = vmatpush2.xpose.msra.mxu0 0.0
        %2935 = vmatprep.mubr.f32.mxu0 0.0
        %2936 = vmatmul.mubr.f32.gmra.mxu0 %v2839
        %v2937 = vpop.f32.mrf.mxu0
        %v2938 = vadd.f32 0.0, %v2937
        %v2939 = vpop.f32.mrf.mxu0
        %2940 = vmatprep.mubr.f32.mxu0 0.0
        %2941 = vmatmul.mubr.f32.gmra.mxu0 %v2841
        %v2942 = vpop.f32.mrf.mxu0
        %v2943 = vadd.f32 0.0, %v2942
        %v2944 = vpop.f32.mrf.mxu0
        %2945 = vmatprep.mubr.f32.mxu0 0.0
        %2946 = vmatmul.mubr.f32.gmra.mxu0 %v2843
        %v2947 = vpop.f32.mrf.mxu0
        %v2948 = vadd.f32 0.0, %v2947
        %v2949 = vpop.f32.mrf.mxu0
        %2950 = vmatprep.mubr.f32.mxu0 0.0
        %2951 = vmatmul.mubr.f32.gmra.mxu0 %v2845
        %v2952 = vpop.f32.mrf.mxu0
        %v2953 = vadd.f32 0.0, %v2952
        %v2954 = vpop.f32.mrf.mxu0
        %2955 = vmatprep.mubr.f32.mxu0 0.0
        %2956 = vmatmul.mubr.f32.gmra.mxu0 %v2847
        %v2957 = vpop.f32.mrf.mxu0
        %v2958 = vadd.f32 0.0, %v2957
        %v2959 = vpop.f32.mrf.mxu0
        %2960 = vmatprep.mubr.f32.mxu0 0.0
        %2961 = vmatmul.mubr.f32.gmra.mxu0 %v2849
        %v2962 = vpop.f32.mrf.mxu0
        %v2963 = vadd.f32 0.0, %v2962
        %v2964 = vpop.f32.mrf.mxu0
        %2965 = vmatprep.mubr.f32.mxu0 0.0
        %2966 = vmatmul.mubr.f32.gmra.mxu0 %v2851
        %v2967 = vpop.f32.mrf.mxu0
        %v2968 = vadd.f32 0.0, %v2967
        %v2969 = vpop.f32.mrf.mxu0
        %2970 = vmatprep.mubr.f32.mxu0 0.0
        %2971 = vmatmul.mubr.f32.gmra.mxu0 %v2853
        %v2972 = vpop.f32.mrf.mxu0
        %v2973 = vadd.f32 0.0, %v2972
        %v2974 = vpop.f32.mrf.mxu0
        %2975 = vmatprep.mubr.f32.mxu0 0.0
        %2976 = vmatmul.mubr.f32.gmra.mxu0 %v2855
        %v2977 = vpop.f32.mrf.mxu0
        %v2978 = vadd.f32 0.0, %v2977
        %v2979 = vpop.f32.mrf.mxu0
        %2980 = vmatprep.mubr.f32.mxu0 0.0
        %2981 = vmatmul.mubr.f32.gmra.mxu0 %v2857
        %v2982 = vpop.f32.mrf.mxu0
        %v2983 = vadd.f32 0.0, %v2982
        %v2984 = vpop.f32.mrf.mxu0
        %2985 = vmatprep.mubr.f32.mxu0 0.0
        %2986 = vmatmul.mubr.f32.gmra.mxu0 %v2859
        %v2987 = vpop.f32.mrf.mxu0
        %v2988 = vadd.f32 0.0, %v2987
        %v2989 = vpop.f32.mrf.mxu0
        %2990 = vmatprep.mubr.f32.mxu0 0.0
        %2991 = vmatmul.mubr.f32.gmra.mxu0 %v2861
        %v2992 = vpop.f32.mrf.mxu0
        %v2993 = vadd.f32 0.0, %v2992
        %v2994 = vpop.f32.mrf.mxu0
        %2995 = vmatprep.mubr.f32.mxu0 0.0
        %2996 = vmatmul.mubr.f32.gmra.mxu0 %v2863
        %v2997 = vpop.f32.mrf.mxu0
        %v2998 = vadd.f32 0.0, %v2997
        %v2999 = vpop.f32.mrf.mxu0
        %3000 = vmatprep.mubr.f32.mxu0 0.0
        %3001 = vmatmul.mubr.f32.gmra.mxu0 %v2865
        %v3002 = vpop.f32.mrf.mxu0
        %v3003 = vadd.f32 0.0, %v3002
        %v3004 = vpop.f32.mrf.mxu0
        %3005 = vmatprep.mubr.f32.mxu0 0.0
        %3006 = vmatmul.mubr.f32.gmra.mxu0 %v2867
        %v3007 = vpop.f32.mrf.mxu0
        %v3008 = vadd.f32 0.0, %v3007
        %v3009 = vpop.f32.mrf.mxu0
        %3010 = vmatprep.mubr.f32.mxu0 0.0
        %3011 = vmatmul.mubr.f32.gmra.mxu0 %v2869
        %v3012 = vpop.f32.mrf.mxu0
        %v3013 = vadd.f32 0.0, %v3012
        %v3014 = vpop.f32.mrf.mxu0
        %3015 = vdwg.mxu0
        %v3016 = vmul.f32 %v2938, 0.125
        %v3017 = vmul.f32 %v2943, 0.125
        %v3018 = vmul.f32 %v2948, 0.125
        %v3019 = vmul.f32 %v2953, 0.125
        %v3020 = vmul.f32 %v2958, 0.125
        %v3021 = vmul.f32 %v2963, 0.125
        %v3022 = vmul.f32 %v2968, 0.125
        %v3023 = vmul.f32 %v2973, 0.125
        %v3024 = vmul.f32 %v2978, 0.125
        %v3025 = vmul.f32 %v2983, 0.125
        %v3026 = vmul.f32 %v2988, 0.125
        %v3027 = vmul.f32 %v2993, 0.125
        %v3028 = vmul.f32 %v2998, 0.125
        %v3029 = vmul.f32 %v3003, 0.125
        %v3030 = vmul.f32 %v3008, 0.125
        %v3031 = vmul.f32 %v3013, 0.125
        %v3032 = vsel %vm2212, %v3016, -1e+30
        %v3033 = vsel %vm2213, %v3017, -1e+30
        %v3034 = vsel %vm2214, %v3018, -1e+30
        %v3035 = vsel %vm2215, %v3019, -1e+30
        %v3036 = vsel %vm2216, %v3020, -1e+30
        %v3037 = vsel %vm2217, %v3021, -1e+30
        %v3038 = vsel %vm2218, %v3022, -1e+30
        %v3039 = vsel %vm2219, %v3023, -1e+30
        %v3040 = vsel %vm2220, %v3024, -1e+30
        %v3041 = vsel %vm2221, %v3025, -1e+30
        %v3042 = vsel %vm2222, %v3026, -1e+30
        %v3043 = vsel %vm2223, %v3027, -1e+30
        %v3044 = vsel %vm2224, %v3028, -1e+30
        %v3045 = vsel %vm2225, %v3029, -1e+30
        %v3046 = vsel %vm2226, %v3030, -1e+30
        %v3047 = vsel %vm2227, %v3031, -1e+30
        %3048 = vmax.xlane.f32.xlu0 %v3032
        %v3049 = vpop.xlane.xlu0 %3048
        %3050 = vmax.xlane.f32.xlu0 %v3033
        %v3051 = vpop.xlane.xlu0 %3050
        %3052 = vmax.xlane.f32.xlu0 %v3034
        %v3053 = vpop.xlane.xlu0 %3052
        %3054 = vmax.xlane.f32.xlu0 %v3035
        %v3055 = vpop.xlane.xlu0 %3054
        %3056 = vmax.xlane.f32.xlu0 %v3036
        %v3057 = vpop.xlane.xlu0 %3056
        %3058 = vmax.xlane.f32.xlu0 %v3037
        %v3059 = vpop.xlane.xlu0 %3058
        %3060 = vmax.xlane.f32.xlu0 %v3038
        %v3061 = vpop.xlane.xlu0 %3060
        %3062 = vmax.xlane.f32.xlu0 %v3039
        %v3063 = vpop.xlane.xlu0 %3062
        %3064 = vmax.xlane.f32.xlu0 %v3040
        %v3065 = vpop.xlane.xlu0 %3064
        %3066 = vmax.xlane.f32.xlu0 %v3041
        %v3067 = vpop.xlane.xlu0 %3066
        %3068 = vmax.xlane.f32.xlu0 %v3042
        %v3069 = vpop.xlane.xlu0 %3068
        %3070 = vmax.xlane.f32.xlu0 %v3043
        %v3071 = vpop.xlane.xlu0 %3070
        %3072 = vmax.xlane.f32.xlu0 %v3044
        %v3073 = vpop.xlane.xlu0 %3072
        %3074 = vmax.xlane.f32.xlu0 %v3045
        %v3075 = vpop.xlane.xlu0 %3074
        %3076 = vmax.xlane.f32.xlu0 %v3046
        %v3077 = vpop.xlane.xlu0 %3076
        %3078 = vmax.xlane.f32.xlu0 %v3047
        %v3079 = vpop.xlane.xlu0 %3078
        %v3080 = vsub.f32 %v3032, %v3049
        %v3081 = vsub.f32 %v3033, %v3051
        %v3082 = vsub.f32 %v3034, %v3053
        %v3083 = vsub.f32 %v3035, %v3055
        %v3084 = vsub.f32 %v3036, %v3057
        %v3085 = vsub.f32 %v3037, %v3059
        %v3086 = vsub.f32 %v3038, %v3061
        %v3087 = vsub.f32 %v3039, %v3063
        %v3088 = vsub.f32 %v3040, %v3065
        %v3089 = vsub.f32 %v3041, %v3067
        %v3090 = vsub.f32 %v3042, %v3069
        %v3091 = vsub.f32 %v3043, %v3071
        %v3092 = vsub.f32 %v3044, %v3073
        %v3093 = vsub.f32 %v3045, %v3075
        %v3094 = vsub.f32 %v3046, %v3077
        %v3095 = vsub.f32 %v3047, %v3079
        %v3096 = vmul.f32 %v3080, 1.442695
        %v3097 = vpow.pop %v3096
        %v3098 = vmul.f32 %v3081, 1.442695
        %v3099 = vpow.pop %v3098
        %v3100 = vmul.f32 %v3082, 1.442695
        %v3101 = vpow.pop %v3100
        %v3102 = vmul.f32 %v3083, 1.442695
        %v3103 = vpow.pop %v3102
        %v3104 = vmul.f32 %v3084, 1.442695
        %v3105 = vpow.pop %v3104
        %v3106 = vmul.f32 %v3085, 1.442695
        %v3107 = vpow.pop %v3106
        %v3108 = vmul.f32 %v3086, 1.442695
        %v3109 = vpow.pop %v3108
        %v3110 = vmul.f32 %v3087, 1.442695
        %v3111 = vpow.pop %v3110
        %v3112 = vmul.f32 %v3088, 1.442695
        %v3113 = vpow.pop %v3112
        %v3114 = vmul.f32 %v3089, 1.442695
        %v3115 = vpow.pop %v3114
        %v3116 = vmul.f32 %v3090, 1.442695
        %v3117 = vpow.pop %v3116
        %v3118 = vmul.f32 %v3091, 1.442695
        %v3119 = vpow.pop %v3118
        %v3120 = vmul.f32 %v3092, 1.442695
        %v3121 = vpow.pop %v3120
        %v3122 = vmul.f32 %v3093, 1.442695
        %v3123 = vpow.pop %v3122
        %v3124 = vmul.f32 %v3094, 1.442695
        %v3125 = vpow.pop %v3124
        %v3126 = vmul.f32 %v3095, 1.442695
        %v3127 = vpow.pop %v3126
        %3128 = vadd.xlane.f32.xlu0 %v3097
        %v3129 = vpop.xlane.xlu0 %3128
        %3130 = vadd.xlane.f32.xlu0 %v3099
        %v3131 = vpop.xlane.xlu0 %3130
        %3132 = vadd.xlane.f32.xlu0 %v3101
        %v3133 = vpop.xlane.xlu0 %3132
        %3134 = vadd.xlane.f32.xlu0 %v3103
        %v3135 = vpop.xlane.xlu0 %3134
        %3136 = vadd.xlane.f32.xlu0 %v3105
        %v3137 = vpop.xlane.xlu0 %3136
        %3138 = vadd.xlane.f32.xlu0 %v3107
        %v3139 = vpop.xlane.xlu0 %3138
        %3140 = vadd.xlane.f32.xlu0 %v3109
        %v3141 = vpop.xlane.xlu0 %3140
        %3142 = vadd.xlane.f32.xlu0 %v3111
        %v3143 = vpop.xlane.xlu0 %3142
        %3144 = vadd.xlane.f32.xlu0 %v3113
        %v3145 = vpop.xlane.xlu0 %3144
        %3146 = vadd.xlane.f32.xlu0 %v3115
        %v3147 = vpop.xlane.xlu0 %3146
        %3148 = vadd.xlane.f32.xlu0 %v3117
        %v3149 = vpop.xlane.xlu0 %3148
        %3150 = vadd.xlane.f32.xlu0 %v3119
        %v3151 = vpop.xlane.xlu0 %3150
        %3152 = vadd.xlane.f32.xlu0 %v3121
        %v3153 = vpop.xlane.xlu0 %3152
        %3154 = vadd.xlane.f32.xlu0 %v3123
        %v3155 = vpop.xlane.xlu0 %3154
        %3156 = vadd.xlane.f32.xlu0 %v3125
        %v3157 = vpop.xlane.xlu0 %3156
        %3158 = vadd.xlane.f32.xlu0 %v3127
        %v3159 = vpop.xlane.xlu0 %3158
        %v3160 = vrcp.pop %v3129
        %v3161 = vrcp.pop %v3131
        %v3162 = vrcp.pop %v3133
        %v3163 = vrcp.pop %v3135
        %v3164 = vrcp.pop %v3137
        %v3165 = vrcp.pop %v3139
        %v3166 = vrcp.pop %v3141
        %v3167 = vrcp.pop %v3143
        %v3168 = vrcp.pop %v3145
        %v3169 = vrcp.pop %v3147
        %v3170 = vrcp.pop %v3149
        %v3171 = vrcp.pop %v3151
        %v3172 = vrcp.pop %v3153
        %v3173 = vrcp.pop %v3155
        %v3174 = vrcp.pop %v3157
        %v3175 = vrcp.pop %v3159
        %v3176 = vmul.f32 %v3097, %v3160
        %v3177 = vmul.f32 %v3099, %v3161
        %v3178 = vmul.f32 %v3101, %v3162
        %v3179 = vmul.f32 %v3103, %v3163
        %v3180 = vmul.f32 %v3105, %v3164
        %v3181 = vmul.f32 %v3107, %v3165
        %v3182 = vmul.f32 %v3109, %v3166
        %v3183 = vmul.f32 %v3111, %v3167
        %v3184 = vmul.f32 %v3113, %v3168
        %v3185 = vmul.f32 %v3115, %v3169
        %v3186 = vmul.f32 %v3117, %v3170
        %v3187 = vmul.f32 %v3119, %v3171
        %v3188 = vmul.f32 %v3121, %v3172
        %v3189 = vmul.f32 %v3123, %v3173
        %v3190 = vmul.f32 %v3125, %v3174
        %v3191 = vmul.f32 %v3127, %v3175
        %3192 = vmatprep.subr.mxu0 0.0
        %3193 = vmatpush1.msra.mxu0 %v1741
        %3194 = vmatprep.subr.mxu0 0.0
        %3195 = vmatpush1.msra.mxu0 %v1737
        %3196 = vmatprep.subr.mxu0 0.0
        %3197 = vmatpush1.msra.mxu0 %v1731
        %3198 = vmatprep.subr.mxu0 0.0
        %3199 = vmatpush1.msra.mxu0 %v1727
        %3200 = vmatprep.subr.mxu0 0.0
        %3201 = vmatpush1.msra.mxu0 %v1721
        %3202 = vmatprep.subr.mxu0 0.0
        %3203 = vmatpush1.msra.mxu0 %v1717
        %3204 = vmatprep.subr.mxu0 0.0
        %3205 = vmatpush1.msra.mxu0 %v1711
        %3206 = vmatprep.subr.mxu0 0.0
        %3207 = vmatpush1.msra.mxu0 %v1707
        %3208 = vmatprep.subr.mxu0 0.0
        %3209 = vmatpush1.msra.mxu0 %v1701
        %3210 = vmatprep.subr.mxu0 0.0
        %3211 = vmatpush1.msra.mxu0 %v1697
        %3212 = vmatprep.subr.mxu0 0.0
        %3213 = vmatpush1.msra.mxu0 %v1691
        %3214 = vmatprep.subr.mxu0 0.0
        %3215 = vmatpush1.msra.mxu0 %v1687
        %3216 = vmatprep.subr.mxu0 0.0
        %3217 = vmatpush1.msra.mxu0 %v1681
        %3218 = vmatprep.subr.mxu0 0.0
        %3219 = vmatpush1.msra.mxu0 %v1677
        %3220 = vmatprep.subr.mxu0 0.0
        %3221 = vmatpush1.msra.mxu0 %v1671
        %3222 = vmatprep.subr.mxu0 0.0
        %3223 = vmatpush1.msra.mxu0 %v1667
        %3224 = vmatprep.subr.mxu0 0.0
        %3225 = vmatpush2.msra.mxu0 0.0
        %3226 = vmatprep.subr.mxu0 0.0
        %3227 = vmatpush2.msra.mxu0 0.0
        %3228 = vmatprep.subr.mxu0 0.0
        %3229 = vmatpush2.msra.mxu0 0.0
        %3230 = vmatprep.subr.mxu0 0.0
        %3231 = vmatpush2.msra.mxu0 0.0
        %3232 = vmatprep.subr.mxu0 0.0
        %3233 = vmatpush2.msra.mxu0 0.0
        %3234 = vmatprep.subr.mxu0 0.0
        %3235 = vmatpush2.msra.mxu0 0.0
        %3236 = vmatprep.subr.mxu0 0.0
        %3237 = vmatpush2.msra.mxu0 0.0
        %3238 = vmatprep.subr.mxu0 0.0
        %3239 = vmatpush2.msra.mxu0 0.0
        %3240 = vmatprep.subr.mxu0 0.0
        %3241 = vmatpush2.msra.mxu0 0.0
        %3242 = vmatprep.subr.mxu0 0.0
        %3243 = vmatpush2.msra.mxu0 0.0
        %3244 = vmatprep.subr.mxu0 0.0
        %3245 = vmatpush2.msra.mxu0 0.0
        %3246 = vmatprep.subr.mxu0 0.0
        %3247 = vmatpush2.msra.mxu0 0.0
        %3248 = vmatprep.subr.mxu0 0.0
        %3249 = vmatpush2.msra.mxu0 0.0
        %3250 = vmatprep.subr.mxu0 0.0
        %3251 = vmatpush2.msra.mxu0 0.0
        %3252 = vmatprep.subr.mxu0 0.0
        %3253 = vmatpush2.msra.mxu0 0.0
        %3254 = vmatprep.subr.mxu0 0.0
        %3255 = vmatpush2.msra.mxu0 0.0
        %3256 = vmatprep.mubr.f32.mxu0 0.0
        %3257 = vmatmul.mubr.f32.gmra.mxu0 %v3176
        %v3258 = vpop.f32.mrf.mxu0
        %v3259 = vadd.f32 0.0, %v3258
        %v3260 = vpop.f32.mrf.mxu0
        %3261 = vmatprep.mubr.f32.mxu0 0.0
        %3262 = vmatmul.mubr.f32.gmra.mxu0 %v3177
        %v3263 = vpop.f32.mrf.mxu0
        %v3264 = vadd.f32 0.0, %v3263
        %v3265 = vpop.f32.mrf.mxu0
        %3266 = vmatprep.mubr.f32.mxu0 0.0
        %3267 = vmatmul.mubr.f32.gmra.mxu0 %v3178
        %v3268 = vpop.f32.mrf.mxu0
        %v3269 = vadd.f32 0.0, %v3268
        %v3270 = vpop.f32.mrf.mxu0
        %3271 = vmatprep.mubr.f32.mxu0 0.0
        %3272 = vmatmul.mubr.f32.gmra.mxu0 %v3179
        %v3273 = vpop.f32.mrf.mxu0
        %v3274 = vadd.f32 0.0, %v3273
        %v3275 = vpop.f32.mrf.mxu0
        %3276 = vmatprep.mubr.f32.mxu0 0.0
        %3277 = vmatmul.mubr.f32.gmra.mxu0 %v3180
        %v3278 = vpop.f32.mrf.mxu0
        %v3279 = vadd.f32 0.0, %v3278
        %v3280 = vpop.f32.mrf.mxu0
        %3281 = vmatprep.mubr.f32.mxu0 0.0
        %3282 = vmatmul.mubr.f32.gmra.mxu0 %v3181
        %v3283 = vpop.f32.mrf.mxu0
        %v3284 = vadd.f32 0.0, %v3283
        %v3285 = vpop.f32.mrf.mxu0
        %3286 = vmatprep.mubr.f32.mxu0 0.0
        %3287 = vmatmul.mubr.f32.gmra.mxu0 %v3182
        %v3288 = vpop.f32.mrf.mxu0
        %v3289 = vadd.f32 0.0, %v3288
        %v3290 = vpop.f32.mrf.mxu0
        %3291 = vmatprep.mubr.f32.mxu0 0.0
        %3292 = vmatmul.mubr.f32.gmra.mxu0 %v3183
        %v3293 = vpop.f32.mrf.mxu0
        %v3294 = vadd.f32 0.0, %v3293
        %v3295 = vpop.f32.mrf.mxu0
        %3296 = vmatprep.mubr.f32.mxu0 0.0
        %3297 = vmatmul.mubr.f32.gmra.mxu0 %v3184
        %v3298 = vpop.f32.mrf.mxu0
        %v3299 = vadd.f32 0.0, %v3298
        %v3300 = vpop.f32.mrf.mxu0
        %3301 = vmatprep.mubr.f32.mxu0 0.0
        %3302 = vmatmul.mubr.f32.gmra.mxu0 %v3185
        %v3303 = vpop.f32.mrf.mxu0
        %v3304 = vadd.f32 0.0, %v3303
        %v3305 = vpop.f32.mrf.mxu0
        %3306 = vmatprep.mubr.f32.mxu0 0.0
        %3307 = vmatmul.mubr.f32.gmra.mxu0 %v3186
        %v3308 = vpop.f32.mrf.mxu0
        %v3309 = vadd.f32 0.0, %v3308
        %v3310 = vpop.f32.mrf.mxu0
        %3311 = vmatprep.mubr.f32.mxu0 0.0
        %3312 = vmatmul.mubr.f32.gmra.mxu0 %v3187
        %v3313 = vpop.f32.mrf.mxu0
        %v3314 = vadd.f32 0.0, %v3313
        %v3315 = vpop.f32.mrf.mxu0
        %3316 = vmatprep.mubr.f32.mxu0 0.0
        %3317 = vmatmul.mubr.f32.gmra.mxu0 %v3188
        %v3318 = vpop.f32.mrf.mxu0
        %v3319 = vadd.f32 0.0, %v3318
        %v3320 = vpop.f32.mrf.mxu0
        %3321 = vmatprep.mubr.f32.mxu0 0.0
        %3322 = vmatmul.mubr.f32.gmra.mxu0 %v3189
        %v3323 = vpop.f32.mrf.mxu0
        %v3324 = vadd.f32 0.0, %v3323
        %v3325 = vpop.f32.mrf.mxu0
        %3326 = vmatprep.mubr.f32.mxu0 0.0
        %3327 = vmatmul.mubr.f32.gmra.mxu0 %v3190
        %v3328 = vpop.f32.mrf.mxu0
        %v3329 = vadd.f32 0.0, %v3328
        %v3330 = vpop.f32.mrf.mxu0
        %3331 = vmatprep.mubr.f32.mxu0 0.0
        %3332 = vmatmul.mubr.f32.gmra.mxu0 %v3191
        %v3333 = vpop.f32.mrf.mxu0
        %v3334 = vadd.f32 0.0, %v3333
        %v3335 = vpop.f32.mrf.mxu0
        %3336 = vdwg.mxu0
        %v3337 = vpack.c.bf16 %v3264, %v3259
        %v3338 = vpack.c.bf16 %v3274, %v3269
        %v3339 = vpack.c.bf16 %v3284, %v3279
        %v3340 = vpack.c.bf16 %v3294, %v3289
        %v3341 = vpack.c.bf16 %v3304, %v3299
        %v3342 = vpack.c.bf16 %v3314, %v3309
        %v3343 = vpack.c.bf16 %v3324, %v3319
        %v3344 = vpack.c.bf16 %v3334, %v3329
        %v3345 = vld [vmem:[#allocation13 + $0x40] sm:$0xff]
        %v3346 = vld [vmem:[#allocation13 + $0x48] sm:$0xff]
        %v3347 = vld [vmem:[#allocation13 + $0x50] sm:$0xff]
        %v3348 = vld [vmem:[#allocation13 + $0x58] sm:$0xff]
        %v3349 = vld [vmem:[#allocation13 + $0x60] sm:$0xff]
        %v3350 = vld [vmem:[#allocation13 + $0x68] sm:$0xff]
        %v3351 = vld [vmem:[#allocation13 + $0x70] sm:$0xff]
        %v3352 = vld [vmem:[#allocation13 + $0x78] sm:$0xff]
        %v3361 = vunpack.c.l.b16 %v3345
        %v3362 = vunpack.c.h.b16 %v3345
        %v3363 = vunpack.c.l.b16 %v3346
        %v3364 = vunpack.c.h.b16 %v3346
        %v3365 = vunpack.c.l.b16 %v3347
        %v3366 = vunpack.c.h.b16 %v3347
        %v3367 = vunpack.c.l.b16 %v3348
        %v3368 = vunpack.c.h.b16 %v3348
        %v3369 = vunpack.c.l.b16 %v3349
        %v3370 = vunpack.c.h.b16 %v3349
        %v3371 = vunpack.c.l.b16 %v3350
        %v3372 = vunpack.c.h.b16 %v3350
        %v3373 = vunpack.c.l.b16 %v3351
        %v3374 = vunpack.c.h.b16 %v3351
        %v3375 = vunpack.c.l.b16 %v3352
        %v3376 = vunpack.c.h.b16 %v3352
        %v3377 = vpack.c.b16 %v3363, %v3361
        %v3378 = vpack.c.b16 %v3364, %v3362
        %v3379 = vpack.c.b16 %v3367, %v3365
        %v3380 = vpack.c.b16 %v3368, %v3366
        %v3381 = vpack.c.b16 %v3371, %v3369
        %v3382 = vpack.c.b16 %v3372, %v3370
        %v3383 = vpack.c.b16 %v3375, %v3373
        %v3384 = vpack.c.b16 %v3376, %v3374
        %v3394 = vsel %vm2228, %v3337, 0
        %v3397 = vsel %vm2228, %v3338, 0
        %v3400 = vsel %vm2228, %v3339, 0
        %v3403 = vsel %vm2228, %v3340, 0
        %v3406 = vsel %vm2228, %v3341, 0
        %v3409 = vsel %vm2228, %v3342, 0
        %v3412 = vsel %vm2228, %v3343, 0
        %v3415 = vsel %vm2228, %v3344, 0
        %3417 = vmatprep.subr.bf16.mxu0 0
        %3418 = vmatpush1.bf16.msra.mxu0 0
        %3419 = vmatprep.subr.bf16.mxu0 0
        %3420 = vmatpush1.bf16.msra.mxu0 0
        %3421 = vmatprep.subr.bf16.mxu0 0
        %3422 = vmatpush1.bf16.msra.mxu0 0
        %3423 = vmatprep.subr.bf16.mxu0 0
        %3424 = vmatpush1.bf16.msra.mxu0 0
        %3425 = vmatprep.subr.bf16.mxu0 %v3384
        %3426 = vmatpush1.bf16.msra.mxu0 %v3383
        %3427 = vmatprep.subr.bf16.mxu0 %v3382
        %3428 = vmatpush1.bf16.msra.mxu0 %v3381
        %3429 = vmatprep.subr.bf16.mxu0 %v3380
        %3430 = vmatpush1.bf16.msra.mxu0 %v3379
        %3431 = vmatprep.subr.bf16.mxu0 %v3378
        %3432 = vmatpush1.bf16.msra.mxu0 %v3377
        %3433 = vmatprep.subr.bf16.mxu0 0
        %3434 = vmatpush2.bf16.msra.mxu0 0
        %3435 = vmatprep.subr.bf16.mxu0 0
        %3436 = vmatpush2.bf16.msra.mxu0 0
        %3437 = vmatprep.subr.bf16.mxu0 0
        %3438 = vmatpush2.bf16.msra.mxu0 0
        %3439 = vmatprep.subr.bf16.mxu0 0
        %3440 = vmatpush2.bf16.msra.mxu0 0
        %3441 = vmatprep.subr.bf16.mxu0 0
        %3442 = vmatpush2.bf16.msra.mxu0 0
        %3443 = vmatprep.subr.bf16.mxu0 0
        %3444 = vmatpush2.bf16.msra.mxu0 0
        %3445 = vmatprep.subr.bf16.mxu0 0
        %3446 = vmatpush2.bf16.msra.mxu0 0
        %3447 = vmatprep.subr.bf16.mxu0 0
        %3448 = vmatpush2.bf16.msra.mxu0 0
        %3449 = vmatprep.mubr.bf16.mxu0 0
        %3450 = vmatmul.mubr.bf16.gmra.mxu0 %v3394
        %v3451 = vpop.f32.mrf.mxu0
        %v3452 = vadd.f32 0.0, %v3451
        %v3453 = vpop.f32.mrf.mxu0
        %v3454 = vadd.f32 0.0, %v3453
        %v3455 = vpop.f32.mrf.mxu0
        %v3456 = vadd.f32 0.0, %v3455
        %v3457 = vpop.f32.mrf.mxu0
        %v3458 = vadd.f32 0.0, %v3457
        %3459 = vmatprep.mubr.bf16.mxu0 0
        %3460 = vmatmul.mubr.bf16.gmra.mxu0 %v3397
        %v3461 = vpop.f32.mrf.mxu0
        %v3462 = vadd.f32 0.0, %v3461
        %v3463 = vpop.f32.mrf.mxu0
        %v3464 = vadd.f32 0.0, %v3463
        %v3465 = vpop.f32.mrf.mxu0
        %v3466 = vadd.f32 0.0, %v3465
        %v3467 = vpop.f32.mrf.mxu0
        %v3468 = vadd.f32 0.0, %v3467
        %3469 = vmatprep.mubr.bf16.mxu0 0
        %3470 = vmatmul.mubr.bf16.gmra.mxu0 %v3400
        %v3471 = vpop.f32.mrf.mxu0
        %v3472 = vadd.f32 0.0, %v3471
        %v3473 = vpop.f32.mrf.mxu0
        %v3474 = vadd.f32 0.0, %v3473
        %v3475 = vpop.f32.mrf.mxu0
        %v3476 = vadd.f32 0.0, %v3475
        %v3477 = vpop.f32.mrf.mxu0
        %v3478 = vadd.f32 0.0, %v3477
        %3479 = vmatprep.mubr.bf16.mxu0 0
        %3480 = vmatmul.mubr.bf16.gmra.mxu0 %v3403
        %v3481 = vpop.f32.mrf.mxu0
        %v3482 = vadd.f32 0.0, %v3481
        %v3483 = vpop.f32.mrf.mxu0
        %v3484 = vadd.f32 0.0, %v3483
        %v3485 = vpop.f32.mrf.mxu0
        %v3486 = vadd.f32 0.0, %v3485
        %v3487 = vpop.f32.mrf.mxu0
        %v3488 = vadd.f32 0.0, %v3487
        %3489 = vmatprep.mubr.bf16.mxu0 0
        %3490 = vmatmul.mubr.bf16.gmra.mxu0 %v3406
        %v3491 = vpop.f32.mrf.mxu0
        %v3492 = vadd.f32 0.0, %v3491
        %v3493 = vpop.f32.mrf.mxu0
        %v3494 = vadd.f32 0.0, %v3493
        %v3495 = vpop.f32.mrf.mxu0
        %v3496 = vadd.f32 0.0, %v3495
        %v3497 = vpop.f32.mrf.mxu0
        %v3498 = vadd.f32 0.0, %v3497
        %3499 = vmatprep.mubr.bf16.mxu0 0
        %3500 = vmatmul.mubr.bf16.gmra.mxu0 %v3409
        %v3501 = vpop.f32.mrf.mxu0
        %v3502 = vadd.f32 0.0, %v3501
        %v3503 = vpop.f32.mrf.mxu0
        %v3504 = vadd.f32 0.0, %v3503
        %v3505 = vpop.f32.mrf.mxu0
        %v3506 = vadd.f32 0.0, %v3505
        %v3507 = vpop.f32.mrf.mxu0
        %v3508 = vadd.f32 0.0, %v3507
        %3509 = vmatprep.mubr.bf16.mxu0 0
        %3510 = vmatmul.mubr.bf16.gmra.mxu0 %v3412
        %v3511 = vpop.f32.mrf.mxu0
        %v3512 = vadd.f32 0.0, %v3511
        %v3513 = vpop.f32.mrf.mxu0
        %v3514 = vadd.f32 0.0, %v3513
        %v3515 = vpop.f32.mrf.mxu0
        %v3516 = vadd.f32 0.0, %v3515
        %v3517 = vpop.f32.mrf.mxu0
        %v3518 = vadd.f32 0.0, %v3517
        %3519 = vmatprep.mubr.bf16.mxu0 0
        %3520 = vmatmul.mubr.bf16.gmra.mxu0 %v3415
        %v3521 = vpop.f32.mrf.mxu0
        %v3522 = vadd.f32 0.0, %v3521
        %v3523 = vpop.f32.mrf.mxu0
        %v3524 = vadd.f32 0.0, %v3523
        %v3525 = vpop.f32.mrf.mxu0
        %v3526 = vadd.f32 0.0, %v3525
        %v3527 = vpop.f32.mrf.mxu0
        %v3528 = vadd.f32 0.0, %v3527
        %3529 = vdwg.mxu0
        %v3538 = vunpack.c.l.b16 %v2799
        %v3539 = vunpack.c.h.b16 %v2799
        %v3540 = vunpack.c.l.b16 %v2800
        %v3541 = vunpack.c.h.b16 %v2800
        %v3542 = vunpack.c.l.b16 %v2801
        %v3543 = vunpack.c.h.b16 %v2801
        %v3544 = vunpack.c.l.b16 %v2802
        %v3545 = vunpack.c.h.b16 %v2802
        %v3546 = vunpack.c.l.b16 %v2803
        %v3547 = vunpack.c.h.b16 %v2803
        %v3548 = vunpack.c.l.b16 %v2804
        %v3549 = vunpack.c.h.b16 %v2804
        %v3550 = vunpack.c.l.b16 %v2805
        %v3551 = vunpack.c.h.b16 %v2805
        %v3552 = vunpack.c.l.b16 %v2806
        %v3553 = vunpack.c.h.b16 %v2806
        %v3554 = vpack.c.b16 %v3540, %v3538
        %v3555 = vpack.c.b16 %v3541, %v3539
        %v3556 = vpack.c.b16 %v3544, %v3542
        %v3557 = vpack.c.b16 %v3545, %v3543
        %v3558 = vpack.c.b16 %v3548, %v3546
        %v3559 = vpack.c.b16 %v3549, %v3547
        %v3560 = vpack.c.b16 %v3552, %v3550
        %v3561 = vpack.c.b16 %v3553, %v3551
        %v3571 = vsel %vm2228, %v2791, 0
        %v3574 = vsel %vm2228, %v2792, 0
        %v3577 = vsel %vm2228, %v2793, 0
        %v3580 = vsel %vm2228, %v2794, 0
        %v3583 = vsel %vm2228, %v2795, 0
        %v3586 = vsel %vm2228, %v2796, 0
        %v3589 = vsel %vm2228, %v2797, 0
        %v3592 = vsel %vm2228, %v2798, 0
        %3594 = vmatprep.subr.bf16.mxu0 0
        %3595 = vmatpush1.bf16.msra.mxu0 0
        %3596 = vmatprep.subr.bf16.mxu0 0
        %3597 = vmatpush1.bf16.msra.mxu0 0
        %3598 = vmatprep.subr.bf16.mxu0 0
        %3599 = vmatpush1.bf16.msra.mxu0 0
        %3600 = vmatprep.subr.bf16.mxu0 0
        %3601 = vmatpush1.bf16.msra.mxu0 0
        %3602 = vmatprep.subr.bf16.mxu0 %v3561
        %3603 = vmatpush1.bf16.msra.mxu0 %v3560
        %3604 = vmatprep.subr.bf16.mxu0 %v3559
        %3605 = vmatpush1.bf16.msra.mxu0 %v3558
        %3606 = vmatprep.subr.bf16.mxu0 %v3557
        %3607 = vmatpush1.bf16.msra.mxu0 %v3556
        %3608 = vmatprep.subr.bf16.mxu0 %v3555
        %3609 = vmatpush1.bf16.msra.mxu0 %v3554
        %3610 = vmatprep.subr.bf16.mxu0 0
        %3611 = vmatpush2.bf16.msra.mxu0 0
        %3612 = vmatprep.subr.bf16.mxu0 0
        %3613 = vmatpush2.bf16.msra.mxu0 0
        %3614 = vmatprep.subr.bf16.mxu0 0
        %3615 = vmatpush2.bf16.msra.mxu0 0
        %3616 = vmatprep.subr.bf16.mxu0 0
        %3617 = vmatpush2.bf16.msra.mxu0 0
        %3618 = vmatprep.subr.bf16.mxu0 0
        %3619 = vmatpush2.bf16.msra.mxu0 0
        %3620 = vmatprep.subr.bf16.mxu0 0
        %3621 = vmatpush2.bf16.msra.mxu0 0
        %3622 = vmatprep.subr.bf16.mxu0 0
        %3623 = vmatpush2.bf16.msra.mxu0 0
        %3624 = vmatprep.subr.bf16.mxu0 0
        %3625 = vmatpush2.bf16.msra.mxu0 0
        %3626 = vmatprep.mubr.bf16.mxu0 0
        %3627 = vmatmul.mubr.bf16.gmra.mxu0 %v3571
        %v3628 = vpop.f32.mrf.mxu0
        %v3629 = vadd.f32 %v3452, %v3628
        %v3630 = vpop.f32.mrf.mxu0
        %v3631 = vadd.f32 %v3454, %v3630
        %v3632 = vpop.f32.mrf.mxu0
        %v3633 = vadd.f32 %v3456, %v3632
        %v3634 = vpop.f32.mrf.mxu0
        %v3635 = vadd.f32 %v3458, %v3634
        %3636 = vmatprep.mubr.bf16.mxu0 0
        %3637 = vmatmul.mubr.bf16.gmra.mxu0 %v3574
        %v3638 = vpop.f32.mrf.mxu0
        %v3639 = vadd.f32 %v3462, %v3638
        %v3640 = vpop.f32.mrf.mxu0
        %v3641 = vadd.f32 %v3464, %v3640
        %v3642 = vpop.f32.mrf.mxu0
        %v3643 = vadd.f32 %v3466, %v3642
        %v3644 = vpop.f32.mrf.mxu0
        %v3645 = vadd.f32 %v3468, %v3644
        %3646 = vmatprep.mubr.bf16.mxu0 0
        %3647 = vmatmul.mubr.bf16.gmra.mxu0 %v3577
        %v3648 = vpop.f32.mrf.mxu0
        %v3649 = vadd.f32 %v3472, %v3648
        %v3650 = vpop.f32.mrf.mxu0
        %v3651 = vadd.f32 %v3474, %v3650
        %v3652 = vpop.f32.mrf.mxu0
        %v3653 = vadd.f32 %v3476, %v3652
        %v3654 = vpop.f32.mrf.mxu0
        %v3655 = vadd.f32 %v3478, %v3654
        %3656 = vmatprep.mubr.bf16.mxu0 0
        %3657 = vmatmul.mubr.bf16.gmra.mxu0 %v3580
        %v3658 = vpop.f32.mrf.mxu0
        %v3659 = vadd.f32 %v3482, %v3658
        %v3660 = vpop.f32.mrf.mxu0
        %v3661 = vadd.f32 %v3484, %v3660
        %v3662 = vpop.f32.mrf.mxu0
        %v3663 = vadd.f32 %v3486, %v3662
        %v3664 = vpop.f32.mrf.mxu0
        %v3665 = vadd.f32 %v3488, %v3664
        %3666 = vmatprep.mubr.bf16.mxu0 0
        %3667 = vmatmul.mubr.bf16.gmra.mxu0 %v3583
        %v3668 = vpop.f32.mrf.mxu0
        %v3669 = vadd.f32 %v3492, %v3668
        %v3670 = vpop.f32.mrf.mxu0
        %v3671 = vadd.f32 %v3494, %v3670
        %v3672 = vpop.f32.mrf.mxu0
        %v3673 = vadd.f32 %v3496, %v3672
        %v3674 = vpop.f32.mrf.mxu0
        %v3675 = vadd.f32 %v3498, %v3674
        %3676 = vmatprep.mubr.bf16.mxu0 0
        %3677 = vmatmul.mubr.bf16.gmra.mxu0 %v3586
        %v3678 = vpop.f32.mrf.mxu0
        %v3679 = vadd.f32 %v3502, %v3678
        %v3680 = vpop.f32.mrf.mxu0
        %v3681 = vadd.f32 %v3504, %v3680
        %v3682 = vpop.f32.mrf.mxu0
        %v3683 = vadd.f32 %v3506, %v3682
        %v3684 = vpop.f32.mrf.mxu0
        %v3685 = vadd.f32 %v3508, %v3684
        %3686 = vmatprep.mubr.bf16.mxu0 0
        %3687 = vmatmul.mubr.bf16.gmra.mxu0 %v3589
        %v3688 = vpop.f32.mrf.mxu0
        %v3689 = vadd.f32 %v3512, %v3688
        %v3690 = vpop.f32.mrf.mxu0
        %v3691 = vadd.f32 %v3514, %v3690
        %v3692 = vpop.f32.mrf.mxu0
        %v3693 = vadd.f32 %v3516, %v3692
        %v3694 = vpop.f32.mrf.mxu0
        %v3695 = vadd.f32 %v3518, %v3694
        %3696 = vmatprep.mubr.bf16.mxu0 0
        %3697 = vmatmul.mubr.bf16.gmra.mxu0 %v3592
        %v3698 = vpop.f32.mrf.mxu0
        %v3699 = vadd.f32 %v3522, %v3698
        %v3700 = vpop.f32.mrf.mxu0
        %v3701 = vadd.f32 %v3524, %v3700
        %v3702 = vpop.f32.mrf.mxu0
        %v3703 = vadd.f32 %v3526, %v3702
        %v3704 = vpop.f32.mrf.mxu0
        %v3705 = vadd.f32 %v3528, %v3704
        %3706 = vdwg.mxu0
        %3707 = vrot.lane.b32.xlu0 %v2177, 64
        %v3708 = vpop.permute.xlu0 %3707
        %3709 = vrot.lane.b32.xlu0 %v2178, 64
        %v3710 = vpop.permute.xlu0 %3709
        %3711 = vrot.lane.b32.xlu0 %v2179, 64
        %v3712 = vpop.permute.xlu0 %3711
        %3713 = vrot.lane.b32.xlu0 %v2180, 64
        %v3714 = vpop.permute.xlu0 %3713
        %3715 = vrot.lane.b32.xlu0 %v2181, 64
        %v3716 = vpop.permute.xlu0 %3715
        %3717 = vrot.lane.b32.xlu0 %v2182, 64
        %v3718 = vpop.permute.xlu0 %3717
        %3719 = vrot.lane.b32.xlu0 %v2183, 64
        %v3720 = vpop.permute.xlu0 %3719
        %3721 = vrot.lane.b32.xlu0 %v2184, 64
        %v3722 = vpop.permute.xlu0 %3721
        %3723 = vrot.lane.b32.xlu0 %v2185, 64
        %v3724 = vpop.permute.xlu0 %3723
        %3725 = vrot.lane.b32.xlu0 %v2186, 64
        %v3726 = vpop.permute.xlu0 %3725
        %3727 = vrot.lane.b32.xlu0 %v2187, 64
        %v3728 = vpop.permute.xlu0 %3727
        %3729 = vrot.lane.b32.xlu0 %v2188, 64
        %v3730 = vpop.permute.xlu0 %3729
        %3731 = vrot.lane.b32.xlu0 %v2189, 64
        %v3732 = vpop.permute.xlu0 %3731
        %3733 = vrot.lane.b32.xlu0 %v2190, 64
        %v3734 = vpop.permute.xlu0 %3733
        %3735 = vrot.lane.b32.xlu0 %v2191, 64
        %v3736 = vpop.permute.xlu0 %3735
        %3737 = vrot.lane.b32.xlu0 %v2192, 64
        %v3738 = vpop.permute.xlu0 %3737
        %v3740 = vsel %vm2228, %v2082, 0
        %v3743 = vsel %vm2228, %v2084, 0
        %v3746 = vsel %vm2228, %v2086, 0
        %v3749 = vsel %vm2228, %v2088, 0
        %v3752 = vsel %vm2228, %v2090, 0
        %v3755 = vsel %vm2228, %v2092, 0
        %v3758 = vsel %vm2228, %v2094, 0
        %v3761 = vsel %vm2228, %v2096, 0
        %v3764 = vsel %vm2228, %v2098, 0
        %v3767 = vsel %vm2228, %v2100, 0
        %v3770 = vsel %vm2228, %v2102, 0
        %v3773 = vsel %vm2228, %v2104, 0
        %v3776 = vsel %vm2228, %v2106, 0
        %v3779 = vsel %vm2228, %v2108, 0
        %v3782 = vsel %vm2228, %v2110, 0
        %v3785 = vsel %vm2228, %v2112, 0
        %v3787 = vsel %vm2228, %v3708, 0
        %v3789 = vsel %vm2228, %v3710, 0
        %v3791 = vsel %vm2228, %v3712, 0
        %v3793 = vsel %vm2228, %v3714, 0
        %v3795 = vsel %vm2228, %v3716, 0
        %v3797 = vsel %vm2228, %v3718, 0
        %v3799 = vsel %vm2228, %v3720, 0
        %v3801 = vsel %vm2228, %v3722, 0
        %v3803 = vsel %vm2228, %v3724, 0
        %v3805 = vsel %vm2228, %v3726, 0
        %v3807 = vsel %vm2228, %v3728, 0
        %v3809 = vsel %vm2228, %v3730, 0
        %v3811 = vsel %vm2228, %v3732, 0
        %v3813 = vsel %vm2228, %v3734, 0
        %v3815 = vsel %vm2228, %v3736, 0
        %v3817 = vsel %vm2228, %v3738, 0
        %3819 = vmatprep.subr.mxu0 0.0
        %3820 = vmatpush1.xpose.msra.mxu0 %v3817
        %3821 = vmatprep.subr.mxu0 0.0
        %3822 = vmatpush1.xpose.msra.mxu0 %v3815
        %3823 = vmatprep.subr.mxu0 0.0
        %3824 = vmatpush1.xpose.msra.mxu0 %v3813
        %3825 = vmatprep.subr.mxu0 0.0
        %3826 = vmatpush1.xpose.msra.mxu0 %v3811
        %3827 = vmatprep.subr.mxu0 0.0
        %3828 = vmatpush1.xpose.msra.mxu0 %v3809
        %3829 = vmatprep.subr.mxu0 0.0
        %3830 = vmatpush1.xpose.msra.mxu0 %v3807
        %3831 = vmatprep.subr.mxu0 0.0
        %3832 = vmatpush1.xpose.msra.mxu0 %v3805
        %3833 = vmatprep.subr.mxu0 0.0
        %3834 = vmatpush1.xpose.msra.mxu0 %v3803
        %3835 = vmatprep.subr.mxu0 0.0
        %3836 = vmatpush1.xpose.msra.mxu0 %v3801
        %3837 = vmatprep.subr.mxu0 0.0
        %3838 = vmatpush1.xpose.msra.mxu0 %v3799
        %3839 = vmatprep.subr.mxu0 0.0
        %3840 = vmatpush1.xpose.msra.mxu0 %v3797
        %3841 = vmatprep.subr.mxu0 0.0
        %3842 = vmatpush1.xpose.msra.mxu0 %v3795
        %3843 = vmatprep.subr.mxu0 0.0
        %3844 = vmatpush1.xpose.msra.mxu0 %v3793
        %3845 = vmatprep.subr.mxu0 0.0
        %3846 = vmatpush1.xpose.msra.mxu0 %v3791
        %3847 = vmatprep.subr.mxu0 0.0
        %3848 = vmatpush1.xpose.msra.mxu0 %v3789
        %3849 = vmatprep.subr.mxu0 0.0
        %3850 = vmatpush1.xpose.msra.mxu0 %v3787
        %3851 = vmatprep.subr.mxu0 0.0
        %3852 = vmatpush2.xpose.msra.mxu0 0.0
        %3853 = vmatprep.subr.mxu0 0.0
        %3854 = vmatpush2.xpose.msra.mxu0 0.0
        %3855 = vmatprep.subr.mxu0 0.0
        %3856 = vmatpush2.xpose.msra.mxu0 0.0
        %3857 = vmatprep.subr.mxu0 0.0
        %3858 = vmatpush2.xpose.msra.mxu0 0.0
        %3859 = vmatprep.subr.mxu0 0.0
        %3860 = vmatpush2.xpose.msra.mxu0 0.0
        %3861 = vmatprep.subr.mxu0 0.0
        %3862 = vmatpush2.xpose.msra.mxu0 0.0
        %3863 = vmatprep.subr.mxu0 0.0
        %3864 = vmatpush2.xpose.msra.mxu0 0.0
        %3865 = vmatprep.subr.mxu0 0.0
        %3866 = vmatpush2.xpose.msra.mxu0 0.0
        %3867 = vmatprep.subr.mxu0 0.0
        %3868 = vmatpush2.xpose.msra.mxu0 0.0
        %3869 = vmatprep.subr.mxu0 0.0
        %3870 = vmatpush2.xpose.msra.mxu0 0.0
        %3871 = vmatprep.subr.mxu0 0.0
        %3872 = vmatpush2.xpose.msra.mxu0 0.0
        %3873 = vmatprep.subr.mxu0 0.0
        %3874 = vmatpush2.xpose.msra.mxu0 0.0
        %3875 = vmatprep.subr.mxu0 0.0
        %3876 = vmatpush2.xpose.msra.mxu0 0.0
        %3877 = vmatprep.subr.mxu0 0.0
        %3878 = vmatpush2.xpose.msra.mxu0 0.0
        %3879 = vmatprep.subr.mxu0 0.0
        %3880 = vmatpush2.xpose.msra.mxu0 0.0
        %3881 = vmatprep.subr.mxu0 0.0
        %3882 = vmatpush2.xpose.msra.mxu0 0.0
        %3883 = vmatprep.mubr.f32.mxu0 0.0
        %3884 = vmatmul.mubr.f32.gmra.mxu0 %v3740
        %v3885 = vpop.f32.mrf.mxu0
        %v3886 = vadd.f32 0.0, %v3885
        %v3887 = vpop.f32.mrf.mxu0
        %3888 = vmatprep.mubr.f32.mxu0 0.0
        %3889 = vmatmul.mubr.f32.gmra.mxu0 %v3743
        %v3890 = vpop.f32.mrf.mxu0
        %v3891 = vadd.f32 0.0, %v3890
        %v3892 = vpop.f32.mrf.mxu0
        %3893 = vmatprep.mubr.f32.mxu0 0.0
        %3894 = vmatmul.mubr.f32.gmra.mxu0 %v3746
        %v3895 = vpop.f32.mrf.mxu0
        %v3896 = vadd.f32 0.0, %v3895
        %v3897 = vpop.f32.mrf.mxu0
        %3898 = vmatprep.mubr.f32.mxu0 0.0
        %3899 = vmatmul.mubr.f32.gmra.mxu0 %v3749
        %v3900 = vpop.f32.mrf.mxu0
        %v3901 = vadd.f32 0.0, %v3900
        %v3902 = vpop.f32.mrf.mxu0
        %3903 = vmatprep.mubr.f32.mxu0 0.0
        %3904 = vmatmul.mubr.f32.gmra.mxu0 %v3752
        %v3905 = vpop.f32.mrf.mxu0
        %v3906 = vadd.f32 0.0, %v3905
        %v3907 = vpop.f32.mrf.mxu0
        %3908 = vmatprep.mubr.f32.mxu0 0.0
        %3909 = vmatmul.mubr.f32.gmra.mxu0 %v3755
        %v3910 = vpop.f32.mrf.mxu0
        %v3911 = vadd.f32 0.0, %v3910
        %v3912 = vpop.f32.mrf.mxu0
        %3913 = vmatprep.mubr.f32.mxu0 0.0
        %3914 = vmatmul.mubr.f32.gmra.mxu0 %v3758
        %v3915 = vpop.f32.mrf.mxu0
        %v3916 = vadd.f32 0.0, %v3915
        %v3917 = vpop.f32.mrf.mxu0
        %3918 = vmatprep.mubr.f32.mxu0 0.0
        %3919 = vmatmul.mubr.f32.gmra.mxu0 %v3761
        %v3920 = vpop.f32.mrf.mxu0
        %v3921 = vadd.f32 0.0, %v3920
        %v3922 = vpop.f32.mrf.mxu0
        %3923 = vmatprep.mubr.f32.mxu0 0.0
        %3924 = vmatmul.mubr.f32.gmra.mxu0 %v3764
        %v3925 = vpop.f32.mrf.mxu0
        %v3926 = vadd.f32 0.0, %v3925
        %v3927 = vpop.f32.mrf.mxu0
        %3928 = vmatprep.mubr.f32.mxu0 0.0
        %3929 = vmatmul.mubr.f32.gmra.mxu0 %v3767
        %v3930 = vpop.f32.mrf.mxu0
        %v3931 = vadd.f32 0.0, %v3930
        %v3932 = vpop.f32.mrf.mxu0
        %3933 = vmatprep.mubr.f32.mxu0 0.0
        %3934 = vmatmul.mubr.f32.gmra.mxu0 %v3770
        %v3935 = vpop.f32.mrf.mxu0
        %v3936 = vadd.f32 0.0, %v3935
        %v3937 = vpop.f32.mrf.mxu0
        %3938 = vmatprep.mubr.f32.mxu0 0.0
        %3939 = vmatmul.mubr.f32.gmra.mxu0 %v3773
        %v3940 = vpop.f32.mrf.mxu0
        %v3941 = vadd.f32 0.0, %v3940
        %v3942 = vpop.f32.mrf.mxu0
        %3943 = vmatprep.mubr.f32.mxu0 0.0
        %3944 = vmatmul.mubr.f32.gmra.mxu0 %v3776
        %v3945 = vpop.f32.mrf.mxu0
        %v3946 = vadd.f32 0.0, %v3945
        %v3947 = vpop.f32.mrf.mxu0
        %3948 = vmatprep.mubr.f32.mxu0 0.0
        %3949 = vmatmul.mubr.f32.gmra.mxu0 %v3779
        %v3950 = vpop.f32.mrf.mxu0
        %v3951 = vadd.f32 0.0, %v3950
        %v3952 = vpop.f32.mrf.mxu0
        %3953 = vmatprep.mubr.f32.mxu0 0.0
        %3954 = vmatmul.mubr.f32.gmra.mxu0 %v3782
        %v3955 = vpop.f32.mrf.mxu0
        %v3956 = vadd.f32 0.0, %v3955
        %v3957 = vpop.f32.mrf.mxu0
        %3958 = vmatprep.mubr.f32.mxu0 0.0
        %3959 = vmatmul.mubr.f32.gmra.mxu0 %v3785
        %v3960 = vpop.f32.mrf.mxu0
        %v3961 = vadd.f32 0.0, %v3960
        %v3962 = vpop.f32.mrf.mxu0
        %3963 = vdwg.mxu0
        %v3964 = vmul.f32 %v3886, 0.125
        %v3965 = vmul.f32 %v3891, 0.125
        %v3966 = vmul.f32 %v3896, 0.125
        %v3967 = vmul.f32 %v3901, 0.125
        %v3968 = vmul.f32 %v3906, 0.125
        %v3969 = vmul.f32 %v3911, 0.125
        %v3970 = vmul.f32 %v3916, 0.125
        %v3971 = vmul.f32 %v3921, 0.125
        %v3972 = vmul.f32 %v3926, 0.125
        %v3973 = vmul.f32 %v3931, 0.125
        %v3974 = vmul.f32 %v3936, 0.125
        %v3975 = vmul.f32 %v3941, 0.125
        %v3976 = vmul.f32 %v3946, 0.125
        %v3977 = vmul.f32 %v3951, 0.125
        %v3978 = vmul.f32 %v3956, 0.125
        %v3979 = vmul.f32 %v3961, 0.125
        %v3980 = vsel %vm2212, %v3964, -1e+30
        %v3981 = vsel %vm2213, %v3965, -1e+30
        %v3982 = vsel %vm2214, %v3966, -1e+30
        %v3983 = vsel %vm2215, %v3967, -1e+30
        %v3984 = vsel %vm2216, %v3968, -1e+30
        %v3985 = vsel %vm2217, %v3969, -1e+30
        %v3986 = vsel %vm2218, %v3970, -1e+30
        %v3987 = vsel %vm2219, %v3971, -1e+30
        %v3988 = vsel %vm2220, %v3972, -1e+30
        %v3989 = vsel %vm2221, %v3973, -1e+30
        %v3990 = vsel %vm2222, %v3974, -1e+30
        %v3991 = vsel %vm2223, %v3975, -1e+30
        %v3992 = vsel %vm2224, %v3976, -1e+30
        %v3993 = vsel %vm2225, %v3977, -1e+30
        %v3994 = vsel %vm2226, %v3978, -1e+30
        %v3995 = vsel %vm2227, %v3979, -1e+30
        %3996 = vmax.xlane.f32.xlu0 %v3980
        %v3997 = vpop.xlane.xlu0 %3996
        %3998 = vmax.xlane.f32.xlu0 %v3981
        %v3999 = vpop.xlane.xlu0 %3998
        %4000 = vmax.xlane.f32.xlu0 %v3982
        %v4001 = vpop.xlane.xlu0 %4000
        %4002 = vmax.xlane.f32.xlu0 %v3983
        %v4003 = vpop.xlane.xlu0 %4002
        %4004 = vmax.xlane.f32.xlu0 %v3984
        %v4005 = vpop.xlane.xlu0 %4004
        %4006 = vmax.xlane.f32.xlu0 %v3985
        %v4007 = vpop.xlane.xlu0 %4006
        %4008 = vmax.xlane.f32.xlu0 %v3986
        %v4009 = vpop.xlane.xlu0 %4008
        %4010 = vmax.xlane.f32.xlu0 %v3987
        %v4011 = vpop.xlane.xlu0 %4010
        %4012 = vmax.xlane.f32.xlu0 %v3988
        %v4013 = vpop.xlane.xlu0 %4012
        %4014 = vmax.xlane.f32.xlu0 %v3989
        %v4015 = vpop.xlane.xlu0 %4014
        %4016 = vmax.xlane.f32.xlu0 %v3990
        %v4017 = vpop.xlane.xlu0 %4016
        %4018 = vmax.xlane.f32.xlu0 %v3991
        %v4019 = vpop.xlane.xlu0 %4018
        %4020 = vmax.xlane.f32.xlu0 %v3992
        %v4021 = vpop.xlane.xlu0 %4020
        %4022 = vmax.xlane.f32.xlu0 %v3993
        %v4023 = vpop.xlane.xlu0 %4022
        %4024 = vmax.xlane.f32.xlu0 %v3994
        %v4025 = vpop.xlane.xlu0 %4024
        %4026 = vmax.xlane.f32.xlu0 %v3995
        %v4027 = vpop.xlane.xlu0 %4026
        %v4028 = vsub.f32 %v3980, %v3997
        %v4029 = vsub.f32 %v3981, %v3999
        %v4030 = vsub.f32 %v3982, %v4001
        %v4031 = vsub.f32 %v3983, %v4003
        %v4032 = vsub.f32 %v3984, %v4005
        %v4033 = vsub.f32 %v3985, %v4007
        %v4034 = vsub.f32 %v3986, %v4009
        %v4035 = vsub.f32 %v3987, %v4011
        %v4036 = vsub.f32 %v3988, %v4013
        %v4037 = vsub.f32 %v3989, %v4015
        %v4038 = vsub.f32 %v3990, %v4017
        %v4039 = vsub.f32 %v3991, %v4019
        %v4040 = vsub.f32 %v3992, %v4021
        %v4041 = vsub.f32 %v3993, %v4023
        %v4042 = vsub.f32 %v3994, %v4025
        %v4043 = vsub.f32 %v3995, %v4027
        %v4044 = vmul.f32 %v4028, 1.442695
        %v4045 = vpow.pop %v4044
        %v4046 = vmul.f32 %v4029, 1.442695
        %v4047 = vpow.pop %v4046
        %v4048 = vmul.f32 %v4030, 1.442695
        %v4049 = vpow.pop %v4048
        %v4050 = vmul.f32 %v4031, 1.442695
        %v4051 = vpow.pop %v4050
        %v4052 = vmul.f32 %v4032, 1.442695
        %v4053 = vpow.pop %v4052
        %v4054 = vmul.f32 %v4033, 1.442695
        %v4055 = vpow.pop %v4054
        %v4056 = vmul.f32 %v4034, 1.442695
        %v4057 = vpow.pop %v4056
        %v4058 = vmul.f32 %v4035, 1.442695
        %v4059 = vpow.pop %v4058
        %v4060 = vmul.f32 %v4036, 1.442695
        %v4061 = vpow.pop %v4060
        %v4062 = vmul.f32 %v4037, 1.442695
        %v4063 = vpow.pop %v4062
        %v4064 = vmul.f32 %v4038, 1.442695
        %v4065 = vpow.pop %v4064
        %v4066 = vmul.f32 %v4039, 1.442695
        %v4067 = vpow.pop %v4066
        %v4068 = vmul.f32 %v4040, 1.442695
        %v4069 = vpow.pop %v4068
        %v4070 = vmul.f32 %v4041, 1.442695
        %v4071 = vpow.pop %v4070
        %v4072 = vmul.f32 %v4042, 1.442695
        %v4073 = vpow.pop %v4072
        %v4074 = vmul.f32 %v4043, 1.442695
        %v4075 = vpow.pop %v4074
        %4076 = vadd.xlane.f32.xlu0 %v4045
        %v4077 = vpop.xlane.xlu0 %4076
        %4078 = vadd.xlane.f32.xlu0 %v4047
        %v4079 = vpop.xlane.xlu0 %4078
        %4080 = vadd.xlane.f32.xlu0 %v4049
        %v4081 = vpop.xlane.xlu0 %4080
        %4082 = vadd.xlane.f32.xlu0 %v4051
        %v4083 = vpop.xlane.xlu0 %4082
        %4084 = vadd.xlane.f32.xlu0 %v4053
        %v4085 = vpop.xlane.xlu0 %4084
        %4086 = vadd.xlane.f32.xlu0 %v4055
        %v4087 = vpop.xlane.xlu0 %4086
        %4088 = vadd.xlane.f32.xlu0 %v4057
        %v4089 = vpop.xlane.xlu0 %4088
        %4090 = vadd.xlane.f32.xlu0 %v4059
        %v4091 = vpop.xlane.xlu0 %4090
        %4092 = vadd.xlane.f32.xlu0 %v4061
        %v4093 = vpop.xlane.xlu0 %4092
        %4094 = vadd.xlane.f32.xlu0 %v4063
        %v4095 = vpop.xlane.xlu0 %4094
        %4096 = vadd.xlane.f32.xlu0 %v4065
        %v4097 = vpop.xlane.xlu0 %4096
        %4098 = vadd.xlane.f32.xlu0 %v4067
        %v4099 = vpop.xlane.xlu0 %4098
        %4100 = vadd.xlane.f32.xlu0 %v4069
        %v4101 = vpop.xlane.xlu0 %4100
        %4102 = vadd.xlane.f32.xlu0 %v4071
        %v4103 = vpop.xlane.xlu0 %4102
        %4104 = vadd.xlane.f32.xlu0 %v4073
        %v4105 = vpop.xlane.xlu0 %4104
        %4106 = vadd.xlane.f32.xlu0 %v4075
        %v4107 = vpop.xlane.xlu0 %4106
        %v4108 = vrcp.pop %v4077
        %v4109 = vrcp.pop %v4079
        %v4110 = vrcp.pop %v4081
        %v4111 = vrcp.pop %v4083
        %v4112 = vrcp.pop %v4085
        %v4113 = vrcp.pop %v4087
        %v4114 = vrcp.pop %v4089
        %v4115 = vrcp.pop %v4091
        %v4116 = vrcp.pop %v4093
        %v4117 = vrcp.pop %v4095
        %v4118 = vrcp.pop %v4097
        %v4119 = vrcp.pop %v4099
        %v4120 = vrcp.pop %v4101
        %v4121 = vrcp.pop %v4103
        %v4122 = vrcp.pop %v4105
        %v4123 = vrcp.pop %v4107
        %v4124 = vmul.f32 %v4045, %v4108
        %v4125 = vmul.f32 %v4047, %v4109
        %v4126 = vmul.f32 %v4049, %v4110
        %v4127 = vmul.f32 %v4051, %v4111
        %v4128 = vmul.f32 %v4053, %v4112
        %v4129 = vmul.f32 %v4055, %v4113
        %v4130 = vmul.f32 %v4057, %v4114
        %v4131 = vmul.f32 %v4059, %v4115
        %v4132 = vmul.f32 %v4061, %v4116
        %v4133 = vmul.f32 %v4063, %v4117
        %v4134 = vmul.f32 %v4065, %v4118
        %v4135 = vmul.f32 %v4067, %v4119
        %v4136 = vmul.f32 %v4069, %v4120
        %v4137 = vmul.f32 %v4071, %v4121
        %v4138 = vmul.f32 %v4073, %v4122
        %v4139 = vmul.f32 %v4075, %v4123
        %4156 = vrot.lane.b32.xlu0 %v1667, 64
        %v4157 = vpop.permute.xlu0 %4156
        %4158 = vrot.lane.b32.xlu0 %v1671, 64
        %v4159 = vpop.permute.xlu0 %4158
        %4160 = vrot.lane.b32.xlu0 %v1677, 64
        %v4161 = vpop.permute.xlu0 %4160
        %4162 = vrot.lane.b32.xlu0 %v1681, 64
        %v4163 = vpop.permute.xlu0 %4162
        %4164 = vrot.lane.b32.xlu0 %v1687, 64
        %v4165 = vpop.permute.xlu0 %4164
        %4166 = vrot.lane.b32.xlu0 %v1691, 64
        %v4167 = vpop.permute.xlu0 %4166
        %4168 = vrot.lane.b32.xlu0 %v1697, 64
        %v4169 = vpop.permute.xlu0 %4168
        %4170 = vrot.lane.b32.xlu0 %v1701, 64
        %v4171 = vpop.permute.xlu0 %4170
        %4172 = vrot.lane.b32.xlu0 %v1707, 64
        %v4173 = vpop.permute.xlu0 %4172
        %4174 = vrot.lane.b32.xlu0 %v1711, 64
        %v4175 = vpop.permute.xlu0 %4174
        %4176 = vrot.lane.b32.xlu0 %v1717, 64
        %v4177 = vpop.permute.xlu0 %4176
        %4178 = vrot.lane.b32.xlu0 %v1721, 64
        %v4179 = vpop.permute.xlu0 %4178
        %4180 = vrot.lane.b32.xlu0 %v1727, 64
        %v4181 = vpop.permute.xlu0 %4180
        %4182 = vrot.lane.b32.xlu0 %v1731, 64
        %v4183 = vpop.permute.xlu0 %4182
        %4184 = vrot.lane.b32.xlu0 %v1737, 64
        %v4185 = vpop.permute.xlu0 %4184
        %4186 = vrot.lane.b32.xlu0 %v1741, 64
        %v4187 = vpop.permute.xlu0 %4186
        %4204 = vmatprep.subr.mxu0 0.0
        %4205 = vmatpush1.msra.mxu0 %v4187
        %4206 = vmatprep.subr.mxu0 0.0
        %4207 = vmatpush1.msra.mxu0 %v4185
        %4208 = vmatprep.subr.mxu0 0.0
        %4209 = vmatpush1.msra.mxu0 %v4183
        %4210 = vmatprep.subr.mxu0 0.0
        %4211 = vmatpush1.msra.mxu0 %v4181
        %4212 = vmatprep.subr.mxu0 0.0
        %4213 = vmatpush1.msra.mxu0 %v4179
        %4214 = vmatprep.subr.mxu0 0.0
        %4215 = vmatpush1.msra.mxu0 %v4177
        %4216 = vmatprep.subr.mxu0 0.0
        %4217 = vmatpush1.msra.mxu0 %v4175
        %4218 = vmatprep.subr.mxu0 0.0
        %4219 = vmatpush1.msra.mxu0 %v4173
        %4220 = vmatprep.subr.mxu0 0.0
        %4221 = vmatpush1.msra.mxu0 %v4171
        %4222 = vmatprep.subr.mxu0 0.0
        %4223 = vmatpush1.msra.mxu0 %v4169
        %4224 = vmatprep.subr.mxu0 0.0
        %4225 = vmatpush1.msra.mxu0 %v4167
        %4226 = vmatprep.subr.mxu0 0.0
        %4227 = vmatpush1.msra.mxu0 %v4165
        %4228 = vmatprep.subr.mxu0 0.0
        %4229 = vmatpush1.msra.mxu0 %v4163
        %4230 = vmatprep.subr.mxu0 0.0
        %4231 = vmatpush1.msra.mxu0 %v4161
        %4232 = vmatprep.subr.mxu0 0.0
        %4233 = vmatpush1.msra.mxu0 %v4159
        %4234 = vmatprep.subr.mxu0 0.0
        %4235 = vmatpush1.msra.mxu0 %v4157
        %4236 = vmatprep.subr.mxu0 0.0
        %4237 = vmatpush2.msra.mxu0 0.0
        %4238 = vmatprep.subr.mxu0 0.0
        %4239 = vmatpush2.msra.mxu0 0.0
        %4240 = vmatprep.subr.mxu0 0.0
        %4241 = vmatpush2.msra.mxu0 0.0
        %4242 = vmatprep.subr.mxu0 0.0
        %4243 = vmatpush2.msra.mxu0 0.0
        %4244 = vmatprep.subr.mxu0 0.0
        %4245 = vmatpush2.msra.mxu0 0.0
        %4246 = vmatprep.subr.mxu0 0.0
        %4247 = vmatpush2.msra.mxu0 0.0
        %4248 = vmatprep.subr.mxu0 0.0
        %4249 = vmatpush2.msra.mxu0 0.0
        %4250 = vmatprep.subr.mxu0 0.0
        %4251 = vmatpush2.msra.mxu0 0.0
        %4252 = vmatprep.subr.mxu0 0.0
        %4253 = vmatpush2.msra.mxu0 0.0
        %4254 = vmatprep.subr.mxu0 0.0
        %4255 = vmatpush2.msra.mxu0 0.0
        %4256 = vmatprep.subr.mxu0 0.0
        %4257 = vmatpush2.msra.mxu0 0.0
        %4258 = vmatprep.subr.mxu0 0.0
        %4259 = vmatpush2.msra.mxu0 0.0
        %4260 = vmatprep.subr.mxu0 0.0
        %4261 = vmatpush2.msra.mxu0 0.0
        %4262 = vmatprep.subr.mxu0 0.0
        %4263 = vmatpush2.msra.mxu0 0.0
        %4264 = vmatprep.subr.mxu0 0.0
        %4265 = vmatpush2.msra.mxu0 0.0
        %4266 = vmatprep.subr.mxu0 0.0
        %4267 = vmatpush2.msra.mxu0 0.0
        %4268 = vmatprep.mubr.f32.mxu0 0.0
        %4269 = vmatmul.mubr.f32.gmra.mxu0 %v4124
        %v4270 = vpop.f32.mrf.mxu0
        %v4271 = vadd.f32 0.0, %v4270
        %v4272 = vpop.f32.mrf.mxu0
        %4273 = vmatprep.mubr.f32.mxu0 0.0
        %4274 = vmatmul.mubr.f32.gmra.mxu0 %v4125
        %v4275 = vpop.f32.mrf.mxu0
        %v4276 = vadd.f32 0.0, %v4275
        %v4277 = vpop.f32.mrf.mxu0
        %4278 = vmatprep.mubr.f32.mxu0 0.0
        %4279 = vmatmul.mubr.f32.gmra.mxu0 %v4126
        %v4280 = vpop.f32.mrf.mxu0
        %v4281 = vadd.f32 0.0, %v4280
        %v4282 = vpop.f32.mrf.mxu0
        %4283 = vmatprep.mubr.f32.mxu0 0.0
        %4284 = vmatmul.mubr.f32.gmra.mxu0 %v4127
        %v4285 = vpop.f32.mrf.mxu0
        %v4286 = vadd.f32 0.0, %v4285
        %v4287 = vpop.f32.mrf.mxu0
        %4288 = vmatprep.mubr.f32.mxu0 0.0
        %4289 = vmatmul.mubr.f32.gmra.mxu0 %v4128
        %v4290 = vpop.f32.mrf.mxu0
        %v4291 = vadd.f32 0.0, %v4290
        %v4292 = vpop.f32.mrf.mxu0
        %4293 = vmatprep.mubr.f32.mxu0 0.0
        %4294 = vmatmul.mubr.f32.gmra.mxu0 %v4129
        %v4295 = vpop.f32.mrf.mxu0
        %v4296 = vadd.f32 0.0, %v4295
        %v4297 = vpop.f32.mrf.mxu0
        %4298 = vmatprep.mubr.f32.mxu0 0.0
        %4299 = vmatmul.mubr.f32.gmra.mxu0 %v4130
        %v4300 = vpop.f32.mrf.mxu0
        %v4301 = vadd.f32 0.0, %v4300
        %v4302 = vpop.f32.mrf.mxu0
        %4303 = vmatprep.mubr.f32.mxu0 0.0
        %4304 = vmatmul.mubr.f32.gmra.mxu0 %v4131
        %v4305 = vpop.f32.mrf.mxu0
        %v4306 = vadd.f32 0.0, %v4305
        %v4307 = vpop.f32.mrf.mxu0
        %4308 = vmatprep.mubr.f32.mxu0 0.0
        %4309 = vmatmul.mubr.f32.gmra.mxu0 %v4132
        %v4310 = vpop.f32.mrf.mxu0
        %v4311 = vadd.f32 0.0, %v4310
        %v4312 = vpop.f32.mrf.mxu0
        %4313 = vmatprep.mubr.f32.mxu0 0.0
        %4314 = vmatmul.mubr.f32.gmra.mxu0 %v4133
        %v4315 = vpop.f32.mrf.mxu0
        %v4316 = vadd.f32 0.0, %v4315
        %v4317 = vpop.f32.mrf.mxu0
        %4318 = vmatprep.mubr.f32.mxu0 0.0
        %4319 = vmatmul.mubr.f32.gmra.mxu0 %v4134
        %v4320 = vpop.f32.mrf.mxu0
        %v4321 = vadd.f32 0.0, %v4320
        %v4322 = vpop.f32.mrf.mxu0
        %4323 = vmatprep.mubr.f32.mxu0 0.0
        %4324 = vmatmul.mubr.f32.gmra.mxu0 %v4135
        %v4325 = vpop.f32.mrf.mxu0
        %v4326 = vadd.f32 0.0, %v4325
        %v4327 = vpop.f32.mrf.mxu0
        %4328 = vmatprep.mubr.f32.mxu0 0.0
        %4329 = vmatmul.mubr.f32.gmra.mxu0 %v4136
        %v4330 = vpop.f32.mrf.mxu0
        %v4331 = vadd.f32 0.0, %v4330
        %v4332 = vpop.f32.mrf.mxu0
        %4333 = vmatprep.mubr.f32.mxu0 0.0
        %4334 = vmatmul.mubr.f32.gmra.mxu0 %v4137
        %v4335 = vpop.f32.mrf.mxu0
        %v4336 = vadd.f32 0.0, %v4335
        %v4337 = vpop.f32.mrf.mxu0
        %4338 = vmatprep.mubr.f32.mxu0 0.0
        %4339 = vmatmul.mubr.f32.gmra.mxu0 %v4138
        %v4340 = vpop.f32.mrf.mxu0
        %v4341 = vadd.f32 0.0, %v4340
        %v4342 = vpop.f32.mrf.mxu0
        %4343 = vmatprep.mubr.f32.mxu0 0.0
        %4344 = vmatmul.mubr.f32.gmra.mxu0 %v4139
        %v4345 = vpop.f32.mrf.mxu0
        %v4346 = vadd.f32 0.0, %v4345
        %v4347 = vpop.f32.mrf.mxu0
        %4348 = vdwg.mxu0
        %v4349 = vpack.c.bf16 %v4276, %v4271
        %v4350 = vpack.c.bf16 %v4286, %v4281
        %v4351 = vpack.c.bf16 %v4296, %v4291
        %v4352 = vpack.c.bf16 %v4306, %v4301
        %v4353 = vpack.c.bf16 %v4316, %v4311
        %v4354 = vpack.c.bf16 %v4326, %v4321
        %v4355 = vpack.c.bf16 %v4336, %v4331
        %v4356 = vpack.c.bf16 %v4346, %v4341
        %v4357 = vld [vmem:[#allocation13 + $0x80] sm:$0xff]
        %v4358 = vld [vmem:[#allocation13 + $0x88] sm:$0xff]
        %v4359 = vld [vmem:[#allocation13 + $0x90] sm:$0xff]
        %v4360 = vld [vmem:[#allocation13 + $0x98] sm:$0xff]
        %v4361 = vld [vmem:[#allocation13 + $0xa0] sm:$0xff]
        %v4362 = vld [vmem:[#allocation13 + $0xa8] sm:$0xff]
        %v4363 = vld [vmem:[#allocation13 + $0xb0] sm:$0xff]
        %v4364 = vld [vmem:[#allocation13 + $0xb8] sm:$0xff]
        %v4373 = vunpack.c.l.b16 %v4357
        %v4374 = vunpack.c.h.b16 %v4357
        %v4375 = vunpack.c.l.b16 %v4358
        %v4376 = vunpack.c.h.b16 %v4358
        %v4377 = vunpack.c.l.b16 %v4359
        %v4378 = vunpack.c.h.b16 %v4359
        %v4379 = vunpack.c.l.b16 %v4360
        %v4380 = vunpack.c.h.b16 %v4360
        %v4381 = vunpack.c.l.b16 %v4361
        %v4382 = vunpack.c.h.b16 %v4361
        %v4383 = vunpack.c.l.b16 %v4362
        %v4384 = vunpack.c.h.b16 %v4362
        %v4385 = vunpack.c.l.b16 %v4363
        %v4386 = vunpack.c.h.b16 %v4363
        %v4387 = vunpack.c.l.b16 %v4364
        %v4388 = vunpack.c.h.b16 %v4364
        %v4389 = vpack.c.b16 %v4375, %v4373
        %v4390 = vpack.c.b16 %v4376, %v4374
        %v4391 = vpack.c.b16 %v4379, %v4377
        %v4392 = vpack.c.b16 %v4380, %v4378
        %v4393 = vpack.c.b16 %v4383, %v4381
        %v4394 = vpack.c.b16 %v4384, %v4382
        %v4395 = vpack.c.b16 %v4387, %v4385
        %v4396 = vpack.c.b16 %v4388, %v4386
        %v4406 = vsel %vm2228, %v4349, 0
        %v4409 = vsel %vm2228, %v4350, 0
        %v4412 = vsel %vm2228, %v4351, 0
        %v4415 = vsel %vm2228, %v4352, 0
        %v4418 = vsel %vm2228, %v4353, 0
        %v4421 = vsel %vm2228, %v4354, 0
        %v4424 = vsel %vm2228, %v4355, 0
        %v4427 = vsel %vm2228, %v4356, 0
        %4429 = vmatprep.subr.bf16.mxu0 0
        %4430 = vmatpush1.bf16.msra.mxu0 0
        %4431 = vmatprep.subr.bf16.mxu0 0
        %4432 = vmatpush1.bf16.msra.mxu0 0
        %4433 = vmatprep.subr.bf16.mxu0 0
        %4434 = vmatpush1.bf16.msra.mxu0 0
        %4435 = vmatprep.subr.bf16.mxu0 0
        %4436 = vmatpush1.bf16.msra.mxu0 0
        %4437 = vmatprep.subr.bf16.mxu0 %v4396
        %4438 = vmatpush1.bf16.msra.mxu0 %v4395
        %4439 = vmatprep.subr.bf16.mxu0 %v4394
        %4440 = vmatpush1.bf16.msra.mxu0 %v4393
        %4441 = vmatprep.subr.bf16.mxu0 %v4392
        %4442 = vmatpush1.bf16.msra.mxu0 %v4391
        %4443 = vmatprep.subr.bf16.mxu0 %v4390
        %4444 = vmatpush1.bf16.msra.mxu0 %v4389
        %4445 = vmatprep.subr.bf16.mxu0 0
        %4446 = vmatpush2.bf16.msra.mxu0 0
        %4447 = vmatprep.subr.bf16.mxu0 0
        %4448 = vmatpush2.bf16.msra.mxu0 0
        %4449 = vmatprep.subr.bf16.mxu0 0
        %4450 = vmatpush2.bf16.msra.mxu0 0
        %4451 = vmatprep.subr.bf16.mxu0 0
        %4452 = vmatpush2.bf16.msra.mxu0 0
        %4453 = vmatprep.subr.bf16.mxu0 0
        %4454 = vmatpush2.bf16.msra.mxu0 0
        %4455 = vmatprep.subr.bf16.mxu0 0
        %4456 = vmatpush2.bf16.msra.mxu0 0
        %4457 = vmatprep.subr.bf16.mxu0 0
        %4458 = vmatpush2.bf16.msra.mxu0 0
        %4459 = vmatprep.subr.bf16.mxu0 0
        %4460 = vmatpush2.bf16.msra.mxu0 0
        %4461 = vmatprep.mubr.bf16.mxu0 0
        %4462 = vmatmul.mubr.bf16.gmra.mxu0 %v4406
        %v4463 = vpop.f32.mrf.mxu0
        %v4464 = vadd.f32 0.0, %v4463
        %v4465 = vpop.f32.mrf.mxu0
        %v4466 = vadd.f32 0.0, %v4465
        %v4467 = vpop.f32.mrf.mxu0
        %v4468 = vadd.f32 0.0, %v4467
        %v4469 = vpop.f32.mrf.mxu0
        %v4470 = vadd.f32 0.0, %v4469
        %4471 = vmatprep.mubr.bf16.mxu0 0
        %4472 = vmatmul.mubr.bf16.gmra.mxu0 %v4409
        %v4473 = vpop.f32.mrf.mxu0
        %v4474 = vadd.f32 0.0, %v4473
        %v4475 = vpop.f32.mrf.mxu0
        %v4476 = vadd.f32 0.0, %v4475
        %v4477 = vpop.f32.mrf.mxu0
        %v4478 = vadd.f32 0.0, %v4477
        %v4479 = vpop.f32.mrf.mxu0
        %v4480 = vadd.f32 0.0, %v4479
        %4481 = vmatprep.mubr.bf16.mxu0 0
        %4482 = vmatmul.mubr.bf16.gmra.mxu0 %v4412
        %v4483 = vpop.f32.mrf.mxu0
        %v4484 = vadd.f32 0.0, %v4483
        %v4485 = vpop.f32.mrf.mxu0
        %v4486 = vadd.f32 0.0, %v4485
        %v4487 = vpop.f32.mrf.mxu0
        %v4488 = vadd.f32 0.0, %v4487
        %v4489 = vpop.f32.mrf.mxu0
        %v4490 = vadd.f32 0.0, %v4489
        %4491 = vmatprep.mubr.bf16.mxu0 0
        %4492 = vmatmul.mubr.bf16.gmra.mxu0 %v4415
        %v4493 = vpop.f32.mrf.mxu0
        %v4494 = vadd.f32 0.0, %v4493
        %v4495 = vpop.f32.mrf.mxu0
        %v4496 = vadd.f32 0.0, %v4495
        %v4497 = vpop.f32.mrf.mxu0
        %v4498 = vadd.f32 0.0, %v4497
        %v4499 = vpop.f32.mrf.mxu0
        %v4500 = vadd.f32 0.0, %v4499
        %4501 = vmatprep.mubr.bf16.mxu0 0
        %4502 = vmatmul.mubr.bf16.gmra.mxu0 %v4418
        %v4503 = vpop.f32.mrf.mxu0
        %v4504 = vadd.f32 0.0, %v4503
        %v4505 = vpop.f32.mrf.mxu0
        %v4506 = vadd.f32 0.0, %v4505
        %v4507 = vpop.f32.mrf.mxu0
        %v4508 = vadd.f32 0.0, %v4507
        %v4509 = vpop.f32.mrf.mxu0
        %v4510 = vadd.f32 0.0, %v4509
        %4511 = vmatprep.mubr.bf16.mxu0 0
        %4512 = vmatmul.mubr.bf16.gmra.mxu0 %v4421
        %v4513 = vpop.f32.mrf.mxu0
        %v4514 = vadd.f32 0.0, %v4513
        %v4515 = vpop.f32.mrf.mxu0
        %v4516 = vadd.f32 0.0, %v4515
        %v4517 = vpop.f32.mrf.mxu0
        %v4518 = vadd.f32 0.0, %v4517
        %v4519 = vpop.f32.mrf.mxu0
        %v4520 = vadd.f32 0.0, %v4519
        %4521 = vmatprep.mubr.bf16.mxu0 0
        %4522 = vmatmul.mubr.bf16.gmra.mxu0 %v4424
        %v4523 = vpop.f32.mrf.mxu0
        %v4524 = vadd.f32 0.0, %v4523
        %v4525 = vpop.f32.mrf.mxu0
        %v4526 = vadd.f32 0.0, %v4525
        %v4527 = vpop.f32.mrf.mxu0
        %v4528 = vadd.f32 0.0, %v4527
        %v4529 = vpop.f32.mrf.mxu0
        %v4530 = vadd.f32 0.0, %v4529
        %4531 = vmatprep.mubr.bf16.mxu0 0
        %4532 = vmatmul.mubr.bf16.gmra.mxu0 %v4427
        %v4533 = vpop.f32.mrf.mxu0
        %v4534 = vadd.f32 0.0, %v4533
        %v4535 = vpop.f32.mrf.mxu0
        %v4536 = vadd.f32 0.0, %v4535
        %v4537 = vpop.f32.mrf.mxu0
        %v4538 = vadd.f32 0.0, %v4537
        %v4539 = vpop.f32.mrf.mxu0
        %v4540 = vadd.f32 0.0, %v4539
        %4541 = vdwg.mxu0
        %v4542 = vadd.f32 %v3629, %v4464
        %v4543 = vadd.f32 %v3631, %v4466
        %v4544 = vadd.f32 %v3633, %v4468
        %v4545 = vadd.f32 %v3635, %v4470
        %v4546 = vadd.f32 %v3639, %v4474
        %v4547 = vadd.f32 %v3641, %v4476
        %v4548 = vadd.f32 %v3643, %v4478
        %v4549 = vadd.f32 %v3645, %v4480
        %v4550 = vadd.f32 %v3649, %v4484
        %v4551 = vadd.f32 %v3651, %v4486
        %v4552 = vadd.f32 %v3653, %v4488
        %v4553 = vadd.f32 %v3655, %v4490
        %v4554 = vadd.f32 %v3659, %v4494
        %v4555 = vadd.f32 %v3661, %v4496
        %v4556 = vadd.f32 %v3663, %v4498
        %v4557 = vadd.f32 %v3665, %v4500
        %v4558 = vadd.f32 %v3669, %v4504
        %v4559 = vadd.f32 %v3671, %v4506
        %v4560 = vadd.f32 %v3673, %v4508
        %v4561 = vadd.f32 %v3675, %v4510
        %v4562 = vadd.f32 %v3679, %v4514
        %v4563 = vadd.f32 %v3681, %v4516
        %v4564 = vadd.f32 %v3683, %v4518
        %v4565 = vadd.f32 %v3685, %v4520
        %v4566 = vadd.f32 %v3689, %v4524
        %v4567 = vadd.f32 %v3691, %v4526
        %v4568 = vadd.f32 %v3693, %v4528
        %v4569 = vadd.f32 %v3695, %v4530
        %v4570 = vadd.f32 %v3699, %v4534
        %v4571 = vadd.f32 %v3701, %v4536
        %v4572 = vadd.f32 %v3703, %v4538
        %v4573 = vadd.f32 %v3705, %v4540
        %4574 = vrot.lane.b32.xlu0 %v2082, 64
        %v4575 = vpop.permute.xlu0 %4574
        %4576 = vrot.lane.b32.xlu0 %v2084, 64
        %v4577 = vpop.permute.xlu0 %4576
        %4578 = vrot.lane.b32.xlu0 %v2086, 64
        %v4579 = vpop.permute.xlu0 %4578
        %4580 = vrot.lane.b32.xlu0 %v2088, 64
        %v4581 = vpop.permute.xlu0 %4580
        %4582 = vrot.lane.b32.xlu0 %v2090, 64
        %v4583 = vpop.permute.xlu0 %4582
        %4584 = vrot.lane.b32.xlu0 %v2092, 64
        %v4585 = vpop.permute.xlu0 %4584
        %4586 = vrot.lane.b32.xlu0 %v2094, 64
        %v4587 = vpop.permute.xlu0 %4586
        %4588 = vrot.lane.b32.xlu0 %v2096, 64
        %v4589 = vpop.permute.xlu0 %4588
        %4590 = vrot.lane.b32.xlu0 %v2098, 64
        %v4591 = vpop.permute.xlu0 %4590
        %4592 = vrot.lane.b32.xlu0 %v2100, 64
        %v4593 = vpop.permute.xlu0 %4592
        %4594 = vrot.lane.b32.xlu0 %v2102, 64
        %v4595 = vpop.permute.xlu0 %4594
        %4596 = vrot.lane.b32.xlu0 %v2104, 64
        %v4597 = vpop.permute.xlu0 %4596
        %4598 = vrot.lane.b32.xlu0 %v2106, 64
        %v4599 = vpop.permute.xlu0 %4598
        %4600 = vrot.lane.b32.xlu0 %v2108, 64
        %v4601 = vpop.permute.xlu0 %4600
        %4602 = vrot.lane.b32.xlu0 %v2110, 64
        %v4603 = vpop.permute.xlu0 %4602
        %4604 = vrot.lane.b32.xlu0 %v2112, 64
        %v4605 = vpop.permute.xlu0 %4604
        %v4606 = vsel %vm2228, %v4575, 0
        %v4608 = vsel %vm2228, %v4577, 0
        %v4610 = vsel %vm2228, %v4579, 0
        %v4612 = vsel %vm2228, %v4581, 0
        %v4614 = vsel %vm2228, %v4583, 0
        %v4616 = vsel %vm2228, %v4585, 0
        %v4618 = vsel %vm2228, %v4587, 0
        %v4620 = vsel %vm2228, %v4589, 0
        %v4622 = vsel %vm2228, %v4591, 0
        %v4624 = vsel %vm2228, %v4593, 0
        %v4626 = vsel %vm2228, %v4595, 0
        %v4628 = vsel %vm2228, %v4597, 0
        %v4630 = vsel %vm2228, %v4599, 0
        %v4632 = vsel %vm2228, %v4601, 0
        %v4634 = vsel %vm2228, %v4603, 0
        %v4636 = vsel %vm2228, %v4605, 0
        %4638 = vmatprep.subr.mxu0 0.0
        %4639 = vmatpush1.xpose.msra.mxu0 %v3817
        %4640 = vmatprep.subr.mxu0 0.0
        %4641 = vmatpush1.xpose.msra.mxu0 %v3815
        %4642 = vmatprep.subr.mxu0 0.0
        %4643 = vmatpush1.xpose.msra.mxu0 %v3813
        %4644 = vmatprep.subr.mxu0 0.0
        %4645 = vmatpush1.xpose.msra.mxu0 %v3811
        %4646 = vmatprep.subr.mxu0 0.0
        %4647 = vmatpush1.xpose.msra.mxu0 %v3809
        %4648 = vmatprep.subr.mxu0 0.0
        %4649 = vmatpush1.xpose.msra.mxu0 %v3807
        %4650 = vmatprep.subr.mxu0 0.0
        %4651 = vmatpush1.xpose.msra.mxu0 %v3805
        %4652 = vmatprep.subr.mxu0 0.0
        %4653 = vmatpush1.xpose.msra.mxu0 %v3803
        %4654 = vmatprep.subr.mxu0 0.0
        %4655 = vmatpush1.xpose.msra.mxu0 %v3801
        %4656 = vmatprep.subr.mxu0 0.0
        %4657 = vmatpush1.xpose.msra.mxu0 %v3799
        %4658 = vmatprep.subr.mxu0 0.0
        %4659 = vmatpush1.xpose.msra.mxu0 %v3797
        %4660 = vmatprep.subr.mxu0 0.0
        %4661 = vmatpush1.xpose.msra.mxu0 %v3795
        %4662 = vmatprep.subr.mxu0 0.0
        %4663 = vmatpush1.xpose.msra.mxu0 %v3793
        %4664 = vmatprep.subr.mxu0 0.0
        %4665 = vmatpush1.xpose.msra.mxu0 %v3791
        %4666 = vmatprep.subr.mxu0 0.0
        %4667 = vmatpush1.xpose.msra.mxu0 %v3789
        %4668 = vmatprep.subr.mxu0 0.0
        %4669 = vmatpush1.xpose.msra.mxu0 %v3787
        %4670 = vmatprep.subr.mxu0 0.0
        %4671 = vmatpush2.xpose.msra.mxu0 0.0
        %4672 = vmatprep.subr.mxu0 0.0
        %4673 = vmatpush2.xpose.msra.mxu0 0.0
        %4674 = vmatprep.subr.mxu0 0.0
        %4675 = vmatpush2.xpose.msra.mxu0 0.0
        %4676 = vmatprep.subr.mxu0 0.0
        %4677 = vmatpush2.xpose.msra.mxu0 0.0
        %4678 = vmatprep.subr.mxu0 0.0
        %4679 = vmatpush2.xpose.msra.mxu0 0.0
        %4680 = vmatprep.subr.mxu0 0.0
        %4681 = vmatpush2.xpose.msra.mxu0 0.0
        %4682 = vmatprep.subr.mxu0 0.0
        %4683 = vmatpush2.xpose.msra.mxu0 0.0
        %4684 = vmatprep.subr.mxu0 0.0
        %4685 = vmatpush2.xpose.msra.mxu0 0.0
        %4686 = vmatprep.subr.mxu0 0.0
        %4687 = vmatpush2.xpose.msra.mxu0 0.0
        %4688 = vmatprep.subr.mxu0 0.0
        %4689 = vmatpush2.xpose.msra.mxu0 0.0
        %4690 = vmatprep.subr.mxu0 0.0
        %4691 = vmatpush2.xpose.msra.mxu0 0.0
        %4692 = vmatprep.subr.mxu0 0.0
        %4693 = vmatpush2.xpose.msra.mxu0 0.0
        %4694 = vmatprep.subr.mxu0 0.0
        %4695 = vmatpush2.xpose.msra.mxu0 0.0
        %4696 = vmatprep.subr.mxu0 0.0
        %4697 = vmatpush2.xpose.msra.mxu0 0.0
        %4698 = vmatprep.subr.mxu0 0.0
        %4699 = vmatpush2.xpose.msra.mxu0 0.0
        %4700 = vmatprep.subr.mxu0 0.0
        %4701 = vmatpush2.xpose.msra.mxu0 0.0
        %4702 = vmatprep.mubr.f32.mxu0 0.0
        %4703 = vmatmul.mubr.f32.gmra.mxu0 %v4606
        %v4704 = vpop.f32.mrf.mxu0
        %v4705 = vadd.f32 0.0, %v4704
        %v4706 = vpop.f32.mrf.mxu0
        %4707 = vmatprep.mubr.f32.mxu0 0.0
        %4708 = vmatmul.mubr.f32.gmra.mxu0 %v4608
        %v4709 = vpop.f32.mrf.mxu0
        %v4710 = vadd.f32 0.0, %v4709
        %v4711 = vpop.f32.mrf.mxu0
        %4712 = vmatprep.mubr.f32.mxu0 0.0
        %4713 = vmatmul.mubr.f32.gmra.mxu0 %v4610
        %v4714 = vpop.f32.mrf.mxu0
        %v4715 = vadd.f32 0.0, %v4714
        %v4716 = vpop.f32.mrf.mxu0
        %4717 = vmatprep.mubr.f32.mxu0 0.0
        %4718 = vmatmul.mubr.f32.gmra.mxu0 %v4612
        %v4719 = vpop.f32.mrf.mxu0
        %v4720 = vadd.f32 0.0, %v4719
        %v4721 = vpop.f32.mrf.mxu0
        %4722 = vmatprep.mubr.f32.mxu0 0.0
        %4723 = vmatmul.mubr.f32.gmra.mxu0 %v4614
        %v4724 = vpop.f32.mrf.mxu0
        %v4725 = vadd.f32 0.0, %v4724
        %v4726 = vpop.f32.mrf.mxu0
        %4727 = vmatprep.mubr.f32.mxu0 0.0
        %4728 = vmatmul.mubr.f32.gmra.mxu0 %v4616
        %v4729 = vpop.f32.mrf.mxu0
        %v4730 = vadd.f32 0.0, %v4729
        %v4731 = vpop.f32.mrf.mxu0
        %4732 = vmatprep.mubr.f32.mxu0 0.0
        %4733 = vmatmul.mubr.f32.gmra.mxu0 %v4618
        %v4734 = vpop.f32.mrf.mxu0
        %v4735 = vadd.f32 0.0, %v4734
        %v4736 = vpop.f32.mrf.mxu0
        %4737 = vmatprep.mubr.f32.mxu0 0.0
        %4738 = vmatmul.mubr.f32.gmra.mxu0 %v4620
        %v4739 = vpop.f32.mrf.mxu0
        %v4740 = vadd.f32 0.0, %v4739
        %v4741 = vpop.f32.mrf.mxu0
        %4742 = vmatprep.mubr.f32.mxu0 0.0
        %4743 = vmatmul.mubr.f32.gmra.mxu0 %v4622
        %v4744 = vpop.f32.mrf.mxu0
        %v4745 = vadd.f32 0.0, %v4744
        %v4746 = vpop.f32.mrf.mxu0
        %4747 = vmatprep.mubr.f32.mxu0 0.0
        %4748 = vmatmul.mubr.f32.gmra.mxu0 %v4624
        %v4749 = vpop.f32.mrf.mxu0
        %v4750 = vadd.f32 0.0, %v4749
        %v4751 = vpop.f32.mrf.mxu0
        %4752 = vmatprep.mubr.f32.mxu0 0.0
        %4753 = vmatmul.mubr.f32.gmra.mxu0 %v4626
        %v4754 = vpop.f32.mrf.mxu0
        %v4755 = vadd.f32 0.0, %v4754
        %v4756 = vpop.f32.mrf.mxu0
        %4757 = vmatprep.mubr.f32.mxu0 0.0
        %4758 = vmatmul.mubr.f32.gmra.mxu0 %v4628
        %v4759 = vpop.f32.mrf.mxu0
        %v4760 = vadd.f32 0.0, %v4759
        %v4761 = vpop.f32.mrf.mxu0
        %4762 = vmatprep.mubr.f32.mxu0 0.0
        %4763 = vmatmul.mubr.f32.gmra.mxu0 %v4630
        %v4764 = vpop.f32.mrf.mxu0
        %v4765 = vadd.f32 0.0, %v4764
        %v4766 = vpop.f32.mrf.mxu0
        %4767 = vmatprep.mubr.f32.mxu0 0.0
        %4768 = vmatmul.mubr.f32.gmra.mxu0 %v4632
        %v4769 = vpop.f32.mrf.mxu0
        %v4770 = vadd.f32 0.0, %v4769
        %v4771 = vpop.f32.mrf.mxu0
        %4772 = vmatprep.mubr.f32.mxu0 0.0
        %4773 = vmatmul.mubr.f32.gmra.mxu0 %v4634
        %v4774 = vpop.f32.mrf.mxu0
        %v4775 = vadd.f32 0.0, %v4774
        %v4776 = vpop.f32.mrf.mxu0
        %4777 = vmatprep.mubr.f32.mxu0 0.0
        %4778 = vmatmul.mubr.f32.gmra.mxu0 %v4636
        %v4779 = vpop.f32.mrf.mxu0
        %v4780 = vadd.f32 0.0, %v4779
        %v4781 = vpop.f32.mrf.mxu0
        %4782 = vdwg.mxu0
        %v4783 = vmul.f32 %v4705, 0.125
        %v4784 = vmul.f32 %v4710, 0.125
        %v4785 = vmul.f32 %v4715, 0.125
        %v4786 = vmul.f32 %v4720, 0.125
        %v4787 = vmul.f32 %v4725, 0.125
        %v4788 = vmul.f32 %v4730, 0.125
        %v4789 = vmul.f32 %v4735, 0.125
        %v4790 = vmul.f32 %v4740, 0.125
        %v4791 = vmul.f32 %v4745, 0.125
        %v4792 = vmul.f32 %v4750, 0.125
        %v4793 = vmul.f32 %v4755, 0.125
        %v4794 = vmul.f32 %v4760, 0.125
        %v4795 = vmul.f32 %v4765, 0.125
        %v4796 = vmul.f32 %v4770, 0.125
        %v4797 = vmul.f32 %v4775, 0.125
        %v4798 = vmul.f32 %v4780, 0.125
        %v4799 = vsel %vm2212, %v4783, -1e+30
        %v4800 = vsel %vm2213, %v4784, -1e+30
        %v4801 = vsel %vm2214, %v4785, -1e+30
        %v4802 = vsel %vm2215, %v4786, -1e+30
        %v4803 = vsel %vm2216, %v4787, -1e+30
        %v4804 = vsel %vm2217, %v4788, -1e+30
        %v4805 = vsel %vm2218, %v4789, -1e+30
        %v4806 = vsel %vm2219, %v4790, -1e+30
        %v4807 = vsel %vm2220, %v4791, -1e+30
        %v4808 = vsel %vm2221, %v4792, -1e+30
        %v4809 = vsel %vm2222, %v4793, -1e+30
        %v4810 = vsel %vm2223, %v4794, -1e+30
        %v4811 = vsel %vm2224, %v4795, -1e+30
        %v4812 = vsel %vm2225, %v4796, -1e+30
        %v4813 = vsel %vm2226, %v4797, -1e+30
        %v4814 = vsel %vm2227, %v4798, -1e+30
        %4815 = vmax.xlane.f32.xlu0 %v4799
        %v4816 = vpop.xlane.xlu0 %4815
        %4817 = vmax.xlane.f32.xlu0 %v4800
        %v4818 = vpop.xlane.xlu0 %4817
        %4819 = vmax.xlane.f32.xlu0 %v4801
        %v4820 = vpop.xlane.xlu0 %4819
        %4821 = vmax.xlane.f32.xlu0 %v4802
        %v4822 = vpop.xlane.xlu0 %4821
        %4823 = vmax.xlane.f32.xlu0 %v4803
        %v4824 = vpop.xlane.xlu0 %4823
        %4825 = vmax.xlane.f32.xlu0 %v4804
        %v4826 = vpop.xlane.xlu0 %4825
        %4827 = vmax.xlane.f32.xlu0 %v4805
        %v4828 = vpop.xlane.xlu0 %4827
        %4829 = vmax.xlane.f32.xlu0 %v4806
        %v4830 = vpop.xlane.xlu0 %4829
        %4831 = vmax.xlane.f32.xlu0 %v4807
        %v4832 = vpop.xlane.xlu0 %4831
        %4833 = vmax.xlane.f32.xlu0 %v4808
        %v4834 = vpop.xlane.xlu0 %4833
        %4835 = vmax.xlane.f32.xlu0 %v4809
        %v4836 = vpop.xlane.xlu0 %4835
        %4837 = vmax.xlane.f32.xlu0 %v4810
        %v4838 = vpop.xlane.xlu0 %4837
        %4839 = vmax.xlane.f32.xlu0 %v4811
        %v4840 = vpop.xlane.xlu0 %4839
        %4841 = vmax.xlane.f32.xlu0 %v4812
        %v4842 = vpop.xlane.xlu0 %4841
        %4843 = vmax.xlane.f32.xlu0 %v4813
        %v4844 = vpop.xlane.xlu0 %4843
        %4845 = vmax.xlane.f32.xlu0 %v4814
        %v4846 = vpop.xlane.xlu0 %4845
        %v4847 = vsub.f32 %v4799, %v4816
        %v4848 = vsub.f32 %v4800, %v4818
        %v4849 = vsub.f32 %v4801, %v4820
        %v4850 = vsub.f32 %v4802, %v4822
        %v4851 = vsub.f32 %v4803, %v4824
        %v4852 = vsub.f32 %v4804, %v4826
        %v4853 = vsub.f32 %v4805, %v4828
        %v4854 = vsub.f32 %v4806, %v4830
        %v4855 = vsub.f32 %v4807, %v4832
        %v4856 = vsub.f32 %v4808, %v4834
        %v4857 = vsub.f32 %v4809, %v4836
        %v4858 = vsub.f32 %v4810, %v4838
        %v4859 = vsub.f32 %v4811, %v4840
        %v4860 = vsub.f32 %v4812, %v4842
        %v4861 = vsub.f32 %v4813, %v4844
        %v4862 = vsub.f32 %v4814, %v4846
        %v4863 = vmul.f32 %v4847, 1.442695
        %v4864 = vpow.pop %v4863
        %v4865 = vmul.f32 %v4848, 1.442695
        %v4866 = vpow.pop %v4865
        %v4867 = vmul.f32 %v4849, 1.442695
        %v4868 = vpow.pop %v4867
        %v4869 = vmul.f32 %v4850, 1.442695
        %v4870 = vpow.pop %v4869
        %v4871 = vmul.f32 %v4851, 1.442695
        %v4872 = vpow.pop %v4871
        %v4873 = vmul.f32 %v4852, 1.442695
        %v4874 = vpow.pop %v4873
        %v4875 = vmul.f32 %v4853, 1.442695
        %v4876 = vpow.pop %v4875
        %v4877 = vmul.f32 %v4854, 1.442695
        %v4878 = vpow.pop %v4877
        %v4879 = vmul.f32 %v4855, 1.442695
        %v4880 = vpow.pop %v4879
        %v4881 = vmul.f32 %v4856, 1.442695
        %v4882 = vpow.pop %v4881
        %v4883 = vmul.f32 %v4857, 1.442695
        %v4884 = vpow.pop %v4883
        %v4885 = vmul.f32 %v4858, 1.442695
        %v4886 = vpow.pop %v4885
        %v4887 = vmul.f32 %v4859, 1.442695
        %v4888 = vpow.pop %v4887
        %v4889 = vmul.f32 %v4860, 1.442695
        %v4890 = vpow.pop %v4889
        %v4891 = vmul.f32 %v4861, 1.442695
        %v4892 = vpow.pop %v4891
        %v4893 = vmul.f32 %v4862, 1.442695
        %v4894 = vpow.pop %v4893
        %4895 = vadd.xlane.f32.xlu0 %v4864
        %v4896 = vpop.xlane.xlu0 %4895
        %4897 = vadd.xlane.f32.xlu0 %v4866
        %v4898 = vpop.xlane.xlu0 %4897
        %4899 = vadd.xlane.f32.xlu0 %v4868
        %v4900 = vpop.xlane.xlu0 %4899
        %4901 = vadd.xlane.f32.xlu0 %v4870
        %v4902 = vpop.xlane.xlu0 %4901
        %4903 = vadd.xlane.f32.xlu0 %v4872
        %v4904 = vpop.xlane.xlu0 %4903
        %4905 = vadd.xlane.f32.xlu0 %v4874
        %v4906 = vpop.xlane.xlu0 %4905
        %4907 = vadd.xlane.f32.xlu0 %v4876
        %v4908 = vpop.xlane.xlu0 %4907
        %4909 = vadd.xlane.f32.xlu0 %v4878
        %v4910 = vpop.xlane.xlu0 %4909
        %4911 = vadd.xlane.f32.xlu0 %v4880
        %v4912 = vpop.xlane.xlu0 %4911
        %4913 = vadd.xlane.f32.xlu0 %v4882
        %v4914 = vpop.xlane.xlu0 %4913
        %4915 = vadd.xlane.f32.xlu0 %v4884
        %v4916 = vpop.xlane.xlu0 %4915
        %4917 = vadd.xlane.f32.xlu0 %v4886
        %v4918 = vpop.xlane.xlu0 %4917
        %4919 = vadd.xlane.f32.xlu0 %v4888
        %v4920 = vpop.xlane.xlu0 %4919
        %4921 = vadd.xlane.f32.xlu0 %v4890
        %v4922 = vpop.xlane.xlu0 %4921
        %4923 = vadd.xlane.f32.xlu0 %v4892
        %v4924 = vpop.xlane.xlu0 %4923
        %4925 = vadd.xlane.f32.xlu0 %v4894
        %v4926 = vpop.xlane.xlu0 %4925
        %v4927 = vrcp.pop %v4896
        %v4928 = vrcp.pop %v4898
        %v4929 = vrcp.pop %v4900
        %v4930 = vrcp.pop %v4902
        %v4931 = vrcp.pop %v4904
        %v4932 = vrcp.pop %v4906
        %v4933 = vrcp.pop %v4908
        %v4934 = vrcp.pop %v4910
        %v4935 = vrcp.pop %v4912
        %v4936 = vrcp.pop %v4914
        %v4937 = vrcp.pop %v4916
        %v4938 = vrcp.pop %v4918
        %v4939 = vrcp.pop %v4920
        %v4940 = vrcp.pop %v4922
        %v4941 = vrcp.pop %v4924
        %v4942 = vrcp.pop %v4926
        %v4943 = vmul.f32 %v4864, %v4927
        %v4944 = vmul.f32 %v4866, %v4928
        %v4945 = vmul.f32 %v4868, %v4929
        %v4946 = vmul.f32 %v4870, %v4930
        %v4947 = vmul.f32 %v4872, %v4931
        %v4948 = vmul.f32 %v4874, %v4932
        %v4949 = vmul.f32 %v4876, %v4933
        %v4950 = vmul.f32 %v4878, %v4934
        %v4951 = vmul.f32 %v4880, %v4935
        %v4952 = vmul.f32 %v4882, %v4936
        %v4953 = vmul.f32 %v4884, %v4937
        %v4954 = vmul.f32 %v4886, %v4938
        %v4955 = vmul.f32 %v4888, %v4939
        %v4956 = vmul.f32 %v4890, %v4940
        %v4957 = vmul.f32 %v4892, %v4941
        %v4958 = vmul.f32 %v4894, %v4942
        %4959 = vmatprep.subr.mxu0 0.0
        %4960 = vmatpush1.msra.mxu0 %v4187
        %4961 = vmatprep.subr.mxu0 0.0
        %4962 = vmatpush1.msra.mxu0 %v4185
        %4963 = vmatprep.subr.mxu0 0.0
        %4964 = vmatpush1.msra.mxu0 %v4183
        %4965 = vmatprep.subr.mxu0 0.0
        %4966 = vmatpush1.msra.mxu0 %v4181
        %4967 = vmatprep.subr.mxu0 0.0
        %4968 = vmatpush1.msra.mxu0 %v4179
        %4969 = vmatprep.subr.mxu0 0.0
        %4970 = vmatpush1.msra.mxu0 %v4177
        %4971 = vmatprep.subr.mxu0 0.0
        %4972 = vmatpush1.msra.mxu0 %v4175
        %4973 = vmatprep.subr.mxu0 0.0
        %4974 = vmatpush1.msra.mxu0 %v4173
        %4975 = vmatprep.subr.mxu0 0.0
        %4976 = vmatpush1.msra.mxu0 %v4171
        %4977 = vmatprep.subr.mxu0 0.0
        %4978 = vmatpush1.msra.mxu0 %v4169
        %4979 = vmatprep.subr.mxu0 0.0
        %4980 = vmatpush1.msra.mxu0 %v4167
        %4981 = vmatprep.subr.mxu0 0.0
        %4982 = vmatpush1.msra.mxu0 %v4165
        %4983 = vmatprep.subr.mxu0 0.0
        %4984 = vmatpush1.msra.mxu0 %v4163
        %4985 = vmatprep.subr.mxu0 0.0
        %4986 = vmatpush1.msra.mxu0 %v4161
        %4987 = vmatprep.subr.mxu0 0.0
        %4988 = vmatpush1.msra.mxu0 %v4159
        %4989 = vmatprep.subr.mxu0 0.0
        %4990 = vmatpush1.msra.mxu0 %v4157
        %4991 = vmatprep.subr.mxu0 0.0
        %4992 = vmatpush2.msra.mxu0 0.0
        %4993 = vmatprep.subr.mxu0 0.0
        %4994 = vmatpush2.msra.mxu0 0.0
        %4995 = vmatprep.subr.mxu0 0.0
        %4996 = vmatpush2.msra.mxu0 0.0
        %4997 = vmatprep.subr.mxu0 0.0
        %4998 = vmatpush2.msra.mxu0 0.0
        %4999 = vmatprep.subr.mxu0 0.0
        %5000 = vmatpush2.msra.mxu0 0.0
        %5001 = vmatprep.subr.mxu0 0.0
        %5002 = vmatpush2.msra.mxu0 0.0
        %5003 = vmatprep.subr.mxu0 0.0
        %5004 = vmatpush2.msra.mxu0 0.0
        %5005 = vmatprep.subr.mxu0 0.0
        %5006 = vmatpush2.msra.mxu0 0.0
        %5007 = vmatprep.subr.mxu0 0.0
        %5008 = vmatpush2.msra.mxu0 0.0
        %5009 = vmatprep.subr.mxu0 0.0
        %5010 = vmatpush2.msra.mxu0 0.0
        %5011 = vmatprep.subr.mxu0 0.0
        %5012 = vmatpush2.msra.mxu0 0.0
        %5013 = vmatprep.subr.mxu0 0.0
        %5014 = vmatpush2.msra.mxu0 0.0
        %5015 = vmatprep.subr.mxu0 0.0
        %5016 = vmatpush2.msra.mxu0 0.0
        %5017 = vmatprep.subr.mxu0 0.0
        %5018 = vmatpush2.msra.mxu0 0.0
        %5019 = vmatprep.subr.mxu0 0.0
        %5020 = vmatpush2.msra.mxu0 0.0
        %5021 = vmatprep.subr.mxu0 0.0
        %5022 = vmatpush2.msra.mxu0 0.0
        %5023 = vmatprep.mubr.f32.mxu0 0.0
        %5024 = vmatmul.mubr.f32.gmra.mxu0 %v4943
        %v5025 = vpop.f32.mrf.mxu0
        %v5026 = vadd.f32 0.0, %v5025
        %v5027 = vpop.f32.mrf.mxu0
        %5028 = vmatprep.mubr.f32.mxu0 0.0
        %5029 = vmatmul.mubr.f32.gmra.mxu0 %v4944
        %v5030 = vpop.f32.mrf.mxu0
        %v5031 = vadd.f32 0.0, %v5030
        %v5032 = vpop.f32.mrf.mxu0
        %5033 = vmatprep.mubr.f32.mxu0 0.0
        %5034 = vmatmul.mubr.f32.gmra.mxu0 %v4945
        %v5035 = vpop.f32.mrf.mxu0
        %v5036 = vadd.f32 0.0, %v5035
        %v5037 = vpop.f32.mrf.mxu0
        %5038 = vmatprep.mubr.f32.mxu0 0.0
        %5039 = vmatmul.mubr.f32.gmra.mxu0 %v4946
        %v5040 = vpop.f32.mrf.mxu0
        %v5041 = vadd.f32 0.0, %v5040
        %v5042 = vpop.f32.mrf.mxu0
        %5043 = vmatprep.mubr.f32.mxu0 0.0
        %5044 = vmatmul.mubr.f32.gmra.mxu0 %v4947
        %v5045 = vpop.f32.mrf.mxu0
        %v5046 = vadd.f32 0.0, %v5045
        %v5047 = vpop.f32.mrf.mxu0
        %5048 = vmatprep.mubr.f32.mxu0 0.0
        %5049 = vmatmul.mubr.f32.gmra.mxu0 %v4948
        %v5050 = vpop.f32.mrf.mxu0
        %v5051 = vadd.f32 0.0, %v5050
        %v5052 = vpop.f32.mrf.mxu0
        %5053 = vmatprep.mubr.f32.mxu0 0.0
        %5054 = vmatmul.mubr.f32.gmra.mxu0 %v4949
        %v5055 = vpop.f32.mrf.mxu0
        %v5056 = vadd.f32 0.0, %v5055
        %v5057 = vpop.f32.mrf.mxu0
        %5058 = vmatprep.mubr.f32.mxu0 0.0
        %5059 = vmatmul.mubr.f32.gmra.mxu0 %v4950
        %v5060 = vpop.f32.mrf.mxu0
        %v5061 = vadd.f32 0.0, %v5060
        %v5062 = vpop.f32.mrf.mxu0
        %5063 = vmatprep.mubr.f32.mxu0 0.0
        %5064 = vmatmul.mubr.f32.gmra.mxu0 %v4951
        %v5065 = vpop.f32.mrf.mxu0
        %v5066 = vadd.f32 0.0, %v5065
        %v5067 = vpop.f32.mrf.mxu0
        %5068 = vmatprep.mubr.f32.mxu0 0.0
        %5069 = vmatmul.mubr.f32.gmra.mxu0 %v4952
        %v5070 = vpop.f32.mrf.mxu0
        %v5071 = vadd.f32 0.0, %v5070
        %v5072 = vpop.f32.mrf.mxu0
        %5073 = vmatprep.mubr.f32.mxu0 0.0
        %5074 = vmatmul.mubr.f32.gmra.mxu0 %v4953
        %v5075 = vpop.f32.mrf.mxu0
        %v5076 = vadd.f32 0.0, %v5075
        %v5077 = vpop.f32.mrf.mxu0
        %5078 = vmatprep.mubr.f32.mxu0 0.0
        %5079 = vmatmul.mubr.f32.gmra.mxu0 %v4954
        %v5080 = vpop.f32.mrf.mxu0
        %v5081 = vadd.f32 0.0, %v5080
        %v5082 = vpop.f32.mrf.mxu0
        %5083 = vmatprep.mubr.f32.mxu0 0.0
        %5084 = vmatmul.mubr.f32.gmra.mxu0 %v4955
        %v5085 = vpop.f32.mrf.mxu0
        %v5086 = vadd.f32 0.0, %v5085
        %v5087 = vpop.f32.mrf.mxu0
        %5088 = vmatprep.mubr.f32.mxu0 0.0
        %5089 = vmatmul.mubr.f32.gmra.mxu0 %v4956
        %v5090 = vpop.f32.mrf.mxu0
        %v5091 = vadd.f32 0.0, %v5090
        %v5092 = vpop.f32.mrf.mxu0
        %5093 = vmatprep.mubr.f32.mxu0 0.0
        %5094 = vmatmul.mubr.f32.gmra.mxu0 %v4957
        %v5095 = vpop.f32.mrf.mxu0
        %v5096 = vadd.f32 0.0, %v5095
        %v5097 = vpop.f32.mrf.mxu0
        %5098 = vmatprep.mubr.f32.mxu0 0.0
        %5099 = vmatmul.mubr.f32.gmra.mxu0 %v4958
        %v5100 = vpop.f32.mrf.mxu0
        %v5101 = vadd.f32 0.0, %v5100
        %v5102 = vpop.f32.mrf.mxu0
        %5103 = vdwg.mxu0
        %v5104 = vpack.c.bf16 %v5031, %v5026
        %v5105 = vpack.c.bf16 %v5041, %v5036
        %v5106 = vpack.c.bf16 %v5051, %v5046
        %v5107 = vpack.c.bf16 %v5061, %v5056
        %v5108 = vpack.c.bf16 %v5071, %v5066
        %v5109 = vpack.c.bf16 %v5081, %v5076
        %v5110 = vpack.c.bf16 %v5091, %v5086
        %v5111 = vpack.c.bf16 %v5101, %v5096
        %v5112 = vld [vmem:[#allocation13 + $0xc0] sm:$0xff]
        %v5113 = vld [vmem:[#allocation13 + $0xc8] sm:$0xff]
        %v5114 = vld [vmem:[#allocation13 + $0xd0] sm:$0xff]
        %v5115 = vld [vmem:[#allocation13 + $0xd8] sm:$0xff]
        %v5116 = vld [vmem:[#allocation13 + $0xe0] sm:$0xff]
        %v5117 = vld [vmem:[#allocation13 + $0xe8] sm:$0xff]
        %v5118 = vld [vmem:[#allocation13 + $0xf0] sm:$0xff]
        %v5119 = vld [vmem:[#allocation13 + $0xf8] sm:$0xff]
        %v5128 = vunpack.c.l.b16 %v5112
        %v5129 = vunpack.c.h.b16 %v5112
        %v5130 = vunpack.c.l.b16 %v5113
        %v5131 = vunpack.c.h.b16 %v5113
        %v5132 = vunpack.c.l.b16 %v5114
        %v5133 = vunpack.c.h.b16 %v5114
        %v5134 = vunpack.c.l.b16 %v5115
        %v5135 = vunpack.c.h.b16 %v5115
        %v5136 = vunpack.c.l.b16 %v5116
        %v5137 = vunpack.c.h.b16 %v5116
        %v5138 = vunpack.c.l.b16 %v5117
        %v5139 = vunpack.c.h.b16 %v5117
        %v5140 = vunpack.c.l.b16 %v5118
        %v5141 = vunpack.c.h.b16 %v5118
        %v5142 = vunpack.c.l.b16 %v5119
        %v5143 = vunpack.c.h.b16 %v5119
        %v5144 = vpack.c.b16 %v5130, %v5128
        %v5145 = vpack.c.b16 %v5131, %v5129
        %v5146 = vpack.c.b16 %v5134, %v5132
        %v5147 = vpack.c.b16 %v5135, %v5133
        %v5148 = vpack.c.b16 %v5138, %v5136
        %v5149 = vpack.c.b16 %v5139, %v5137
        %v5150 = vpack.c.b16 %v5142, %v5140
        %v5151 = vpack.c.b16 %v5143, %v5141
        %v5161 = vsel %vm2228, %v5104, 0
        %v5164 = vsel %vm2228, %v5105, 0
        %v5167 = vsel %vm2228, %v5106, 0
        %v5170 = vsel %vm2228, %v5107, 0
        %v5173 = vsel %vm2228, %v5108, 0
        %v5176 = vsel %vm2228, %v5109, 0
        %v5179 = vsel %vm2228, %v5110, 0
        %v5182 = vsel %vm2228, %v5111, 0
        %5184 = vmatprep.subr.bf16.mxu0 0
        %5185 = vmatpush1.bf16.msra.mxu0 0
        %5186 = vmatprep.subr.bf16.mxu0 0
        %5187 = vmatpush1.bf16.msra.mxu0 0
        %5188 = vmatprep.subr.bf16.mxu0 0
        %5189 = vmatpush1.bf16.msra.mxu0 0
        %5190 = vmatprep.subr.bf16.mxu0 0
        %5191 = vmatpush1.bf16.msra.mxu0 0
        %5192 = vmatprep.subr.bf16.mxu0 %v5151
        %5193 = vmatpush1.bf16.msra.mxu0 %v5150
        %5194 = vmatprep.subr.bf16.mxu0 %v5149
        %5195 = vmatpush1.bf16.msra.mxu0 %v5148
        %5196 = vmatprep.subr.bf16.mxu0 %v5147
        %5197 = vmatpush1.bf16.msra.mxu0 %v5146
        %5198 = vmatprep.subr.bf16.mxu0 %v5145
        %5199 = vmatpush1.bf16.msra.mxu0 %v5144
        %5200 = vmatprep.subr.bf16.mxu0 0
        %5201 = vmatpush2.bf16.msra.mxu0 0
        %5202 = vmatprep.subr.bf16.mxu0 0
        %5203 = vmatpush2.bf16.msra.mxu0 0
        %5204 = vmatprep.subr.bf16.mxu0 0
        %5205 = vmatpush2.bf16.msra.mxu0 0
        %5206 = vmatprep.subr.bf16.mxu0 0
        %5207 = vmatpush2.bf16.msra.mxu0 0
        %5208 = vmatprep.subr.bf16.mxu0 0
        %5209 = vmatpush2.bf16.msra.mxu0 0
        %5210 = vmatprep.subr.bf16.mxu0 0
        %5211 = vmatpush2.bf16.msra.mxu0 0
        %5212 = vmatprep.subr.bf16.mxu0 0
        %5213 = vmatpush2.bf16.msra.mxu0 0
        %5214 = vmatprep.subr.bf16.mxu0 0
        %5215 = vmatpush2.bf16.msra.mxu0 0
        %5216 = vmatprep.mubr.bf16.mxu0 0
        %5217 = vmatmul.mubr.bf16.gmra.mxu0 %v5161
        %v5218 = vpop.f32.mrf.mxu0
        %v5219 = vadd.f32 0.0, %v5218
        %v5220 = vpop.f32.mrf.mxu0
        %v5221 = vadd.f32 0.0, %v5220
        %v5222 = vpop.f32.mrf.mxu0
        %v5223 = vadd.f32 0.0, %v5222
        %v5224 = vpop.f32.mrf.mxu0
        %v5225 = vadd.f32 0.0, %v5224
        %5226 = vmatprep.mubr.bf16.mxu0 0
        %5227 = vmatmul.mubr.bf16.gmra.mxu0 %v5164
        %v5228 = vpop.f32.mrf.mxu0
        %v5229 = vadd.f32 0.0, %v5228
        %v5230 = vpop.f32.mrf.mxu0
        %v5231 = vadd.f32 0.0, %v5230
        %v5232 = vpop.f32.mrf.mxu0
        %v5233 = vadd.f32 0.0, %v5232
        %v5234 = vpop.f32.mrf.mxu0
        %v5235 = vadd.f32 0.0, %v5234
        %5236 = vmatprep.mubr.bf16.mxu0 0
        %5237 = vmatmul.mubr.bf16.gmra.mxu0 %v5167
        %v5238 = vpop.f32.mrf.mxu0
        %v5239 = vadd.f32 0.0, %v5238
        %v5240 = vpop.f32.mrf.mxu0
        %v5241 = vadd.f32 0.0, %v5240
        %v5242 = vpop.f32.mrf.mxu0
        %v5243 = vadd.f32 0.0, %v5242
        %v5244 = vpop.f32.mrf.mxu0
        %v5245 = vadd.f32 0.0, %v5244
        %5246 = vmatprep.mubr.bf16.mxu0 0
        %5247 = vmatmul.mubr.bf16.gmra.mxu0 %v5170
        %v5248 = vpop.f32.mrf.mxu0
        %v5249 = vadd.f32 0.0, %v5248
        %v5250 = vpop.f32.mrf.mxu0
        %v5251 = vadd.f32 0.0, %v5250
        %v5252 = vpop.f32.mrf.mxu0
        %v5253 = vadd.f32 0.0, %v5252
        %v5254 = vpop.f32.mrf.mxu0
        %v5255 = vadd.f32 0.0, %v5254
        %5256 = vmatprep.mubr.bf16.mxu0 0
        %5257 = vmatmul.mubr.bf16.gmra.mxu0 %v5173
        %v5258 = vpop.f32.mrf.mxu0
        %v5259 = vadd.f32 0.0, %v5258
        %v5260 = vpop.f32.mrf.mxu0
        %v5261 = vadd.f32 0.0, %v5260
        %v5262 = vpop.f32.mrf.mxu0
        %v5263 = vadd.f32 0.0, %v5262
        %v5264 = vpop.f32.mrf.mxu0
        %v5265 = vadd.f32 0.0, %v5264
        %5266 = vmatprep.mubr.bf16.mxu0 0
        %5267 = vmatmul.mubr.bf16.gmra.mxu0 %v5176
        %v5268 = vpop.f32.mrf.mxu0
        %v5269 = vadd.f32 0.0, %v5268
        %v5270 = vpop.f32.mrf.mxu0
        %v5271 = vadd.f32 0.0, %v5270
        %v5272 = vpop.f32.mrf.mxu0
        %v5273 = vadd.f32 0.0, %v5272
        %v5274 = vpop.f32.mrf.mxu0
        %v5275 = vadd.f32 0.0, %v5274
        %5276 = vmatprep.mubr.bf16.mxu0 0
        %5277 = vmatmul.mubr.bf16.gmra.mxu0 %v5179
        %v5278 = vpop.f32.mrf.mxu0
        %v5279 = vadd.f32 0.0, %v5278
        %v5280 = vpop.f32.mrf.mxu0
        %v5281 = vadd.f32 0.0, %v5280
        %v5282 = vpop.f32.mrf.mxu0
        %v5283 = vadd.f32 0.0, %v5282
        %v5284 = vpop.f32.mrf.mxu0
        %v5285 = vadd.f32 0.0, %v5284
        %5286 = vmatprep.mubr.bf16.mxu0 0
        %5287 = vmatmul.mubr.bf16.gmra.mxu0 %v5182
        %v5288 = vpop.f32.mrf.mxu0
        %v5289 = vadd.f32 0.0, %v5288
        %v5290 = vpop.f32.mrf.mxu0
        %v5291 = vadd.f32 0.0, %v5290
        %v5292 = vpop.f32.mrf.mxu0
        %v5293 = vadd.f32 0.0, %v5292
        %v5294 = vpop.f32.mrf.mxu0
        %v5295 = vadd.f32 0.0, %v5294
        %5296 = vdwg.mxu0
        %v5297 = vadd.f32 %v4542, %v5219
        %v5298 = vadd.f32 %v4543, %v5221
        %v5299 = vadd.f32 %v4544, %v5223
        %v5300 = vadd.f32 %v4545, %v5225
        %v5301 = vadd.f32 %v4546, %v5229
        %v5302 = vadd.f32 %v4547, %v5231
        %v5303 = vadd.f32 %v4548, %v5233
        %v5304 = vadd.f32 %v4549, %v5235
        %v5305 = vadd.f32 %v4550, %v5239
        %v5306 = vadd.f32 %v4551, %v5241
        %v5307 = vadd.f32 %v4552, %v5243
        %v5308 = vadd.f32 %v4553, %v5245
        %v5309 = vadd.f32 %v4554, %v5249
        %v5310 = vadd.f32 %v4555, %v5251
        %v5311 = vadd.f32 %v4556, %v5253
        %v5312 = vadd.f32 %v4557, %v5255
        %v5313 = vadd.f32 %v4558, %v5259
        %v5314 = vadd.f32 %v4559, %v5261
        %v5315 = vadd.f32 %v4560, %v5263
        %v5316 = vadd.f32 %v4561, %v5265
        %v5317 = vadd.f32 %v4562, %v5269
        %v5318 = vadd.f32 %v4563, %v5271
        %v5319 = vadd.f32 %v4564, %v5273
        %v5320 = vadd.f32 %v4565, %v5275
        %v5321 = vadd.f32 %v4566, %v5279
        %v5322 = vadd.f32 %v4567, %v5281
        %v5323 = vadd.f32 %v4568, %v5283
        %v5324 = vadd.f32 %v4569, %v5285
        %v5325 = vadd.f32 %v4570, %v5289
        %v5326 = vadd.f32 %v4571, %v5291
        %v5327 = vadd.f32 %v4572, %v5293
        %v5328 = vadd.f32 %v4573, %v5295
        %v5329 = vadd.f32 %v5297, %v560
        %v5330 = vadd.f32 %v5298, %v561
        %v5331 = vadd.f32 %v5299, %v562
        %v5332 = vadd.f32 %v5300, %v563
        %v5333 = vadd.f32 %v5301, %v564
        %v5334 = vadd.f32 %v5302, %v565
        %v5335 = vadd.f32 %v5303, %v566
        %v5336 = vadd.f32 %v5304, %v567
        %v5337 = vadd.f32 %v5305, %v568
        %v5338 = vadd.f32 %v5306, %v569
        %v5339 = vadd.f32 %v5307, %v570
        %v5340 = vadd.f32 %v5308, %v571
        %v5341 = vadd.f32 %v5309, %v572
        %v5342 = vadd.f32 %v5310, %v573
        %v5343 = vadd.f32 %v5311, %v574
        %v5344 = vadd.f32 %v5312, %v575
        %v5345 = vadd.f32 %v5313, %v576
        %v5346 = vadd.f32 %v5314, %v577
        %v5347 = vadd.f32 %v5315, %v578
        %v5348 = vadd.f32 %v5316, %v579
        %v5349 = vadd.f32 %v5317, %v580
        %v5350 = vadd.f32 %v5318, %v581
        %v5351 = vadd.f32 %v5319, %v582
        %v5352 = vadd.f32 %v5320, %v583
        %v5353 = vadd.f32 %v5321, %v584
        %v5354 = vadd.f32 %v5322, %v585
        %v5355 = vadd.f32 %v5323, %v586
        %v5356 = vadd.f32 %v5324, %v587
        %v5357 = vadd.f32 %v5325, %v588
        %v5358 = vadd.f32 %v5326, %v589
        %v5359 = vadd.f32 %v5327, %v590
        %v5360 = vadd.f32 %v5328, %v591
        %5361 = vst [vmem:[%s558] sm:$0xff] %v5329
        %5362 = vst [vmem:[%s558 + $0x8] sm:$0xff] %v5330
        %5363 = vst [vmem:[%s558 + $0x10] sm:$0xff] %v5331
        %5364 = vst [vmem:[%s558 + $0x18] sm:$0xff] %v5332
        %5365 = vst [vmem:[%s558 + $0x20] sm:$0xff] %v5333
        %5366 = vst [vmem:[%s558 + $0x28] sm:$0xff] %v5334
        %5367 = vst [vmem:[%s558 + $0x30] sm:$0xff] %v5335
        %5368 = vst [vmem:[%s558 + $0x38] sm:$0xff] %v5336
        %5369 = vst [vmem:[%s558 + $0x40] sm:$0xff] %v5337
        %5370 = vst [vmem:[%s558 + $0x48] sm:$0xff] %v5338
        %5371 = vst [vmem:[%s558 + $0x50] sm:$0xff] %v5339
        %5372 = vst [vmem:[%s558 + $0x58] sm:$0xff] %v5340
        %5373 = vst [vmem:[%s558 + $0x60] sm:$0xff] %v5341
        %5374 = vst [vmem:[%s558 + $0x68] sm:$0xff] %v5342
        %5375 = vst [vmem:[%s558 + $0x70] sm:$0xff] %v5343
        %5376 = vst [vmem:[%s558 + $0x78] sm:$0xff] %v5344
        %5377 = vst [vmem:[%s558 + $0x80] sm:$0xff] %v5345
        %5378 = vst [vmem:[%s558 + $0x88] sm:$0xff] %v5346
        %5379 = vst [vmem:[%s558 + $0x90] sm:$0xff] %v5347
        %5380 = vst [vmem:[%s558 + $0x98] sm:$0xff] %v5348
        %5381 = vst [vmem:[%s558 + $0xa0] sm:$0xff] %v5349
        %5382 = vst [vmem:[%s558 + $0xa8] sm:$0xff] %v5350
        %5383 = vst [vmem:[%s558 + $0xb0] sm:$0xff] %v5351
        %5384 = vst [vmem:[%s558 + $0xb8] sm:$0xff] %v5352
        %5385 = vst [vmem:[%s558 + $0xc0] sm:$0xff] %v5353
        %5386 = vst [vmem:[%s558 + $0xc8] sm:$0xff] %v5354
        %5387 = vst [vmem:[%s558 + $0xd0] sm:$0xff] %v5355
        %5388 = vst [vmem:[%s558 + $0xd8] sm:$0xff] %v5356
        %5389 = vst [vmem:[%s558 + $0xe0] sm:$0xff] %v5357
        %5390 = vst [vmem:[%s558 + $0xe8] sm:$0xff] %v5358
        %5391 = vst [vmem:[%s558 + $0xf0] sm:$0xff] %v5359
        %5392 = vst [vmem:[%s558 + $0xf8] sm:$0xff] %v5360
        %v5393 = vmul.f32 %v5329, %v5329
        %v5394 = vmul.f32 %v5330, %v5330
        %v5395 = vmul.f32 %v5331, %v5331
        %v5396 = vmul.f32 %v5332, %v5332
        %v5397 = vmul.f32 %v5333, %v5333
        %v5398 = vmul.f32 %v5334, %v5334
        %v5399 = vmul.f32 %v5335, %v5335
        %v5400 = vmul.f32 %v5336, %v5336
        %v5401 = vmul.f32 %v5337, %v5337
        %v5402 = vmul.f32 %v5338, %v5338
        %v5403 = vmul.f32 %v5339, %v5339
        %v5404 = vmul.f32 %v5340, %v5340
        %v5405 = vmul.f32 %v5341, %v5341
        %v5406 = vmul.f32 %v5342, %v5342
        %v5407 = vmul.f32 %v5343, %v5343
        %v5408 = vmul.f32 %v5344, %v5344
        %v5409 = vmul.f32 %v5345, %v5345
        %v5410 = vmul.f32 %v5346, %v5346
        %v5411 = vmul.f32 %v5347, %v5347
        %v5412 = vmul.f32 %v5348, %v5348
        %v5413 = vmul.f32 %v5349, %v5349
        %v5414 = vmul.f32 %v5350, %v5350
        %v5415 = vmul.f32 %v5351, %v5351
        %v5416 = vmul.f32 %v5352, %v5352
        %v5417 = vmul.f32 %v5353, %v5353
        %v5418 = vmul.f32 %v5354, %v5354
        %v5419 = vmul.f32 %v5355, %v5355
        %v5420 = vmul.f32 %v5356, %v5356
        %v5421 = vmul.f32 %v5357, %v5357
        %v5422 = vmul.f32 %v5358, %v5358
        %v5423 = vmul.f32 %v5359, %v5359
        %v5424 = vmul.f32 %v5360, %v5360
        %v5425 = vadd.f32 %v5393, %v5394
        %5426 = vadd.xlane.f32.xlu0 %v5425
        %v5427 = vpop.xlane.xlu0 %5426
        %v5428 = vadd.f32 %v5395, %v5396
        %5429 = vadd.xlane.f32.xlu0 %v5428
        %v5430 = vpop.xlane.xlu0 %5429
        %v5431 = vadd.f32 %v5397, %v5398
        %5432 = vadd.xlane.f32.xlu0 %v5431
        %v5433 = vpop.xlane.xlu0 %5432
        %v5434 = vadd.f32 %v5399, %v5400
        %5435 = vadd.xlane.f32.xlu0 %v5434
        %v5436 = vpop.xlane.xlu0 %5435
        %v5437 = vadd.f32 %v5401, %v5402
        %5438 = vadd.xlane.f32.xlu0 %v5437
        %v5439 = vpop.xlane.xlu0 %5438
        %v5440 = vadd.f32 %v5403, %v5404
        %5441 = vadd.xlane.f32.xlu0 %v5440
        %v5442 = vpop.xlane.xlu0 %5441
        %v5443 = vadd.f32 %v5405, %v5406
        %5444 = vadd.xlane.f32.xlu0 %v5443
        %v5445 = vpop.xlane.xlu0 %5444
        %v5446 = vadd.f32 %v5407, %v5408
        %5447 = vadd.xlane.f32.xlu0 %v5446
        %v5448 = vpop.xlane.xlu0 %5447
        %v5449 = vadd.f32 %v5409, %v5410
        %5450 = vadd.xlane.f32.xlu0 %v5449
        %v5451 = vpop.xlane.xlu0 %5450
        %v5452 = vadd.f32 %v5411, %v5412
        %5453 = vadd.xlane.f32.xlu0 %v5452
        %v5454 = vpop.xlane.xlu0 %5453
        %v5455 = vadd.f32 %v5413, %v5414
        %5456 = vadd.xlane.f32.xlu0 %v5455
        %v5457 = vpop.xlane.xlu0 %5456
        %v5458 = vadd.f32 %v5415, %v5416
        %5459 = vadd.xlane.f32.xlu0 %v5458
        %v5460 = vpop.xlane.xlu0 %5459
        %v5461 = vadd.f32 %v5417, %v5418
        %5462 = vadd.xlane.f32.xlu0 %v5461
        %v5463 = vpop.xlane.xlu0 %5462
        %v5464 = vadd.f32 %v5419, %v5420
        %5465 = vadd.xlane.f32.xlu0 %v5464
        %v5466 = vpop.xlane.xlu0 %5465
        %v5467 = vadd.f32 %v5421, %v5422
        %5468 = vadd.xlane.f32.xlu0 %v5467
        %v5469 = vpop.xlane.xlu0 %5468
        %v5470 = vadd.f32 %v5423, %v5424
        %5471 = vadd.xlane.f32.xlu0 %v5470
        %v5472 = vpop.xlane.xlu0 %5471
        %v5473 = vmul.f32 %v5427, %v672
        %v5474 = vmul.f32 %v5430, %v672
        %v5475 = vmul.f32 %v5433, %v672
        %v5476 = vmul.f32 %v5436, %v672
        %v5477 = vmul.f32 %v5439, %v672
        %v5478 = vmul.f32 %v5442, %v672
        %v5479 = vmul.f32 %v5445, %v672
        %v5480 = vmul.f32 %v5448, %v672
        %v5481 = vmul.f32 %v5451, %v672
        %v5482 = vmul.f32 %v5454, %v672
        %v5483 = vmul.f32 %v5457, %v672
        %v5484 = vmul.f32 %v5460, %v672
        %v5485 = vmul.f32 %v5463, %v672
        %v5486 = vmul.f32 %v5466, %v672
        %v5487 = vmul.f32 %v5469, %v672
        %v5488 = vmul.f32 %v5472, %v672
        %v5489 = vadd.f32 %v5473, 1e-05
        %v5490 = vadd.f32 %v5474, 1e-05
        %v5491 = vadd.f32 %v5475, 1e-05
        %v5492 = vadd.f32 %v5476, 1e-05
        %v5493 = vadd.f32 %v5477, 1e-05
        %v5494 = vadd.f32 %v5478, 1e-05
        %v5495 = vadd.f32 %v5479, 1e-05
        %v5496 = vadd.f32 %v5480, 1e-05
        %v5497 = vadd.f32 %v5481, 1e-05
        %v5498 = vadd.f32 %v5482, 1e-05
        %v5499 = vadd.f32 %v5483, 1e-05
        %v5500 = vadd.f32 %v5484, 1e-05
        %v5501 = vadd.f32 %v5485, 1e-05
        %v5502 = vadd.f32 %v5486, 1e-05
        %v5503 = vadd.f32 %v5487, 1e-05
        %v5504 = vadd.f32 %v5488, 1e-05
        %v5505 = vrsqrt.pop %v5489
        %v5506 = vrsqrt.pop %v5490
        %v5507 = vrsqrt.pop %v5491
        %v5508 = vrsqrt.pop %v5492
        %v5509 = vrsqrt.pop %v5493
        %v5510 = vrsqrt.pop %v5494
        %v5511 = vrsqrt.pop %v5495
        %v5512 = vrsqrt.pop %v5496
        %v5513 = vrsqrt.pop %v5497
        %v5514 = vrsqrt.pop %v5498
        %v5515 = vrsqrt.pop %v5499
        %v5516 = vrsqrt.pop %v5500
        %v5517 = vrsqrt.pop %v5501
        %v5518 = vrsqrt.pop %v5502
        %v5519 = vrsqrt.pop %v5503
        %v5520 = vrsqrt.pop %v5504
        %v5521 = vmul.f32 %v5329, %v5505
        %v5522 = vmul.f32 %v5330, %v5505
        %v5523 = vmul.f32 %v5331, %v5506
        %v5524 = vmul.f32 %v5332, %v5506
        %v5525 = vmul.f32 %v5333, %v5507
        %v5526 = vmul.f32 %v5334, %v5507
        %v5527 = vmul.f32 %v5335, %v5508
        %v5528 = vmul.f32 %v5336, %v5508
        %v5529 = vmul.f32 %v5337, %v5509
        %v5530 = vmul.f32 %v5338, %v5509
        %v5531 = vmul.f32 %v5339, %v5510
        %v5532 = vmul.f32 %v5340, %v5510
        %v5533 = vmul.f32 %v5341, %v5511
        %v5534 = vmul.f32 %v5342, %v5511
        %v5535 = vmul.f32 %v5343, %v5512
        %v5536 = vmul.f32 %v5344, %v5512
        %v5537 = vmul.f32 %v5345, %v5513
        %v5538 = vmul.f32 %v5346, %v5513
        %v5539 = vmul.f32 %v5347, %v5514
        %v5540 = vmul.f32 %v5348, %v5514
        %v5541 = vmul.f32 %v5349, %v5515
        %v5542 = vmul.f32 %v5350, %v5515
        %v5543 = vmul.f32 %v5351, %v5516
        %v5544 = vmul.f32 %v5352, %v5516
        %v5545 = vmul.f32 %v5353, %v5517
        %v5546 = vmul.f32 %v5354, %v5517
        %v5547 = vmul.f32 %v5355, %v5518
        %v5548 = vmul.f32 %v5356, %v5518
        %v5549 = vmul.f32 %v5357, %v5519
        %v5550 = vmul.f32 %v5358, %v5519
        %v5551 = vmul.f32 %v5359, %v5520
        %v5552 = vmul.f32 %v5360, %v5520
        %v5553 = vld [vmem:[%s6] sm:$0x3]
        %v5555 = vlaneseq
        %v5556 = vshrl.u32 %v5555, 7
        %v5557 = vsub.s32 0, %v5556
        %v5558 = vrot.slane %v5553, %v5557
        %v5559 = vlaneseq
        %v5560 = vshrl.u32 %v5559, 7
        %v5561 = vsub.s32 1, %v5560
        %v5562 = vrot.slane %v5553, %v5561
        %v5565 = vmul.f32 %v5521, %v5558
        %v5566 = vmul.f32 %v5522, %v5562
        %v5567 = vmul.f32 %v5523, %v5558
        %v5568 = vmul.f32 %v5524, %v5562
        %v5569 = vmul.f32 %v5525, %v5558
        %v5570 = vmul.f32 %v5526, %v5562
        %v5571 = vmul.f32 %v5527, %v5558
        %v5572 = vmul.f32 %v5528, %v5562
        %v5573 = vmul.f32 %v5529, %v5558
        %v5574 = vmul.f32 %v5530, %v5562
        %v5575 = vmul.f32 %v5531, %v5558
        %v5576 = vmul.f32 %v5532, %v5562
        %v5577 = vmul.f32 %v5533, %v5558
        %v5578 = vmul.f32 %v5534, %v5562
        %v5579 = vmul.f32 %v5535, %v5558
        %v5580 = vmul.f32 %v5536, %v5562
        %v5581 = vmul.f32 %v5537, %v5558
        %v5582 = vmul.f32 %v5538, %v5562
        %v5583 = vmul.f32 %v5539, %v5558
        %v5584 = vmul.f32 %v5540, %v5562
        %v5585 = vmul.f32 %v5541, %v5558
        %v5586 = vmul.f32 %v5542, %v5562
        %v5587 = vmul.f32 %v5543, %v5558
        %v5588 = vmul.f32 %v5544, %v5562
        %v5589 = vmul.f32 %v5545, %v5558
        %v5590 = vmul.f32 %v5546, %v5562
        %v5591 = vmul.f32 %v5547, %v5558
        %v5592 = vmul.f32 %v5548, %v5562
        %v5593 = vmul.f32 %v5549, %v5558
        %v5594 = vmul.f32 %v5550, %v5562
        %v5595 = vmul.f32 %v5551, %v5558
        %v5596 = vmul.f32 %v5552, %v5562
        %v5597 = vpack.c.bf16 %v5567, %v5565
        %v5598 = vpack.c.bf16 %v5568, %v5566
        %v5599 = vpack.c.bf16 %v5571, %v5569
        %v5600 = vpack.c.bf16 %v5572, %v5570
        %v5601 = vpack.c.bf16 %v5575, %v5573
        %v5602 = vpack.c.bf16 %v5576, %v5574
        %v5603 = vpack.c.bf16 %v5579, %v5577
        %v5604 = vpack.c.bf16 %v5580, %v5578
        %v5605 = vpack.c.bf16 %v5583, %v5581
        %v5606 = vpack.c.bf16 %v5584, %v5582
        %v5607 = vpack.c.bf16 %v5587, %v5585
        %v5608 = vpack.c.bf16 %v5588, %v5586
        %v5609 = vpack.c.bf16 %v5591, %v5589
        %v5610 = vpack.c.bf16 %v5592, %v5590
        %v5611 = vpack.c.bf16 %v5595, %v5593
        %v5612 = vpack.c.bf16 %v5596, %v5594
        %v5613 = vld [vmem:[#allocation14] sm:$0xff]
        %v5614 = vld [vmem:[#allocation14 + $0x8] sm:$0xff]
        %v5615 = vld [vmem:[#allocation14 + $0x10] sm:$0xff]
        %v5616 = vld [vmem:[#allocation14 + $0x18] sm:$0xff]
        %v5617 = vld [vmem:[#allocation14 + $0x20] sm:$0xff]
        %v5618 = vld [vmem:[#allocation14 + $0x28] sm:$0xff]
        %v5619 = vld [vmem:[#allocation14 + $0x30] sm:$0xff]
        %v5620 = vld [vmem:[#allocation14 + $0x38] sm:$0xff]
        %v5621 = vld [vmem:[#allocation14 + $0x40] sm:$0xff]
        %v5622 = vld [vmem:[#allocation14 + $0x48] sm:$0xff]
        %v5623 = vld [vmem:[#allocation14 + $0x50] sm:$0xff]
        %v5624 = vld [vmem:[#allocation14 + $0x58] sm:$0xff]
        %v5625 = vld [vmem:[#allocation14 + $0x60] sm:$0xff]
        %v5626 = vld [vmem:[#allocation14 + $0x68] sm:$0xff]
        %v5627 = vld [vmem:[#allocation14 + $0x70] sm:$0xff]
        %v5628 = vld [vmem:[#allocation14 + $0x78] sm:$0xff]
        %v5629 = vld [vmem:[#allocation14 + $0x80] sm:$0xff]
        %v5630 = vld [vmem:[#allocation14 + $0x88] sm:$0xff]
        %v5631 = vld [vmem:[#allocation14 + $0x90] sm:$0xff]
        %v5632 = vld [vmem:[#allocation14 + $0x98] sm:$0xff]
        %v5633 = vld [vmem:[#allocation14 + $0xa0] sm:$0xff]
        %v5634 = vld [vmem:[#allocation14 + $0xa8] sm:$0xff]
        %v5635 = vld [vmem:[#allocation14 + $0xb0] sm:$0xff]
        %v5636 = vld [vmem:[#allocation14 + $0xb8] sm:$0xff]
        %v5637 = vld [vmem:[#allocation14 + $0xc0] sm:$0xff]
        %v5638 = vld [vmem:[#allocation14 + $0xc8] sm:$0xff]
        %v5639 = vld [vmem:[#allocation14 + $0xd0] sm:$0xff]
        %v5640 = vld [vmem:[#allocation14 + $0xd8] sm:$0xff]
        %v5641 = vld [vmem:[#allocation14 + $0xe0] sm:$0xff]
        %v5642 = vld [vmem:[#allocation14 + $0xe8] sm:$0xff]
        %v5643 = vld [vmem:[#allocation14 + $0xf0] sm:$0xff]
        %v5644 = vld [vmem:[#allocation14 + $0xf8] sm:$0xff]
        %v5645 = vld [vmem:[#allocation14 + $0x100] sm:$0xff]
        %v5646 = vld [vmem:[#allocation14 + $0x108] sm:$0xff]
        %v5647 = vld [vmem:[#allocation14 + $0x110] sm:$0xff]
        %v5648 = vld [vmem:[#allocation14 + $0x118] sm:$0xff]
        %v5649 = vld [vmem:[#allocation14 + $0x120] sm:$0xff]
        %v5650 = vld [vmem:[#allocation14 + $0x128] sm:$0xff]
        %v5651 = vld [vmem:[#allocation14 + $0x130] sm:$0xff]
        %v5652 = vld [vmem:[#allocation14 + $0x138] sm:$0xff]
        %v5653 = vld [vmem:[#allocation14 + $0x140] sm:$0xff]
        %v5654 = vld [vmem:[#allocation14 + $0x148] sm:$0xff]
        %v5655 = vld [vmem:[#allocation14 + $0x150] sm:$0xff]
        %v5656 = vld [vmem:[#allocation14 + $0x158] sm:$0xff]
        %v5657 = vld [vmem:[#allocation14 + $0x160] sm:$0xff]
        %v5658 = vld [vmem:[#allocation14 + $0x168] sm:$0xff]
        %v5659 = vld [vmem:[#allocation14 + $0x170] sm:$0xff]
        %v5660 = vld [vmem:[#allocation14 + $0x178] sm:$0xff]
        %v5661 = vld [vmem:[#allocation14 + $0x180] sm:$0xff]
        %v5662 = vld [vmem:[#allocation14 + $0x188] sm:$0xff]
        %v5663 = vld [vmem:[#allocation14 + $0x190] sm:$0xff]
        %v5664 = vld [vmem:[#allocation14 + $0x198] sm:$0xff]
        %v5665 = vld [vmem:[#allocation14 + $0x1a0] sm:$0xff]
        %v5666 = vld [vmem:[#allocation14 + $0x1a8] sm:$0xff]
        %v5667 = vld [vmem:[#allocation14 + $0x1b0] sm:$0xff]
        %v5668 = vld [vmem:[#allocation14 + $0x1b8] sm:$0xff]
        %v5669 = vld [vmem:[#allocation14 + $0x1c0] sm:$0xff]
        %v5670 = vld [vmem:[#allocation14 + $0x1c8] sm:$0xff]
        %v5671 = vld [vmem:[#allocation14 + $0x1d0] sm:$0xff]
        %v5672 = vld [vmem:[#allocation14 + $0x1d8] sm:$0xff]
        %v5673 = vld [vmem:[#allocation14 + $0x1e0] sm:$0xff]
        %v5674 = vld [vmem:[#allocation14 + $0x1e8] sm:$0xff]
        %v5675 = vld [vmem:[#allocation14 + $0x1f0] sm:$0xff]
        %v5676 = vld [vmem:[#allocation14 + $0x1f8] sm:$0xff]
        %v5677 = vld [vmem:[#allocation14 + $0x200] sm:$0xff]
        %v5678 = vld [vmem:[#allocation14 + $0x208] sm:$0xff]
        %v5679 = vld [vmem:[#allocation14 + $0x210] sm:$0xff]
        %v5680 = vld [vmem:[#allocation14 + $0x218] sm:$0xff]
        %v5681 = vld [vmem:[#allocation14 + $0x220] sm:$0xff]
        %v5682 = vld [vmem:[#allocation14 + $0x228] sm:$0xff]
        %v5683 = vld [vmem:[#allocation14 + $0x230] sm:$0xff]
        %v5684 = vld [vmem:[#allocation14 + $0x238] sm:$0xff]
        %v5685 = vld [vmem:[#allocation14 + $0x240] sm:$0xff]
        %v5686 = vld [vmem:[#allocation14 + $0x248] sm:$0xff]
        %v5687 = vld [vmem:[#allocation14 + $0x250] sm:$0xff]
        %v5688 = vld [vmem:[#allocation14 + $0x258] sm:$0xff]
        %v5689 = vld [vmem:[#allocation14 + $0x260] sm:$0xff]
        %v5690 = vld [vmem:[#allocation14 + $0x268] sm:$0xff]
        %v5691 = vld [vmem:[#allocation14 + $0x270] sm:$0xff]
        %v5692 = vld [vmem:[#allocation14 + $0x278] sm:$0xff]
        %v5693 = vld [vmem:[#allocation14 + $0x280] sm:$0xff]
        %v5694 = vld [vmem:[#allocation14 + $0x288] sm:$0xff]
        %v5695 = vld [vmem:[#allocation14 + $0x290] sm:$0xff]
        %v5696 = vld [vmem:[#allocation14 + $0x298] sm:$0xff]
        %v5697 = vld [vmem:[#allocation14 + $0x2a0] sm:$0xff]
        %v5698 = vld [vmem:[#allocation14 + $0x2a8] sm:$0xff]
        %v5699 = vld [vmem:[#allocation14 + $0x2b0] sm:$0xff]
        %v5700 = vld [vmem:[#allocation14 + $0x2b8] sm:$0xff]
        %v5701 = vld [vmem:[#allocation14 + $0x2c0] sm:$0xff]
        %v5702 = vld [vmem:[#allocation14 + $0x2c8] sm:$0xff]
        %v5703 = vld [vmem:[#allocation14 + $0x2d0] sm:$0xff]
        %v5704 = vld [vmem:[#allocation14 + $0x2d8] sm:$0xff]
        %v5705 = vld [vmem:[#allocation14 + $0x2e0] sm:$0xff]
        %v5706 = vld [vmem:[#allocation14 + $0x2e8] sm:$0xff]
        %v5707 = vld [vmem:[#allocation14 + $0x2f0] sm:$0xff]
        %v5708 = vld [vmem:[#allocation14 + $0x2f8] sm:$0xff]
        %v5709 = vld [vmem:[#allocation14 + $0x300] sm:$0xff]
        %v5710 = vld [vmem:[#allocation14 + $0x308] sm:$0xff]
        %v5711 = vld [vmem:[#allocation14 + $0x310] sm:$0xff]
        %v5712 = vld [vmem:[#allocation14 + $0x318] sm:$0xff]
        %v5713 = vld [vmem:[#allocation14 + $0x320] sm:$0xff]
        %v5714 = vld [vmem:[#allocation14 + $0x328] sm:$0xff]
        %v5715 = vld [vmem:[#allocation14 + $0x330] sm:$0xff]
        %v5716 = vld [vmem:[#allocation14 + $0x338] sm:$0xff]
        %v5717 = vld [vmem:[#allocation14 + $0x340] sm:$0xff]
        %v5718 = vld [vmem:[#allocation14 + $0x348] sm:$0xff]
        %v5719 = vld [vmem:[#allocation14 + $0x350] sm:$0xff]
        %v5720 = vld [vmem:[#allocation14 + $0x358] sm:$0xff]
        %v5721 = vld [vmem:[#allocation14 + $0x360] sm:$0xff]
        %v5722 = vld [vmem:[#allocation14 + $0x368] sm:$0xff]
        %v5723 = vld [vmem:[#allocation14 + $0x370] sm:$0xff]
        %v5724 = vld [vmem:[#allocation14 + $0x378] sm:$0xff]
        %v5725 = vld [vmem:[#allocation14 + $0x380] sm:$0xff]
        %v5726 = vld [vmem:[#allocation14 + $0x388] sm:$0xff]
        %v5727 = vld [vmem:[#allocation14 + $0x390] sm:$0xff]
        %v5728 = vld [vmem:[#allocation14 + $0x398] sm:$0xff]
        %v5729 = vld [vmem:[#allocation14 + $0x3a0] sm:$0xff]
        %v5730 = vld [vmem:[#allocation14 + $0x3a8] sm:$0xff]
        %v5731 = vld [vmem:[#allocation14 + $0x3b0] sm:$0xff]
        %v5732 = vld [vmem:[#allocation14 + $0x3b8] sm:$0xff]
        %v5733 = vld [vmem:[#allocation14 + $0x3c0] sm:$0xff]
        %v5734 = vld [vmem:[#allocation14 + $0x3c8] sm:$0xff]
        %v5735 = vld [vmem:[#allocation14 + $0x3d0] sm:$0xff]
        %v5736 = vld [vmem:[#allocation14 + $0x3d8] sm:$0xff]
        %v5737 = vld [vmem:[#allocation14 + $0x3e0] sm:$0xff]
        %v5738 = vld [vmem:[#allocation14 + $0x3e8] sm:$0xff]
        %v5739 = vld [vmem:[#allocation14 + $0x3f0] sm:$0xff]
        %v5740 = vld [vmem:[#allocation14 + $0x3f8] sm:$0xff]
        %v5869 = vunpack.c.l.b16 %v5613
        %v5870 = vunpack.c.h.b16 %v5613
        %v5871 = vunpack.c.l.b16 %v5614
        %v5872 = vunpack.c.h.b16 %v5614
        %v5873 = vunpack.c.l.b16 %v5615
        %v5874 = vunpack.c.h.b16 %v5615
        %v5875 = vunpack.c.l.b16 %v5616
        %v5876 = vunpack.c.h.b16 %v5616
        %v5877 = vunpack.c.l.b16 %v5617
        %v5878 = vunpack.c.h.b16 %v5617
        %v5879 = vunpack.c.l.b16 %v5618
        %v5880 = vunpack.c.h.b16 %v5618
        %v5881 = vunpack.c.l.b16 %v5619
        %v5882 = vunpack.c.h.b16 %v5619
        %v5883 = vunpack.c.l.b16 %v5620
        %v5884 = vunpack.c.h.b16 %v5620
        %v5885 = vunpack.c.l.b16 %v5621
        %v5886 = vunpack.c.h.b16 %v5621
        %v5887 = vunpack.c.l.b16 %v5622
        %v5888 = vunpack.c.h.b16 %v5622
        %v5889 = vunpack.c.l.b16 %v5623
        %v5890 = vunpack.c.h.b16 %v5623
        %v5891 = vunpack.c.l.b16 %v5624
        %v5892 = vunpack.c.h.b16 %v5624
        %v5893 = vunpack.c.l.b16 %v5625
        %v5894 = vunpack.c.h.b16 %v5625
        %v5895 = vunpack.c.l.b16 %v5626
        %v5896 = vunpack.c.h.b16 %v5626
        %v5897 = vunpack.c.l.b16 %v5627
        %v5898 = vunpack.c.h.b16 %v5627
        %v5899 = vunpack.c.l.b16 %v5628
        %v5900 = vunpack.c.h.b16 %v5628
        %v5901 = vunpack.c.l.b16 %v5629
        %v5902 = vunpack.c.h.b16 %v5629
        %v5903 = vunpack.c.l.b16 %v5630
        %v5904 = vunpack.c.h.b16 %v5630
        %v5905 = vunpack.c.l.b16 %v5631
        %v5906 = vunpack.c.h.b16 %v5631
        %v5907 = vunpack.c.l.b16 %v5632
        %v5908 = vunpack.c.h.b16 %v5632
        %v5909 = vunpack.c.l.b16 %v5633
        %v5910 = vunpack.c.h.b16 %v5633
        %v5911 = vunpack.c.l.b16 %v5634
        %v5912 = vunpack.c.h.b16 %v5634
        %v5913 = vunpack.c.l.b16 %v5635
        %v5914 = vunpack.c.h.b16 %v5635
        %v5915 = vunpack.c.l.b16 %v5636
        %v5916 = vunpack.c.h.b16 %v5636
        %v5917 = vunpack.c.l.b16 %v5637
        %v5918 = vunpack.c.h.b16 %v5637
        %v5919 = vunpack.c.l.b16 %v5638
        %v5920 = vunpack.c.h.b16 %v5638
        %v5921 = vunpack.c.l.b16 %v5639
        %v5922 = vunpack.c.h.b16 %v5639
        %v5923 = vunpack.c.l.b16 %v5640
        %v5924 = vunpack.c.h.b16 %v5640
        %v5925 = vunpack.c.l.b16 %v5641
        %v5926 = vunpack.c.h.b16 %v5641
        %v5927 = vunpack.c.l.b16 %v5642
        %v5928 = vunpack.c.h.b16 %v5642
        %v5929 = vunpack.c.l.b16 %v5643
        %v5930 = vunpack.c.h.b16 %v5643
        %v5931 = vunpack.c.l.b16 %v5644
        %v5932 = vunpack.c.h.b16 %v5644
        %v5933 = vunpack.c.l.b16 %v5645
        %v5934 = vunpack.c.h.b16 %v5645
        %v5935 = vunpack.c.l.b16 %v5646
        %v5936 = vunpack.c.h.b16 %v5646
        %v5937 = vunpack.c.l.b16 %v5647
        %v5938 = vunpack.c.h.b16 %v5647
        %v5939 = vunpack.c.l.b16 %v5648
        %v5940 = vunpack.c.h.b16 %v5648
        %v5941 = vunpack.c.l.b16 %v5649
        %v5942 = vunpack.c.h.b16 %v5649
        %v5943 = vunpack.c.l.b16 %v5650
        %v5944 = vunpack.c.h.b16 %v5650
        %v5945 = vunpack.c.l.b16 %v5651
        %v5946 = vunpack.c.h.b16 %v5651
        %v5947 = vunpack.c.l.b16 %v5652
        %v5948 = vunpack.c.h.b16 %v5652
        %v5949 = vunpack.c.l.b16 %v5653
        %v5950 = vunpack.c.h.b16 %v5653
        %v5951 = vunpack.c.l.b16 %v5654
        %v5952 = vunpack.c.h.b16 %v5654
        %v5953 = vunpack.c.l.b16 %v5655
        %v5954 = vunpack.c.h.b16 %v5655
        %v5955 = vunpack.c.l.b16 %v5656
        %v5956 = vunpack.c.h.b16 %v5656
        %v5957 = vunpack.c.l.b16 %v5657
        %v5958 = vunpack.c.h.b16 %v5657
        %v5959 = vunpack.c.l.b16 %v5658
        %v5960 = vunpack.c.h.b16 %v5658
        %v5961 = vunpack.c.l.b16 %v5659
        %v5962 = vunpack.c.h.b16 %v5659
        %v5963 = vunpack.c.l.b16 %v5660
        %v5964 = vunpack.c.h.b16 %v5660
        %v5965 = vunpack.c.l.b16 %v5661
        %v5966 = vunpack.c.h.b16 %v5661
        %v5967 = vunpack.c.l.b16 %v5662
        %v5968 = vunpack.c.h.b16 %v5662
        %v5969 = vunpack.c.l.b16 %v5663
        %v5970 = vunpack.c.h.b16 %v5663
        %v5971 = vunpack.c.l.b16 %v5664
        %v5972 = vunpack.c.h.b16 %v5664
        %v5973 = vunpack.c.l.b16 %v5665
        %v5974 = vunpack.c.h.b16 %v5665
        %v5975 = vunpack.c.l.b16 %v5666
        %v5976 = vunpack.c.h.b16 %v5666
        %v5977 = vunpack.c.l.b16 %v5667
        %v5978 = vunpack.c.h.b16 %v5667
        %v5979 = vunpack.c.l.b16 %v5668
        %v5980 = vunpack.c.h.b16 %v5668
        %v5981 = vunpack.c.l.b16 %v5669
        %v5982 = vunpack.c.h.b16 %v5669
        %v5983 = vunpack.c.l.b16 %v5670
        %v5984 = vunpack.c.h.b16 %v5670
        %v5985 = vunpack.c.l.b16 %v5671
        %v5986 = vunpack.c.h.b16 %v5671
        %v5987 = vunpack.c.l.b16 %v5672
        %v5988 = vunpack.c.h.b16 %v5672
        %v5989 = vunpack.c.l.b16 %v5673
        %v5990 = vunpack.c.h.b16 %v5673
        %v5991 = vunpack.c.l.b16 %v5674
        %v5992 = vunpack.c.h.b16 %v5674
        %v5993 = vunpack.c.l.b16 %v5675
        %v5994 = vunpack.c.h.b16 %v5675
        %v5995 = vunpack.c.l.b16 %v5676
        %v5996 = vunpack.c.h.b16 %v5676
        %v5997 = vunpack.c.l.b16 %v5677
        %v5998 = vunpack.c.h.b16 %v5677
        %v5999 = vunpack.c.l.b16 %v5678
        %v6000 = vunpack.c.h.b16 %v5678
        %v6001 = vunpack.c.l.b16 %v5679
        %v6002 = vunpack.c.h.b16 %v5679
        %v6003 = vunpack.c.l.b16 %v5680
        %v6004 = vunpack.c.h.b16 %v5680
        %v6005 = vunpack.c.l.b16 %v5681
        %v6006 = vunpack.c.h.b16 %v5681
        %v6007 = vunpack.c.l.b16 %v5682
        %v6008 = vunpack.c.h.b16 %v5682
        %v6009 = vunpack.c.l.b16 %v5683
        %v6010 = vunpack.c.h.b16 %v5683
        %v6011 = vunpack.c.l.b16 %v5684
        %v6012 = vunpack.c.h.b16 %v5684
        %v6013 = vunpack.c.l.b16 %v5685
        %v6014 = vunpack.c.h.b16 %v5685
        %v6015 = vunpack.c.l.b16 %v5686
        %v6016 = vunpack.c.h.b16 %v5686
        %v6017 = vunpack.c.l.b16 %v5687
        %v6018 = vunpack.c.h.b16 %v5687
        %v6019 = vunpack.c.l.b16 %v5688
        %v6020 = vunpack.c.h.b16 %v5688
        %v6021 = vunpack.c.l.b16 %v5689
        %v6022 = vunpack.c.h.b16 %v5689
        %v6023 = vunpack.c.l.b16 %v5690
        %v6024 = vunpack.c.h.b16 %v5690
        %v6025 = vunpack.c.l.b16 %v5691
        %v6026 = vunpack.c.h.b16 %v5691
        %v6027 = vunpack.c.l.b16 %v5692
        %v6028 = vunpack.c.h.b16 %v5692
        %v6029 = vunpack.c.l.b16 %v5693
        %v6030 = vunpack.c.h.b16 %v5693
        %v6031 = vunpack.c.l.b16 %v5694
        %v6032 = vunpack.c.h.b16 %v5694
        %v6033 = vunpack.c.l.b16 %v5695
        %v6034 = vunpack.c.h.b16 %v5695
        %v6035 = vunpack.c.l.b16 %v5696
        %v6036 = vunpack.c.h.b16 %v5696
        %v6037 = vunpack.c.l.b16 %v5697
        %v6038 = vunpack.c.h.b16 %v5697
        %v6039 = vunpack.c.l.b16 %v5698
        %v6040 = vunpack.c.h.b16 %v5698
        %v6041 = vunpack.c.l.b16 %v5699
        %v6042 = vunpack.c.h.b16 %v5699
        %v6043 = vunpack.c.l.b16 %v5700
        %v6044 = vunpack.c.h.b16 %v5700
        %v6045 = vunpack.c.l.b16 %v5701
        %v6046 = vunpack.c.h.b16 %v5701
        %v6047 = vunpack.c.l.b16 %v5702
        %v6048 = vunpack.c.h.b16 %v5702
        %v6049 = vunpack.c.l.b16 %v5703
        %v6050 = vunpack.c.h.b16 %v5703
        %v6051 = vunpack.c.l.b16 %v5704
        %v6052 = vunpack.c.h.b16 %v5704
        %v6053 = vunpack.c.l.b16 %v5705
        %v6054 = vunpack.c.h.b16 %v5705
        %v6055 = vunpack.c.l.b16 %v5706
        %v6056 = vunpack.c.h.b16 %v5706
        %v6057 = vunpack.c.l.b16 %v5707
        %v6058 = vunpack.c.h.b16 %v5707
        %v6059 = vunpack.c.l.b16 %v5708
        %v6060 = vunpack.c.h.b16 %v5708
        %v6061 = vunpack.c.l.b16 %v5709
        %v6062 = vunpack.c.h.b16 %v5709
        %v6063 = vunpack.c.l.b16 %v5710
        %v6064 = vunpack.c.h.b16 %v5710
        %v6065 = vunpack.c.l.b16 %v5711
        %v6066 = vunpack.c.h.b16 %v5711
        %v6067 = vunpack.c.l.b16 %v5712
        %v6068 = vunpack.c.h.b16 %v5712
        %v6069 = vunpack.c.l.b16 %v5713
        %v6070 = vunpack.c.h.b16 %v5713
        %v6071 = vunpack.c.l.b16 %v5714
        %v6072 = vunpack.c.h.b16 %v5714
        %v6073 = vunpack.c.l.b16 %v5715
        %v6074 = vunpack.c.h.b16 %v5715
        %v6075 = vunpack.c.l.b16 %v5716
        %v6076 = vunpack.c.h.b16 %v5716
        %v6077 = vunpack.c.l.b16 %v5717
        %v6078 = vunpack.c.h.b16 %v5717
        %v6079 = vunpack.c.l.b16 %v5718
        %v6080 = vunpack.c.h.b16 %v5718
        %v6081 = vunpack.c.l.b16 %v5719
        %v6082 = vunpack.c.h.b16 %v5719
        %v6083 = vunpack.c.l.b16 %v5720
        %v6084 = vunpack.c.h.b16 %v5720
        %v6085 = vunpack.c.l.b16 %v5721
        %v6086 = vunpack.c.h.b16 %v5721
        %v6087 = vunpack.c.l.b16 %v5722
        %v6088 = vunpack.c.h.b16 %v5722
        %v6089 = vunpack.c.l.b16 %v5723
        %v6090 = vunpack.c.h.b16 %v5723
        %v6091 = vunpack.c.l.b16 %v5724
        %v6092 = vunpack.c.h.b16 %v5724
        %v6093 = vunpack.c.l.b16 %v5725
        %v6094 = vunpack.c.h.b16 %v5725
        %v6095 = vunpack.c.l.b16 %v5726
        %v6096 = vunpack.c.h.b16 %v5726
        %v6097 = vunpack.c.l.b16 %v5727
        %v6098 = vunpack.c.h.b16 %v5727
        %v6099 = vunpack.c.l.b16 %v5728
        %v6100 = vunpack.c.h.b16 %v5728
        %v6101 = vunpack.c.l.b16 %v5729
        %v6102 = vunpack.c.h.b16 %v5729
        %v6103 = vunpack.c.l.b16 %v5730
        %v6104 = vunpack.c.h.b16 %v5730
        %v6105 = vunpack.c.l.b16 %v5731
        %v6106 = vunpack.c.h.b16 %v5731
        %v6107 = vunpack.c.l.b16 %v5732
        %v6108 = vunpack.c.h.b16 %v5732
        %v6109 = vunpack.c.l.b16 %v5733
        %v6110 = vunpack.c.h.b16 %v5733
        %v6111 = vunpack.c.l.b16 %v5734
        %v6112 = vunpack.c.h.b16 %v5734
        %v6113 = vunpack.c.l.b16 %v5735
        %v6114 = vunpack.c.h.b16 %v5735
        %v6115 = vunpack.c.l.b16 %v5736
        %v6116 = vunpack.c.h.b16 %v5736
        %v6117 = vunpack.c.l.b16 %v5737
        %v6118 = vunpack.c.h.b16 %v5737
        %v6119 = vunpack.c.l.b16 %v5738
        %v6120 = vunpack.c.h.b16 %v5738
        %v6121 = vunpack.c.l.b16 %v5739
        %v6122 = vunpack.c.h.b16 %v5739
        %v6123 = vunpack.c.l.b16 %v5740
        %v6124 = vunpack.c.h.b16 %v5740
        %v6125 = vpack.c.b16 %v5877, %v5869
        %v6126 = vpack.c.b16 %v5878, %v5870
        %v6127 = vpack.c.b16 %v5879, %v5871
        %v6128 = vpack.c.b16 %v5880, %v5872
        %v6129 = vpack.c.b16 %v5881, %v5873
        %v6130 = vpack.c.b16 %v5882, %v5874
        %v6131 = vpack.c.b16 %v5883, %v5875
        %v6132 = vpack.c.b16 %v5884, %v5876
        %v6133 = vpack.c.b16 %v5893, %v5885
        %v6134 = vpack.c.b16 %v5894, %v5886
        %v6135 = vpack.c.b16 %v5895, %v5887
        %v6136 = vpack.c.b16 %v5896, %v5888
        %v6137 = vpack.c.b16 %v5897, %v5889
        %v6138 = vpack.c.b16 %v5898, %v5890
        %v6139 = vpack.c.b16 %v5899, %v5891
        %v6140 = vpack.c.b16 %v5900, %v5892
        %v6141 = vpack.c.b16 %v5909, %v5901
        %v6142 = vpack.c.b16 %v5910, %v5902
        %v6143 = vpack.c.b16 %v5911, %v5903
        %v6144 = vpack.c.b16 %v5912, %v5904
        %v6145 = vpack.c.b16 %v5913, %v5905
        %v6146 = vpack.c.b16 %v5914, %v5906
        %v6147 = vpack.c.b16 %v5915, %v5907
        %v6148 = vpack.c.b16 %v5916, %v5908
        %v6149 = vpack.c.b16 %v5925, %v5917
        %v6150 = vpack.c.b16 %v5926, %v5918
        %v6151 = vpack.c.b16 %v5927, %v5919
        %v6152 = vpack.c.b16 %v5928, %v5920
        %v6153 = vpack.c.b16 %v5929, %v5921
        %v6154 = vpack.c.b16 %v5930, %v5922
        %v6155 = vpack.c.b16 %v5931, %v5923
        %v6156 = vpack.c.b16 %v5932, %v5924
        %v6157 = vpack.c.b16 %v5941, %v5933
        %v6158 = vpack.c.b16 %v5942, %v5934
        %v6159 = vpack.c.b16 %v5943, %v5935
        %v6160 = vpack.c.b16 %v5944, %v5936
        %v6161 = vpack.c.b16 %v5945, %v5937
        %v6162 = vpack.c.b16 %v5946, %v5938
        %v6163 = vpack.c.b16 %v5947, %v5939
        %v6164 = vpack.c.b16 %v5948, %v5940
        %v6165 = vpack.c.b16 %v5957, %v5949
        %v6166 = vpack.c.b16 %v5958, %v5950
        %v6167 = vpack.c.b16 %v5959, %v5951
        %v6168 = vpack.c.b16 %v5960, %v5952
        %v6169 = vpack.c.b16 %v5961, %v5953
        %v6170 = vpack.c.b16 %v5962, %v5954
        %v6171 = vpack.c.b16 %v5963, %v5955
        %v6172 = vpack.c.b16 %v5964, %v5956
        %v6173 = vpack.c.b16 %v5973, %v5965
        %v6174 = vpack.c.b16 %v5974, %v5966
        %v6175 = vpack.c.b16 %v5975, %v5967
        %v6176 = vpack.c.b16 %v5976, %v5968
        %v6177 = vpack.c.b16 %v5977, %v5969
        %v6178 = vpack.c.b16 %v5978, %v5970
        %v6179 = vpack.c.b16 %v5979, %v5971
        %v6180 = vpack.c.b16 %v5980, %v5972
        %v6181 = vpack.c.b16 %v5989, %v5981
        %v6182 = vpack.c.b16 %v5990, %v5982
        %v6183 = vpack.c.b16 %v5991, %v5983
        %v6184 = vpack.c.b16 %v5992, %v5984
        %v6185 = vpack.c.b16 %v5993, %v5985
        %v6186 = vpack.c.b16 %v5994, %v5986
        %v6187 = vpack.c.b16 %v5995, %v5987
        %v6188 = vpack.c.b16 %v5996, %v5988
        %v6189 = vpack.c.b16 %v6005, %v5997
        %v6190 = vpack.c.b16 %v6006, %v5998
        %v6191 = vpack.c.b16 %v6007, %v5999
        %v6192 = vpack.c.b16 %v6008, %v6000
        %v6193 = vpack.c.b16 %v6009, %v6001
        %v6194 = vpack.c.b16 %v6010, %v6002
        %v6195 = vpack.c.b16 %v6011, %v6003
        %v6196 = vpack.c.b16 %v6012, %v6004
        %v6197 = vpack.c.b16 %v6021, %v6013
        %v6198 = vpack.c.b16 %v6022, %v6014
        %v6199 = vpack.c.b16 %v6023, %v6015
        %v6200 = vpack.c.b16 %v6024, %v6016
        %v6201 = vpack.c.b16 %v6025, %v6017
        %v6202 = vpack.c.b16 %v6026, %v6018
        %v6203 = vpack.c.b16 %v6027, %v6019
        %v6204 = vpack.c.b16 %v6028, %v6020
        %v6205 = vpack.c.b16 %v6037, %v6029
        %v6206 = vpack.c.b16 %v6038, %v6030
        %v6207 = vpack.c.b16 %v6039, %v6031
        %v6208 = vpack.c.b16 %v6040, %v6032
        %v6209 = vpack.c.b16 %v6041, %v6033
        %v6210 = vpack.c.b16 %v6042, %v6034
        %v6211 = vpack.c.b16 %v6043, %v6035
        %v6212 = vpack.c.b16 %v6044, %v6036
        %v6213 = vpack.c.b16 %v6053, %v6045
        %v6214 = vpack.c.b16 %v6054, %v6046
        %v6215 = vpack.c.b16 %v6055, %v6047
        %v6216 = vpack.c.b16 %v6056, %v6048
        %v6217 = vpack.c.b16 %v6057, %v6049
        %v6218 = vpack.c.b16 %v6058, %v6050
        %v6219 = vpack.c.b16 %v6059, %v6051
        %v6220 = vpack.c.b16 %v6060, %v6052
        %v6221 = vpack.c.b16 %v6069, %v6061
        %v6222 = vpack.c.b16 %v6070, %v6062
        %v6223 = vpack.c.b16 %v6071, %v6063
        %v6224 = vpack.c.b16 %v6072, %v6064
        %v6225 = vpack.c.b16 %v6073, %v6065
        %v6226 = vpack.c.b16 %v6074, %v6066
        %v6227 = vpack.c.b16 %v6075, %v6067
        %v6228 = vpack.c.b16 %v6076, %v6068
        %v6229 = vpack.c.b16 %v6085, %v6077
        %v6230 = vpack.c.b16 %v6086, %v6078
        %v6231 = vpack.c.b16 %v6087, %v6079
        %v6232 = vpack.c.b16 %v6088, %v6080
        %v6233 = vpack.c.b16 %v6089, %v6081
        %v6234 = vpack.c.b16 %v6090, %v6082
        %v6235 = vpack.c.b16 %v6091, %v6083
        %v6236 = vpack.c.b16 %v6092, %v6084
        %v6237 = vpack.c.b16 %v6101, %v6093
        %v6238 = vpack.c.b16 %v6102, %v6094
        %v6239 = vpack.c.b16 %v6103, %v6095
        %v6240 = vpack.c.b16 %v6104, %v6096
        %v6241 = vpack.c.b16 %v6105, %v6097
        %v6242 = vpack.c.b16 %v6106, %v6098
        %v6243 = vpack.c.b16 %v6107, %v6099
        %v6244 = vpack.c.b16 %v6108, %v6100
        %v6245 = vpack.c.b16 %v6117, %v6109
        %v6246 = vpack.c.b16 %v6118, %v6110
        %v6247 = vpack.c.b16 %v6119, %v6111
        %v6248 = vpack.c.b16 %v6120, %v6112
        %v6249 = vpack.c.b16 %v6121, %v6113
        %v6250 = vpack.c.b16 %v6122, %v6114
        %v6251 = vpack.c.b16 %v6123, %v6115
        %v6252 = vpack.c.b16 %v6124, %v6116
        %6381 = vmatprep.subr.bf16.mxu0 %v6182
        %6382 = vmatpush1.bf16.msra.mxu0 %v6181
        %6383 = vmatprep.subr.bf16.mxu0 %v6174
        %6384 = vmatpush1.bf16.msra.mxu0 %v6173
        %6385 = vmatprep.subr.bf16.mxu0 %v6166
        %6386 = vmatpush1.bf16.msra.mxu0 %v6165
        %6387 = vmatprep.subr.bf16.mxu0 %v6158
        %6388 = vmatpush1.bf16.msra.mxu0 %v6157
        %6389 = vmatprep.subr.bf16.mxu0 %v6150
        %6390 = vmatpush1.bf16.msra.mxu0 %v6149
        %6391 = vmatprep.subr.bf16.mxu0 %v6142
        %6392 = vmatpush1.bf16.msra.mxu0 %v6141
        %6393 = vmatprep.subr.bf16.mxu0 %v6134
        %6394 = vmatpush1.bf16.msra.mxu0 %v6133
        %6395 = vmatprep.subr.bf16.mxu0 %v6126
        %6396 = vmatpush1.bf16.msra.mxu0 %v6125
        %6397 = vmatprep.subr.bf16.mxu0 %v6246
        %6398 = vmatpush2.bf16.msra.mxu0 %v6245
        %6399 = vmatprep.subr.bf16.mxu0 %v6238
        %6400 = vmatpush2.bf16.msra.mxu0 %v6237
        %6401 = vmatprep.subr.bf16.mxu0 %v6230
        %6402 = vmatpush2.bf16.msra.mxu0 %v6229
        %6403 = vmatprep.subr.bf16.mxu0 %v6222
        %6404 = vmatpush2.bf16.msra.mxu0 %v6221
        %6405 = vmatprep.subr.bf16.mxu0 %v6214
        %6406 = vmatpush2.bf16.msra.mxu0 %v6213
        %6407 = vmatprep.subr.bf16.mxu0 %v6206
        %6408 = vmatpush2.bf16.msra.mxu0 %v6205
        %6409 = vmatprep.subr.bf16.mxu0 %v6198
        %6410 = vmatpush2.bf16.msra.mxu0 %v6197
        %6411 = vmatprep.subr.bf16.mxu0 %v6190
        %6412 = vmatpush2.bf16.msra.mxu0 %v6189
        %6413 = vmatprep.mubr.bf16.mxu0 %v5598
        %6414 = vmatmul.mubr.bf16.gmra.mxu0 %v5597
        %v6415 = vpop.f32.mrf.mxu0
        %v6416 = vadd.f32 0.0, %v6415
        %v6417 = vpop.f32.mrf.mxu0
        %v6418 = vadd.f32 0.0, %v6417
        %v6419 = vpop.f32.mrf.mxu0
        %v6420 = vadd.f32 0.0, %v6419
        %v6421 = vpop.f32.mrf.mxu0
        %v6422 = vadd.f32 0.0, %v6421
        %6423 = vmatprep.mubr.bf16.mxu0 %v5600
        %6424 = vmatmul.mubr.bf16.gmra.mxu0 %v5599
        %v6425 = vpop.f32.mrf.mxu0
        %v6426 = vadd.f32 0.0, %v6425
        %v6427 = vpop.f32.mrf.mxu0
        %v6428 = vadd.f32 0.0, %v6427
        %v6429 = vpop.f32.mrf.mxu0
        %v6430 = vadd.f32 0.0, %v6429
        %v6431 = vpop.f32.mrf.mxu0
        %v6432 = vadd.f32 0.0, %v6431
        %6433 = vmatprep.mubr.bf16.mxu0 %v5602
        %6434 = vmatmul.mubr.bf16.gmra.mxu0 %v5601
        %v6435 = vpop.f32.mrf.mxu0
        %v6436 = vadd.f32 0.0, %v6435
        %v6437 = vpop.f32.mrf.mxu0
        %v6438 = vadd.f32 0.0, %v6437
        %v6439 = vpop.f32.mrf.mxu0
        %v6440 = vadd.f32 0.0, %v6439
        %v6441 = vpop.f32.mrf.mxu0
        %v6442 = vadd.f32 0.0, %v6441
        %6443 = vmatprep.mubr.bf16.mxu0 %v5604
        %6444 = vmatmul.mubr.bf16.gmra.mxu0 %v5603
        %v6445 = vpop.f32.mrf.mxu0
        %v6446 = vadd.f32 0.0, %v6445
        %v6447 = vpop.f32.mrf.mxu0
        %v6448 = vadd.f32 0.0, %v6447
        %v6449 = vpop.f32.mrf.mxu0
        %v6450 = vadd.f32 0.0, %v6449
        %v6451 = vpop.f32.mrf.mxu0
        %v6452 = vadd.f32 0.0, %v6451
        %6453 = vmatprep.mubr.bf16.mxu0 %v5606
        %6454 = vmatmul.mubr.bf16.gmra.mxu0 %v5605
        %v6455 = vpop.f32.mrf.mxu0
        %v6456 = vadd.f32 0.0, %v6455
        %v6457 = vpop.f32.mrf.mxu0
        %v6458 = vadd.f32 0.0, %v6457
        %v6459 = vpop.f32.mrf.mxu0
        %v6460 = vadd.f32 0.0, %v6459
        %v6461 = vpop.f32.mrf.mxu0
        %v6462 = vadd.f32 0.0, %v6461
        %6463 = vmatprep.mubr.bf16.mxu0 %v5608
        %6464 = vmatmul.mubr.bf16.gmra.mxu0 %v5607
        %v6465 = vpop.f32.mrf.mxu0
        %v6466 = vadd.f32 0.0, %v6465
        %v6467 = vpop.f32.mrf.mxu0
        %v6468 = vadd.f32 0.0, %v6467
        %v6469 = vpop.f32.mrf.mxu0
        %v6470 = vadd.f32 0.0, %v6469
        %v6471 = vpop.f32.mrf.mxu0
        %v6472 = vadd.f32 0.0, %v6471
        %6473 = vmatprep.mubr.bf16.mxu0 %v5610
        %6474 = vmatmul.mubr.bf16.gmra.mxu0 %v5609
        %v6475 = vpop.f32.mrf.mxu0
        %v6476 = vadd.f32 0.0, %v6475
        %v6477 = vpop.f32.mrf.mxu0
        %v6478 = vadd.f32 0.0, %v6477
        %v6479 = vpop.f32.mrf.mxu0
        %v6480 = vadd.f32 0.0, %v6479
        %v6481 = vpop.f32.mrf.mxu0
        %v6482 = vadd.f32 0.0, %v6481
        %6483 = vmatprep.mubr.bf16.mxu0 %v5612
        %6484 = vmatmul.mubr.bf16.gmra.mxu0 %v5611
        %v6485 = vpop.f32.mrf.mxu0
        %v6486 = vadd.f32 0.0, %v6485
        %v6487 = vpop.f32.mrf.mxu0
        %v6488 = vadd.f32 0.0, %v6487
        %v6489 = vpop.f32.mrf.mxu0
        %v6490 = vadd.f32 0.0, %v6489
        %v6491 = vpop.f32.mrf.mxu0
        %v6492 = vadd.f32 0.0, %v6491
        %6493 = vdwg.mxu0
        %6494 = vmatprep.subr.bf16.mxu0 %v6184
        %6495 = vmatpush1.bf16.msra.mxu0 %v6183
        %6496 = vmatprep.subr.bf16.mxu0 %v6176
        %6497 = vmatpush1.bf16.msra.mxu0 %v6175
        %6498 = vmatprep.subr.bf16.mxu0 %v6168
        %6499 = vmatpush1.bf16.msra.mxu0 %v6167
        %6500 = vmatprep.subr.bf16.mxu0 %v6160
        %6501 = vmatpush1.bf16.msra.mxu0 %v6159
        %6502 = vmatprep.subr.bf16.mxu0 %v6152
        %6503 = vmatpush1.bf16.msra.mxu0 %v6151
        %6504 = vmatprep.subr.bf16.mxu0 %v6144
        %6505 = vmatpush1.bf16.msra.mxu0 %v6143
        %6506 = vmatprep.subr.bf16.mxu0 %v6136
        %6507 = vmatpush1.bf16.msra.mxu0 %v6135
        %6508 = vmatprep.subr.bf16.mxu0 %v6128
        %6509 = vmatpush1.bf16.msra.mxu0 %v6127
        %6510 = vmatprep.subr.bf16.mxu0 %v6248
        %6511 = vmatpush2.bf16.msra.mxu0 %v6247
        %6512 = vmatprep.subr.bf16.mxu0 %v6240
        %6513 = vmatpush2.bf16.msra.mxu0 %v6239
        %6514 = vmatprep.subr.bf16.mxu0 %v6232
        %6515 = vmatpush2.bf16.msra.mxu0 %v6231
        %6516 = vmatprep.subr.bf16.mxu0 %v6224
        %6517 = vmatpush2.bf16.msra.mxu0 %v6223
        %6518 = vmatprep.subr.bf16.mxu0 %v6216
        %6519 = vmatpush2.bf16.msra.mxu0 %v6215
        %6520 = vmatprep.subr.bf16.mxu0 %v6208
        %6521 = vmatpush2.bf16.msra.mxu0 %v6207
        %6522 = vmatprep.subr.bf16.mxu0 %v6200
        %6523 = vmatpush2.bf16.msra.mxu0 %v6199
        %6524 = vmatprep.subr.bf16.mxu0 %v6192
        %6525 = vmatpush2.bf16.msra.mxu0 %v6191
        %6526 = vmatprep.mubr.bf16.mxu0 %v5598
        %6527 = vmatmul.mubr.bf16.gmra.mxu0 %v5597
        %v6528 = vpop.f32.mrf.mxu0
        %v6529 = vadd.f32 0.0, %v6528
        %v6530 = vpop.f32.mrf.mxu0
        %v6531 = vadd.f32 0.0, %v6530
        %v6532 = vpop.f32.mrf.mxu0
        %v6533 = vadd.f32 0.0, %v6532
        %v6534 = vpop.f32.mrf.mxu0
        %v6535 = vadd.f32 0.0, %v6534
        %6536 = vmatprep.mubr.bf16.mxu0 %v5600
        %6537 = vmatmul.mubr.bf16.gmra.mxu0 %v5599
        %v6538 = vpop.f32.mrf.mxu0
        %v6539 = vadd.f32 0.0, %v6538
        %v6540 = vpop.f32.mrf.mxu0
        %v6541 = vadd.f32 0.0, %v6540
        %v6542 = vpop.f32.mrf.mxu0
        %v6543 = vadd.f32 0.0, %v6542
        %v6544 = vpop.f32.mrf.mxu0
        %v6545 = vadd.f32 0.0, %v6544
        %6546 = vmatprep.mubr.bf16.mxu0 %v5602
        %6547 = vmatmul.mubr.bf16.gmra.mxu0 %v5601
        %v6548 = vpop.f32.mrf.mxu0
        %v6549 = vadd.f32 0.0, %v6548
        %v6550 = vpop.f32.mrf.mxu0
        %v6551 = vadd.f32 0.0, %v6550
        %v6552 = vpop.f32.mrf.mxu0
        %v6553 = vadd.f32 0.0, %v6552
        %v6554 = vpop.f32.mrf.mxu0
        %v6555 = vadd.f32 0.0, %v6554
        %6556 = vmatprep.mubr.bf16.mxu0 %v5604
        %6557 = vmatmul.mubr.bf16.gmra.mxu0 %v5603
        %v6558 = vpop.f32.mrf.mxu0
        %v6559 = vadd.f32 0.0, %v6558
        %v6560 = vpop.f32.mrf.mxu0
        %v6561 = vadd.f32 0.0, %v6560
        %v6562 = vpop.f32.mrf.mxu0
        %v6563 = vadd.f32 0.0, %v6562
        %v6564 = vpop.f32.mrf.mxu0
        %v6565 = vadd.f32 0.0, %v6564
        %6566 = vmatprep.mubr.bf16.mxu0 %v5606
        %6567 = vmatmul.mubr.bf16.gmra.mxu0 %v5605
        %v6568 = vpop.f32.mrf.mxu0
        %v6569 = vadd.f32 0.0, %v6568
        %v6570 = vpop.f32.mrf.mxu0
        %v6571 = vadd.f32 0.0, %v6570
        %v6572 = vpop.f32.mrf.mxu0
        %v6573 = vadd.f32 0.0, %v6572
        %v6574 = vpop.f32.mrf.mxu0
        %v6575 = vadd.f32 0.0, %v6574
        %6576 = vmatprep.mubr.bf16.mxu0 %v5608
        %6577 = vmatmul.mubr.bf16.gmra.mxu0 %v5607
        %v6578 = vpop.f32.mrf.mxu0
        %v6579 = vadd.f32 0.0, %v6578
        %v6580 = vpop.f32.mrf.mxu0
        %v6581 = vadd.f32 0.0, %v6580
        %v6582 = vpop.f32.mrf.mxu0
        %v6583 = vadd.f32 0.0, %v6582
        %v6584 = vpop.f32.mrf.mxu0
        %v6585 = vadd.f32 0.0, %v6584
        %6586 = vmatprep.mubr.bf16.mxu0 %v5610
        %6587 = vmatmul.mubr.bf16.gmra.mxu0 %v5609
        %v6588 = vpop.f32.mrf.mxu0
        %v6589 = vadd.f32 0.0, %v6588
        %v6590 = vpop.f32.mrf.mxu0
        %v6591 = vadd.f32 0.0, %v6590
        %v6592 = vpop.f32.mrf.mxu0
        %v6593 = vadd.f32 0.0, %v6592
        %v6594 = vpop.f32.mrf.mxu0
        %v6595 = vadd.f32 0.0, %v6594
        %6596 = vmatprep.mubr.bf16.mxu0 %v5612
        %6597 = vmatmul.mubr.bf16.gmra.mxu0 %v5611
        %v6598 = vpop.f32.mrf.mxu0
        %v6599 = vadd.f32 0.0, %v6598
        %v6600 = vpop.f32.mrf.mxu0
        %v6601 = vadd.f32 0.0, %v6600
        %v6602 = vpop.f32.mrf.mxu0
        %v6603 = vadd.f32 0.0, %v6602
        %v6604 = vpop.f32.mrf.mxu0
        %v6605 = vadd.f32 0.0, %v6604
        %6606 = vdwg.mxu0
        %6607 = vmatprep.subr.bf16.mxu0 %v6186
        %6608 = vmatpush1.bf16.msra.mxu0 %v6185
        %6609 = vmatprep.subr.bf16.mxu0 %v6178
        %6610 = vmatpush1.bf16.msra.mxu0 %v6177
        %6611 = vmatprep.subr.bf16.mxu0 %v6170
        %6612 = vmatpush1.bf16.msra.mxu0 %v6169
        %6613 = vmatprep.subr.bf16.mxu0 %v6162
        %6614 = vmatpush1.bf16.msra.mxu0 %v6161
        %6615 = vmatprep.subr.bf16.mxu0 %v6154
        %6616 = vmatpush1.bf16.msra.mxu0 %v6153
        %6617 = vmatprep.subr.bf16.mxu0 %v6146
        %6618 = vmatpush1.bf16.msra.mxu0 %v6145
        %6619 = vmatprep.subr.bf16.mxu0 %v6138
        %6620 = vmatpush1.bf16.msra.mxu0 %v6137
        %6621 = vmatprep.subr.bf16.mxu0 %v6130
        %6622 = vmatpush1.bf16.msra.mxu0 %v6129
        %6623 = vmatprep.subr.bf16.mxu0 %v6250
        %6624 = vmatpush2.bf16.msra.mxu0 %v6249
        %6625 = vmatprep.subr.bf16.mxu0 %v6242
        %6626 = vmatpush2.bf16.msra.mxu0 %v6241
        %6627 = vmatprep.subr.bf16.mxu0 %v6234
        %6628 = vmatpush2.bf16.msra.mxu0 %v6233
        %6629 = vmatprep.subr.bf16.mxu0 %v6226
        %6630 = vmatpush2.bf16.msra.mxu0 %v6225
        %6631 = vmatprep.subr.bf16.mxu0 %v6218
        %6632 = vmatpush2.bf16.msra.mxu0 %v6217
        %6633 = vmatprep.subr.bf16.mxu0 %v6210
        %6634 = vmatpush2.bf16.msra.mxu0 %v6209
        %6635 = vmatprep.subr.bf16.mxu0 %v6202
        %6636 = vmatpush2.bf16.msra.mxu0 %v6201
        %6637 = vmatprep.subr.bf16.mxu0 %v6194
        %6638 = vmatpush2.bf16.msra.mxu0 %v6193
        %6639 = vmatprep.mubr.bf16.mxu0 %v5598
        %6640 = vmatmul.mubr.bf16.gmra.mxu0 %v5597
        %v6641 = vpop.f32.mrf.mxu0
        %v6642 = vadd.f32 0.0, %v6641
        %v6643 = vpop.f32.mrf.mxu0
        %v6644 = vadd.f32 0.0, %v6643
        %v6645 = vpop.f32.mrf.mxu0
        %v6646 = vadd.f32 0.0, %v6645
        %v6647 = vpop.f32.mrf.mxu0
        %v6648 = vadd.f32 0.0, %v6647
        %6649 = vmatprep.mubr.bf16.mxu0 %v5600
        %6650 = vmatmul.mubr.bf16.gmra.mxu0 %v5599
        %v6651 = vpop.f32.mrf.mxu0
        %v6652 = vadd.f32 0.0, %v6651
        %v6653 = vpop.f32.mrf.mxu0
        %v6654 = vadd.f32 0.0, %v6653
        %v6655 = vpop.f32.mrf.mxu0
        %v6656 = vadd.f32 0.0, %v6655
        %v6657 = vpop.f32.mrf.mxu0
        %v6658 = vadd.f32 0.0, %v6657
        %6659 = vmatprep.mubr.bf16.mxu0 %v5602
        %6660 = vmatmul.mubr.bf16.gmra.mxu0 %v5601
        %v6661 = vpop.f32.mrf.mxu0
        %v6662 = vadd.f32 0.0, %v6661
        %v6663 = vpop.f32.mrf.mxu0
        %v6664 = vadd.f32 0.0, %v6663
        %v6665 = vpop.f32.mrf.mxu0
        %v6666 = vadd.f32 0.0, %v6665
        %v6667 = vpop.f32.mrf.mxu0
        %v6668 = vadd.f32 0.0, %v6667
        %6669 = vmatprep.mubr.bf16.mxu0 %v5604
        %6670 = vmatmul.mubr.bf16.gmra.mxu0 %v5603
        %v6671 = vpop.f32.mrf.mxu0
        %v6672 = vadd.f32 0.0, %v6671
        %v6673 = vpop.f32.mrf.mxu0
        %v6674 = vadd.f32 0.0, %v6673
        %v6675 = vpop.f32.mrf.mxu0
        %v6676 = vadd.f32 0.0, %v6675
        %v6677 = vpop.f32.mrf.mxu0
        %v6678 = vadd.f32 0.0, %v6677
        %6679 = vmatprep.mubr.bf16.mxu0 %v5606
        %6680 = vmatmul.mubr.bf16.gmra.mxu0 %v5605
        %v6681 = vpop.f32.mrf.mxu0
        %v6682 = vadd.f32 0.0, %v6681
        %v6683 = vpop.f32.mrf.mxu0
        %v6684 = vadd.f32 0.0, %v6683
        %v6685 = vpop.f32.mrf.mxu0
        %v6686 = vadd.f32 0.0, %v6685
        %v6687 = vpop.f32.mrf.mxu0
        %v6688 = vadd.f32 0.0, %v6687
        %6689 = vmatprep.mubr.bf16.mxu0 %v5608
        %6690 = vmatmul.mubr.bf16.gmra.mxu0 %v5607
        %v6691 = vpop.f32.mrf.mxu0
        %v6692 = vadd.f32 0.0, %v6691
        %v6693 = vpop.f32.mrf.mxu0
        %v6694 = vadd.f32 0.0, %v6693
        %v6695 = vpop.f32.mrf.mxu0
        %v6696 = vadd.f32 0.0, %v6695
        %v6697 = vpop.f32.mrf.mxu0
        %v6698 = vadd.f32 0.0, %v6697
        %6699 = vmatprep.mubr.bf16.mxu0 %v5610
        %6700 = vmatmul.mubr.bf16.gmra.mxu0 %v5609
        %v6701 = vpop.f32.mrf.mxu0
        %v6702 = vadd.f32 0.0, %v6701
        %v6703 = vpop.f32.mrf.mxu0
        %v6704 = vadd.f32 0.0, %v6703
        %v6705 = vpop.f32.mrf.mxu0
        %v6706 = vadd.f32 0.0, %v6705
        %v6707 = vpop.f32.mrf.mxu0
        %v6708 = vadd.f32 0.0, %v6707
        %6709 = vmatprep.mubr.bf16.mxu0 %v5612
        %6710 = vmatmul.mubr.bf16.gmra.mxu0 %v5611
        %v6711 = vpop.f32.mrf.mxu0
        %v6712 = vadd.f32 0.0, %v6711
        %v6713 = vpop.f32.mrf.mxu0
        %v6714 = vadd.f32 0.0, %v6713
        %v6715 = vpop.f32.mrf.mxu0
        %v6716 = vadd.f32 0.0, %v6715
        %v6717 = vpop.f32.mrf.mxu0
        %v6718 = vadd.f32 0.0, %v6717
        %6719 = vdwg.mxu0
        %6720 = vmatprep.subr.bf16.mxu0 %v6188
        %6721 = vmatpush1.bf16.msra.mxu0 %v6187
        %6722 = vmatprep.subr.bf16.mxu0 %v6180
        %6723 = vmatpush1.bf16.msra.mxu0 %v6179
        %6724 = vmatprep.subr.bf16.mxu0 %v6172
        %6725 = vmatpush1.bf16.msra.mxu0 %v6171
        %6726 = vmatprep.subr.bf16.mxu0 %v6164
        %6727 = vmatpush1.bf16.msra.mxu0 %v6163
        %6728 = vmatprep.subr.bf16.mxu0 %v6156
        %6729 = vmatpush1.bf16.msra.mxu0 %v6155
        %6730 = vmatprep.subr.bf16.mxu0 %v6148
        %6731 = vmatpush1.bf16.msra.mxu0 %v6147
        %6732 = vmatprep.subr.bf16.mxu0 %v6140
        %6733 = vmatpush1.bf16.msra.mxu0 %v6139
        %6734 = vmatprep.subr.bf16.mxu0 %v6132
        %6735 = vmatpush1.bf16.msra.mxu0 %v6131
        %6736 = vmatprep.subr.bf16.mxu0 %v6252
        %6737 = vmatpush2.bf16.msra.mxu0 %v6251
        %6738 = vmatprep.subr.bf16.mxu0 %v6244
        %6739 = vmatpush2.bf16.msra.mxu0 %v6243
        %6740 = vmatprep.subr.bf16.mxu0 %v6236
        %6741 = vmatpush2.bf16.msra.mxu0 %v6235
        %6742 = vmatprep.subr.bf16.mxu0 %v6228
        %6743 = vmatpush2.bf16.msra.mxu0 %v6227
        %6744 = vmatprep.subr.bf16.mxu0 %v6220
        %6745 = vmatpush2.bf16.msra.mxu0 %v6219
        %6746 = vmatprep.subr.bf16.mxu0 %v6212
        %6747 = vmatpush2.bf16.msra.mxu0 %v6211
        %6748 = vmatprep.subr.bf16.mxu0 %v6204
        %6749 = vmatpush2.bf16.msra.mxu0 %v6203
        %6750 = vmatprep.subr.bf16.mxu0 %v6196
        %6751 = vmatpush2.bf16.msra.mxu0 %v6195
        %6752 = vmatprep.mubr.bf16.mxu0 %v5598
        %6753 = vmatmul.mubr.bf16.gmra.mxu0 %v5597
        %v6754 = vpop.f32.mrf.mxu0
        %v6755 = vadd.f32 0.0, %v6754
        %v6756 = vpop.f32.mrf.mxu0
        %v6757 = vadd.f32 0.0, %v6756
        %v6758 = vpop.f32.mrf.mxu0
        %v6759 = vadd.f32 0.0, %v6758
        %v6760 = vpop.f32.mrf.mxu0
        %v6761 = vadd.f32 0.0, %v6760
        %6762 = vmatprep.mubr.bf16.mxu0 %v5600
        %6763 = vmatmul.mubr.bf16.gmra.mxu0 %v5599
        %v6764 = vpop.f32.mrf.mxu0
        %v6765 = vadd.f32 0.0, %v6764
        %v6766 = vpop.f32.mrf.mxu0
        %v6767 = vadd.f32 0.0, %v6766
        %v6768 = vpop.f32.mrf.mxu0
        %v6769 = vadd.f32 0.0, %v6768
        %v6770 = vpop.f32.mrf.mxu0
        %v6771 = vadd.f32 0.0, %v6770
        %6772 = vmatprep.mubr.bf16.mxu0 %v5602
        %6773 = vmatmul.mubr.bf16.gmra.mxu0 %v5601
        %v6774 = vpop.f32.mrf.mxu0
        %v6775 = vadd.f32 0.0, %v6774
        %v6776 = vpop.f32.mrf.mxu0
        %v6777 = vadd.f32 0.0, %v6776
        %v6778 = vpop.f32.mrf.mxu0
        %v6779 = vadd.f32 0.0, %v6778
        %v6780 = vpop.f32.mrf.mxu0
        %v6781 = vadd.f32 0.0, %v6780
        %6782 = vmatprep.mubr.bf16.mxu0 %v5604
        %6783 = vmatmul.mubr.bf16.gmra.mxu0 %v5603
        %v6784 = vpop.f32.mrf.mxu0
        %v6785 = vadd.f32 0.0, %v6784
        %v6786 = vpop.f32.mrf.mxu0
        %v6787 = vadd.f32 0.0, %v6786
        %v6788 = vpop.f32.mrf.mxu0
        %v6789 = vadd.f32 0.0, %v6788
        %v6790 = vpop.f32.mrf.mxu0
        %v6791 = vadd.f32 0.0, %v6790
        %6792 = vmatprep.mubr.bf16.mxu0 %v5606
        %6793 = vmatmul.mubr.bf16.gmra.mxu0 %v5605
        %v6794 = vpop.f32.mrf.mxu0
        %v6795 = vadd.f32 0.0, %v6794
        %v6796 = vpop.f32.mrf.mxu0
        %v6797 = vadd.f32 0.0, %v6796
        %v6798 = vpop.f32.mrf.mxu0
        %v6799 = vadd.f32 0.0, %v6798
        %v6800 = vpop.f32.mrf.mxu0
        %v6801 = vadd.f32 0.0, %v6800
        %6802 = vmatprep.mubr.bf16.mxu0 %v5608
        %6803 = vmatmul.mubr.bf16.gmra.mxu0 %v5607
        %v6804 = vpop.f32.mrf.mxu0
        %v6805 = vadd.f32 0.0, %v6804
        %v6806 = vpop.f32.mrf.mxu0
        %v6807 = vadd.f32 0.0, %v6806
        %v6808 = vpop.f32.mrf.mxu0
        %v6809 = vadd.f32 0.0, %v6808
        %v6810 = vpop.f32.mrf.mxu0
        %v6811 = vadd.f32 0.0, %v6810
        %6812 = vmatprep.mubr.bf16.mxu0 %v5610
        %6813 = vmatmul.mubr.bf16.gmra.mxu0 %v5609
        %v6814 = vpop.f32.mrf.mxu0
        %v6815 = vadd.f32 0.0, %v6814
        %v6816 = vpop.f32.mrf.mxu0
        %v6817 = vadd.f32 0.0, %v6816
        %v6818 = vpop.f32.mrf.mxu0
        %v6819 = vadd.f32 0.0, %v6818
        %v6820 = vpop.f32.mrf.mxu0
        %v6821 = vadd.f32 0.0, %v6820
        %6822 = vmatprep.mubr.bf16.mxu0 %v5612
        %6823 = vmatmul.mubr.bf16.gmra.mxu0 %v5611
        %v6824 = vpop.f32.mrf.mxu0
        %v6825 = vadd.f32 0.0, %v6824
        %v6826 = vpop.f32.mrf.mxu0
        %v6827 = vadd.f32 0.0, %v6826
        %v6828 = vpop.f32.mrf.mxu0
        %v6829 = vadd.f32 0.0, %v6828
        %v6830 = vpop.f32.mrf.mxu0
        %v6831 = vadd.f32 0.0, %v6830
        %6832 = vdwg.mxu0
        %v6833 = vxor.u32 %v6416, 2147483648
        %v6834 = vxor.u32 %v6418, 2147483648
        %v6835 = vxor.u32 %v6529, 2147483648
        %v6836 = vxor.u32 %v6531, 2147483648
        %v6837 = vxor.u32 %v6420, 2147483648
        %v6838 = vxor.u32 %v6422, 2147483648
        %v6839 = vxor.u32 %v6533, 2147483648
        %v6840 = vxor.u32 %v6535, 2147483648
        %v6841 = vxor.u32 %v6426, 2147483648
        %v6842 = vxor.u32 %v6428, 2147483648
        %v6843 = vxor.u32 %v6539, 2147483648
        %v6844 = vxor.u32 %v6541, 2147483648
        %v6845 = vxor.u32 %v6430, 2147483648
        %v6846 = vxor.u32 %v6432, 2147483648
        %v6847 = vxor.u32 %v6543, 2147483648
        %v6848 = vxor.u32 %v6545, 2147483648
        %v6849 = vxor.u32 %v6436, 2147483648
        %v6850 = vxor.u32 %v6438, 2147483648
        %v6851 = vxor.u32 %v6549, 2147483648
        %v6852 = vxor.u32 %v6551, 2147483648
        %v6853 = vxor.u32 %v6440, 2147483648
        %v6854 = vxor.u32 %v6442, 2147483648
        %v6855 = vxor.u32 %v6553, 2147483648
        %v6856 = vxor.u32 %v6555, 2147483648
        %v6857 = vxor.u32 %v6446, 2147483648
        %v6858 = vxor.u32 %v6448, 2147483648
        %v6859 = vxor.u32 %v6559, 2147483648
        %v6860 = vxor.u32 %v6561, 2147483648
        %v6861 = vxor.u32 %v6450, 2147483648
        %v6862 = vxor.u32 %v6452, 2147483648
        %v6863 = vxor.u32 %v6563, 2147483648
        %v6864 = vxor.u32 %v6565, 2147483648
        %v6865 = vxor.u32 %v6456, 2147483648
        %v6866 = vxor.u32 %v6458, 2147483648
        %v6867 = vxor.u32 %v6569, 2147483648
        %v6868 = vxor.u32 %v6571, 2147483648
        %v6869 = vxor.u32 %v6460, 2147483648
        %v6870 = vxor.u32 %v6462, 2147483648
        %v6871 = vxor.u32 %v6573, 2147483648
        %v6872 = vxor.u32 %v6575, 2147483648
        %v6873 = vxor.u32 %v6466, 2147483648
        %v6874 = vxor.u32 %v6468, 2147483648
        %v6875 = vxor.u32 %v6579, 2147483648
        %v6876 = vxor.u32 %v6581, 2147483648
        %v6877 = vxor.u32 %v6470, 2147483648
        %v6878 = vxor.u32 %v6472, 2147483648
        %v6879 = vxor.u32 %v6583, 2147483648
        %v6880 = vxor.u32 %v6585, 2147483648
        %v6881 = vxor.u32 %v6476, 2147483648
        %v6882 = vxor.u32 %v6478, 2147483648
        %v6883 = vxor.u32 %v6589, 2147483648
        %v6884 = vxor.u32 %v6591, 2147483648
        %v6885 = vxor.u32 %v6480, 2147483648
        %v6886 = vxor.u32 %v6482, 2147483648
        %v6887 = vxor.u32 %v6593, 2147483648
        %v6888 = vxor.u32 %v6595, 2147483648
        %v6889 = vxor.u32 %v6486, 2147483648
        %v6890 = vxor.u32 %v6488, 2147483648
        %v6891 = vxor.u32 %v6599, 2147483648
        %v6892 = vxor.u32 %v6601, 2147483648
        %v6893 = vxor.u32 %v6490, 2147483648
        %v6894 = vxor.u32 %v6492, 2147483648
        %v6895 = vxor.u32 %v6603, 2147483648
        %v6896 = vxor.u32 %v6605, 2147483648
        %v6897 = vmul.f32 %v6833, 1.442695
        %v6898 = vpow.pop %v6897
        %v6899 = vmul.f32 %v6834, 1.442695
        %v6900 = vpow.pop %v6899
        %v6901 = vmul.f32 %v6835, 1.442695
        %v6902 = vpow.pop %v6901
        %v6903 = vmul.f32 %v6836, 1.442695
        %v6904 = vpow.pop %v6903
        %v6905 = vmul.f32 %v6837, 1.442695
        %v6906 = vpow.pop %v6905
        %v6907 = vmul.f32 %v6838, 1.442695
        %v6908 = vpow.pop %v6907
        %v6909 = vmul.f32 %v6839, 1.442695
        %v6910 = vpow.pop %v6909
        %v6911 = vmul.f32 %v6840, 1.442695
        %v6912 = vpow.pop %v6911
        %v6913 = vmul.f32 %v6841, 1.442695
        %v6914 = vpow.pop %v6913
        %v6915 = vmul.f32 %v6842, 1.442695
        %v6916 = vpow.pop %v6915
        %v6917 = vmul.f32 %v6843, 1.442695
        %v6918 = vpow.pop %v6917
        %v6919 = vmul.f32 %v6844, 1.442695
        %v6920 = vpow.pop %v6919
        %v6921 = vmul.f32 %v6845, 1.442695
        %v6922 = vpow.pop %v6921
        %v6923 = vmul.f32 %v6846, 1.442695
        %v6924 = vpow.pop %v6923
        %v6925 = vmul.f32 %v6847, 1.442695
        %v6926 = vpow.pop %v6925
        %v6927 = vmul.f32 %v6848, 1.442695
        %v6928 = vpow.pop %v6927
        %v6929 = vmul.f32 %v6849, 1.442695
        %v6930 = vpow.pop %v6929
        %v6931 = vmul.f32 %v6850, 1.442695
        %v6932 = vpow.pop %v6931
        %v6933 = vmul.f32 %v6851, 1.442695
        %v6934 = vpow.pop %v6933
        %v6935 = vmul.f32 %v6852, 1.442695
        %v6936 = vpow.pop %v6935
        %v6937 = vmul.f32 %v6853, 1.442695
        %v6938 = vpow.pop %v6937
        %v6939 = vmul.f32 %v6854, 1.442695
        %v6940 = vpow.pop %v6939
        %v6941 = vmul.f32 %v6855, 1.442695
        %v6942 = vpow.pop %v6941
        %v6943 = vmul.f32 %v6856, 1.442695
        %v6944 = vpow.pop %v6943
        %v6945 = vmul.f32 %v6857, 1.442695
        %v6946 = vpow.pop %v6945
        %v6947 = vmul.f32 %v6858, 1.442695
        %v6948 = vpow.pop %v6947
        %v6949 = vmul.f32 %v6859, 1.442695
        %v6950 = vpow.pop %v6949
        %v6951 = vmul.f32 %v6860, 1.442695
        %v6952 = vpow.pop %v6951
        %v6953 = vmul.f32 %v6861, 1.442695
        %v6954 = vpow.pop %v6953
        %v6955 = vmul.f32 %v6862, 1.442695
        %v6956 = vpow.pop %v6955
        %v6957 = vmul.f32 %v6863, 1.442695
        %v6958 = vpow.pop %v6957
        %v6959 = vmul.f32 %v6864, 1.442695
        %v6960 = vpow.pop %v6959
        %v6961 = vmul.f32 %v6865, 1.442695
        %v6962 = vpow.pop %v6961
        %v6963 = vmul.f32 %v6866, 1.442695
        %v6964 = vpow.pop %v6963
        %v6965 = vmul.f32 %v6867, 1.442695
        %v6966 = vpow.pop %v6965
        %v6967 = vmul.f32 %v6868, 1.442695
        %v6968 = vpow.pop %v6967
        %v6969 = vmul.f32 %v6869, 1.442695
        %v6970 = vpow.pop %v6969
        %v6971 = vmul.f32 %v6870, 1.442695
        %v6972 = vpow.pop %v6971
        %v6973 = vmul.f32 %v6871, 1.442695
        %v6974 = vpow.pop %v6973
        %v6975 = vmul.f32 %v6872, 1.442695
        %v6976 = vpow.pop %v6975
        %v6977 = vmul.f32 %v6873, 1.442695
        %v6978 = vpow.pop %v6977
        %v6979 = vmul.f32 %v6874, 1.442695
        %v6980 = vpow.pop %v6979
        %v6981 = vmul.f32 %v6875, 1.442695
        %v6982 = vpow.pop %v6981
        %v6983 = vmul.f32 %v6876, 1.442695
        %v6984 = vpow.pop %v6983
        %v6985 = vmul.f32 %v6877, 1.442695
        %v6986 = vpow.pop %v6985
        %v6987 = vmul.f32 %v6878, 1.442695
        %v6988 = vpow.pop %v6987
        %v6989 = vmul.f32 %v6879, 1.442695
        %v6990 = vpow.pop %v6989
        %v6991 = vmul.f32 %v6880, 1.442695
        %v6992 = vpow.pop %v6991
        %v6993 = vmul.f32 %v6881, 1.442695
        %v6994 = vpow.pop %v6993
        %v6995 = vmul.f32 %v6882, 1.442695
        %v6996 = vpow.pop %v6995
        %v6997 = vmul.f32 %v6883, 1.442695
        %v6998 = vpow.pop %v6997
        %v6999 = vmul.f32 %v6884, 1.442695
        %v7000 = vpow.pop %v6999
        %v7001 = vmul.f32 %v6885, 1.442695
        %v7002 = vpow.pop %v7001
        %v7003 = vmul.f32 %v6886, 1.442695
        %v7004 = vpow.pop %v7003
        %v7005 = vmul.f32 %v6887, 1.442695
        %v7006 = vpow.pop %v7005
        %v7007 = vmul.f32 %v6888, 1.442695
        %v7008 = vpow.pop %v7007
        %v7009 = vmul.f32 %v6889, 1.442695
        %v7010 = vpow.pop %v7009
        %v7011 = vmul.f32 %v6890, 1.442695
        %v7012 = vpow.pop %v7011
        %v7013 = vmul.f32 %v6891, 1.442695
        %v7014 = vpow.pop %v7013
        %v7015 = vmul.f32 %v6892, 1.442695
        %v7016 = vpow.pop %v7015
        %v7017 = vmul.f32 %v6893, 1.442695
        %v7018 = vpow.pop %v7017
        %v7019 = vmul.f32 %v6894, 1.442695
        %v7020 = vpow.pop %v7019
        %v7021 = vmul.f32 %v6895, 1.442695
        %v7022 = vpow.pop %v7021
        %v7023 = vmul.f32 %v6896, 1.442695
        %v7024 = vpow.pop %v7023
        %v7025 = vadd.f32 %v6898, 1.0
        %v7026 = vadd.f32 %v6900, 1.0
        %v7027 = vadd.f32 %v6902, 1.0
        %v7028 = vadd.f32 %v6904, 1.0
        %v7029 = vadd.f32 %v6906, 1.0
        %v7030 = vadd.f32 %v6908, 1.0
        %v7031 = vadd.f32 %v6910, 1.0
        %v7032 = vadd.f32 %v6912, 1.0
        %v7033 = vadd.f32 %v6914, 1.0
        %v7034 = vadd.f32 %v6916, 1.0
        %v7035 = vadd.f32 %v6918, 1.0
        %v7036 = vadd.f32 %v6920, 1.0
        %v7037 = vadd.f32 %v6922, 1.0
        %v7038 = vadd.f32 %v6924, 1.0
        %v7039 = vadd.f32 %v6926, 1.0
        %v7040 = vadd.f32 %v6928, 1.0
        %v7041 = vadd.f32 %v6930, 1.0
        %v7042 = vadd.f32 %v6932, 1.0
        %v7043 = vadd.f32 %v6934, 1.0
        %v7044 = vadd.f32 %v6936, 1.0
        %v7045 = vadd.f32 %v6938, 1.0
        %v7046 = vadd.f32 %v6940, 1.0
        %v7047 = vadd.f32 %v6942, 1.0
        %v7048 = vadd.f32 %v6944, 1.0
        %v7049 = vadd.f32 %v6946, 1.0
        %v7050 = vadd.f32 %v6948, 1.0
        %v7051 = vadd.f32 %v6950, 1.0
        %v7052 = vadd.f32 %v6952, 1.0
        %v7053 = vadd.f32 %v6954, 1.0
        %v7054 = vadd.f32 %v6956, 1.0
        %v7055 = vadd.f32 %v6958, 1.0
        %v7056 = vadd.f32 %v6960, 1.0
        %v7057 = vadd.f32 %v6962, 1.0
        %v7058 = vadd.f32 %v6964, 1.0
        %v7059 = vadd.f32 %v6966, 1.0
        %v7060 = vadd.f32 %v6968, 1.0
        %v7061 = vadd.f32 %v6970, 1.0
        %v7062 = vadd.f32 %v6972, 1.0
        %v7063 = vadd.f32 %v6974, 1.0
        %v7064 = vadd.f32 %v6976, 1.0
        %v7065 = vadd.f32 %v6978, 1.0
        %v7066 = vadd.f32 %v6980, 1.0
        %v7067 = vadd.f32 %v6982, 1.0
        %v7068 = vadd.f32 %v6984, 1.0
        %v7069 = vadd.f32 %v6986, 1.0
        %v7070 = vadd.f32 %v6988, 1.0
        %v7071 = vadd.f32 %v6990, 1.0
        %v7072 = vadd.f32 %v6992, 1.0
        %v7073 = vadd.f32 %v6994, 1.0
        %v7074 = vadd.f32 %v6996, 1.0
        %v7075 = vadd.f32 %v6998, 1.0
        %v7076 = vadd.f32 %v7000, 1.0
        %v7077 = vadd.f32 %v7002, 1.0
        %v7078 = vadd.f32 %v7004, 1.0
        %v7079 = vadd.f32 %v7006, 1.0
        %v7080 = vadd.f32 %v7008, 1.0
        %v7081 = vadd.f32 %v7010, 1.0
        %v7082 = vadd.f32 %v7012, 1.0
        %v7083 = vadd.f32 %v7014, 1.0
        %v7084 = vadd.f32 %v7016, 1.0
        %v7085 = vadd.f32 %v7018, 1.0
        %v7086 = vadd.f32 %v7020, 1.0
        %v7087 = vadd.f32 %v7022, 1.0
        %v7088 = vadd.f32 %v7024, 1.0
        %v7089 = vrcp.pop %v7025
        %v7090 = vmul.f32 1.0, %v7089
        %v7091 = vrcp.pop %v7026
        %v7092 = vmul.f32 1.0, %v7091
        %v7093 = vrcp.pop %v7027
        %v7094 = vmul.f32 1.0, %v7093
        %v7095 = vrcp.pop %v7028
        %v7096 = vmul.f32 1.0, %v7095
        %v7097 = vrcp.pop %v7029
        %v7098 = vmul.f32 1.0, %v7097
        %v7099 = vrcp.pop %v7030
        %v7100 = vmul.f32 1.0, %v7099
        %v7101 = vrcp.pop %v7031
        %v7102 = vmul.f32 1.0, %v7101
        %v7103 = vrcp.pop %v7032
        %v7104 = vmul.f32 1.0, %v7103
        %v7105 = vrcp.pop %v7033
        %v7106 = vmul.f32 1.0, %v7105
        %v7107 = vrcp.pop %v7034
        %v7108 = vmul.f32 1.0, %v7107
        %v7109 = vrcp.pop %v7035
        %v7110 = vmul.f32 1.0, %v7109
        %v7111 = vrcp.pop %v7036
        %v7112 = vmul.f32 1.0, %v7111
        %v7113 = vrcp.pop %v7037
        %v7114 = vmul.f32 1.0, %v7113
        %v7115 = vrcp.pop %v7038
        %v7116 = vmul.f32 1.0, %v7115
        %v7117 = vrcp.pop %v7039
        %v7118 = vmul.f32 1.0, %v7117
        %v7119 = vrcp.pop %v7040
        %v7120 = vmul.f32 1.0, %v7119
        %v7121 = vrcp.pop %v7041
        %v7122 = vmul.f32 1.0, %v7121
        %v7123 = vrcp.pop %v7042
        %v7124 = vmul.f32 1.0, %v7123
        %v7125 = vrcp.pop %v7043
        %v7126 = vmul.f32 1.0, %v7125
        %v7127 = vrcp.pop %v7044
        %v7128 = vmul.f32 1.0, %v7127
        %v7129 = vrcp.pop %v7045
        %v7130 = vmul.f32 1.0, %v7129
        %v7131 = vrcp.pop %v7046
        %v7132 = vmul.f32 1.0, %v7131
        %v7133 = vrcp.pop %v7047
        %v7134 = vmul.f32 1.0, %v7133
        %v7135 = vrcp.pop %v7048
        %v7136 = vmul.f32 1.0, %v7135
        %v7137 = vrcp.pop %v7049
        %v7138 = vmul.f32 1.0, %v7137
        %v7139 = vrcp.pop %v7050
        %v7140 = vmul.f32 1.0, %v7139
        %v7141 = vrcp.pop %v7051
        %v7142 = vmul.f32 1.0, %v7141
        %v7143 = vrcp.pop %v7052
        %v7144 = vmul.f32 1.0, %v7143
        %v7145 = vrcp.pop %v7053
        %v7146 = vmul.f32 1.0, %v7145
        %v7147 = vrcp.pop %v7054
        %v7148 = vmul.f32 1.0, %v7147
        %v7149 = vrcp.pop %v7055
        %v7150 = vmul.f32 1.0, %v7149
        %v7151 = vrcp.pop %v7056
        %v7152 = vmul.f32 1.0, %v7151
        %v7153 = vrcp.pop %v7057
        %v7154 = vmul.f32 1.0, %v7153
        %v7155 = vrcp.pop %v7058
        %v7156 = vmul.f32 1.0, %v7155
        %v7157 = vrcp.pop %v7059
        %v7158 = vmul.f32 1.0, %v7157
        %v7159 = vrcp.pop %v7060
        %v7160 = vmul.f32 1.0, %v7159
        %v7161 = vrcp.pop %v7061
        %v7162 = vmul.f32 1.0, %v7161
        %v7163 = vrcp.pop %v7062
        %v7164 = vmul.f32 1.0, %v7163
        %v7165 = vrcp.pop %v7063
        %v7166 = vmul.f32 1.0, %v7165
        %v7167 = vrcp.pop %v7064
        %v7168 = vmul.f32 1.0, %v7167
        %v7169 = vrcp.pop %v7065
        %v7170 = vmul.f32 1.0, %v7169
        %v7171 = vrcp.pop %v7066
        %v7172 = vmul.f32 1.0, %v7171
        %v7173 = vrcp.pop %v7067
        %v7174 = vmul.f32 1.0, %v7173
        %v7175 = vrcp.pop %v7068
        %v7176 = vmul.f32 1.0, %v7175
        %v7177 = vrcp.pop %v7069
        %v7178 = vmul.f32 1.0, %v7177
        %v7179 = vrcp.pop %v7070
        %v7180 = vmul.f32 1.0, %v7179
        %v7181 = vrcp.pop %v7071
        %v7182 = vmul.f32 1.0, %v7181
        %v7183 = vrcp.pop %v7072
        %v7184 = vmul.f32 1.0, %v7183
        %v7185 = vrcp.pop %v7073
        %v7186 = vmul.f32 1.0, %v7185
        %v7187 = vrcp.pop %v7074
        %v7188 = vmul.f32 1.0, %v7187
        %v7189 = vrcp.pop %v7075
        %v7190 = vmul.f32 1.0, %v7189
        %v7191 = vrcp.pop %v7076
        %v7192 = vmul.f32 1.0, %v7191
        %v7193 = vrcp.pop %v7077
        %v7194 = vmul.f32 1.0, %v7193
        %v7195 = vrcp.pop %v7078
        %v7196 = vmul.f32 1.0, %v7195
        %v7197 = vrcp.pop %v7079
        %v7198 = vmul.f32 1.0, %v7197
        %v7199 = vrcp.pop %v7080
        %v7200 = vmul.f32 1.0, %v7199
        %v7201 = vrcp.pop %v7081
        %v7202 = vmul.f32 1.0, %v7201
        %v7203 = vrcp.pop %v7082
        %v7204 = vmul.f32 1.0, %v7203
        %v7205 = vrcp.pop %v7083
        %v7206 = vmul.f32 1.0, %v7205
        %v7207 = vrcp.pop %v7084
        %v7208 = vmul.f32 1.0, %v7207
        %v7209 = vrcp.pop %v7085
        %v7210 = vmul.f32 1.0, %v7209
        %v7211 = vrcp.pop %v7086
        %v7212 = vmul.f32 1.0, %v7211
        %v7213 = vrcp.pop %v7087
        %v7214 = vmul.f32 1.0, %v7213
        %v7215 = vrcp.pop %v7088
        %v7216 = vmul.f32 1.0, %v7215
        %v7217 = vmul.f32 %v6416, %v7090
        %v7218 = vmul.f32 %v6418, %v7092
        %v7219 = vmul.f32 %v6529, %v7094
        %v7220 = vmul.f32 %v6531, %v7096
        %v7221 = vmul.f32 %v6420, %v7098
        %v7222 = vmul.f32 %v6422, %v7100
        %v7223 = vmul.f32 %v6533, %v7102
        %v7224 = vmul.f32 %v6535, %v7104
        %v7225 = vmul.f32 %v6426, %v7106
        %v7226 = vmul.f32 %v6428, %v7108
        %v7227 = vmul.f32 %v6539, %v7110
        %v7228 = vmul.f32 %v6541, %v7112
        %v7229 = vmul.f32 %v6430, %v7114
        %v7230 = vmul.f32 %v6432, %v7116
        %v7231 = vmul.f32 %v6543, %v7118
        %v7232 = vmul.f32 %v6545, %v7120
        %v7233 = vmul.f32 %v6436, %v7122
        %v7234 = vmul.f32 %v6438, %v7124
        %v7235 = vmul.f32 %v6549, %v7126
        %v7236 = vmul.f32 %v6551, %v7128
        %v7237 = vmul.f32 %v6440, %v7130
        %v7238 = vmul.f32 %v6442, %v7132
        %v7239 = vmul.f32 %v6553, %v7134
        %v7240 = vmul.f32 %v6555, %v7136
        %v7241 = vmul.f32 %v6446, %v7138
        %v7242 = vmul.f32 %v6448, %v7140
        %v7243 = vmul.f32 %v6559, %v7142
        %v7244 = vmul.f32 %v6561, %v7144
        %v7245 = vmul.f32 %v6450, %v7146
        %v7246 = vmul.f32 %v6452, %v7148
        %v7247 = vmul.f32 %v6563, %v7150
        %v7248 = vmul.f32 %v6565, %v7152
        %v7249 = vmul.f32 %v6456, %v7154
        %v7250 = vmul.f32 %v6458, %v7156
        %v7251 = vmul.f32 %v6569, %v7158
        %v7252 = vmul.f32 %v6571, %v7160
        %v7253 = vmul.f32 %v6460, %v7162
        %v7254 = vmul.f32 %v6462, %v7164
        %v7255 = vmul.f32 %v6573, %v7166
        %v7256 = vmul.f32 %v6575, %v7168
        %v7257 = vmul.f32 %v6466, %v7170
        %v7258 = vmul.f32 %v6468, %v7172
        %v7259 = vmul.f32 %v6579, %v7174
        %v7260 = vmul.f32 %v6581, %v7176
        %v7261 = vmul.f32 %v6470, %v7178
        %v7262 = vmul.f32 %v6472, %v7180
        %v7263 = vmul.f32 %v6583, %v7182
        %v7264 = vmul.f32 %v6585, %v7184
        %v7265 = vmul.f32 %v6476, %v7186
        %v7266 = vmul.f32 %v6478, %v7188
        %v7267 = vmul.f32 %v6589, %v7190
        %v7268 = vmul.f32 %v6591, %v7192
        %v7269 = vmul.f32 %v6480, %v7194
        %v7270 = vmul.f32 %v6482, %v7196
        %v7271 = vmul.f32 %v6593, %v7198
        %v7272 = vmul.f32 %v6595, %v7200
        %v7273 = vmul.f32 %v6486, %v7202
        %v7274 = vmul.f32 %v6488, %v7204
        %v7275 = vmul.f32 %v6599, %v7206
        %v7276 = vmul.f32 %v6601, %v7208
        %v7277 = vmul.f32 %v6490, %v7210
        %v7278 = vmul.f32 %v6492, %v7212
        %v7279 = vmul.f32 %v6603, %v7214
        %v7280 = vmul.f32 %v6605, %v7216
        %v7281 = vmul.f32 %v7217, %v6642
        %v7282 = vmul.f32 %v7218, %v6644
        %v7283 = vmul.f32 %v7219, %v6755
        %v7284 = vmul.f32 %v7220, %v6757
        %v7285 = vmul.f32 %v7221, %v6646
        %v7286 = vmul.f32 %v7222, %v6648
        %v7287 = vmul.f32 %v7223, %v6759
        %v7288 = vmul.f32 %v7224, %v6761
        %v7289 = vmul.f32 %v7225, %v6652
        %v7290 = vmul.f32 %v7226, %v6654
        %v7291 = vmul.f32 %v7227, %v6765
        %v7292 = vmul.f32 %v7228, %v6767
        %v7293 = vmul.f32 %v7229, %v6656
        %v7294 = vmul.f32 %v7230, %v6658
        %v7295 = vmul.f32 %v7231, %v6769
        %v7296 = vmul.f32 %v7232, %v6771
        %v7297 = vmul.f32 %v7233, %v6662
        %v7298 = vmul.f32 %v7234, %v6664
        %v7299 = vmul.f32 %v7235, %v6775
        %v7300 = vmul.f32 %v7236, %v6777
        %v7301 = vmul.f32 %v7237, %v6666
        %v7302 = vmul.f32 %v7238, %v6668
        %v7303 = vmul.f32 %v7239, %v6779
        %v7304 = vmul.f32 %v7240, %v6781
        %v7305 = vmul.f32 %v7241, %v6672
        %v7306 = vmul.f32 %v7242, %v6674
        %v7307 = vmul.f32 %v7243, %v6785
        %v7308 = vmul.f32 %v7244, %v6787
        %v7309 = vmul.f32 %v7245, %v6676
        %v7310 = vmul.f32 %v7246, %v6678
        %v7311 = vmul.f32 %v7247, %v6789
        %v7312 = vmul.f32 %v7248, %v6791
        %v7313 = vmul.f32 %v7249, %v6682
        %v7314 = vmul.f32 %v7250, %v6684
        %v7315 = vmul.f32 %v7251, %v6795
        %v7316 = vmul.f32 %v7252, %v6797
        %v7317 = vmul.f32 %v7253, %v6686
        %v7318 = vmul.f32 %v7254, %v6688
        %v7319 = vmul.f32 %v7255, %v6799
        %v7320 = vmul.f32 %v7256, %v6801
        %v7321 = vmul.f32 %v7257, %v6692
        %v7322 = vmul.f32 %v7258, %v6694
        %v7323 = vmul.f32 %v7259, %v6805
        %v7324 = vmul.f32 %v7260, %v6807
        %v7325 = vmul.f32 %v7261, %v6696
        %v7326 = vmul.f32 %v7262, %v6698
        %v7327 = vmul.f32 %v7263, %v6809
        %v7328 = vmul.f32 %v7264, %v6811
        %v7329 = vmul.f32 %v7265, %v6702
        %v7330 = vmul.f32 %v7266, %v6704
        %v7331 = vmul.f32 %v7267, %v6815
        %v7332 = vmul.f32 %v7268, %v6817
        %v7333 = vmul.f32 %v7269, %v6706
        %v7334 = vmul.f32 %v7270, %v6708
        %v7335 = vmul.f32 %v7271, %v6819
        %v7336 = vmul.f32 %v7272, %v6821
        %v7337 = vmul.f32 %v7273, %v6712
        %v7338 = vmul.f32 %v7274, %v6714
        %v7339 = vmul.f32 %v7275, %v6825
        %v7340 = vmul.f32 %v7276, %v6827
        %v7341 = vmul.f32 %v7277, %v6716
        %v7342 = vmul.f32 %v7278, %v6718
        %v7343 = vmul.f32 %v7279, %v6829
        %v7344 = vmul.f32 %v7280, %v6831
        %v7345 = vpack.c.bf16 %v7285, %v7281
        %v7346 = vpack.c.bf16 %v7286, %v7282
        %v7347 = vpack.c.bf16 %v7287, %v7283
        %v7348 = vpack.c.bf16 %v7288, %v7284
        %v7349 = vpack.c.bf16 %v7293, %v7289
        %v7350 = vpack.c.bf16 %v7294, %v7290
        %v7351 = vpack.c.bf16 %v7295, %v7291
        %v7352 = vpack.c.bf16 %v7296, %v7292
        %v7353 = vpack.c.bf16 %v7301, %v7297
        %v7354 = vpack.c.bf16 %v7302, %v7298
        %v7355 = vpack.c.bf16 %v7303, %v7299
        %v7356 = vpack.c.bf16 %v7304, %v7300
        %v7357 = vpack.c.bf16 %v7309, %v7305
        %v7358 = vpack.c.bf16 %v7310, %v7306
        %v7359 = vpack.c.bf16 %v7311, %v7307
        %v7360 = vpack.c.bf16 %v7312, %v7308
        %v7361 = vpack.c.bf16 %v7317, %v7313
        %v7362 = vpack.c.bf16 %v7318, %v7314
        %v7363 = vpack.c.bf16 %v7319, %v7315
        %v7364 = vpack.c.bf16 %v7320, %v7316
        %v7365 = vpack.c.bf16 %v7325, %v7321
        %v7366 = vpack.c.bf16 %v7326, %v7322
        %v7367 = vpack.c.bf16 %v7327, %v7323
        %v7368 = vpack.c.bf16 %v7328, %v7324
        %v7369 = vpack.c.bf16 %v7333, %v7329
        %v7370 = vpack.c.bf16 %v7334, %v7330
        %v7371 = vpack.c.bf16 %v7335, %v7331
        %v7372 = vpack.c.bf16 %v7336, %v7332
        %v7373 = vpack.c.bf16 %v7341, %v7337
        %v7374 = vpack.c.bf16 %v7342, %v7338
        %v7375 = vpack.c.bf16 %v7343, %v7339
        %v7376 = vpack.c.bf16 %v7344, %v7340
        %v7377 = vld [vmem:[#allocation16] sm:$0xff]
        %v7378 = vld [vmem:[#allocation16 + $0x8] sm:$0xff]
        %v7379 = vld [vmem:[#allocation16 + $0x10] sm:$0xff]
        %v7380 = vld [vmem:[#allocation16 + $0x18] sm:$0xff]
        %v7381 = vld [vmem:[#allocation16 + $0x20] sm:$0xff]
        %v7382 = vld [vmem:[#allocation16 + $0x28] sm:$0xff]
        %v7383 = vld [vmem:[#allocation16 + $0x30] sm:$0xff]
        %v7384 = vld [vmem:[#allocation16 + $0x38] sm:$0xff]
        %v7385 = vld [vmem:[#allocation16 + $0x40] sm:$0xff]
        %v7386 = vld [vmem:[#allocation16 + $0x48] sm:$0xff]
        %v7387 = vld [vmem:[#allocation16 + $0x50] sm:$0xff]
        %v7388 = vld [vmem:[#allocation16 + $0x58] sm:$0xff]
        %v7389 = vld [vmem:[#allocation16 + $0x60] sm:$0xff]
        %v7390 = vld [vmem:[#allocation16 + $0x68] sm:$0xff]
        %v7391 = vld [vmem:[#allocation16 + $0x70] sm:$0xff]
        %v7392 = vld [vmem:[#allocation16 + $0x78] sm:$0xff]
        %v7393 = vld [vmem:[#allocation16 + $0x80] sm:$0xff]
        %v7394 = vld [vmem:[#allocation16 + $0x88] sm:$0xff]
        %v7395 = vld [vmem:[#allocation16 + $0x90] sm:$0xff]
        %v7396 = vld [vmem:[#allocation16 + $0x98] sm:$0xff]
        %v7397 = vld [vmem:[#allocation16 + $0xa0] sm:$0xff]
        %v7398 = vld [vmem:[#allocation16 + $0xa8] sm:$0xff]
        %v7399 = vld [vmem:[#allocation16 + $0xb0] sm:$0xff]
        %v7400 = vld [vmem:[#allocation16 + $0xb8] sm:$0xff]
        %v7401 = vld [vmem:[#allocation16 + $0xc0] sm:$0xff]
        %v7402 = vld [vmem:[#allocation16 + $0xc8] sm:$0xff]
        %v7403 = vld [vmem:[#allocation16 + $0xd0] sm:$0xff]
        %v7404 = vld [vmem:[#allocation16 + $0xd8] sm:$0xff]
        %v7405 = vld [vmem:[#allocation16 + $0xe0] sm:$0xff]
        %v7406 = vld [vmem:[#allocation16 + $0xe8] sm:$0xff]
        %v7407 = vld [vmem:[#allocation16 + $0xf0] sm:$0xff]
        %v7408 = vld [vmem:[#allocation16 + $0xf8] sm:$0xff]
        %v7409 = vld [vmem:[#allocation16 + $0x100] sm:$0xff]
        %v7410 = vld [vmem:[#allocation16 + $0x108] sm:$0xff]
        %v7411 = vld [vmem:[#allocation16 + $0x110] sm:$0xff]
        %v7412 = vld [vmem:[#allocation16 + $0x118] sm:$0xff]
        %v7413 = vld [vmem:[#allocation16 + $0x120] sm:$0xff]
        %v7414 = vld [vmem:[#allocation16 + $0x128] sm:$0xff]
        %v7415 = vld [vmem:[#allocation16 + $0x130] sm:$0xff]
        %v7416 = vld [vmem:[#allocation16 + $0x138] sm:$0xff]
        %v7417 = vld [vmem:[#allocation16 + $0x140] sm:$0xff]
        %v7418 = vld [vmem:[#allocation16 + $0x148] sm:$0xff]
        %v7419 = vld [vmem:[#allocation16 + $0x150] sm:$0xff]
        %v7420 = vld [vmem:[#allocation16 + $0x158] sm:$0xff]
        %v7421 = vld [vmem:[#allocation16 + $0x160] sm:$0xff]
        %v7422 = vld [vmem:[#allocation16 + $0x168] sm:$0xff]
        %v7423 = vld [vmem:[#allocation16 + $0x170] sm:$0xff]
        %v7424 = vld [vmem:[#allocation16 + $0x178] sm:$0xff]
        %v7425 = vld [vmem:[#allocation16 + $0x180] sm:$0xff]
        %v7426 = vld [vmem:[#allocation16 + $0x188] sm:$0xff]
        %v7427 = vld [vmem:[#allocation16 + $0x190] sm:$0xff]
        %v7428 = vld [vmem:[#allocation16 + $0x198] sm:$0xff]
        %v7429 = vld [vmem:[#allocation16 + $0x1a0] sm:$0xff]
        %v7430 = vld [vmem:[#allocation16 + $0x1a8] sm:$0xff]
        %v7431 = vld [vmem:[#allocation16 + $0x1b0] sm:$0xff]
        %v7432 = vld [vmem:[#allocation16 + $0x1b8] sm:$0xff]
        %v7433 = vld [vmem:[#allocation16 + $0x1c0] sm:$0xff]
        %v7434 = vld [vmem:[#allocation16 + $0x1c8] sm:$0xff]
        %v7435 = vld [vmem:[#allocation16 + $0x1d0] sm:$0xff]
        %v7436 = vld [vmem:[#allocation16 + $0x1d8] sm:$0xff]
        %v7437 = vld [vmem:[#allocation16 + $0x1e0] sm:$0xff]
        %v7438 = vld [vmem:[#allocation16 + $0x1e8] sm:$0xff]
        %v7439 = vld [vmem:[#allocation16 + $0x1f0] sm:$0xff]
        %v7440 = vld [vmem:[#allocation16 + $0x1f8] sm:$0xff]
        %v7505 = vunpack.c.l.b16 %v7377
        %v7506 = vunpack.c.h.b16 %v7377
        %v7507 = vunpack.c.l.b16 %v7378
        %v7508 = vunpack.c.h.b16 %v7378
        %v7509 = vunpack.c.l.b16 %v7379
        %v7510 = vunpack.c.h.b16 %v7379
        %v7511 = vunpack.c.l.b16 %v7380
        %v7512 = vunpack.c.h.b16 %v7380
        %v7513 = vunpack.c.l.b16 %v7381
        %v7514 = vunpack.c.h.b16 %v7381
        %v7515 = vunpack.c.l.b16 %v7382
        %v7516 = vunpack.c.h.b16 %v7382
        %v7517 = vunpack.c.l.b16 %v7383
        %v7518 = vunpack.c.h.b16 %v7383
        %v7519 = vunpack.c.l.b16 %v7384
        %v7520 = vunpack.c.h.b16 %v7384
        %v7521 = vunpack.c.l.b16 %v7385
        %v7522 = vunpack.c.h.b16 %v7385
        %v7523 = vunpack.c.l.b16 %v7386
        %v7524 = vunpack.c.h.b16 %v7386
        %v7525 = vunpack.c.l.b16 %v7387
        %v7526 = vunpack.c.h.b16 %v7387
        %v7527 = vunpack.c.l.b16 %v7388
        %v7528 = vunpack.c.h.b16 %v7388
        %v7529 = vunpack.c.l.b16 %v7389
        %v7530 = vunpack.c.h.b16 %v7389
        %v7531 = vunpack.c.l.b16 %v7390
        %v7532 = vunpack.c.h.b16 %v7390
        %v7533 = vunpack.c.l.b16 %v7391
        %v7534 = vunpack.c.h.b16 %v7391
        %v7535 = vunpack.c.l.b16 %v7392
        %v7536 = vunpack.c.h.b16 %v7392
        %v7537 = vunpack.c.l.b16 %v7393
        %v7538 = vunpack.c.h.b16 %v7393
        %v7539 = vunpack.c.l.b16 %v7394
        %v7540 = vunpack.c.h.b16 %v7394
        %v7541 = vunpack.c.l.b16 %v7395
        %v7542 = vunpack.c.h.b16 %v7395
        %v7543 = vunpack.c.l.b16 %v7396
        %v7544 = vunpack.c.h.b16 %v7396
        %v7545 = vunpack.c.l.b16 %v7397
        %v7546 = vunpack.c.h.b16 %v7397
        %v7547 = vunpack.c.l.b16 %v7398
        %v7548 = vunpack.c.h.b16 %v7398
        %v7549 = vunpack.c.l.b16 %v7399
        %v7550 = vunpack.c.h.b16 %v7399
        %v7551 = vunpack.c.l.b16 %v7400
        %v7552 = vunpack.c.h.b16 %v7400
        %v7553 = vunpack.c.l.b16 %v7401
        %v7554 = vunpack.c.h.b16 %v7401
        %v7555 = vunpack.c.l.b16 %v7402
        %v7556 = vunpack.c.h.b16 %v7402
        %v7557 = vunpack.c.l.b16 %v7403
        %v7558 = vunpack.c.h.b16 %v7403
        %v7559 = vunpack.c.l.b16 %v7404
        %v7560 = vunpack.c.h.b16 %v7404
        %v7561 = vunpack.c.l.b16 %v7405
        %v7562 = vunpack.c.h.b16 %v7405
        %v7563 = vunpack.c.l.b16 %v7406
        %v7564 = vunpack.c.h.b16 %v7406
        %v7565 = vunpack.c.l.b16 %v7407
        %v7566 = vunpack.c.h.b16 %v7407
        %v7567 = vunpack.c.l.b16 %v7408
        %v7568 = vunpack.c.h.b16 %v7408
        %v7569 = vunpack.c.l.b16 %v7409
        %v7570 = vunpack.c.h.b16 %v7409
        %v7571 = vunpack.c.l.b16 %v7410
        %v7572 = vunpack.c.h.b16 %v7410
        %v7573 = vunpack.c.l.b16 %v7411
        %v7574 = vunpack.c.h.b16 %v7411
        %v7575 = vunpack.c.l.b16 %v7412
        %v7576 = vunpack.c.h.b16 %v7412
        %v7577 = vunpack.c.l.b16 %v7413
        %v7578 = vunpack.c.h.b16 %v7413
        %v7579 = vunpack.c.l.b16 %v7414
        %v7580 = vunpack.c.h.b16 %v7414
        %v7581 = vunpack.c.l.b16 %v7415
        %v7582 = vunpack.c.h.b16 %v7415
        %v7583 = vunpack.c.l.b16 %v7416
        %v7584 = vunpack.c.h.b16 %v7416
        %v7585 = vunpack.c.l.b16 %v7417
        %v7586 = vunpack.c.h.b16 %v7417
        %v7587 = vunpack.c.l.b16 %v7418
        %v7588 = vunpack.c.h.b16 %v7418
        %v7589 = vunpack.c.l.b16 %v7419
        %v7590 = vunpack.c.h.b16 %v7419
        %v7591 = vunpack.c.l.b16 %v7420
        %v7592 = vunpack.c.h.b16 %v7420
        %v7593 = vunpack.c.l.b16 %v7421
        %v7594 = vunpack.c.h.b16 %v7421
        %v7595 = vunpack.c.l.b16 %v7422
        %v7596 = vunpack.c.h.b16 %v7422
        %v7597 = vunpack.c.l.b16 %v7423
        %v7598 = vunpack.c.h.b16 %v7423
        %v7599 = vunpack.c.l.b16 %v7424
        %v7600 = vunpack.c.h.b16 %v7424
        %v7601 = vunpack.c.l.b16 %v7425
        %v7602 = vunpack.c.h.b16 %v7425
        %v7603 = vunpack.c.l.b16 %v7426
        %v7604 = vunpack.c.h.b16 %v7426
        %v7605 = vunpack.c.l.b16 %v7427
        %v7606 = vunpack.c.h.b16 %v7427
        %v7607 = vunpack.c.l.b16 %v7428
        %v7608 = vunpack.c.h.b16 %v7428
        %v7609 = vunpack.c.l.b16 %v7429
        %v7610 = vunpack.c.h.b16 %v7429
        %v7611 = vunpack.c.l.b16 %v7430
        %v7612 = vunpack.c.h.b16 %v7430
        %v7613 = vunpack.c.l.b16 %v7431
        %v7614 = vunpack.c.h.b16 %v7431
        %v7615 = vunpack.c.l.b16 %v7432
        %v7616 = vunpack.c.h.b16 %v7432
        %v7617 = vunpack.c.l.b16 %v7433
        %v7618 = vunpack.c.h.b16 %v7433
        %v7619 = vunpack.c.l.b16 %v7434
        %v7620 = vunpack.c.h.b16 %v7434
        %v7621 = vunpack.c.l.b16 %v7435
        %v7622 = vunpack.c.h.b16 %v7435
        %v7623 = vunpack.c.l.b16 %v7436
        %v7624 = vunpack.c.h.b16 %v7436
        %v7625 = vunpack.c.l.b16 %v7437
        %v7626 = vunpack.c.h.b16 %v7437
        %v7627 = vunpack.c.l.b16 %v7438
        %v7628 = vunpack.c.h.b16 %v7438
        %v7629 = vunpack.c.l.b16 %v7439
        %v7630 = vunpack.c.h.b16 %v7439
        %v7631 = vunpack.c.l.b16 %v7440
        %v7632 = vunpack.c.h.b16 %v7440
        %v7633 = vpack.c.b16 %v7507, %v7505
        %v7634 = vpack.c.b16 %v7508, %v7506
        %v7635 = vpack.c.b16 %v7511, %v7509
        %v7636 = vpack.c.b16 %v7512, %v7510
        %v7637 = vpack.c.b16 %v7515, %v7513
        %v7638 = vpack.c.b16 %v7516, %v7514
        %v7639 = vpack.c.b16 %v7519, %v7517
        %v7640 = vpack.c.b16 %v7520, %v7518
        %v7641 = vpack.c.b16 %v7523, %v7521
        %v7642 = vpack.c.b16 %v7524, %v7522
        %v7643 = vpack.c.b16 %v7527, %v7525
        %v7644 = vpack.c.b16 %v7528, %v7526
        %v7645 = vpack.c.b16 %v7531, %v7529
        %v7646 = vpack.c.b16 %v7532, %v7530
        %v7647 = vpack.c.b16 %v7535, %v7533
        %v7648 = vpack.c.b16 %v7536, %v7534
        %v7649 = vpack.c.b16 %v7539, %v7537
        %v7650 = vpack.c.b16 %v7540, %v7538
        %v7651 = vpack.c.b16 %v7543, %v7541
        %v7652 = vpack.c.b16 %v7544, %v7542
        %v7653 = vpack.c.b16 %v7547, %v7545
        %v7654 = vpack.c.b16 %v7548, %v7546
        %v7655 = vpack.c.b16 %v7551, %v7549
        %v7656 = vpack.c.b16 %v7552, %v7550
        %v7657 = vpack.c.b16 %v7555, %v7553
        %v7658 = vpack.c.b16 %v7556, %v7554
        %v7659 = vpack.c.b16 %v7559, %v7557
        %v7660 = vpack.c.b16 %v7560, %v7558
        %v7661 = vpack.c.b16 %v7563, %v7561
        %v7662 = vpack.c.b16 %v7564, %v7562
        %v7663 = vpack.c.b16 %v7567, %v7565
        %v7664 = vpack.c.b16 %v7568, %v7566
        %v7665 = vpack.c.b16 %v7571, %v7569
        %v7666 = vpack.c.b16 %v7572, %v7570
        %v7667 = vpack.c.b16 %v7575, %v7573
        %v7668 = vpack.c.b16 %v7576, %v7574
        %v7669 = vpack.c.b16 %v7579, %v7577
        %v7670 = vpack.c.b16 %v7580, %v7578
        %v7671 = vpack.c.b16 %v7583, %v7581
        %v7672 = vpack.c.b16 %v7584, %v7582
        %v7673 = vpack.c.b16 %v7587, %v7585
        %v7674 = vpack.c.b16 %v7588, %v7586
        %v7675 = vpack.c.b16 %v7591, %v7589
        %v7676 = vpack.c.b16 %v7592, %v7590
        %v7677 = vpack.c.b16 %v7595, %v7593
        %v7678 = vpack.c.b16 %v7596, %v7594
        %v7679 = vpack.c.b16 %v7599, %v7597
        %v7680 = vpack.c.b16 %v7600, %v7598
        %v7681 = vpack.c.b16 %v7603, %v7601
        %v7682 = vpack.c.b16 %v7604, %v7602
        %v7683 = vpack.c.b16 %v7607, %v7605
        %v7684 = vpack.c.b16 %v7608, %v7606
        %v7685 = vpack.c.b16 %v7611, %v7609
        %v7686 = vpack.c.b16 %v7612, %v7610
        %v7687 = vpack.c.b16 %v7615, %v7613
        %v7688 = vpack.c.b16 %v7616, %v7614
        %v7689 = vpack.c.b16 %v7619, %v7617
        %v7690 = vpack.c.b16 %v7620, %v7618
        %v7691 = vpack.c.b16 %v7623, %v7621
        %v7692 = vpack.c.b16 %v7624, %v7622
        %v7693 = vpack.c.b16 %v7627, %v7625
        %v7694 = vpack.c.b16 %v7628, %v7626
        %v7695 = vpack.c.b16 %v7631, %v7629
        %v7696 = vpack.c.b16 %v7632, %v7630
        %7761 = vmatprep.subr.bf16.mxu0 %v7648
        %7762 = vmatpush1.bf16.msra.mxu0 %v7647
        %7763 = vmatprep.subr.bf16.mxu0 %v7646
        %7764 = vmatpush1.bf16.msra.mxu0 %v7645
        %7765 = vmatprep.subr.bf16.mxu0 %v7644
        %7766 = vmatpush1.bf16.msra.mxu0 %v7643
        %7767 = vmatprep.subr.bf16.mxu0 %v7642
        %7768 = vmatpush1.bf16.msra.mxu0 %v7641
        %7769 = vmatprep.subr.bf16.mxu0 %v7640
        %7770 = vmatpush1.bf16.msra.mxu0 %v7639
        %7771 = vmatprep.subr.bf16.mxu0 %v7638
        %7772 = vmatpush1.bf16.msra.mxu0 %v7637
        %7773 = vmatprep.subr.bf16.mxu0 %v7636
        %7774 = vmatpush1.bf16.msra.mxu0 %v7635
        %7775 = vmatprep.subr.bf16.mxu0 %v7634
        %7776 = vmatpush1.bf16.msra.mxu0 %v7633
        %7777 = vmatprep.subr.bf16.mxu0 %v7664
        %7778 = vmatpush2.bf16.msra.mxu0 %v7663
        %7779 = vmatprep.subr.bf16.mxu0 %v7662
        %7780 = vmatpush2.bf16.msra.mxu0 %v7661
        %7781 = vmatprep.subr.bf16.mxu0 %v7660
        %7782 = vmatpush2.bf16.msra.mxu0 %v7659
        %7783 = vmatprep.subr.bf16.mxu0 %v7658
        %7784 = vmatpush2.bf16.msra.mxu0 %v7657
        %7785 = vmatprep.subr.bf16.mxu0 %v7656
        %7786 = vmatpush2.bf16.msra.mxu0 %v7655
        %7787 = vmatprep.subr.bf16.mxu0 %v7654
        %7788 = vmatpush2.bf16.msra.mxu0 %v7653
        %7789 = vmatprep.subr.bf16.mxu0 %v7652
        %7790 = vmatpush2.bf16.msra.mxu0 %v7651
        %7791 = vmatprep.subr.bf16.mxu0 %v7650
        %7792 = vmatpush2.bf16.msra.mxu0 %v7649
        %7793 = vmatprep.mubr.bf16.mxu0 %v7346
        %7794 = vmatmul.mubr.bf16.gmra.mxu0 %v7345
        %v7795 = vpop.f32.mrf.mxu0
        %v7796 = vadd.f32 0.0, %v7795
        %v7797 = vpop.f32.mrf.mxu0
        %v7798 = vadd.f32 0.0, %v7797
        %v7799 = vpop.f32.mrf.mxu0
        %v7800 = vadd.f32 0.0, %v7799
        %v7801 = vpop.f32.mrf.mxu0
        %v7802 = vadd.f32 0.0, %v7801
        %7803 = vmatprep.mubr.bf16.mxu0 %v7350
        %7804 = vmatmul.mubr.bf16.gmra.mxu0 %v7349
        %v7805 = vpop.f32.mrf.mxu0
        %v7806 = vadd.f32 0.0, %v7805
        %v7807 = vpop.f32.mrf.mxu0
        %v7808 = vadd.f32 0.0, %v7807
        %v7809 = vpop.f32.mrf.mxu0
        %v7810 = vadd.f32 0.0, %v7809
        %v7811 = vpop.f32.mrf.mxu0
        %v7812 = vadd.f32 0.0, %v7811
        %7813 = vmatprep.mubr.bf16.mxu0 %v7354
        %7814 = vmatmul.mubr.bf16.gmra.mxu0 %v7353
        %v7815 = vpop.f32.mrf.mxu0
        %v7816 = vadd.f32 0.0, %v7815
        %v7817 = vpop.f32.mrf.mxu0
        %v7818 = vadd.f32 0.0, %v7817
        %v7819 = vpop.f32.mrf.mxu0
        %v7820 = vadd.f32 0.0, %v7819
        %v7821 = vpop.f32.mrf.mxu0
        %v7822 = vadd.f32 0.0, %v7821
        %7823 = vmatprep.mubr.bf16.mxu0 %v7358
        %7824 = vmatmul.mubr.bf16.gmra.mxu0 %v7357
        %v7825 = vpop.f32.mrf.mxu0
        %v7826 = vadd.f32 0.0, %v7825
        %v7827 = vpop.f32.mrf.mxu0
        %v7828 = vadd.f32 0.0, %v7827
        %v7829 = vpop.f32.mrf.mxu0
        %v7830 = vadd.f32 0.0, %v7829
        %v7831 = vpop.f32.mrf.mxu0
        %v7832 = vadd.f32 0.0, %v7831
        %7833 = vmatprep.mubr.bf16.mxu0 %v7362
        %7834 = vmatmul.mubr.bf16.gmra.mxu0 %v7361
        %v7835 = vpop.f32.mrf.mxu0
        %v7836 = vadd.f32 0.0, %v7835
        %v7837 = vpop.f32.mrf.mxu0
        %v7838 = vadd.f32 0.0, %v7837
        %v7839 = vpop.f32.mrf.mxu0
        %v7840 = vadd.f32 0.0, %v7839
        %v7841 = vpop.f32.mrf.mxu0
        %v7842 = vadd.f32 0.0, %v7841
        %7843 = vmatprep.mubr.bf16.mxu0 %v7366
        %7844 = vmatmul.mubr.bf16.gmra.mxu0 %v7365
        %v7845 = vpop.f32.mrf.mxu0
        %v7846 = vadd.f32 0.0, %v7845
        %v7847 = vpop.f32.mrf.mxu0
        %v7848 = vadd.f32 0.0, %v7847
        %v7849 = vpop.f32.mrf.mxu0
        %v7850 = vadd.f32 0.0, %v7849
        %v7851 = vpop.f32.mrf.mxu0
        %v7852 = vadd.f32 0.0, %v7851
        %7853 = vmatprep.mubr.bf16.mxu0 %v7370
        %7854 = vmatmul.mubr.bf16.gmra.mxu0 %v7369
        %v7855 = vpop.f32.mrf.mxu0
        %v7856 = vadd.f32 0.0, %v7855
        %v7857 = vpop.f32.mrf.mxu0
        %v7858 = vadd.f32 0.0, %v7857
        %v7859 = vpop.f32.mrf.mxu0
        %v7860 = vadd.f32 0.0, %v7859
        %v7861 = vpop.f32.mrf.mxu0
        %v7862 = vadd.f32 0.0, %v7861
        %7863 = vmatprep.mubr.bf16.mxu0 %v7374
        %7864 = vmatmul.mubr.bf16.gmra.mxu0 %v7373
        %v7865 = vpop.f32.mrf.mxu0
        %v7866 = vadd.f32 0.0, %v7865
        %v7867 = vpop.f32.mrf.mxu0
        %v7868 = vadd.f32 0.0, %v7867
        %v7869 = vpop.f32.mrf.mxu0
        %v7870 = vadd.f32 0.0, %v7869
        %v7871 = vpop.f32.mrf.mxu0
        %v7872 = vadd.f32 0.0, %v7871
        %7873 = vdwg.mxu0
        %7874 = vmatprep.subr.bf16.mxu0 %v7680
        %7875 = vmatpush1.bf16.msra.mxu0 %v7679
        %7876 = vmatprep.subr.bf16.mxu0 %v7678
        %7877 = vmatpush1.bf16.msra.mxu0 %v7677
        %7878 = vmatprep.subr.bf16.mxu0 %v7676
        %7879 = vmatpush1.bf16.msra.mxu0 %v7675
        %7880 = vmatprep.subr.bf16.mxu0 %v7674
        %7881 = vmatpush1.bf16.msra.mxu0 %v7673
        %7882 = vmatprep.subr.bf16.mxu0 %v7672
        %7883 = vmatpush1.bf16.msra.mxu0 %v7671
        %7884 = vmatprep.subr.bf16.mxu0 %v7670
        %7885 = vmatpush1.bf16.msra.mxu0 %v7669
        %7886 = vmatprep.subr.bf16.mxu0 %v7668
        %7887 = vmatpush1.bf16.msra.mxu0 %v7667
        %7888 = vmatprep.subr.bf16.mxu0 %v7666
        %7889 = vmatpush1.bf16.msra.mxu0 %v7665
        %7890 = vmatprep.subr.bf16.mxu0 %v7696
        %7891 = vmatpush2.bf16.msra.mxu0 %v7695
        %7892 = vmatprep.subr.bf16.mxu0 %v7694
        %7893 = vmatpush2.bf16.msra.mxu0 %v7693
        %7894 = vmatprep.subr.bf16.mxu0 %v7692
        %7895 = vmatpush2.bf16.msra.mxu0 %v7691
        %7896 = vmatprep.subr.bf16.mxu0 %v7690
        %7897 = vmatpush2.bf16.msra.mxu0 %v7689
        %7898 = vmatprep.subr.bf16.mxu0 %v7688
        %7899 = vmatpush2.bf16.msra.mxu0 %v7687
        %7900 = vmatprep.subr.bf16.mxu0 %v7686
        %7901 = vmatpush2.bf16.msra.mxu0 %v7685
        %7902 = vmatprep.subr.bf16.mxu0 %v7684
        %7903 = vmatpush2.bf16.msra.mxu0 %v7683
        %7904 = vmatprep.subr.bf16.mxu0 %v7682
        %7905 = vmatpush2.bf16.msra.mxu0 %v7681
        %7906 = vmatprep.mubr.bf16.mxu0 %v7348
        %7907 = vmatmul.mubr.bf16.gmra.mxu0 %v7347
        %v7908 = vpop.f32.mrf.mxu0
        %v7909 = vadd.f32 %v7796, %v7908
        %v7910 = vpop.f32.mrf.mxu0
        %v7911 = vadd.f32 %v7798, %v7910
        %v7912 = vpop.f32.mrf.mxu0
        %v7913 = vadd.f32 %v7800, %v7912
        %v7914 = vpop.f32.mrf.mxu0
        %v7915 = vadd.f32 %v7802, %v7914
        %7916 = vmatprep.mubr.bf16.mxu0 %v7352
        %7917 = vmatmul.mubr.bf16.gmra.mxu0 %v7351
        %v7918 = vpop.f32.mrf.mxu0
        %v7919 = vadd.f32 %v7806, %v7918
        %v7920 = vpop.f32.mrf.mxu0
        %v7921 = vadd.f32 %v7808, %v7920
        %v7922 = vpop.f32.mrf.mxu0
        %v7923 = vadd.f32 %v7810, %v7922
        %v7924 = vpop.f32.mrf.mxu0
        %v7925 = vadd.f32 %v7812, %v7924
        %7926 = vmatprep.mubr.bf16.mxu0 %v7356
        %7927 = vmatmul.mubr.bf16.gmra.mxu0 %v7355
        %v7928 = vpop.f32.mrf.mxu0
        %v7929 = vadd.f32 %v7816, %v7928
        %v7930 = vpop.f32.mrf.mxu0
        %v7931 = vadd.f32 %v7818, %v7930
        %v7932 = vpop.f32.mrf.mxu0
        %v7933 = vadd.f32 %v7820, %v7932
        %v7934 = vpop.f32.mrf.mxu0
        %v7935 = vadd.f32 %v7822, %v7934
        %7936 = vmatprep.mubr.bf16.mxu0 %v7360
        %7937 = vmatmul.mubr.bf16.gmra.mxu0 %v7359
        %v7938 = vpop.f32.mrf.mxu0
        %v7939 = vadd.f32 %v7826, %v7938
        %v7940 = vpop.f32.mrf.mxu0
        %v7941 = vadd.f32 %v7828, %v7940
        %v7942 = vpop.f32.mrf.mxu0
        %v7943 = vadd.f32 %v7830, %v7942
        %v7944 = vpop.f32.mrf.mxu0
        %v7945 = vadd.f32 %v7832, %v7944
        %7946 = vmatprep.mubr.bf16.mxu0 %v7364
        %7947 = vmatmul.mubr.bf16.gmra.mxu0 %v7363
        %v7948 = vpop.f32.mrf.mxu0
        %v7949 = vadd.f32 %v7836, %v7948
        %v7950 = vpop.f32.mrf.mxu0
        %v7951 = vadd.f32 %v7838, %v7950
        %v7952 = vpop.f32.mrf.mxu0
        %v7953 = vadd.f32 %v7840, %v7952
        %v7954 = vpop.f32.mrf.mxu0
        %v7955 = vadd.f32 %v7842, %v7954
        %7956 = vmatprep.mubr.bf16.mxu0 %v7368
        %7957 = vmatmul.mubr.bf16.gmra.mxu0 %v7367
        %v7958 = vpop.f32.mrf.mxu0
        %v7959 = vadd.f32 %v7846, %v7958
        %v7960 = vpop.f32.mrf.mxu0
        %v7961 = vadd.f32 %v7848, %v7960
        %v7962 = vpop.f32.mrf.mxu0
        %v7963 = vadd.f32 %v7850, %v7962
        %v7964 = vpop.f32.mrf.mxu0
        %v7965 = vadd.f32 %v7852, %v7964
        %7966 = vmatprep.mubr.bf16.mxu0 %v7372
        %7967 = vmatmul.mubr.bf16.gmra.mxu0 %v7371
        %v7968 = vpop.f32.mrf.mxu0
        %v7969 = vadd.f32 %v7856, %v7968
        %v7970 = vpop.f32.mrf.mxu0
        %v7971 = vadd.f32 %v7858, %v7970
        %v7972 = vpop.f32.mrf.mxu0
        %v7973 = vadd.f32 %v7860, %v7972
        %v7974 = vpop.f32.mrf.mxu0
        %v7975 = vadd.f32 %v7862, %v7974
        %7976 = vmatprep.mubr.bf16.mxu0 %v7376
        %7977 = vmatmul.mubr.bf16.gmra.mxu0 %v7375
        %v7978 = vpop.f32.mrf.mxu0
        %v7979 = vadd.f32 %v7866, %v7978
        %v7980 = vpop.f32.mrf.mxu0
        %v7981 = vadd.f32 %v7868, %v7980
        %v7982 = vpop.f32.mrf.mxu0
        %v7983 = vadd.f32 %v7870, %v7982
        %v7984 = vpop.f32.mrf.mxu0
        %v7985 = vadd.f32 %v7872, %v7984
        %7986 = vdwg.mxu0
        %7987 = vst [vmem:[%s551] sm:$0xff] %v7909
        %7988 = vst [vmem:[%s551 + $0x8] sm:$0xff] %v7911
        %7989 = vst [vmem:[%s551 + $0x10] sm:$0xff] %v7913
        %7990 = vst [vmem:[%s551 + $0x18] sm:$0xff] %v7915
        %7991 = vst [vmem:[%s551 + $0x20] sm:$0xff] %v7919
        %7992 = vst [vmem:[%s551 + $0x28] sm:$0xff] %v7921
        %7993 = vst [vmem:[%s551 + $0x30] sm:$0xff] %v7923
        %7994 = vst [vmem:[%s551 + $0x38] sm:$0xff] %v7925
        %7995 = vst [vmem:[%s551 + $0x40] sm:$0xff] %v7929
        %7996 = vst [vmem:[%s551 + $0x48] sm:$0xff] %v7931
        %7997 = vst [vmem:[%s551 + $0x50] sm:$0xff] %v7933
        %7998 = vst [vmem:[%s551 + $0x58] sm:$0xff] %v7935
        %7999 = vst [vmem:[%s551 + $0x60] sm:$0xff] %v7939
        %8000 = vst [vmem:[%s551 + $0x68] sm:$0xff] %v7941
        %8001 = vst [vmem:[%s551 + $0x70] sm:$0xff] %v7943
        %8002 = vst [vmem:[%s551 + $0x78] sm:$0xff] %v7945
        %8003 = vst [vmem:[%s551 + $0x80] sm:$0xff] %v7949
        %8004 = vst [vmem:[%s551 + $0x88] sm:$0xff] %v7951
        %8005 = vst [vmem:[%s551 + $0x90] sm:$0xff] %v7953
        %8006 = vst [vmem:[%s551 + $0x98] sm:$0xff] %v7955
        %8007 = vst [vmem:[%s551 + $0xa0] sm:$0xff] %v7959
        %8008 = vst [vmem:[%s551 + $0xa8] sm:$0xff] %v7961
        %8009 = vst [vmem:[%s551 + $0xb0] sm:$0xff] %v7963
        %8010 = vst [vmem:[%s551 + $0xb8] sm:$0xff] %v7965
        %8011 = vst [vmem:[%s551 + $0xc0] sm:$0xff] %v7969
        %8012 = vst [vmem:[%s551 + $0xc8] sm:$0xff] %v7971
        %8013 = vst [vmem:[%s551 + $0xd0] sm:$0xff] %v7973
        %8014 = vst [vmem:[%s551 + $0xd8] sm:$0xff] %v7975
        %8015 = vst [vmem:[%s551 + $0xe0] sm:$0xff] %v7979
        %8016 = vst [vmem:[%s551 + $0xe8] sm:$0xff] %v7981
        %8017 = vst [vmem:[%s551 + $0xf0] sm:$0xff] %v7983
        %8018 = vst [vmem:[%s551 + $0xf8] sm:$0xff] %v7985
        %s8019 = sand.u32 %s281, 1
        %s8020 = scalar_lea.sflag [#allocation4], %s8019
        %s8021 = sand.u32 %s281, 1
        %s8022 = smul.addr %s8021, 256
        %s8023 = scalar_lea.vmem [#allocation17], %s8022
        %s8024 = sand.u32 %s307, 1
        %s8025 = scalar_lea.sflag [#allocation19], %s8024
        %s8026 = sand.u32 %s307, 1
        %s8027 = smul.addr %s8026, 256
        %s8028 = scalar_lea.vmem [#allocation18], %s8027
        // Predicated region
        $region101: #{llama_decoder_layer.1} parent=63 // pred_check
          %p8029 = pneg %p291
        $region102: #{llama_decoder_layer.1} parent=63 // pred_check_branch
          %8031 = sbr.rel (%p8029) target = $region104
        $region103: #{llama_decoder_layer.1} parent=63 // pred_region
          %s8033 = ssub.s32 4096, 4096
          %8034 = vsyncadd %s8020, %s8033
          %s8035 = smul.addr %s37, 32
          %s8036 = smul.addr %s8035, 128
          %s8037 = scalar_lea.hbm %s11, %s8036
          %s8038 = sshll.u32 %s8023, 4
          %s8039 = int_to_ptr.vmem [resolvable:$true] %s8038
          %8044 = dma.vmem_to_hbm [thread:$0]  %s8039, 4096, %s8037, %s8020, 256, 256, 16
        $region104: #{llama_decoder_layer.1} parent=63 // pred_fallthru
          _
        // Predicated region
        $region105: #{llama_decoder_layer.1} parent=63 // pred_check
          %p8045 = pneg %p317
        $region106: #{llama_decoder_layer.1} parent=63 // pred_check_branch
          %8047 = sbr.rel (%p8045) target = $region108
        $region107: #{llama_decoder_layer.1} parent=63 // pred_region
          %s8049 = ssub.s32 4096, 4096
          %8050 = vsyncadd %s8025, %s8049
          %s8051 = smul.addr %s37, 32
          %s8052 = smul.addr %s8051, 128
          %s8053 = scalar_lea.hbm %s12, %s8052
          %s8054 = sshll.u32 %s8028, 4
          %s8055 = int_to_ptr.vmem [resolvable:$true] %s8054
          %8060 = dma.vmem_to_hbm [thread:$0]  %s8055, 4096, %s8053, %s8025, 256, 256, 16
        $region108: #{llama_decoder_layer.1} parent=63 // pred_fallthru
          _
      $region64: #{llama_decoder_layer.1} parent=5 // pred_fallthru
        _
      %p8061 = scmp.le.s32.totalorder 2, %s32
      // Predicated region
      $region109: #{llama_decoder_layer.1} parent=5 // pred_check
        %p8062 = pneg %p8061
      $region110: #{llama_decoder_layer.1} parent=5 // pred_check_branch
        %8064 = sbr.rel (%p8062) target = $region112
      $region111: #{llama_decoder_layer.1} parent=5 // pred_region
        %s8065 = ssub.s32 %s32, 2
        // Predicated region
        $region113: #{llama_decoder_layer.1} parent=111 // pred_check
          %p8066 = pneg %p297
        $region114: #{llama_decoder_layer.1} parent=111 // pred_check_branch
          %8068 = sbr.rel (%p8066) target = $region116
        $region115: #{llama_decoder_layer.1} parent=111 // pred_region
          %s8069 = sand.u32 %s282, 1
          %s8070 = scalar_lea.sflag [#allocation4], %s8069
          %s8071 = sand.u32 %s282, 1
          %s8072 = smul.addr %s8071, 256
          %s8073 = scalar_lea.vmem [#allocation17], %s8072
          %8074 = dma.done %s8070, 4096
        $region116: #{llama_decoder_layer.1} parent=111 // pred_fallthru
          _
        // Predicated region
        $region117: #{llama_decoder_layer.1} parent=111 // pred_check
          %p8075 = pneg %p323
        $region118: #{llama_decoder_layer.1} parent=111 // pred_check_branch
          %8077 = sbr.rel (%p8075) target = $region120
        $region119: #{llama_decoder_layer.1} parent=111 // pred_region
          %s8078 = sand.u32 %s308, 1
          %s8079 = scalar_lea.sflag [#allocation19], %s8078
          %s8080 = sand.u32 %s308, 1
          %s8081 = smul.addr %s8080, 256
          %s8082 = scalar_lea.vmem [#allocation18], %s8081
          %8083 = dma.done %s8079, 4096
        $region120: #{llama_decoder_layer.1} parent=111 // pred_fallthru
          _
      $region112: #{llama_decoder_layer.1} parent=5 // pred_fallthru
        _
    $region6: #{llama_decoder_layer.1} parent=1 // loop_footer
      %s36 = sadd.s32 1, %s32
    $region7: #{llama_decoder_layer.1} parent=1 // loop_footer_branch
      %31 = sbr.rel target = $region3
    $region8: #{llama_decoder_layer.1} parent=1 // loop_exit
      _
    %8084 = vsyncpa [#allocation3], 1
    %s8085 = scalar_lea.sflag [#allocation3], 1
    %8086 = vsyncpa %s8085, 1
    %8087 = vsyncpa [#allocation6], 1
    %8088 = vsyncpa [#allocation9], 1
    %8089 = vsyncpa [#allocation12], 1
    %8090 = vsyncpa [#allocation15], 1
    %8091 = vsyncpa [#allocation4], 1
    %s8092 = scalar_lea.sflag [#allocation4], 1
    %8093 = vsyncpa %s8092, 1
    %8094 = vsyncpa [#allocation19], 1
    %s8095 = scalar_lea.sflag [#allocation19], 1
    %8096 = vsyncpa %s8095, 1

</llo_original>
